<compile_context>
chip_gen: v6e
topology: v6e:2x2x1
jax: 0.10.0
libtpu: 0.0.40
codegen_flags: <defaults>
</compile_context>

<pallas_src>
import jax
import jax.numpy as jnp
from jax import lax
from jax.experimental import pallas as pl
from jax.experimental.pallas import tpu as pltpu


# ----------------------------- config ---------------------------------------
B = 2                 # batch
LATENT = 32           # latent_dim
C_HID = 4             # base_channel_size
C2 = 2 * C_HID        # 8
NUM_IN_CH = 1         # num_input_channels (decoder output channels)
L0 = 2048             # hard-coded by the module (view(..., -1, 2048))
N_LIN = C2 * L0       # 16384
L_OUT = 16 * L0       # 32768 = final length after upsample + 2x stride-2 convT


def _gelu(x):
    # tanh-approx GELU (see TODO above)
    c = 0.7978845608028654  # sqrt(2/pi)
    return 0.5 * x * (1.0 + jnp.tanh(c * (x + 0.044715 * x * x * x)))


# --------------------------- fused decoder kernel ----------------------------
def _decoder_kernel(x_ref, wlin_ref, blin_ref, wc_ref, bc_ref,
                    wt1_ref, b1_ref, wb_ref, b2_ref, o_ref,
                    yrow_ref, s_ref):
    # x_ref   : (1, 1, LATENT) f32
    # wlin_ref: (LATENT, N_LIN) bf16, columns ordered n = c*L0 + l
    # blin_ref: (C2, L0) f32
    # wc_ref  : (3*C2, C2) f32,  rows [Wk0; Wk1; Wk2],  Wk[co,ci] = conv_w[co,ci,k]
    # bc_ref  : (C2, 1) f32
    # wt1_ref : (3*C_HID, C2) f32, rows [Wt0; Wt1; Wt2], Wtk[co,ci] = ct1_w[ci,co,k]
    # b1_ref  : (C_HID, 1) f32
    # wb_ref  : (16, 4*C_HID) f32, phase table over stacked [E; I; Bd; En]
    # b2_ref  : (1, 1) f32
    # o_ref   : (1, 16, L0) f32,  o[0, s, q] = final_output[16*q + s]
    # yrow_ref: VMEM (C2, L0) f32 scratch      (linear-row relayout)
    # s_ref   : VMEM (4*C_HID, L0) f32 scratch (stacked [E;I;Bd;En])
    L = L0

    # ---- Linear(latent -> 16384): single bf16 MXU dot, f32 accumulation ----
    xb = x_ref[0].astype(jnp.bfloat16)                                   # (1, LATENT)
    yflat = jnp.dot(xb, wlin_ref[...], preferred_element_type=jnp.float32)  # (1, N_LIN)
    # relayout the 64 KiB row to (C2, L0) entirely in VMEM (no HBM round trip)
    for c in range(C2):
        yrow_ref[pl.ds(c, 1), :] = yflat[:, c * L0:(c + 1) * L0]
    y = _gelu(yrow_ref[...] + blin_ref[...])                              # (C2, L0)

    # ---- Conv1d(C2->C2, k=3, pad=1): one stacked dot, shift the results ----
    lane8 = lax.broadcasted_iota(jnp.int32, (C2, L), 1)
    r = jnp.dot(wc_ref[...], y, preferred_element_type=jnp.float32)      # (3*C2, L)
    r0 = r[0:C2]            # W0 @ y
    r1 = r[C2:2 * C2]       # W1 @ y
    r2 = r[2 * C2:3 * C2]   # W2 @ y
    r0s = jnp.where(lane8 == 0, 0.0, pltpu.roll(r0, shift=1, axis=1))         # (W0 y)[:, l-1]
    r2s = jnp.where(lane8 == L - 1, 0.0, pltpu.roll(r2, shift=L - 1, axis=1))  # (W2 y)[:, l+1]
    z = r0s + r1 + r2s + bc_ref[...]                                      # (C2, L)

    # ---- ConvTranspose1d #1 (C2->C_HID, k=3, s=2, p=1, op=1) + GELU, with the
    #      x4 nearest upsample folded in; everything stays at length L.
    #      E  = even-phase value, I = interior odd-phase, Bd = odd phase at the
    #      upsample boundary (taps against the next z column).
    t = jnp.dot(wt1_ref[...], z, preferred_element_type=jnp.float32)      # (3*C_HID, L)
    p0 = t[0:C_HID]                 # W0 @ z
    ev = t[C_HID:2 * C_HID]         # W1 @ z
    p2 = t[2 * C_HID:3 * C_HID]     # W2 @ z
    lane4 = lax.broadcasted_iota(jnp.int32, (C_HID, L), 1)
    b1 = b1_ref[...]
    p0n = jnp.where(lane4 == L - 1, 0.0, pltpu.roll(p0, shift=L - 1, axis=1))  # (W0 z)[:, q+1]
    E = _gelu(ev + b1)
    I = _gelu(p0 + p2 + b1)
    Bd = _gelu(p0n + p2 + b1)
    En = jnp.where(lane4 == L - 1, 0.0, pltpu.roll(E, shift=L - 1, axis=1))     # E[:, q+1]

    # ---- ConvTranspose1d #2 (C_HID->1, k=3, s=2, p=1, op=1) + Tanh, fully folded
    #      to length L: one (16,16)x(16,L) dot over the stacked [E; I; Bd; En].
    s_ref[pl.ds(0, C_HID), :] = E
    s_ref[pl.ds(C_HID, C_HID), :] = I
    s_ref[pl.ds(2 * C_HID, C_HID), :] = Bd
    s_ref[pl.ds(3 * C_HID, C_HID), :] = En
    out16 = jnp.dot(wb_ref[...], s_ref[...],
                    preferred_element_type=jnp.float32) + b2_ref[...]      # (16, L)
    o_ref[0] = jnp.tanh(out16)


def fused_decoder(x3, pp):
    Bx = x3.shape[0]
    return pl.pallas_call(
        _decoder_kernel,
        out_shape=jax.ShapeDtypeStruct((Bx, 16, L0), jnp.float32),
        grid=(Bx,),
        in_specs=[
            pl.BlockSpec((1, 1, LATENT), lambda b: (b, 0, 0)),
            pl.BlockSpec((LATENT, N_LIN), lambda b: (0, 0)),
            pl.BlockSpec((C2, L0), lambda b: (0, 0)),
            pl.BlockSpec((3 * C2, C2), lambda b: (0, 0)),
            pl.BlockSpec((C2, 1), lambda b: (0, 0)),
            pl.BlockSpec((3 * C_HID, C2), lambda b: (0, 0)),
            pl.BlockSpec((C_HID, 1), lambda b: (0, 0)),
            pl.BlockSpec((16, 4 * C_HID), lambda b: (0, 0)),
            pl.BlockSpec((1, 1), lambda b: (0, 0)),
        ],
        out_specs=pl.BlockSpec((1, 16, L0), lambda b: (b, 0, 0)),
        scratch_shapes=[
            pltpu.VMEM((C2, L0), jnp.float32),
            pltpu.VMEM((4 * C_HID, L0), jnp.float32),
        ],
        compiler_params=pltpu.CompilerParams(dimension_semantics=("parallel",)),
    )(x3, pp["lin_w"], pp["lin_b2d"], pp["conv_wst"], pp["conv_b"],
      pp["ct1_wst"], pp["ct1_b"], pp["ct2_wb16"], pp["ct2_b"])


# ----------------------------- full decoder ----------------------------------
def decoder_forward(x, pp):
    Bx = x.shape[0]
    o16 = fused_decoder(x.reshape(Bx, 1, LATENT), pp)        # (B, 16, L0)
    # single tiny interleave of the final tensor: out[b, 0, 16q+s] = o16[b, s, q]
    return jnp.transpose(o16, (0, 2, 1)).reshape(Bx, NUM_IN_CH, L_OUT)


# --------------------- one-time parameter preparation ------------------------
def prepare_params(p):
    f32 = jnp.float32
    # Linear: lane-dense (LATENT, N) bf16 (dominant HBM read halved); bias as (C2, L0).
    lin_w = jnp.asarray(p["lin_w"]).T.astype(jnp.bfloat16)                 # (LATENT, N_LIN)
    lin_b2d = jnp.asarray(p["lin_b"], f32).reshape(C2, L0)

    # Conv1d: taps stacked along the output-row axis -> one (24, 8) LHS.
    cw = jnp.asarray(p["conv_w"], f32)                                     # (C2, C2, 3)
    conv_wst = jnp.concatenate([cw[:, :, 0], cw[:, :, 1], cw[:, :, 2]], axis=0)
    conv_b = jnp.asarray(p["conv_b"], f32).reshape(-1, 1)

    # ConvTranspose #1: per-tap (Cout, Cin) matrices stacked -> (12, 8) LHS.
    w1 = jnp.asarray(p["ct1_w"], f32)                                      # (Cin, Cout, 3)
    ct1_wst = jnp.concatenate([w1[:, :, 0].T, w1[:, :, 1].T, w1[:, :, 2].T], axis=0)
    ct1_b = jnp.asarray(p["ct1_b"], f32).reshape(-1, 1)

    # ConvTranspose #2 folded to length L0: (16, 16) phase-combination matrix over
    # the stacked rows [E; I; Bd; E_next].
    w2 = jnp.asarray(p["ct2_w"], f32)[:, 0, :]                             # (C_HID, 3)
    wk = [w2[:, k] for k in range(3)]
    z4 = jnp.zeros((C_HID,), f32)
    rows = []
    for s in range(16):
        if s % 2 == 0:                      # even ct2 output: tap k=1
            t = s // 2
            if t == 7:
                e, i_, bd, en = z4, z4, wk[1], z4
            elif t % 2 == 0:
                e, i_, bd, en = wk[1], z4, z4, z4
            else:
                e, i_, bd, en = z4, wk[1], z4, z4
        else:                               # odd ct2 output: taps k=2 (cur) + k=0 (next)
            t = (s - 1) // 2
            if t in (0, 2, 4):
                e, i_, bd, en = wk[2], wk[0], z4, z4
            elif t in (1, 3, 5):
                e, i_, bd, en = wk[0], wk[2], z4, z4
            elif t == 6:
                e, i_, bd, en = wk[2], z4, wk[0], z4
            else:                           # t == 7
                e, i_, bd, en = z4, z4, wk[2], wk[0]
        rows.append(jnp.concatenate([e, i_, bd, en]))
    ct2_wb16 = jnp.stack(rows)                                             # (16, 16)
    ct2_b = jnp.asarray(p["ct2_b"], f32).reshape(1, 1)

    return {"lin_w": lin_w, "lin_b2d": lin_b2d,
            "conv_wst": conv_wst, "conv_b": conv_b,
            "ct1_wst": ct1_wst, "ct1_b": ct1_b,
            "ct2_wb16": ct2_wb16, "ct2_b": ct2_b}


def init_params(key):
    ks = jax.random.split(key, 8)
    s = 0.05
    return {
        "lin_w": s * jax.random.normal(ks[0], (N_LIN, LATENT), jnp.float32),   # (out, in)
        "lin_b": s * jax.random.normal(ks[1], (N_LIN,), jnp.float32),
        "conv_w": s * jax.random.normal(ks[2], (C2, C2, 3), jnp.float32),      # (Cout, Cin, k)
        "conv_b": s * jax.random.normal(ks[3], (C2,), jnp.float32),
        "ct1_w": s * jax.random.normal(ks[4], (C2, C_HID, 3), jnp.float32),    # (Cin, Cout, k)
        "ct1_b": s * jax.random.normal(ks[5], (C_HID,), jnp.float32),
        "ct2_w": s * jax.random.normal(ks[6], (C_HID, NUM_IN_CH, 3), jnp.float32),
        "ct2_b": s * jax.random.normal(ks[7], (NUM_IN_CH,), jnp.float32),
    }


# ------------- straightforward JAX reference (validates the folding) ---------
def reference_forward(x, p):
    f32 = jnp.float32
    Bx = x.shape[0]
    # Linear (+ bf16 weight, matching the kernel's storage choice) + GELU
    w = jnp.asarray(p["lin_w"]).astype(jnp.bfloat16)                        # (N, D)
    y = jnp.dot(x.astype(jnp.bfloat16), w.T,
                preferred_element_type=f32) + jnp.asarray(p["lin_b"], f32)
    y = _gelu(y).reshape(Bx, C2, L0)
    # Conv1d(k=3, pad=1)
    cw = jnp.asarray(p["conv_w"], f32)
    cb = jnp.asarray(p["conv_b"], f32)
    yp = jnp.pad(y, ((0, 0), (0, 0), (1, 1)))
    z = (jnp.einsum('oi,bil->bol', cw[:, :, 0], yp[:, :, 0:L0])
         + jnp.einsum('oi,bil->bol', cw[:, :, 1], yp[:, :, 1:L0 + 1])
         + jnp.einsum('oi,bil->bol', cw[:, :, 2], yp[:, :, 2:L0 + 2])
         + cb[None, :, None])
    # Upsample(8192), nearest
    u = jnp.repeat(z, 4, axis=2)

    # ConvTranspose1d(k=3, s=2, p=1, output_padding=1)
    def conv_t(v, w, b):
        nxt = jnp.concatenate([v[:, :, 1:], jnp.zeros_like(v[:, :, :1])], axis=2)
        even = jnp.einsum('io,bil->bol', w[:, :, 1], v)
        odd = (jnp.einsum('io,bil->bol', w[:, :, 2], v)
               + jnp.einsum('io,bil->bol', w[:, :, 0], nxt))
        out = jnp.stack([even, odd], axis=-1).reshape(v.shape[0], w.shape[1],
                                                      2 * v.shape[2])
        return out + b[None, :, None]

    v1 = _gelu(conv_t(u, jnp.asarray(p["ct1_w"], f32), jnp.asarray(p["ct1_b"], f32)))
    v2 = jnp.tanh(conv_t(v1, jnp.asarray(p["ct2_w"], f32), jnp.asarray(p["ct2_b"], f32)))
    return v2


if __name__ == "__main__":
    key = jax.random.PRNGKey(0)
    pkey, xkey = jax.random.split(key)
    params = init_params(pkey)
    pp = prepare_params(params)          # one-time layout/weight prep (outside jit)
    x = jax.random.normal(xkey, (B, LATENT), jnp.float32)

    out = jax.jit(decoder_forward)(x, pp)
    out = jax.block_until_ready(out)
    assert out.shape == (B, NUM_IN_CH, L_OUT), out.shape

    # numerical validation of the upsample / stride-2 phase folding
    ref = jax.block_until_ready(jax.jit(reference_forward)(x, params))
    err = float(jnp.max(jnp.abs(out - ref)))
    assert err < 3e-3, f"max abs error vs reference: {err}"

    print("KERNEL_OK")
</pallas_src>

<mosaic_0001>
module attributes {stable_mosaic.version = 11 : i64} {
  func.func @_decoder_kernel(%arg0: i32, %arg1: memref<1x1x32xf32, #tpu.memory_space<vmem>>, %arg2: memref<32x16384xbf16, #tpu.memory_space<vmem>>, %arg3: memref<8x2048xf32, #tpu.memory_space<vmem>>, %arg4: memref<24x8xf32, #tpu.memory_space<vmem>>, %arg5: memref<8x1xf32, #tpu.memory_space<vmem>>, %arg6: memref<12x8xf32, #tpu.memory_space<vmem>>, %arg7: memref<4x1xf32, #tpu.memory_space<vmem>>, %arg8: memref<16x16xf32, #tpu.memory_space<vmem>>, %arg9: memref<1x1xf32, #tpu.memory_space<vmem>>, %arg10: memref<1x16x2048xf32, #tpu.memory_space<vmem>>, %arg11: memref<8x2048xf32, #tpu.memory_space<vmem>>, %arg12: memref<16x2048xf32, #tpu.memory_space<vmem>>) attributes {dimension_semantics = [#tpu.dimension_semantics<parallel>], iteration_bounds = array<i64: 2>, scalar_prefetch = 0 : i64, scratch_operands = 2 : i64, tpu.core_type = #tpu.core_type<tc>, window_params = [{transform_indices = @transform_0, window_bounds = array<i64: 1, 1, 32>}, {pipeline_mode = #tpu.pipeline_mode<synchronous>, transform_indices = @transform_1, window_bounds = array<i64: 32, 16384>}, {pipeline_mode = #tpu.pipeline_mode<synchronous>, transform_indices = @transform_2, window_bounds = array<i64: 8, 2048>}, {pipeline_mode = #tpu.pipeline_mode<synchronous>, transform_indices = @transform_3, window_bounds = array<i64: 24, 8>}, {pipeline_mode = #tpu.pipeline_mode<synchronous>, transform_indices = @transform_4, window_bounds = array<i64: 8, 1>}, {pipeline_mode = #tpu.pipeline_mode<synchronous>, transform_indices = @transform_5, window_bounds = array<i64: 12, 8>}, {pipeline_mode = #tpu.pipeline_mode<synchronous>, transform_indices = @transform_6, window_bounds = array<i64: 4, 1>}, {pipeline_mode = #tpu.pipeline_mode<synchronous>, transform_indices = @transform_7, window_bounds = array<i64: 16, 16>}, {pipeline_mode = #tpu.pipeline_mode<synchronous>, transform_indices = @transform_8, window_bounds = array<i64: 1, 1>}, {transform_indices = @transform_9, window_bounds = array<i64: 1, 16, 2048>}]} {
    %c0 = arith.constant 0 : index
    %c0_0 = arith.constant 0 : index
    %c0_1 = arith.constant 0 : index
    %0 = vector.load %arg1[%c0, %c0_0, %c0_1] : memref<1x1x32xf32, #tpu.memory_space<vmem>>, vector<1x1x32xf32>
    %1 = vector.shape_cast %0 : vector<1x1x32xf32> to vector<1x32xf32>
    %2 = arith.truncf %1 : vector<1x32xf32> to vector<1x32xbf16>
    %c0_2 = arith.constant 0 : index
    %c0_3 = arith.constant 0 : index
    %3 = vector.load %arg2[%c0_2, %c0_3] : memref<32x16384xbf16, #tpu.memory_space<vmem>>, vector<32x16384xbf16>
    %cst = arith.constant dense<0.000000e+00> : vector<1x16384xf32>
    %4 = tpu.matmul %2, %3, %cst {dimension_numbers = #tpu.dot_dimension_numbers<[1], [0], [0], [1], [0, 0, 1, 1], [], []>} : vector<1x32xbf16>, vector<32x16384xbf16>, vector<1x16384xf32> -> vector<1x16384xf32>
    %5 = vector.extract_strided_slice %4 {offsets = [0, 0], sizes = [1, 2048], strides = [1, 1]} : vector<1x16384xf32> to vector<1x2048xf32>
    %c0_4 = arith.constant 0 : index
    %c0_5 = arith.constant 0 : index
    %6 = vector.load %arg11[%c0_4, %c0_5] : memref<8x2048xf32, #tpu.memory_space<vmem>>, vector<1x2048xf32>
    tpu.vector_store %arg11[%c0_4, %c0_5], %5 {strides = array<i32>} : memref<8x2048xf32, #tpu.memory_space<vmem>>, vector<1x2048xf32>,
    %7 = vector.extract_strided_slice %4 {offsets = [0, 2048], sizes = [1, 2048], strides = [1, 1]} : vector<1x16384xf32> to vector<1x2048xf32>
    %c1 = arith.constant 1 : index
    %c0_6 = arith.constant 0 : index
    %8 = vector.load %arg11[%c1, %c0_6] : memref<8x2048xf32, #tpu.memory_space<vmem>>, vector<1x2048xf32>
    tpu.vector_store %arg11[%c1, %c0_6], %7 {strides = array<i32>} : memref<8x2048xf32, #tpu.memory_space<vmem>>, vector<1x2048xf32>,
    %9 = vector.extract_strided_slice %4 {offsets = [0, 4096], sizes = [1, 2048], strides = [1, 1]} : vector<1x16384xf32> to vector<1x2048xf32>
    %c2 = arith.constant 2 : index
    %c0_7 = arith.constant 0 : index
    %10 = vector.load %arg11[%c2, %c0_7] : memref<8x2048xf32, #tpu.memory_space<vmem>>, vector<1x2048xf32>
    tpu.vector_store %arg11[%c2, %c0_7], %9 {strides = array<i32>} : memref<8x2048xf32, #tpu.memory_space<vmem>>, vector<1x2048xf32>,
    %11 = vector.extract_strided_slice %4 {offsets = [0, 6144], sizes = [1, 2048], strides = [1, 1]} : vector<1x16384xf32> to vector<1x2048xf32>
    %c3 = arith.constant 3 : index
    %c0_8 = arith.constant 0 : index
    %12 = vector.load %arg11[%c3, %c0_8] : memref<8x2048xf32, #tpu.memory_space<vmem>>, vector<1x2048xf32>
    tpu.vector_store %arg11[%c3, %c0_8], %11 {strides = array<i32>} : memref<8x2048xf32, #tpu.memory_space<vmem>>, vector<1x2048xf32>,
    %13 = vector.extract_strided_slice %4 {offsets = [0, 8192], sizes = [1, 2048], strides = [1, 1]} : vector<1x16384xf32> to vector<1x2048xf32>
    %c4 = arith.constant 4 : index
    %c0_9 = arith.constant 0 : index
    %14 = vector.load %arg11[%c4, %c0_9] : memref<8x2048xf32, #tpu.memory_space<vmem>>, vector<1x2048xf32>
    tpu.vector_store %arg11[%c4, %c0_9], %13 {strides = array<i32>} : memref<8x2048xf32, #tpu.memory_space<vmem>>, vector<1x2048xf32>,
    %15 = vector.extract_strided_slice %4 {offsets = [0, 10240], sizes = [1, 2048], strides = [1, 1]} : vector<1x16384xf32> to vector<1x2048xf32>
    %c5 = arith.constant 5 : index
    %c0_10 = arith.constant 0 : index
    %16 = vector.load %arg11[%c5, %c0_10] : memref<8x2048xf32, #tpu.memory_space<vmem>>, vector<1x2048xf32>
    tpu.vector_store %arg11[%c5, %c0_10], %15 {strides = array<i32>} : memref<8x2048xf32, #tpu.memory_space<vmem>>, vector<1x2048xf32>,
    %17 = vector.extract_strided_slice %4 {offsets = [0, 12288], sizes = [1, 2048], strides = [1, 1]} : vector<1x16384xf32> to vector<1x2048xf32>
    %c6 = arith.constant 6 : index
    %c0_11 = arith.constant 0 : index
    %18 = vector.load %arg11[%c6, %c0_11] : memref<8x2048xf32, #tpu.memory_space<vmem>>, vector<1x2048xf32>
    tpu.vector_store %arg11[%c6, %c0_11], %17 {strides = array<i32>} : memref<8x2048xf32, #tpu.memory_space<vmem>>, vector<1x2048xf32>,
    %19 = vector.extract_strided_slice %4 {offsets = [0, 14336], sizes = [1, 2048], strides = [1, 1]} : vector<1x16384xf32> to vector<1x2048xf32>
    %c7 = arith.constant 7 : index
    %c0_12 = arith.constant 0 : index
    %20 = vector.load %arg11[%c7, %c0_12] : memref<8x2048xf32, #tpu.memory_space<vmem>>, vector<1x2048xf32>
    tpu.vector_store %arg11[%c7, %c0_12], %19 {strides = array<i32>} : memref<8x2048xf32, #tpu.memory_space<vmem>>, vector<1x2048xf32>,
    %c0_13 = arith.constant 0 : index
    %c0_14 = arith.constant 0 : index
    %21 = vector.load %arg11[%c0_13, %c0_14] : memref<8x2048xf32, #tpu.memory_space<vmem>>, vector<8x2048xf32>
    %c0_15 = arith.constant 0 : index
    %c0_16 = arith.constant 0 : index
    %22 = vector.load %arg3[%c0_15, %c0_16] : memref<8x2048xf32, #tpu.memory_space<vmem>>, vector<8x2048xf32>
    %23 = arith.addf %21, %22 : vector<8x2048xf32>
    %cst_17 = arith.constant 5.000000e-01 : f32
    %24 = vector.broadcast %cst_17 : f32 to vector<8x2048xf32>
    %25 = arith.mulf %24, %23 : vector<8x2048xf32>
    %cst_18 = arith.constant 4.471500e-02 : f32
    %26 = vector.broadcast %cst_18 : f32 to vector<8x2048xf32>
    %27 = arith.mulf %26, %23 : vector<8x2048xf32>
    %28 = arith.mulf %27, %23 : vector<8x2048xf32>
    %29 = arith.mulf %28, %23 : vector<8x2048xf32>
    %30 = arith.addf %23, %29 : vector<8x2048xf32>
    %cst_19 = arith.constant 0.797884583 : f32
    %31 = vector.broadcast %cst_19 : f32 to vector<8x2048xf32>
    %32 = arith.mulf %31, %30 : vector<8x2048xf32>
    %33 = math.tanh %32 : vector<8x2048xf32>
    %cst_20 = arith.constant 1.000000e+00 : f32
    %34 = vector.broadcast %cst_20 : f32 to vector<8x2048xf32>
    %35 = arith.addf %34, %33 : vector<8x2048xf32>
    %36 = arith.mulf %25, %35 : vector<8x2048xf32>
    %37 = tpu.iota {dimensions = array<i32: 1>} : vector<8x2048xi32>
    %c0_21 = arith.constant 0 : index
    %c0_22 = arith.constant 0 : index
    %38 = vector.load %arg4[%c0_21, %c0_22] : memref<24x8xf32, #tpu.memory_space<vmem>>, vector<24x8xf32>
    %cst_23 = arith.constant dense<0.000000e+00> : vector<24x2048xf32>
    %39 = tpu.matmul %38, %36, %cst_23 {dimension_numbers = #tpu.dot_dimension_numbers<[1], [0], [0], [1], [0, 0, 1, 1], [], []>} : vector<24x8xf32>, vector<8x2048xf32>, vector<24x2048xf32> -> vector<24x2048xf32>
    %40 = vector.extract_strided_slice %39 {offsets = [0, 0], sizes = [8, 2048], strides = [1, 1]} : vector<24x2048xf32> to vector<8x2048xf32>
    %41 = vector.extract_strided_slice %39 {offsets = [8, 0], sizes = [8, 2048], strides = [1, 1]} : vector<24x2048xf32> to vector<8x2048xf32>
    %42 = vector.extract_strided_slice %39 {offsets = [16, 0], sizes = [8, 2048], strides = [1, 1]} : vector<24x2048xf32> to vector<8x2048xf32>
    %c0_i32 = arith.constant 0 : i32
    %43 = vector.broadcast %c0_i32 : i32 to vector<8x2048xi32>
    %44 = arith.cmpi eq, %37, %43 : vector<8x2048xi32>
    %c1_i32 = arith.constant 1 : i32
    %45 = tpu.dynamic_rotate %40 by %c1_i32 dim 1 : vector<8x2048xf32>, i32 -> vector<8x2048xf32>
    %cst_24 = arith.constant 0.000000e+00 : f32
    %46 = vector.broadcast %cst_24 : f32 to vector<8x2048xf32>
    %47 = arith.select %44, %46, %45 : vector<8x2048xi1>, vector<8x2048xf32>
    %c2047_i32 = arith.constant 2047 : i32
    %48 = vector.broadcast %c2047_i32 : i32 to vector<8x2048xi32>
    %49 = arith.cmpi eq, %37, %48 : vector<8x2048xi32>
    %c2047_i32_25 = arith.constant 2047 : i32
    %50 = tpu.dynamic_rotate %42 by %c2047_i32_25 dim 1 : vector<8x2048xf32>, i32 -> vector<8x2048xf32>
    %cst_26 = arith.constant 0.000000e+00 : f32
    %51 = vector.broadcast %cst_26 : f32 to vector<8x2048xf32>
    %52 = arith.select %49, %51, %50 : vector<8x2048xi1>, vector<8x2048xf32>
    %53 = arith.addf %47, %41 : vector<8x2048xf32>
    %54 = arith.addf %53, %52 : vector<8x2048xf32>
    %c0_27 = arith.constant 0 : index
    %c0_28 = arith.constant 0 : index
    %55 = vector.load %arg5[%c0_27, %c0_28] : memref<8x1xf32, #tpu.memory_space<vmem>>, vector<8x1xf32>
    %56 = vector.broadcast %55 : vector<8x1xf32> to vector<8x2048xf32>
    %57 = arith.addf %54, %56 : vector<8x2048xf32>
    %c0_29 = arith.constant 0 : index
    %c0_30 = arith.constant 0 : index
    %58 = vector.load %arg6[%c0_29, %c0_30] : memref<12x8xf32, #tpu.memory_space<vmem>>, vector<12x8xf32>
    %cst_31 = arith.constant dense<0.000000e+00> : vector<12x2048xf32>
    %59 = tpu.matmul %58, %57, %cst_31 {dimension_numbers = #tpu.dot_dimension_numbers<[1], [0], [0], [1], [0, 0, 1, 1], [], []>} : vector<12x8xf32>, vector<8x2048xf32>, vector<12x2048xf32> -> vector<12x2048xf32>
    %60 = vector.extract_strided_slice %59 {offsets = [0, 0], sizes = [4, 2048], strides = [1, 1]} : vector<12x2048xf32> to vector<4x2048xf32>
    %61 = vector.extract_strided_slice %59 {offsets = [4, 0], sizes = [4, 2048], strides = [1, 1]} : vector<12x2048xf32> to vector<4x2048xf32>
    %62 = vector.extract_strided_slice %59 {offsets = [8, 0], sizes = [4, 2048], strides = [1, 1]} : vector<12x2048xf32> to vector<4x2048xf32>
    %63 = tpu.iota {dimensions = array<i32: 1>} : vector<4x2048xi32>
    %c0_32 = arith.constant 0 : index
    %c0_33 = arith.constant 0 : index
    %64 = vector.load %arg7[%c0_32, %c0_33] : memref<4x1xf32, #tpu.memory_space<vmem>>, vector<4x1xf32>
    %c2047_i32_34 = arith.constant 2047 : i32
    %65 = vector.broadcast %c2047_i32_34 : i32 to vector<4x2048xi32>
    %66 = arith.cmpi eq, %63, %65 : vector<4x2048xi32>
    %c2047_i32_35 = arith.constant 2047 : i32
    %67 = tpu.dynamic_rotate %60 by %c2047_i32_35 dim 1 : vector<4x2048xf32>, i32 -> vector<4x2048xf32>
    %cst_36 = arith.constant 0.000000e+00 : f32
    %68 = vector.broadcast %cst_36 : f32 to vector<4x2048xf32>
    %69 = arith.select %66, %68, %67 : vector<4x2048xi1>, vector<4x2048xf32>
    %70 = vector.broadcast %64 : vector<4x1xf32> to vector<4x2048xf32>
    %71 = arith.addf %61, %70 : vector<4x2048xf32>
    %cst_37 = arith.constant 5.000000e-01 : f32
    %72 = vector.broadcast %cst_37 : f32 to vector<4x2048xf32>
    %73 = arith.mulf %72, %71 : vector<4x2048xf32>
    %cst_38 = arith.constant 4.471500e-02 : f32
    %74 = vector.broadcast %cst_38 : f32 to vector<4x2048xf32>
    %75 = arith.mulf %74, %71 : vector<4x2048xf32>
    %76 = arith.mulf %75, %71 : vector<4x2048xf32>
    %77 = arith.mulf %76, %71 : vector<4x2048xf32>
    %78 = arith.addf %71, %77 : vector<4x2048xf32>
    %cst_39 = arith.constant 0.797884583 : f32
    %79 = vector.broadcast %cst_39 : f32 to vector<4x2048xf32>
    %80 = arith.mulf %79, %78 : vector<4x2048xf32>
    %81 = math.tanh %80 : vector<4x2048xf32>
    %cst_40 = arith.constant 1.000000e+00 : f32
    %82 = vector.broadcast %cst_40 : f32 to vector<4x2048xf32>
    %83 = arith.addf %82, %81 : vector<4x2048xf32>
    %84 = arith.mulf %73, %83 : vector<4x2048xf32>
    %85 = arith.addf %60, %62 : vector<4x2048xf32>
    %86 = vector.broadcast %64 : vector<4x1xf32> to vector<4x2048xf32>
    %87 = arith.addf %85, %86 : vector<4x2048xf32>
    %cst_41 = arith.constant 5.000000e-01 : f32
    %88 = vector.broadcast %cst_41 : f32 to vector<4x2048xf32>
    %89 = arith.mulf %88, %87 : vector<4x2048xf32>
    %cst_42 = arith.constant 4.471500e-02 : f32
    %90 = vector.broadcast %cst_42 : f32 to vector<4x2048xf32>
    %91 = arith.mulf %90, %87 : vector<4x2048xf32>
    %92 = arith.mulf %91, %87 : vector<4x2048xf32>
    %93 = arith.mulf %92, %87 : vector<4x2048xf32>
    %94 = arith.addf %87, %93 : vector<4x2048xf32>
    %cst_43 = arith.constant 0.797884583 : f32
    %95 = vector.broadcast %cst_43 : f32 to vector<4x2048xf32>
    %96 = arith.mulf %95, %94 : vector<4x2048xf32>
    %97 = math.tanh %96 : vector<4x2048xf32>
    %cst_44 = arith.constant 1.000000e+00 : f32
    %98 = vector.broadcast %cst_44 : f32 to vector<4x2048xf32>
    %99 = arith.addf %98, %97 : vector<4x2048xf32>
    %100 = arith.mulf %89, %99 : vector<4x2048xf32>
    %101 = arith.addf %69, %62 : vector<4x2048xf32>
    %102 = vector.broadcast %64 : vector<4x1xf32> to vector<4x2048xf32>
    %103 = arith.addf %101, %102 : vector<4x2048xf32>
    %cst_45 = arith.constant 5.000000e-01 : f32
    %104 = vector.broadcast %cst_45 : f32 to vector<4x2048xf32>
    %105 = arith.mulf %104, %103 : vector<4x2048xf32>
    %cst_46 = arith.constant 4.471500e-02 : f32
    %106 = vector.broadcast %cst_46 : f32 to vector<4x2048xf32>
    %107 = arith.mulf %106, %103 : vector<4x2048xf32>
    %108 = arith.mulf %107, %103 : vector<4x2048xf32>
    %109 = arith.mulf %108, %103 : vector<4x2048xf32>
    %110 = arith.addf %103, %109 : vector<4x2048xf32>
    %cst_47 = arith.constant 0.797884583 : f32
    %111 = vector.broadcast %cst_47 : f32 to vector<4x2048xf32>
    %112 = arith.mulf %111, %110 : vector<4x2048xf32>
    %113 = math.tanh %112 : vector<4x2048xf32>
    %cst_48 = arith.constant 1.000000e+00 : f32
    %114 = vector.broadcast %cst_48 : f32 to vector<4x2048xf32>
    %115 = arith.addf %114, %113 : vector<4x2048xf32>
    %116 = arith.mulf %105, %115 : vector<4x2048xf32>
    %c2047_i32_49 = arith.constant 2047 : i32
    %117 = vector.broadcast %c2047_i32_49 : i32 to vector<4x2048xi32>
    %118 = arith.cmpi eq, %63, %117 : vector<4x2048xi32>
    %c2047_i32_50 = arith.constant 2047 : i32
    %119 = tpu.dynamic_rotate %84 by %c2047_i32_50 dim 1 : vector<4x2048xf32>, i32 -> vector<4x2048xf32>
    %cst_51 = arith.constant 0.000000e+00 : f32
    %120 = vector.broadcast %cst_51 : f32 to vector<4x2048xf32>
    %121 = arith.select %118, %120, %119 : vector<4x2048xi1>, vector<4x2048xf32>
    %c0_52 = arith.constant 0 : index
    %c0_53 = arith.constant 0 : index
    %122 = vector.load %arg12[%c0_52, %c0_53] : memref<16x2048xf32, #tpu.memory_space<vmem>>, vector<4x2048xf32>
    tpu.vector_store %arg12[%c0_52, %c0_53], %84 {strides = array<i32>} : memref<16x2048xf32, #tpu.memory_space<vmem>>, vector<4x2048xf32>,
    %c4_54 = arith.constant 4 : index
    %c0_55 = arith.constant 0 : index
    %123 = vector.load %arg12[%c4_54, %c0_55] : memref<16x2048xf32, #tpu.memory_space<vmem>>, vector<4x2048xf32>
    tpu.vector_store %arg12[%c4_54, %c0_55], %100 {strides = array<i32>} : memref<16x2048xf32, #tpu.memory_space<vmem>>, vector<4x2048xf32>,
    %c8 = arith.constant 8 : index
    %c0_56 = arith.constant 0 : index
    %124 = vector.load %arg12[%c8, %c0_56] : memref<16x2048xf32, #tpu.memory_space<vmem>>, vector<4x2048xf32>
    tpu.vector_store %arg12[%c8, %c0_56], %116 {strides = array<i32>} : memref<16x2048xf32, #tpu.memory_space<vmem>>, vector<4x2048xf32>,
    %c12 = arith.constant 12 : index
    %c0_57 = arith.constant 0 : index
    %125 = vector.load %arg12[%c12, %c0_57] : memref<16x2048xf32, #tpu.memory_space<vmem>>, vector<4x2048xf32>
    tpu.vector_store %arg12[%c12, %c0_57], %121 {strides = array<i32>} : memref<16x2048xf32, #tpu.memory_space<vmem>>, vector<4x2048xf32>,
    %c0_58 = arith.constant 0 : index
    %c0_59 = arith.constant 0 : index
    %126 = vector.load %arg8[%c0_58, %c0_59] : memref<16x16xf32, #tpu.memory_space<vmem>>, vector<16x16xf32>
    %c0_60 = arith.constant 0 : index
    %c0_61 = arith.constant 0 : index
    %127 = vector.load %arg12[%c0_60, %c0_61] : memref<16x2048xf32, #tpu.memory_space<vmem>>, vector<16x2048xf32>
    %cst_62 = arith.constant dense<0.000000e+00> : vector<16x2048xf32>
    %128 = tpu.matmul %126, %127, %cst_62 {dimension_numbers = #tpu.dot_dimension_numbers<[1], [0], [0], [1], [0, 0, 1, 1], [], []>} : vector<16x16xf32>, vector<16x2048xf32>, vector<16x2048xf32> -> vector<16x2048xf32>
    %c0_63 = arith.constant 0 : index
    %c0_64 = arith.constant 0 : index
    %129 = vector.load %arg9[%c0_63, %c0_64] : memref<1x1xf32, #tpu.memory_space<vmem>>, vector<1x1xf32>
    %130 = vector.broadcast %129 : vector<1x1xf32> to vector<16x2048xf32>
    %131 = arith.addf %128, %130 : vector<16x2048xf32>
    %132 = math.tanh %131 : vector<16x2048xf32>
    %c0_65 = arith.constant 0 : index
    %c0_66 = arith.constant 0 : index
    %c0_67 = arith.constant 0 : index
    %133 = vector.load %arg10[%c0_65, %c0_66, %c0_67] : memref<1x16x2048xf32, #tpu.memory_space<vmem>>, vector<1x16x2048xf32>
    %134 = vector.shape_cast %133 : vector<1x16x2048xf32> to vector<16x2048xf32>
    %135 = vector.shape_cast %132 : vector<16x2048xf32> to vector<1x16x2048xf32>
    tpu.vector_store %arg10[%c0_65, %c0_66, %c0_67], %135 {strides = array<i32>} : memref<1x16x2048xf32, #tpu.memory_space<vmem>>, vector<1x16x2048xf32>,
    return
  }
  func.func @transform_0(%arg0: i32) -> (i32, i32, i32) {
    %c0_i32 = arith.constant 0 : i32
    %c0_i32_0 = arith.constant 0 : i32
    %c0_i32_1 = arith.constant 0 : i32
    return %arg0, %c0_i32, %c0_i32_0 : i32, i32, i32
  }
  func.func @transform_1(%arg0: i32) -> (i32, i32) {
    %c0_i32 = arith.constant 0 : i32
    %c0_i32_0 = arith.constant 0 : i32
    %c0_i32_1 = arith.constant 0 : i32
    return %c0_i32, %c0_i32_0 : i32, i32
  }
  func.func @transform_2(%arg0: i32) -> (i32, i32) {
    %c0_i32 = arith.constant 0 : i32
    %c0_i32_0 = arith.constant 0 : i32
    %c0_i32_1 = arith.constant 0 : i32
    return %c0_i32, %c0_i32_0 : i32, i32
  }
  func.func @transform_3(%arg0: i32) -> (i32, i32) {
    %c0_i32 = arith.constant 0 : i32
    %c0_i32_0 = arith.constant 0 : i32
    %c0_i32_1 = arith.constant 0 : i32
    return %c0_i32, %c0_i32_0 : i32, i32
  }
  func.func @transform_4(%arg0: i32) -> (i32, i32) {
    %c0_i32 = arith.constant 0 : i32
    %c0_i32_0 = arith.constant 0 : i32
    %c0_i32_1 = arith.constant 0 : i32
    return %c0_i32, %c0_i32_0 : i32, i32
  }
  func.func @transform_5(%arg0: i32) -> (i32, i32) {
    %c0_i32 = arith.constant 0 : i32
    %c0_i32_0 = arith.constant 0 : i32
    %c0_i32_1 = arith.constant 0 : i32
    return %c0_i32, %c0_i32_0 : i32, i32
  }
  func.func @transform_6(%arg0: i32) -> (i32, i32) {
    %c0_i32 = arith.constant 0 : i32
    %c0_i32_0 = arith.constant 0 : i32
    %c0_i32_1 = arith.constant 0 : i32
    return %c0_i32, %c0_i32_0 : i32, i32
  }
  func.func @transform_7(%arg0: i32) -> (i32, i32) {
    %c0_i32 = arith.constant 0 : i32
    %c0_i32_0 = arith.constant 0 : i32
    %c0_i32_1 = arith.constant 0 : i32
    return %c0_i32, %c0_i32_0 : i32, i32
  }
  func.func @transform_8(%arg0: i32) -> (i32, i32) {
    %c0_i32 = arith.constant 0 : i32
    %c0_i32_0 = arith.constant 0 : i32
    %c0_i32_1 = arith.constant 0 : i32
    return %c0_i32, %c0_i32_0 : i32, i32
  }
  func.func @transform_9(%arg0: i32) -> (i32, i32, i32) {
    %c0_i32 = arith.constant 0 : i32
    %c0_i32_0 = arith.constant 0 : i32
    %c0_i32_1 = arith.constant 0 : i32
    return %arg0, %c0_i32, %c0_i32_0 : i32, i32, i32
  }
}

</mosaic_0001>

<llo_original>
// kernel: decoder_forward.1
$region0: #{decoder_forward.1}
  #allocation0 [shape = 'u32[]', space=smem, size = 0x4, offset = 0x4, fixed_abs, tag = 'smem constant byte address 0x4 - core index']
  #allocation1 [shape = 'u32[144,128]{1,0:T(1,128)}', space=vmem, size = 0x12000, scoped, tag = 'internal scratch']
  #allocation2 [shape = 'f32[8,2048]{1,0:T(8,128)}', space=vmem, size = 0x10000, scoped, tag = 'scratch operand']
  #allocation3 [shape = 'f32[16,2048]{1,0:T(8,128)}', space=vmem, size = 0x20000, scoped, tag = 'scratch operand']
  #allocation4 [shape = 'f32[1,1]{1,0:T(1,128)S(1)}', space=vmem, size = 0x200, scoped, tag = 'scoped memory for decoder_forward.1']
  %s0 = inlined_call_operand.hbm [shape: f32[2,1,32], index: 0, kind: input, shape index: {}]
  %s1 = inlined_call_operand.hbm [shape: bf16[32,16384], index: 1, kind: input, shape index: {}]
  %s2 = inlined_call_operand.hbm [shape: f32[8,2048], index: 2, kind: input, shape index: {}]
  %s3 = inlined_call_operand.vmem [shape: f32[24,8], index: 3, kind: input, shape index: {}]
  %s4 = inlined_call_operand.vmem [shape: f32[8,1], index: 4, kind: input, shape index: {}]
  %s5 = inlined_call_operand.vmem [shape: f32[12,8], index: 5, kind: input, shape index: {}]
  %s6 = inlined_call_operand.vmem [shape: f32[4,1], index: 6, kind: input, shape index: {}]
  %s7 = inlined_call_operand.hbm [shape: f32[16,16], index: 7, kind: input, shape index: {}]
  %s8 = inlined_call_operand.<no memory space> [shape: f32[1,1], index: 8, kind: input, shape index: {}]
  %s9 = inlined_call_operand.vmem [shape: f32[2,16,2048], index: 9, kind: output, shape index: {}]
  %s10 = sld [smem:[#allocation0]]
  $region85: #{decoder_forward.1} parent=0
    _
  %s12 = ssub.s32 1, %s10
  %s13 = scalar_select 0, %s12, %s10
  %v14 = vstv %s8
  %15 = vst [vmem:[#allocation4] sm:$0x1] %v14
  $region1: #{decoder_forward.1} parent=0
    #allocation5 [shape = 'u8[1024]{0}', space=vmem, size = 0x400, scoped, tag = 'input window, operand 0']
    #allocation6 [shape = 's32[2]{0}', space=sflag, size = 0x8, scoped, tag = 'scoped memory for decoder_forward.1']
    #allocation7 [shape = 'u8[1048576]{0}', space=vmem, size = 0x100000, scoped, tag = 'input window, operand 1, single buffered']
    #allocation8 [shape = 's32[1]{0}', space=sflag, size = 0x4, scoped, tag = 'scoped memory for decoder_forward.1']
    #allocation9 [shape = 'u8[65536]{0}', space=vmem, size = 0x10000, scoped, tag = 'input window, operand 2, single buffered']
    #allocation10 [shape = 'u8[8192]{0}', space=vmem, size = 0x2000, scoped, tag = 'input window, operand 7, single buffered']
    #allocation11 [shape = 's32[1]{0}', space=sflag, size = 0x4, scoped, tag = 'scoped memory for decoder_forward.1']
    %16 = vsyncpa [#allocation6], 0
    %s17 = scalar_lea.sflag [#allocation6], 1
    %18 = vsyncpa %s17, 0
    %19 = vsyncpa [#allocation8], 0
    %20 = vsyncpa [#allocation11], 0
    loop: start=0, step=1, limit=4
    $region2: #{decoder_forward.1} parent=1 // loop_pre_header
      _
    $region3: #{decoder_forward.1} parent=1 // loop_header
      %s22 = sphi 0, %s26
      %p23 = scmp.ge.s32.totalorder %s22, 4
      %s32 = sphi 0, %s34
      %s35 = sphi 0, %s32
      %s36 = sphi 0, %s35
      %s52 = sphi 0, %s36
      %s56 = sphi 0, %s56
      %s58 = sphi 0, %s56
      %s59 = sphi 0, %s58
      %s73 = sphi 0, %s59
      %s77 = sphi 0, %s77
      %s79 = sphi 0, %s77
      %s80 = sphi 0, %s79
      %s94 = sphi 0, %s80
      %s98 = sphi 0, %s98
      %s100 = sphi 0, %s98
      %s101 = sphi 0, %s100
      %s115 = sphi 0, %s101
      %s119 = sphi 0, %s119
      %s121 = sphi 0, %s119
      %s122 = sphi 0, %s121
      %s136 = sphi 0, %s122
      %s140 = sphi 0, %s140
      %s142 = sphi 0, %s140
      %s143 = sphi 0, %s142
      %s157 = sphi 0, %s143
      %s161 = sphi 0, %s161
      %s163 = sphi 0, %s161
      %s164 = sphi 0, %s163
      %s178 = sphi 0, %s164
      %s182 = sphi 0, %s182
      %s184 = sphi 0, %s182
      %s185 = sphi 0, %s184
      %s199 = sphi 0, %s185
      %s203 = sphi 0, %s203
      %s205 = sphi 0, %s203
      %s206 = sphi 0, %s205
      %s220 = sphi 0, %s206
      %s226 = sphi 0, %s228
      %s229 = sphi 0, %s226
      %s230 = sphi 0, %s229
      %s246 = sphi 0, %s230
    $region4: #{decoder_forward.1} parent=1 // loop_header_branch
      %25 = sbr.rel (%p23) target = $region8
    $region5: #{decoder_forward.1} parent=1 // loop_body
      %s27 = ssub.s32 %s22, 1
      %s28 = ssub.s32 %s22, 2
      %s29 = sadd.s32 %s22, 1
      %s30 = ssub.s32 %s22, %s29
      %p31 = scmp.eq.s32.totalorder %s30, 0
      %s33 = sadd.s32 %s32, 1
      %s34 = scalar_select %p31, %s32, %s33
      %p37 = pneg %p31
      %p38 = scmp.eq.s32.totalorder %s22, 1
      %p39 = por %p37, %p38
      %p40 = scmp.ne.s32.totalorder %s32, %s35
      %p41 = scmp.eq.s32.totalorder %s22, 0
      %p42 = por %p40, %p41
      %p43 = scmp.ne.s32.totalorder %s32, %s35
      %p44 = scmp.eq.s32.totalorder %s27, 1
      %p45 = por %p43, %p44
      %p46 = scmp.ne.s32.totalorder %s35, %s36
      %p47 = scmp.eq.s32.totalorder %s27, 0
      %p48 = por %p46, %p47
      %p49 = scmp.ne.s32.totalorder %s35, %s36
      %p50 = scmp.eq.s32.totalorder %s28, 1
      %p51 = por %p49, %p50
      %p53 = scmp.ne.s32.totalorder %s36, %s52
      %p54 = scmp.eq.s32.totalorder %s28, 0
      %p55 = por %p53, %p54
      %s57 = sadd.s32 %s56, 1
      %p60 = scmp.eq.s32.totalorder %s22, 1
      %p61 = scmp.ne.s32.totalorder %s56, %s58
      %p62 = scmp.eq.s32.totalorder %s22, 0
      %p63 = por %p61, %p62
      %p64 = scmp.ne.s32.totalorder %s56, %s58
      %p65 = scmp.eq.s32.totalorder %s27, 1
      %p66 = por %p64, %p65
      %p67 = scmp.ne.s32.totalorder %s58, %s59
      %p68 = scmp.eq.s32.totalorder %s27, 0
      %p69 = por %p67, %p68
      %p70 = scmp.ne.s32.totalorder %s58, %s59
      %p71 = scmp.eq.s32.totalorder %s28, 1
      %p72 = por %p70, %p71
      %p74 = scmp.ne.s32.totalorder %s59, %s73
      %p75 = scmp.eq.s32.totalorder %s28, 0
      %p76 = por %p74, %p75
      %s78 = sadd.s32 %s77, 1
      %p81 = scmp.eq.s32.totalorder %s22, 1
      %p82 = scmp.ne.s32.totalorder %s77, %s79
      %p83 = scmp.eq.s32.totalorder %s22, 0
      %p84 = por %p82, %p83
      %p85 = scmp.ne.s32.totalorder %s77, %s79
      %p86 = scmp.eq.s32.totalorder %s27, 1
      %p87 = por %p85, %p86
      %p88 = scmp.ne.s32.totalorder %s79, %s80
      %p89 = scmp.eq.s32.totalorder %s27, 0
      %p90 = por %p88, %p89
      %p91 = scmp.ne.s32.totalorder %s79, %s80
      %p92 = scmp.eq.s32.totalorder %s28, 1
      %p93 = por %p91, %p92
      %p95 = scmp.ne.s32.totalorder %s80, %s94
      %p96 = scmp.eq.s32.totalorder %s28, 0
      %p97 = por %p95, %p96
      %s99 = sadd.s32 %s98, 1
      %p102 = scmp.eq.s32.totalorder %s22, 1
      %p103 = scmp.ne.s32.totalorder %s98, %s100
      %p104 = scmp.eq.s32.totalorder %s22, 0
      %p105 = por %p103, %p104
      %p106 = scmp.ne.s32.totalorder %s98, %s100
      %p107 = scmp.eq.s32.totalorder %s27, 1
      %p108 = por %p106, %p107
      %p109 = scmp.ne.s32.totalorder %s100, %s101
      %p110 = scmp.eq.s32.totalorder %s27, 0
      %p111 = por %p109, %p110
      %p112 = scmp.ne.s32.totalorder %s100, %s101
      %p113 = scmp.eq.s32.totalorder %s28, 1
      %p114 = por %p112, %p113
      %p116 = scmp.ne.s32.totalorder %s101, %s115
      %p117 = scmp.eq.s32.totalorder %s28, 0
      %p118 = por %p116, %p117
      %s120 = sadd.s32 %s119, 1
      %p123 = scmp.eq.s32.totalorder %s22, 1
      %p124 = scmp.ne.s32.totalorder %s119, %s121
      %p125 = scmp.eq.s32.totalorder %s22, 0
      %p126 = por %p124, %p125
      %p127 = scmp.ne.s32.totalorder %s119, %s121
      %p128 = scmp.eq.s32.totalorder %s27, 1
      %p129 = por %p127, %p128
      %p130 = scmp.ne.s32.totalorder %s121, %s122
      %p131 = scmp.eq.s32.totalorder %s27, 0
      %p132 = por %p130, %p131
      %p133 = scmp.ne.s32.totalorder %s121, %s122
      %p134 = scmp.eq.s32.totalorder %s28, 1
      %p135 = por %p133, %p134
      %p137 = scmp.ne.s32.totalorder %s122, %s136
      %p138 = scmp.eq.s32.totalorder %s28, 0
      %p139 = por %p137, %p138
      %s141 = sadd.s32 %s140, 1
      %p144 = scmp.eq.s32.totalorder %s22, 1
      %p145 = scmp.ne.s32.totalorder %s140, %s142
      %p146 = scmp.eq.s32.totalorder %s22, 0
      %p147 = por %p145, %p146
      %p148 = scmp.ne.s32.totalorder %s140, %s142
      %p149 = scmp.eq.s32.totalorder %s27, 1
      %p150 = por %p148, %p149
      %p151 = scmp.ne.s32.totalorder %s142, %s143
      %p152 = scmp.eq.s32.totalorder %s27, 0
      %p153 = por %p151, %p152
      %p154 = scmp.ne.s32.totalorder %s142, %s143
      %p155 = scmp.eq.s32.totalorder %s28, 1
      %p156 = por %p154, %p155
      %p158 = scmp.ne.s32.totalorder %s143, %s157
      %p159 = scmp.eq.s32.totalorder %s28, 0
      %p160 = por %p158, %p159
      %s162 = sadd.s32 %s161, 1
      %p165 = scmp.eq.s32.totalorder %s22, 1
      %p166 = scmp.ne.s32.totalorder %s161, %s163
      %p167 = scmp.eq.s32.totalorder %s22, 0
      %p168 = por %p166, %p167
      %p169 = scmp.ne.s32.totalorder %s161, %s163
      %p170 = scmp.eq.s32.totalorder %s27, 1
      %p171 = por %p169, %p170
      %p172 = scmp.ne.s32.totalorder %s163, %s164
      %p173 = scmp.eq.s32.totalorder %s27, 0
      %p174 = por %p172, %p173
      %p175 = scmp.ne.s32.totalorder %s163, %s164
      %p176 = scmp.eq.s32.totalorder %s28, 1
      %p177 = por %p175, %p176
      %p179 = scmp.ne.s32.totalorder %s164, %s178
      %p180 = scmp.eq.s32.totalorder %s28, 0
      %p181 = por %p179, %p180
      %s183 = sadd.s32 %s182, 1
      %p186 = scmp.eq.s32.totalorder %s22, 1
      %p187 = scmp.ne.s32.totalorder %s182, %s184
      %p188 = scmp.eq.s32.totalorder %s22, 0
      %p189 = por %p187, %p188
      %p190 = scmp.ne.s32.totalorder %s182, %s184
      %p191 = scmp.eq.s32.totalorder %s27, 1
      %p192 = por %p190, %p191
      %p193 = scmp.ne.s32.totalorder %s184, %s185
      %p194 = scmp.eq.s32.totalorder %s27, 0
      %p195 = por %p193, %p194
      %p196 = scmp.ne.s32.totalorder %s184, %s185
      %p197 = scmp.eq.s32.totalorder %s28, 1
      %p198 = por %p196, %p197
      %p200 = scmp.ne.s32.totalorder %s185, %s199
      %p201 = scmp.eq.s32.totalorder %s28, 0
      %p202 = por %p200, %p201
      %s204 = sadd.s32 %s203, 1
      %p207 = scmp.eq.s32.totalorder %s22, 1
      %p208 = scmp.ne.s32.totalorder %s203, %s205
      %p209 = scmp.eq.s32.totalorder %s22, 0
      %p210 = por %p208, %p209
      %p211 = scmp.ne.s32.totalorder %s203, %s205
      %p212 = scmp.eq.s32.totalorder %s27, 1
      %p213 = por %p211, %p212
      %p214 = scmp.ne.s32.totalorder %s205, %s206
      %p215 = scmp.eq.s32.totalorder %s27, 0
      %p216 = por %p214, %p215
      %p217 = scmp.ne.s32.totalorder %s205, %s206
      %p218 = scmp.eq.s32.totalorder %s28, 1
      %p219 = por %p217, %p218
      %p221 = scmp.ne.s32.totalorder %s206, %s220
      %p222 = scmp.eq.s32.totalorder %s28, 0
      %p223 = por %p221, %p222
      %s224 = ssub.s32 %s22, %s29
      %p225 = scmp.eq.s32.totalorder %s224, 0
      %s227 = sadd.s32 %s226, 1
      %s228 = scalar_select %p225, %s226, %s227
      %p231 = pneg %p225
      %p232 = scmp.eq.s32.totalorder %s22, 1
      %p233 = por %p231, %p232
      %p234 = scmp.ne.s32.totalorder %s226, %s229
      %p235 = scmp.eq.s32.totalorder %s22, 0
      %p236 = por %p234, %p235
      %p237 = scmp.ne.s32.totalorder %s226, %s229
      %p238 = scmp.eq.s32.totalorder %s27, 1
      %p239 = por %p237, %p238
      %p240 = scmp.ne.s32.totalorder %s229, %s230
      %p241 = scmp.eq.s32.totalorder %s27, 0
      %p242 = por %p240, %p241
      %p243 = scmp.ne.s32.totalorder %s229, %s230
      %p244 = scmp.eq.s32.totalorder %s28, 1
      %p245 = por %p243, %p244
      %p247 = scmp.ne.s32.totalorder %s230, %s246
      %p248 = scmp.eq.s32.totalorder %s28, 0
      %p249 = por %p247, %p248
      %p250 = scmp.le.s32.totalorder 1, %s22
      %p251 = scmp.lt.s32.totalorder %s22, 3
      %p252 = pnand %p250, %p251
      %p253 = pneg %p252
      // Predicated region
      $region9: #{decoder_forward.1} parent=5 // pred_check
        _
      $region10: #{decoder_forward.1} parent=5 // pred_check_branch
        %255 = sbr.rel (%p252) target = $region12
      $region11: #{decoder_forward.1} parent=5 // pred_region
        %s256 = ssub.s32 %s22, 1
        // Predicated region
        $region13: #{decoder_forward.1} parent=11 // pred_check
          %p257 = pneg %p69
        $region14: #{decoder_forward.1} parent=11 // pred_check_branch
          %259 = sbr.rel (%p257) target = $region16
        $region15: #{decoder_forward.1} parent=11 // pred_region
          %s261 = ssub.s32 32768, 32768
          %262 = vsyncadd [#allocation8], %s261
          %s263 = sshll.u32 [#allocation7], 4
          %s264 = int_to_ptr.vmem [resolvable:$true] %s263
          %269 = dma.hbm_to_vmem [thread:$0]  %s1, 32768, %s264, [#allocation8], 8192, 8192, 512
        $region16: #{decoder_forward.1} parent=11 // pred_fallthru
          _
        // Predicated region
        $region17: #{decoder_forward.1} parent=11 // pred_check
          %p270 = pneg %p90
        $region18: #{decoder_forward.1} parent=11 // pred_check_branch
          %272 = sbr.rel (%p270) target = $region20
        $region19: #{decoder_forward.1} parent=11 // pred_region
          %s274 = ssub.s32 2048, 2048
          %275 = vsyncadd [#allocation8], %s274
          %s277 = sshll.u32 [#allocation9], 4
          %s278 = int_to_ptr.vmem [resolvable:$true] %s277
          %280 = dma.hbm_to_vmem [thread:$0]  %s2, 2048, %s278, [#allocation8]
        $region20: #{decoder_forward.1} parent=11 // pred_fallthru
          _
        // Predicated region
        $region21: #{decoder_forward.1} parent=11 // pred_check
          %p281 = pneg %p111
        $region22: #{decoder_forward.1} parent=11 // pred_check_branch
          %283 = sbr.rel (%p281) target = $region24
        $region23: #{decoder_forward.1} parent=11 // pred_region
          _
        $region24: #{decoder_forward.1} parent=11 // pred_fallthru
          _
        // Predicated region
        $region25: #{decoder_forward.1} parent=11 // pred_check
          %p284 = pneg %p132
        $region26: #{decoder_forward.1} parent=11 // pred_check_branch
          %286 = sbr.rel (%p284) target = $region28
        $region27: #{decoder_forward.1} parent=11 // pred_region
          _
        $region28: #{decoder_forward.1} parent=11 // pred_fallthru
          _
        // Predicated region
        $region29: #{decoder_forward.1} parent=11 // pred_check
          %p287 = pneg %p153
        $region30: #{decoder_forward.1} parent=11 // pred_check_branch
          %289 = sbr.rel (%p287) target = $region32
        $region31: #{decoder_forward.1} parent=11 // pred_region
          _
        $region32: #{decoder_forward.1} parent=11 // pred_fallthru
          _
        // Predicated region
        $region33: #{decoder_forward.1} parent=11 // pred_check
          %p290 = pneg %p174
        $region34: #{decoder_forward.1} parent=11 // pred_check_branch
          %292 = sbr.rel (%p290) target = $region36
        $region35: #{decoder_forward.1} parent=11 // pred_region
          _
        $region36: #{decoder_forward.1} parent=11 // pred_fallthru
          _
        // Predicated region
        $region37: #{decoder_forward.1} parent=11 // pred_check
          %p293 = pneg %p195
        $region38: #{decoder_forward.1} parent=11 // pred_check_branch
          %295 = sbr.rel (%p293) target = $region40
        $region39: #{decoder_forward.1} parent=11 // pred_region
          %s297 = ssub.s32 256, 256
          %298 = vsyncadd [#allocation11], %s297
          %s299 = sshll.u32 [#allocation10], 4
          %s300 = int_to_ptr.vmem [resolvable:$true] %s299
          %305 = dma.hbm_to_vmem [thread:$0]  %s7, 256, %s300, [#allocation11], 128, 128, 8
        $region40: #{decoder_forward.1} parent=11 // pred_fallthru
          _
        // Predicated region
        $region41: #{decoder_forward.1} parent=11 // pred_check
          %p306 = pneg %p216
        $region42: #{decoder_forward.1} parent=11 // pred_check_branch
          %308 = sbr.rel (%p306) target = $region44
        $region43: #{decoder_forward.1} parent=11 // pred_region
          _
        $region44: #{decoder_forward.1} parent=11 // pred_fallthru
          _
      $region12: #{decoder_forward.1} parent=5 // pred_fallthru
        _
      %p309 = scmp.lt.s32.totalorder %s22, 2
      // Predicated region
      $region45: #{decoder_forward.1} parent=5 // pred_check
        %p310 = pneg %p309
      $region46: #{decoder_forward.1} parent=5 // pred_check_branch
        %312 = sbr.rel (%p310) target = $region48
      $region47: #{decoder_forward.1} parent=5 // pred_region
        // Predicated region
        $region49: #{decoder_forward.1} parent=47 // pred_check
          %p313 = pneg %p42
        $region50: #{decoder_forward.1} parent=47 // pred_check_branch
          %315 = sbr.rel (%p313) target = $region52
        $region51: #{decoder_forward.1} parent=47 // pred_region
          %s316 = sand.u32 %s32, 1
          %s317 = scalar_lea.sflag [#allocation6], %s316
          %s318 = sand.u32 %s32, 1
          %s319 = scalar_lea.vmem [#allocation5], %s318
          %s321 = ssub.s32 16, 16
          %322 = vsyncadd %s317, %s321
          %s323 = smul.addr %s22, 16
          %s324 = scalar_lea.hbm %s0, %s323
          %s326 = sshll.u32 %s319, 4
          %s327 = int_to_ptr.vmem [resolvable:$true] %s326
          %329 = dma.hbm_to_vmem [thread:$0]  %s324, 16, %s327, %s317
        $region52: #{decoder_forward.1} parent=47 // pred_fallthru
          _
      $region48: #{decoder_forward.1} parent=5 // pred_fallthru
        _
      %p330 = scmp.le.s32.totalorder 1, %s22
      %p331 = scmp.lt.s32.totalorder %s22, 3
      %p332 = pnand %p330, %p331
      %p333 = pneg %p332
      // Predicated region
      $region53: #{decoder_forward.1} parent=5 // pred_check
        _
      $region54: #{decoder_forward.1} parent=5 // pred_check_branch
        %335 = sbr.rel (%p332) target = $region56
      $region55: #{decoder_forward.1} parent=5 // pred_region
        %s336 = ssub.s32 %s22, 1
        %s337 = sand.u32 %s35, 1
        %s338 = scalar_lea.sflag [#allocation6], %s337
        %s339 = sand.u32 %s35, 1
        %s340 = scalar_lea.vmem [#allocation5], %s339
        // Predicated region
        $region57: #{decoder_forward.1} parent=55 // pred_check
          %p341 = pneg %p48
        $region58: #{decoder_forward.1} parent=55 // pred_check_branch
          %343 = sbr.rel (%p341) target = $region60
        $region59: #{decoder_forward.1} parent=55 // pred_region
          %344 = dma.done %s338, 16
        $region60: #{decoder_forward.1} parent=55 // pred_fallthru
          _
        // Predicated region
        $region61: #{decoder_forward.1} parent=55 // pred_check
          %p345 = pneg %p69
        $region62: #{decoder_forward.1} parent=55 // pred_check_branch
          %347 = sbr.rel (%p345) target = $region64
        $region63: #{decoder_forward.1} parent=55 // pred_region
          %348 = dma.done [#allocation8], 32768
        $region64: #{decoder_forward.1} parent=55 // pred_fallthru
          _
        // Predicated region
        $region65: #{decoder_forward.1} parent=55 // pred_check
          %p349 = pneg %p90
        $region66: #{decoder_forward.1} parent=55 // pred_check_branch
          %351 = sbr.rel (%p349) target = $region68
        $region67: #{decoder_forward.1} parent=55 // pred_region
          %352 = dma.done [#allocation8], 2048
        $region68: #{decoder_forward.1} parent=55 // pred_fallthru
          _
        // Predicated region
        $region69: #{decoder_forward.1} parent=55 // pred_check
          %p353 = pneg %p195
        $region70: #{decoder_forward.1} parent=55 // pred_check_branch
          %355 = sbr.rel (%p353) target = $region72
        $region71: #{decoder_forward.1} parent=55 // pred_region
          %356 = dma.done [#allocation11], 256
        $region72: #{decoder_forward.1} parent=55 // pred_fallthru
          _
        %s357 = sand.u32 %s35, 1
        %s358 = scalar_lea.sflag [#allocation6], %s357
        %s359 = sand.u32 %s35, 1
        %s360 = scalar_lea.vmem [#allocation5], %s359
        %p361 = pneg %p48
        %p362 = pneg %p45
        %p363 = pneg %p69
        %p364 = pneg %p66
        %p365 = pneg %p90
        %p366 = pneg %p87
        %p367 = pneg %p111
        %p368 = pneg %p108
        %p369 = pneg %p132
        %p370 = pneg %p129
        %p371 = pneg %p153
        %p372 = pneg %p150
        %p373 = pneg %p174
        %p374 = pneg %p171
        %p375 = pneg %p195
        %p376 = pneg %p192
        %p377 = pneg %p216
        %p378 = pneg %p213
        %p379 = pneg %p242
        %p380 = pneg %p239
        %p381 = scmp.lt.s32.totalorder %s27, 1
        %s382 = scalar_select %p381, %s27, 1
        %s383 = smul.addr %s382, 32
        %s384 = smul.addr %s383, 8
        %s385 = scalar_lea.vmem %s9, %s384
        %p386 = scmp.lt.s32.totalorder %s27, 1
        %s387 = scalar_select %p386, %s27, 1
        %s388 = smul.addr %s387, 32
        %s389 = smul.addr %s388, 8
        %s390 = scalar_lea.vmem %s9, %s389
        %v392 = vld [vmem:[%s340] sm:$0x1]
        %v393 = vpack.c.bf16 %v392, %v392
        %v394 = vld [vmem:[#allocation7] sm:$0xff]
        %v395 = vld [vmem:[#allocation7 + $0x8] sm:$0xff]
        %v396 = vld [vmem:[#allocation7 + $0x10] sm:$0xff]
        %v397 = vld [vmem:[#allocation7 + $0x18] sm:$0xff]
        %v398 = vld [vmem:[#allocation7 + $0x20] sm:$0xff]
        %v399 = vld [vmem:[#allocation7 + $0x28] sm:$0xff]
        %v400 = vld [vmem:[#allocation7 + $0x30] sm:$0xff]
        %v401 = vld [vmem:[#allocation7 + $0x38] sm:$0xff]
        %v402 = vld [vmem:[#allocation7 + $0x40] sm:$0xff]
        %v403 = vld [vmem:[#allocation7 + $0x48] sm:$0xff]
        %v404 = vld [vmem:[#allocation7 + $0x50] sm:$0xff]
        %v405 = vld [vmem:[#allocation7 + $0x58] sm:$0xff]
        %v406 = vld [vmem:[#allocation7 + $0x60] sm:$0xff]
        %v407 = vld [vmem:[#allocation7 + $0x68] sm:$0xff]
        %v408 = vld [vmem:[#allocation7 + $0x70] sm:$0xff]
        %v409 = vld [vmem:[#allocation7 + $0x78] sm:$0xff]
        %v410 = vld [vmem:[#allocation7 + $0x80] sm:$0xff]
        %v411 = vld [vmem:[#allocation7 + $0x88] sm:$0xff]
        %v412 = vld [vmem:[#allocation7 + $0x90] sm:$0xff]
        %v413 = vld [vmem:[#allocation7 + $0x98] sm:$0xff]
        %v414 = vld [vmem:[#allocation7 + $0xa0] sm:$0xff]
        %v415 = vld [vmem:[#allocation7 + $0xa8] sm:$0xff]
        %v416 = vld [vmem:[#allocation7 + $0xb0] sm:$0xff]
        %v417 = vld [vmem:[#allocation7 + $0xb8] sm:$0xff]
        %v418 = vld [vmem:[#allocation7 + $0xc0] sm:$0xff]
        %v419 = vld [vmem:[#allocation7 + $0xc8] sm:$0xff]
        %v420 = vld [vmem:[#allocation7 + $0xd0] sm:$0xff]
        %v421 = vld [vmem:[#allocation7 + $0xd8] sm:$0xff]
        %v422 = vld [vmem:[#allocation7 + $0xe0] sm:$0xff]
        %v423 = vld [vmem:[#allocation7 + $0xe8] sm:$0xff]
        %v424 = vld [vmem:[#allocation7 + $0xf0] sm:$0xff]
        %v425 = vld [vmem:[#allocation7 + $0xf8] sm:$0xff]
        %v426 = vld [vmem:[#allocation7 + $0x100] sm:$0xff]
        %v427 = vld [vmem:[#allocation7 + $0x108] sm:$0xff]
        %v428 = vld [vmem:[#allocation7 + $0x110] sm:$0xff]
        %v429 = vld [vmem:[#allocation7 + $0x118] sm:$0xff]
        %v430 = vld [vmem:[#allocation7 + $0x120] sm:$0xff]
        %v431 = vld [vmem:[#allocation7 + $0x128] sm:$0xff]
        %v432 = vld [vmem:[#allocation7 + $0x130] sm:$0xff]
        %v433 = vld [vmem:[#allocation7 + $0x138] sm:$0xff]
        %v434 = vld [vmem:[#allocation7 + $0x140] sm:$0xff]
        %v435 = vld [vmem:[#allocation7 + $0x148] sm:$0xff]
        %v436 = vld [vmem:[#allocation7 + $0x150] sm:$0xff]
        %v437 = vld [vmem:[#allocation7 + $0x158] sm:$0xff]
        %v438 = vld [vmem:[#allocation7 + $0x160] sm:$0xff]
        %v439 = vld [vmem:[#allocation7 + $0x168] sm:$0xff]
        %v440 = vld [vmem:[#allocation7 + $0x170] sm:$0xff]
        %v441 = vld [vmem:[#allocation7 + $0x178] sm:$0xff]
        %v442 = vld [vmem:[#allocation7 + $0x180] sm:$0xff]
        %v443 = vld [vmem:[#allocation7 + $0x188] sm:$0xff]
        %v444 = vld [vmem:[#allocation7 + $0x190] sm:$0xff]
        %v445 = vld [vmem:[#allocation7 + $0x198] sm:$0xff]
        %v446 = vld [vmem:[#allocation7 + $0x1a0] sm:$0xff]
        %v447 = vld [vmem:[#allocation7 + $0x1a8] sm:$0xff]
        %v448 = vld [vmem:[#allocation7 + $0x1b0] sm:$0xff]
        %v449 = vld [vmem:[#allocation7 + $0x1b8] sm:$0xff]
        %v450 = vld [vmem:[#allocation7 + $0x1c0] sm:$0xff]
        %v451 = vld [vmem:[#allocation7 + $0x1c8] sm:$0xff]
        %v452 = vld [vmem:[#allocation7 + $0x1d0] sm:$0xff]
        %v453 = vld [vmem:[#allocation7 + $0x1d8] sm:$0xff]
        %v454 = vld [vmem:[#allocation7 + $0x1e0] sm:$0xff]
        %v455 = vld [vmem:[#allocation7 + $0x1e8] sm:$0xff]
        %v456 = vld [vmem:[#allocation7 + $0x1f0] sm:$0xff]
        %v457 = vld [vmem:[#allocation7 + $0x1f8] sm:$0xff]
        %v458 = vld [vmem:[#allocation7 + $0x200] sm:$0xff]
        %v459 = vld [vmem:[#allocation7 + $0x208] sm:$0xff]
        %v460 = vld [vmem:[#allocation7 + $0x210] sm:$0xff]
        %v461 = vld [vmem:[#allocation7 + $0x218] sm:$0xff]
        %v462 = vld [vmem:[#allocation7 + $0x220] sm:$0xff]
        %v463 = vld [vmem:[#allocation7 + $0x228] sm:$0xff]
        %v464 = vld [vmem:[#allocation7 + $0x230] sm:$0xff]
        %v465 = vld [vmem:[#allocation7 + $0x238] sm:$0xff]
        %v466 = vld [vmem:[#allocation7 + $0x240] sm:$0xff]
        %v467 = vld [vmem:[#allocation7 + $0x248] sm:$0xff]
        %v468 = vld [vmem:[#allocation7 + $0x250] sm:$0xff]
        %v469 = vld [vmem:[#allocation7 + $0x258] sm:$0xff]
        %v470 = vld [vmem:[#allocation7 + $0x260] sm:$0xff]
        %v471 = vld [vmem:[#allocation7 + $0x268] sm:$0xff]
        %v472 = vld [vmem:[#allocation7 + $0x270] sm:$0xff]
        %v473 = vld [vmem:[#allocation7 + $0x278] sm:$0xff]
        %v474 = vld [vmem:[#allocation7 + $0x280] sm:$0xff]
        %v475 = vld [vmem:[#allocation7 + $0x288] sm:$0xff]
        %v476 = vld [vmem:[#allocation7 + $0x290] sm:$0xff]
        %v477 = vld [vmem:[#allocation7 + $0x298] sm:$0xff]
        %v478 = vld [vmem:[#allocation7 + $0x2a0] sm:$0xff]
        %v479 = vld [vmem:[#allocation7 + $0x2a8] sm:$0xff]
        %v480 = vld [vmem:[#allocation7 + $0x2b0] sm:$0xff]
        %v481 = vld [vmem:[#allocation7 + $0x2b8] sm:$0xff]
        %v482 = vld [vmem:[#allocation7 + $0x2c0] sm:$0xff]
        %v483 = vld [vmem:[#allocation7 + $0x2c8] sm:$0xff]
        %v484 = vld [vmem:[#allocation7 + $0x2d0] sm:$0xff]
        %v485 = vld [vmem:[#allocation7 + $0x2d8] sm:$0xff]
        %v486 = vld [vmem:[#allocation7 + $0x2e0] sm:$0xff]
        %v487 = vld [vmem:[#allocation7 + $0x2e8] sm:$0xff]
        %v488 = vld [vmem:[#allocation7 + $0x2f0] sm:$0xff]
        %v489 = vld [vmem:[#allocation7 + $0x2f8] sm:$0xff]
        %v490 = vld [vmem:[#allocation7 + $0x300] sm:$0xff]
        %v491 = vld [vmem:[#allocation7 + $0x308] sm:$0xff]
        %v492 = vld [vmem:[#allocation7 + $0x310] sm:$0xff]
        %v493 = vld [vmem:[#allocation7 + $0x318] sm:$0xff]
        %v494 = vld [vmem:[#allocation7 + $0x320] sm:$0xff]
        %v495 = vld [vmem:[#allocation7 + $0x328] sm:$0xff]
        %v496 = vld [vmem:[#allocation7 + $0x330] sm:$0xff]
        %v497 = vld [vmem:[#allocation7 + $0x338] sm:$0xff]
        %v498 = vld [vmem:[#allocation7 + $0x340] sm:$0xff]
        %v499 = vld [vmem:[#allocation7 + $0x348] sm:$0xff]
        %v500 = vld [vmem:[#allocation7 + $0x350] sm:$0xff]
        %v501 = vld [vmem:[#allocation7 + $0x358] sm:$0xff]
        %v502 = vld [vmem:[#allocation7 + $0x360] sm:$0xff]
        %v503 = vld [vmem:[#allocation7 + $0x368] sm:$0xff]
        %v504 = vld [vmem:[#allocation7 + $0x370] sm:$0xff]
        %v505 = vld [vmem:[#allocation7 + $0x378] sm:$0xff]
        %v506 = vld [vmem:[#allocation7 + $0x380] sm:$0xff]
        %v507 = vld [vmem:[#allocation7 + $0x388] sm:$0xff]
        %v508 = vld [vmem:[#allocation7 + $0x390] sm:$0xff]
        %v509 = vld [vmem:[#allocation7 + $0x398] sm:$0xff]
        %v510 = vld [vmem:[#allocation7 + $0x3a0] sm:$0xff]
        %v511 = vld [vmem:[#allocation7 + $0x3a8] sm:$0xff]
        %v512 = vld [vmem:[#allocation7 + $0x3b0] sm:$0xff]
        %v513 = vld [vmem:[#allocation7 + $0x3b8] sm:$0xff]
        %v514 = vld [vmem:[#allocation7 + $0x3c0] sm:$0xff]
        %v515 = vld [vmem:[#allocation7 + $0x3c8] sm:$0xff]
        %v516 = vld [vmem:[#allocation7 + $0x3d0] sm:$0xff]
        %v517 = vld [vmem:[#allocation7 + $0x3d8] sm:$0xff]
        %v518 = vld [vmem:[#allocation7 + $0x3e0] sm:$0xff]
        %v519 = vld [vmem:[#allocation7 + $0x3e8] sm:$0xff]
        %v520 = vld [vmem:[#allocation7 + $0x3f0] sm:$0xff]
        %v521 = vld [vmem:[#allocation7 + $0x3f8] sm:$0xff]
        %v522 = vld [vmem:[#allocation7 + $0x400] sm:$0xff]
        %v523 = vld [vmem:[#allocation7 + $0x408] sm:$0xff]
        %v524 = vld [vmem:[#allocation7 + $0x410] sm:$0xff]
        %v525 = vld [vmem:[#allocation7 + $0x418] sm:$0xff]
        %v526 = vld [vmem:[#allocation7 + $0x420] sm:$0xff]
        %v527 = vld [vmem:[#allocation7 + $0x428] sm:$0xff]
        %v528 = vld [vmem:[#allocation7 + $0x430] sm:$0xff]
        %v529 = vld [vmem:[#allocation7 + $0x438] sm:$0xff]
        %v530 = vld [vmem:[#allocation7 + $0x440] sm:$0xff]
        %v531 = vld [vmem:[#allocation7 + $0x448] sm:$0xff]
        %v532 = vld [vmem:[#allocation7 + $0x450] sm:$0xff]
        %v533 = vld [vmem:[#allocation7 + $0x458] sm:$0xff]
        %v534 = vld [vmem:[#allocation7 + $0x460] sm:$0xff]
        %v535 = vld [vmem:[#allocation7 + $0x468] sm:$0xff]
        %v536 = vld [vmem:[#allocation7 + $0x470] sm:$0xff]
        %v537 = vld [vmem:[#allocation7 + $0x478] sm:$0xff]
        %v538 = vld [vmem:[#allocation7 + $0x480] sm:$0xff]
        %v539 = vld [vmem:[#allocation7 + $0x488] sm:$0xff]
        %v540 = vld [vmem:[#allocation7 + $0x490] sm:$0xff]
        %v541 = vld [vmem:[#allocation7 + $0x498] sm:$0xff]
        %v542 = vld [vmem:[#allocation7 + $0x4a0] sm:$0xff]
        %v543 = vld [vmem:[#allocation7 + $0x4a8] sm:$0xff]
        %v544 = vld [vmem:[#allocation7 + $0x4b0] sm:$0xff]
        %v545 = vld [vmem:[#allocation7 + $0x4b8] sm:$0xff]
        %v546 = vld [vmem:[#allocation7 + $0x4c0] sm:$0xff]
        %v547 = vld [vmem:[#allocation7 + $0x4c8] sm:$0xff]
        %v548 = vld [vmem:[#allocation7 + $0x4d0] sm:$0xff]
        %v549 = vld [vmem:[#allocation7 + $0x4d8] sm:$0xff]
        %v550 = vld [vmem:[#allocation7 + $0x4e0] sm:$0xff]
        %v551 = vld [vmem:[#allocation7 + $0x4e8] sm:$0xff]
        %v552 = vld [vmem:[#allocation7 + $0x4f0] sm:$0xff]
        %v553 = vld [vmem:[#allocation7 + $0x4f8] sm:$0xff]
        %v554 = vld [vmem:[#allocation7 + $0x500] sm:$0xff]
        %v555 = vld [vmem:[#allocation7 + $0x508] sm:$0xff]
        %v556 = vld [vmem:[#allocation7 + $0x510] sm:$0xff]
        %v557 = vld [vmem:[#allocation7 + $0x518] sm:$0xff]
        %v558 = vld [vmem:[#allocation7 + $0x520] sm:$0xff]
        %v559 = vld [vmem:[#allocation7 + $0x528] sm:$0xff]
        %v560 = vld [vmem:[#allocation7 + $0x530] sm:$0xff]
        %v561 = vld [vmem:[#allocation7 + $0x538] sm:$0xff]
        %v562 = vld [vmem:[#allocation7 + $0x540] sm:$0xff]
        %v563 = vld [vmem:[#allocation7 + $0x548] sm:$0xff]
        %v564 = vld [vmem:[#allocation7 + $0x550] sm:$0xff]
        %v565 = vld [vmem:[#allocation7 + $0x558] sm:$0xff]
        %v566 = vld [vmem:[#allocation7 + $0x560] sm:$0xff]
        %v567 = vld [vmem:[#allocation7 + $0x568] sm:$0xff]
        %v568 = vld [vmem:[#allocation7 + $0x570] sm:$0xff]
        %v569 = vld [vmem:[#allocation7 + $0x578] sm:$0xff]
        %v570 = vld [vmem:[#allocation7 + $0x580] sm:$0xff]
        %v571 = vld [vmem:[#allocation7 + $0x588] sm:$0xff]
        %v572 = vld [vmem:[#allocation7 + $0x590] sm:$0xff]
        %v573 = vld [vmem:[#allocation7 + $0x598] sm:$0xff]
        %v574 = vld [vmem:[#allocation7 + $0x5a0] sm:$0xff]
        %v575 = vld [vmem:[#allocation7 + $0x5a8] sm:$0xff]
        %v576 = vld [vmem:[#allocation7 + $0x5b0] sm:$0xff]
        %v577 = vld [vmem:[#allocation7 + $0x5b8] sm:$0xff]
        %v578 = vld [vmem:[#allocation7 + $0x5c0] sm:$0xff]
        %v579 = vld [vmem:[#allocation7 + $0x5c8] sm:$0xff]
        %v580 = vld [vmem:[#allocation7 + $0x5d0] sm:$0xff]
        %v581 = vld [vmem:[#allocation7 + $0x5d8] sm:$0xff]
        %v582 = vld [vmem:[#allocation7 + $0x5e0] sm:$0xff]
        %v583 = vld [vmem:[#allocation7 + $0x5e8] sm:$0xff]
        %v584 = vld [vmem:[#allocation7 + $0x5f0] sm:$0xff]
        %v585 = vld [vmem:[#allocation7 + $0x5f8] sm:$0xff]
        %v586 = vld [vmem:[#allocation7 + $0x600] sm:$0xff]
        %v587 = vld [vmem:[#allocation7 + $0x608] sm:$0xff]
        %v588 = vld [vmem:[#allocation7 + $0x610] sm:$0xff]
        %v589 = vld [vmem:[#allocation7 + $0x618] sm:$0xff]
        %v590 = vld [vmem:[#allocation7 + $0x620] sm:$0xff]
        %v591 = vld [vmem:[#allocation7 + $0x628] sm:$0xff]
        %v592 = vld [vmem:[#allocation7 + $0x630] sm:$0xff]
        %v593 = vld [vmem:[#allocation7 + $0x638] sm:$0xff]
        %v594 = vld [vmem:[#allocation7 + $0x640] sm:$0xff]
        %v595 = vld [vmem:[#allocation7 + $0x648] sm:$0xff]
        %v596 = vld [vmem:[#allocation7 + $0x650] sm:$0xff]
        %v597 = vld [vmem:[#allocation7 + $0x658] sm:$0xff]
        %v598 = vld [vmem:[#allocation7 + $0x660] sm:$0xff]
        %v599 = vld [vmem:[#allocation7 + $0x668] sm:$0xff]
        %v600 = vld [vmem:[#allocation7 + $0x670] sm:$0xff]
        %v601 = vld [vmem:[#allocation7 + $0x678] sm:$0xff]
        %v602 = vld [vmem:[#allocation7 + $0x680] sm:$0xff]
        %v603 = vld [vmem:[#allocation7 + $0x688] sm:$0xff]
        %v604 = vld [vmem:[#allocation7 + $0x690] sm:$0xff]
        %v605 = vld [vmem:[#allocation7 + $0x698] sm:$0xff]
        %v606 = vld [vmem:[#allocation7 + $0x6a0] sm:$0xff]
        %v607 = vld [vmem:[#allocation7 + $0x6a8] sm:$0xff]
        %v608 = vld [vmem:[#allocation7 + $0x6b0] sm:$0xff]
        %v609 = vld [vmem:[#allocation7 + $0x6b8] sm:$0xff]
        %v610 = vld [vmem:[#allocation7 + $0x6c0] sm:$0xff]
        %v611 = vld [vmem:[#allocation7 + $0x6c8] sm:$0xff]
        %v612 = vld [vmem:[#allocation7 + $0x6d0] sm:$0xff]
        %v613 = vld [vmem:[#allocation7 + $0x6d8] sm:$0xff]
        %v614 = vld [vmem:[#allocation7 + $0x6e0] sm:$0xff]
        %v615 = vld [vmem:[#allocation7 + $0x6e8] sm:$0xff]
        %v616 = vld [vmem:[#allocation7 + $0x6f0] sm:$0xff]
        %v617 = vld [vmem:[#allocation7 + $0x6f8] sm:$0xff]
        %v618 = vld [vmem:[#allocation7 + $0x700] sm:$0xff]
        %v619 = vld [vmem:[#allocation7 + $0x708] sm:$0xff]
        %v620 = vld [vmem:[#allocation7 + $0x710] sm:$0xff]
        %v621 = vld [vmem:[#allocation7 + $0x718] sm:$0xff]
        %v622 = vld [vmem:[#allocation7 + $0x720] sm:$0xff]
        %v623 = vld [vmem:[#allocation7 + $0x728] sm:$0xff]
        %v624 = vld [vmem:[#allocation7 + $0x730] sm:$0xff]
        %v625 = vld [vmem:[#allocation7 + $0x738] sm:$0xff]
        %v626 = vld [vmem:[#allocation7 + $0x740] sm:$0xff]
        %v627 = vld [vmem:[#allocation7 + $0x748] sm:$0xff]
        %v628 = vld [vmem:[#allocation7 + $0x750] sm:$0xff]
        %v629 = vld [vmem:[#allocation7 + $0x758] sm:$0xff]
        %v630 = vld [vmem:[#allocation7 + $0x760] sm:$0xff]
        %v631 = vld [vmem:[#allocation7 + $0x768] sm:$0xff]
        %v632 = vld [vmem:[#allocation7 + $0x770] sm:$0xff]
        %v633 = vld [vmem:[#allocation7 + $0x778] sm:$0xff]
        %v634 = vld [vmem:[#allocation7 + $0x780] sm:$0xff]
        %v635 = vld [vmem:[#allocation7 + $0x788] sm:$0xff]
        %v636 = vld [vmem:[#allocation7 + $0x790] sm:$0xff]
        %v637 = vld [vmem:[#allocation7 + $0x798] sm:$0xff]
        %v638 = vld [vmem:[#allocation7 + $0x7a0] sm:$0xff]
        %v639 = vld [vmem:[#allocation7 + $0x7a8] sm:$0xff]
        %v640 = vld [vmem:[#allocation7 + $0x7b0] sm:$0xff]
        %v641 = vld [vmem:[#allocation7 + $0x7b8] sm:$0xff]
        %v642 = vld [vmem:[#allocation7 + $0x7c0] sm:$0xff]
        %v643 = vld [vmem:[#allocation7 + $0x7c8] sm:$0xff]
        %v644 = vld [vmem:[#allocation7 + $0x7d0] sm:$0xff]
        %v645 = vld [vmem:[#allocation7 + $0x7d8] sm:$0xff]
        %v646 = vld [vmem:[#allocation7 + $0x7e0] sm:$0xff]
        %v647 = vld [vmem:[#allocation7 + $0x7e8] sm:$0xff]
        %v648 = vld [vmem:[#allocation7 + $0x7f0] sm:$0xff]
        %v649 = vld [vmem:[#allocation7 + $0x7f8] sm:$0xff]
        %v906 = vunpack.c.l.b16 %v394
        %v907 = vunpack.c.h.b16 %v394
        %v908 = vunpack.c.l.b16 %v395
        %v909 = vunpack.c.h.b16 %v395
        %v910 = vunpack.c.l.b16 %v396
        %v911 = vunpack.c.h.b16 %v396
        %v912 = vunpack.c.l.b16 %v397
        %v913 = vunpack.c.h.b16 %v397
        %v914 = vunpack.c.l.b16 %v398
        %v915 = vunpack.c.h.b16 %v398
        %v916 = vunpack.c.l.b16 %v399
        %v917 = vunpack.c.h.b16 %v399
        %v918 = vunpack.c.l.b16 %v400
        %v919 = vunpack.c.h.b16 %v400
        %v920 = vunpack.c.l.b16 %v401
        %v921 = vunpack.c.h.b16 %v401
        %v922 = vunpack.c.l.b16 %v402
        %v923 = vunpack.c.h.b16 %v402
        %v924 = vunpack.c.l.b16 %v403
        %v925 = vunpack.c.h.b16 %v403
        %v926 = vunpack.c.l.b16 %v404
        %v927 = vunpack.c.h.b16 %v404
        %v928 = vunpack.c.l.b16 %v405
        %v929 = vunpack.c.h.b16 %v405
        %v930 = vunpack.c.l.b16 %v406
        %v931 = vunpack.c.h.b16 %v406
        %v932 = vunpack.c.l.b16 %v407
        %v933 = vunpack.c.h.b16 %v407
        %v934 = vunpack.c.l.b16 %v408
        %v935 = vunpack.c.h.b16 %v408
        %v936 = vunpack.c.l.b16 %v409
        %v937 = vunpack.c.h.b16 %v409
        %v938 = vunpack.c.l.b16 %v410
        %v939 = vunpack.c.h.b16 %v410
        %v940 = vunpack.c.l.b16 %v411
        %v941 = vunpack.c.h.b16 %v411
        %v942 = vunpack.c.l.b16 %v412
        %v943 = vunpack.c.h.b16 %v412
        %v944 = vunpack.c.l.b16 %v413
        %v945 = vunpack.c.h.b16 %v413
        %v946 = vunpack.c.l.b16 %v414
        %v947 = vunpack.c.h.b16 %v414
        %v948 = vunpack.c.l.b16 %v415
        %v949 = vunpack.c.h.b16 %v415
        %v950 = vunpack.c.l.b16 %v416
        %v951 = vunpack.c.h.b16 %v416
        %v952 = vunpack.c.l.b16 %v417
        %v953 = vunpack.c.h.b16 %v417
        %v954 = vunpack.c.l.b16 %v418
        %v955 = vunpack.c.h.b16 %v418
        %v956 = vunpack.c.l.b16 %v419
        %v957 = vunpack.c.h.b16 %v419
        %v958 = vunpack.c.l.b16 %v420
        %v959 = vunpack.c.h.b16 %v420
        %v960 = vunpack.c.l.b16 %v421
        %v961 = vunpack.c.h.b16 %v421
        %v962 = vunpack.c.l.b16 %v422
        %v963 = vunpack.c.h.b16 %v422
        %v964 = vunpack.c.l.b16 %v423
        %v965 = vunpack.c.h.b16 %v423
        %v966 = vunpack.c.l.b16 %v424
        %v967 = vunpack.c.h.b16 %v424
        %v968 = vunpack.c.l.b16 %v425
        %v969 = vunpack.c.h.b16 %v425
        %v970 = vunpack.c.l.b16 %v426
        %v971 = vunpack.c.h.b16 %v426
        %v972 = vunpack.c.l.b16 %v427
        %v973 = vunpack.c.h.b16 %v427
        %v974 = vunpack.c.l.b16 %v428
        %v975 = vunpack.c.h.b16 %v428
        %v976 = vunpack.c.l.b16 %v429
        %v977 = vunpack.c.h.b16 %v429
        %v978 = vunpack.c.l.b16 %v430
        %v979 = vunpack.c.h.b16 %v430
        %v980 = vunpack.c.l.b16 %v431
        %v981 = vunpack.c.h.b16 %v431
        %v982 = vunpack.c.l.b16 %v432
        %v983 = vunpack.c.h.b16 %v432
        %v984 = vunpack.c.l.b16 %v433
        %v985 = vunpack.c.h.b16 %v433
        %v986 = vunpack.c.l.b16 %v434
        %v987 = vunpack.c.h.b16 %v434
        %v988 = vunpack.c.l.b16 %v435
        %v989 = vunpack.c.h.b16 %v435
        %v990 = vunpack.c.l.b16 %v436
        %v991 = vunpack.c.h.b16 %v436
        %v992 = vunpack.c.l.b16 %v437
        %v993 = vunpack.c.h.b16 %v437
        %v994 = vunpack.c.l.b16 %v438
        %v995 = vunpack.c.h.b16 %v438
        %v996 = vunpack.c.l.b16 %v439
        %v997 = vunpack.c.h.b16 %v439
        %v998 = vunpack.c.l.b16 %v440
        %v999 = vunpack.c.h.b16 %v440
        %v1000 = vunpack.c.l.b16 %v441
        %v1001 = vunpack.c.h.b16 %v441
        %v1002 = vunpack.c.l.b16 %v442
        %v1003 = vunpack.c.h.b16 %v442
        %v1004 = vunpack.c.l.b16 %v443
        %v1005 = vunpack.c.h.b16 %v443
        %v1006 = vunpack.c.l.b16 %v444
        %v1007 = vunpack.c.h.b16 %v444
        %v1008 = vunpack.c.l.b16 %v445
        %v1009 = vunpack.c.h.b16 %v445
        %v1010 = vunpack.c.l.b16 %v446
        %v1011 = vunpack.c.h.b16 %v446
        %v1012 = vunpack.c.l.b16 %v447
        %v1013 = vunpack.c.h.b16 %v447
        %v1014 = vunpack.c.l.b16 %v448
        %v1015 = vunpack.c.h.b16 %v448
        %v1016 = vunpack.c.l.b16 %v449
        %v1017 = vunpack.c.h.b16 %v449
        %v1018 = vunpack.c.l.b16 %v450
        %v1019 = vunpack.c.h.b16 %v450
        %v1020 = vunpack.c.l.b16 %v451
        %v1021 = vunpack.c.h.b16 %v451
        %v1022 = vunpack.c.l.b16 %v452
        %v1023 = vunpack.c.h.b16 %v452
        %v1024 = vunpack.c.l.b16 %v453
        %v1025 = vunpack.c.h.b16 %v453
        %v1026 = vunpack.c.l.b16 %v454
        %v1027 = vunpack.c.h.b16 %v454
        %v1028 = vunpack.c.l.b16 %v455
        %v1029 = vunpack.c.h.b16 %v455
        %v1030 = vunpack.c.l.b16 %v456
        %v1031 = vunpack.c.h.b16 %v456
        %v1032 = vunpack.c.l.b16 %v457
        %v1033 = vunpack.c.h.b16 %v457
        %v1034 = vunpack.c.l.b16 %v458
        %v1035 = vunpack.c.h.b16 %v458
        %v1036 = vunpack.c.l.b16 %v459
        %v1037 = vunpack.c.h.b16 %v459
        %v1038 = vunpack.c.l.b16 %v460
        %v1039 = vunpack.c.h.b16 %v460
        %v1040 = vunpack.c.l.b16 %v461
        %v1041 = vunpack.c.h.b16 %v461
        %v1042 = vunpack.c.l.b16 %v462
        %v1043 = vunpack.c.h.b16 %v462
        %v1044 = vunpack.c.l.b16 %v463
        %v1045 = vunpack.c.h.b16 %v463
        %v1046 = vunpack.c.l.b16 %v464
        %v1047 = vunpack.c.h.b16 %v464
        %v1048 = vunpack.c.l.b16 %v465
        %v1049 = vunpack.c.h.b16 %v465
        %v1050 = vunpack.c.l.b16 %v466
        %v1051 = vunpack.c.h.b16 %v466
        %v1052 = vunpack.c.l.b16 %v467
        %v1053 = vunpack.c.h.b16 %v467
        %v1054 = vunpack.c.l.b16 %v468
        %v1055 = vunpack.c.h.b16 %v468
        %v1056 = vunpack.c.l.b16 %v469
        %v1057 = vunpack.c.h.b16 %v469
        %v1058 = vunpack.c.l.b16 %v470
        %v1059 = vunpack.c.h.b16 %v470
        %v1060 = vunpack.c.l.b16 %v471
        %v1061 = vunpack.c.h.b16 %v471
        %v1062 = vunpack.c.l.b16 %v472
        %v1063 = vunpack.c.h.b16 %v472
        %v1064 = vunpack.c.l.b16 %v473
        %v1065 = vunpack.c.h.b16 %v473
        %v1066 = vunpack.c.l.b16 %v474
        %v1067 = vunpack.c.h.b16 %v474
        %v1068 = vunpack.c.l.b16 %v475
        %v1069 = vunpack.c.h.b16 %v475
        %v1070 = vunpack.c.l.b16 %v476
        %v1071 = vunpack.c.h.b16 %v476
        %v1072 = vunpack.c.l.b16 %v477
        %v1073 = vunpack.c.h.b16 %v477
        %v1074 = vunpack.c.l.b16 %v478
        %v1075 = vunpack.c.h.b16 %v478
        %v1076 = vunpack.c.l.b16 %v479
        %v1077 = vunpack.c.h.b16 %v479
        %v1078 = vunpack.c.l.b16 %v480
        %v1079 = vunpack.c.h.b16 %v480
        %v1080 = vunpack.c.l.b16 %v481
        %v1081 = vunpack.c.h.b16 %v481
        %v1082 = vunpack.c.l.b16 %v482
        %v1083 = vunpack.c.h.b16 %v482
        %v1084 = vunpack.c.l.b16 %v483
        %v1085 = vunpack.c.h.b16 %v483
        %v1086 = vunpack.c.l.b16 %v484
        %v1087 = vunpack.c.h.b16 %v484
        %v1088 = vunpack.c.l.b16 %v485
        %v1089 = vunpack.c.h.b16 %v485
        %v1090 = vunpack.c.l.b16 %v486
        %v1091 = vunpack.c.h.b16 %v486
        %v1092 = vunpack.c.l.b16 %v487
        %v1093 = vunpack.c.h.b16 %v487
        %v1094 = vunpack.c.l.b16 %v488
        %v1095 = vunpack.c.h.b16 %v488
        %v1096 = vunpack.c.l.b16 %v489
        %v1097 = vunpack.c.h.b16 %v489
        %v1098 = vunpack.c.l.b16 %v490
        %v1099 = vunpack.c.h.b16 %v490
        %v1100 = vunpack.c.l.b16 %v491
        %v1101 = vunpack.c.h.b16 %v491
        %v1102 = vunpack.c.l.b16 %v492
        %v1103 = vunpack.c.h.b16 %v492
        %v1104 = vunpack.c.l.b16 %v493
        %v1105 = vunpack.c.h.b16 %v493
        %v1106 = vunpack.c.l.b16 %v494
        %v1107 = vunpack.c.h.b16 %v494
        %v1108 = vunpack.c.l.b16 %v495
        %v1109 = vunpack.c.h.b16 %v495
        %v1110 = vunpack.c.l.b16 %v496
        %v1111 = vunpack.c.h.b16 %v496
        %v1112 = vunpack.c.l.b16 %v497
        %v1113 = vunpack.c.h.b16 %v497
        %v1114 = vunpack.c.l.b16 %v498
        %v1115 = vunpack.c.h.b16 %v498
        %v1116 = vunpack.c.l.b16 %v499
        %v1117 = vunpack.c.h.b16 %v499
        %v1118 = vunpack.c.l.b16 %v500
        %v1119 = vunpack.c.h.b16 %v500
        %v1120 = vunpack.c.l.b16 %v501
        %v1121 = vunpack.c.h.b16 %v501
        %v1122 = vunpack.c.l.b16 %v502
        %v1123 = vunpack.c.h.b16 %v502
        %v1124 = vunpack.c.l.b16 %v503
        %v1125 = vunpack.c.h.b16 %v503
        %v1126 = vunpack.c.l.b16 %v504
        %v1127 = vunpack.c.h.b16 %v504
        %v1128 = vunpack.c.l.b16 %v505
        %v1129 = vunpack.c.h.b16 %v505
        %v1130 = vunpack.c.l.b16 %v506
        %v1131 = vunpack.c.h.b16 %v506
        %v1132 = vunpack.c.l.b16 %v507
        %v1133 = vunpack.c.h.b16 %v507
        %v1134 = vunpack.c.l.b16 %v508
        %v1135 = vunpack.c.h.b16 %v508
        %v1136 = vunpack.c.l.b16 %v509
        %v1137 = vunpack.c.h.b16 %v509
        %v1138 = vunpack.c.l.b16 %v510
        %v1139 = vunpack.c.h.b16 %v510
        %v1140 = vunpack.c.l.b16 %v511
        %v1141 = vunpack.c.h.b16 %v511
        %v1142 = vunpack.c.l.b16 %v512
        %v1143 = vunpack.c.h.b16 %v512
        %v1144 = vunpack.c.l.b16 %v513
        %v1145 = vunpack.c.h.b16 %v513
        %v1146 = vunpack.c.l.b16 %v514
        %v1147 = vunpack.c.h.b16 %v514
        %v1148 = vunpack.c.l.b16 %v515
        %v1149 = vunpack.c.h.b16 %v515
        %v1150 = vunpack.c.l.b16 %v516
        %v1151 = vunpack.c.h.b16 %v516
        %v1152 = vunpack.c.l.b16 %v517
        %v1153 = vunpack.c.h.b16 %v517
        %v1154 = vunpack.c.l.b16 %v518
        %v1155 = vunpack.c.h.b16 %v518
        %v1156 = vunpack.c.l.b16 %v519
        %v1157 = vunpack.c.h.b16 %v519
        %v1158 = vunpack.c.l.b16 %v520
        %v1159 = vunpack.c.h.b16 %v520
        %v1160 = vunpack.c.l.b16 %v521
        %v1161 = vunpack.c.h.b16 %v521
        %v1162 = vunpack.c.l.b16 %v522
        %v1163 = vunpack.c.h.b16 %v522
        %v1164 = vunpack.c.l.b16 %v523
        %v1165 = vunpack.c.h.b16 %v523
        %v1166 = vunpack.c.l.b16 %v524
        %v1167 = vunpack.c.h.b16 %v524
        %v1168 = vunpack.c.l.b16 %v525
        %v1169 = vunpack.c.h.b16 %v525
        %v1170 = vunpack.c.l.b16 %v526
        %v1171 = vunpack.c.h.b16 %v526
        %v1172 = vunpack.c.l.b16 %v527
        %v1173 = vunpack.c.h.b16 %v527
        %v1174 = vunpack.c.l.b16 %v528
        %v1175 = vunpack.c.h.b16 %v528
        %v1176 = vunpack.c.l.b16 %v529
        %v1177 = vunpack.c.h.b16 %v529
        %v1178 = vunpack.c.l.b16 %v530
        %v1179 = vunpack.c.h.b16 %v530
        %v1180 = vunpack.c.l.b16 %v531
        %v1181 = vunpack.c.h.b16 %v531
        %v1182 = vunpack.c.l.b16 %v532
        %v1183 = vunpack.c.h.b16 %v532
        %v1184 = vunpack.c.l.b16 %v533
        %v1185 = vunpack.c.h.b16 %v533
        %v1186 = vunpack.c.l.b16 %v534
        %v1187 = vunpack.c.h.b16 %v534
        %v1188 = vunpack.c.l.b16 %v535
        %v1189 = vunpack.c.h.b16 %v535
        %v1190 = vunpack.c.l.b16 %v536
        %v1191 = vunpack.c.h.b16 %v536
        %v1192 = vunpack.c.l.b16 %v537
        %v1193 = vunpack.c.h.b16 %v537
        %v1194 = vunpack.c.l.b16 %v538
        %v1195 = vunpack.c.h.b16 %v538
        %v1196 = vunpack.c.l.b16 %v539
        %v1197 = vunpack.c.h.b16 %v539
        %v1198 = vunpack.c.l.b16 %v540
        %v1199 = vunpack.c.h.b16 %v540
        %v1200 = vunpack.c.l.b16 %v541
        %v1201 = vunpack.c.h.b16 %v541
        %v1202 = vunpack.c.l.b16 %v542
        %v1203 = vunpack.c.h.b16 %v542
        %v1204 = vunpack.c.l.b16 %v543
        %v1205 = vunpack.c.h.b16 %v543
        %v1206 = vunpack.c.l.b16 %v544
        %v1207 = vunpack.c.h.b16 %v544
        %v1208 = vunpack.c.l.b16 %v545
        %v1209 = vunpack.c.h.b16 %v545
        %v1210 = vunpack.c.l.b16 %v546
        %v1211 = vunpack.c.h.b16 %v546
        %v1212 = vunpack.c.l.b16 %v547
        %v1213 = vunpack.c.h.b16 %v547
        %v1214 = vunpack.c.l.b16 %v548
        %v1215 = vunpack.c.h.b16 %v548
        %v1216 = vunpack.c.l.b16 %v549
        %v1217 = vunpack.c.h.b16 %v549
        %v1218 = vunpack.c.l.b16 %v550
        %v1219 = vunpack.c.h.b16 %v550
        %v1220 = vunpack.c.l.b16 %v551
        %v1221 = vunpack.c.h.b16 %v551
        %v1222 = vunpack.c.l.b16 %v552
        %v1223 = vunpack.c.h.b16 %v552
        %v1224 = vunpack.c.l.b16 %v553
        %v1225 = vunpack.c.h.b16 %v553
        %v1226 = vunpack.c.l.b16 %v554
        %v1227 = vunpack.c.h.b16 %v554
        %v1228 = vunpack.c.l.b16 %v555
        %v1229 = vunpack.c.h.b16 %v555
        %v1230 = vunpack.c.l.b16 %v556
        %v1231 = vunpack.c.h.b16 %v556
        %v1232 = vunpack.c.l.b16 %v557
        %v1233 = vunpack.c.h.b16 %v557
        %v1234 = vunpack.c.l.b16 %v558
        %v1235 = vunpack.c.h.b16 %v558
        %v1236 = vunpack.c.l.b16 %v559
        %v1237 = vunpack.c.h.b16 %v559
        %v1238 = vunpack.c.l.b16 %v560
        %v1239 = vunpack.c.h.b16 %v560
        %v1240 = vunpack.c.l.b16 %v561
        %v1241 = vunpack.c.h.b16 %v561
        %v1242 = vunpack.c.l.b16 %v562
        %v1243 = vunpack.c.h.b16 %v562
        %v1244 = vunpack.c.l.b16 %v563
        %v1245 = vunpack.c.h.b16 %v563
        %v1246 = vunpack.c.l.b16 %v564
        %v1247 = vunpack.c.h.b16 %v564
        %v1248 = vunpack.c.l.b16 %v565
        %v1249 = vunpack.c.h.b16 %v565
        %v1250 = vunpack.c.l.b16 %v566
        %v1251 = vunpack.c.h.b16 %v566
        %v1252 = vunpack.c.l.b16 %v567
        %v1253 = vunpack.c.h.b16 %v567
        %v1254 = vunpack.c.l.b16 %v568
        %v1255 = vunpack.c.h.b16 %v568
        %v1256 = vunpack.c.l.b16 %v569
        %v1257 = vunpack.c.h.b16 %v569
        %v1258 = vunpack.c.l.b16 %v570
        %v1259 = vunpack.c.h.b16 %v570
        %v1260 = vunpack.c.l.b16 %v571
        %v1261 = vunpack.c.h.b16 %v571
        %v1262 = vunpack.c.l.b16 %v572
        %v1263 = vunpack.c.h.b16 %v572
        %v1264 = vunpack.c.l.b16 %v573
        %v1265 = vunpack.c.h.b16 %v573
        %v1266 = vunpack.c.l.b16 %v574
        %v1267 = vunpack.c.h.b16 %v574
        %v1268 = vunpack.c.l.b16 %v575
        %v1269 = vunpack.c.h.b16 %v575
        %v1270 = vunpack.c.l.b16 %v576
        %v1271 = vunpack.c.h.b16 %v576
        %v1272 = vunpack.c.l.b16 %v577
        %v1273 = vunpack.c.h.b16 %v577
        %v1274 = vunpack.c.l.b16 %v578
        %v1275 = vunpack.c.h.b16 %v578
        %v1276 = vunpack.c.l.b16 %v579
        %v1277 = vunpack.c.h.b16 %v579
        %v1278 = vunpack.c.l.b16 %v580
        %v1279 = vunpack.c.h.b16 %v580
        %v1280 = vunpack.c.l.b16 %v581
        %v1281 = vunpack.c.h.b16 %v581
        %v1282 = vunpack.c.l.b16 %v582
        %v1283 = vunpack.c.h.b16 %v582
        %v1284 = vunpack.c.l.b16 %v583
        %v1285 = vunpack.c.h.b16 %v583
        %v1286 = vunpack.c.l.b16 %v584
        %v1287 = vunpack.c.h.b16 %v584
        %v1288 = vunpack.c.l.b16 %v585
        %v1289 = vunpack.c.h.b16 %v585
        %v1290 = vunpack.c.l.b16 %v586
        %v1291 = vunpack.c.h.b16 %v586
        %v1292 = vunpack.c.l.b16 %v587
        %v1293 = vunpack.c.h.b16 %v587
        %v1294 = vunpack.c.l.b16 %v588
        %v1295 = vunpack.c.h.b16 %v588
        %v1296 = vunpack.c.l.b16 %v589
        %v1297 = vunpack.c.h.b16 %v589
        %v1298 = vunpack.c.l.b16 %v590
        %v1299 = vunpack.c.h.b16 %v590
        %v1300 = vunpack.c.l.b16 %v591
        %v1301 = vunpack.c.h.b16 %v591
        %v1302 = vunpack.c.l.b16 %v592
        %v1303 = vunpack.c.h.b16 %v592
        %v1304 = vunpack.c.l.b16 %v593
        %v1305 = vunpack.c.h.b16 %v593
        %v1306 = vunpack.c.l.b16 %v594
        %v1307 = vunpack.c.h.b16 %v594
        %v1308 = vunpack.c.l.b16 %v595
        %v1309 = vunpack.c.h.b16 %v595
        %v1310 = vunpack.c.l.b16 %v596
        %v1311 = vunpack.c.h.b16 %v596
        %v1312 = vunpack.c.l.b16 %v597
        %v1313 = vunpack.c.h.b16 %v597
        %v1314 = vunpack.c.l.b16 %v598
        %v1315 = vunpack.c.h.b16 %v598
        %v1316 = vunpack.c.l.b16 %v599
        %v1317 = vunpack.c.h.b16 %v599
        %v1318 = vunpack.c.l.b16 %v600
        %v1319 = vunpack.c.h.b16 %v600
        %v1320 = vunpack.c.l.b16 %v601
        %v1321 = vunpack.c.h.b16 %v601
        %v1322 = vunpack.c.l.b16 %v602
        %v1323 = vunpack.c.h.b16 %v602
        %v1324 = vunpack.c.l.b16 %v603
        %v1325 = vunpack.c.h.b16 %v603
        %v1326 = vunpack.c.l.b16 %v604
        %v1327 = vunpack.c.h.b16 %v604
        %v1328 = vunpack.c.l.b16 %v605
        %v1329 = vunpack.c.h.b16 %v605
        %v1330 = vunpack.c.l.b16 %v606
        %v1331 = vunpack.c.h.b16 %v606
        %v1332 = vunpack.c.l.b16 %v607
        %v1333 = vunpack.c.h.b16 %v607
        %v1334 = vunpack.c.l.b16 %v608
        %v1335 = vunpack.c.h.b16 %v608
        %v1336 = vunpack.c.l.b16 %v609
        %v1337 = vunpack.c.h.b16 %v609
        %v1338 = vunpack.c.l.b16 %v610
        %v1339 = vunpack.c.h.b16 %v610
        %v1340 = vunpack.c.l.b16 %v611
        %v1341 = vunpack.c.h.b16 %v611
        %v1342 = vunpack.c.l.b16 %v612
        %v1343 = vunpack.c.h.b16 %v612
        %v1344 = vunpack.c.l.b16 %v613
        %v1345 = vunpack.c.h.b16 %v613
        %v1346 = vunpack.c.l.b16 %v614
        %v1347 = vunpack.c.h.b16 %v614
        %v1348 = vunpack.c.l.b16 %v615
        %v1349 = vunpack.c.h.b16 %v615
        %v1350 = vunpack.c.l.b16 %v616
        %v1351 = vunpack.c.h.b16 %v616
        %v1352 = vunpack.c.l.b16 %v617
        %v1353 = vunpack.c.h.b16 %v617
        %v1354 = vunpack.c.l.b16 %v618
        %v1355 = vunpack.c.h.b16 %v618
        %v1356 = vunpack.c.l.b16 %v619
        %v1357 = vunpack.c.h.b16 %v619
        %v1358 = vunpack.c.l.b16 %v620
        %v1359 = vunpack.c.h.b16 %v620
        %v1360 = vunpack.c.l.b16 %v621
        %v1361 = vunpack.c.h.b16 %v621
        %v1362 = vunpack.c.l.b16 %v622
        %v1363 = vunpack.c.h.b16 %v622
        %v1364 = vunpack.c.l.b16 %v623
        %v1365 = vunpack.c.h.b16 %v623
        %v1366 = vunpack.c.l.b16 %v624
        %v1367 = vunpack.c.h.b16 %v624
        %v1368 = vunpack.c.l.b16 %v625
        %v1369 = vunpack.c.h.b16 %v625
        %v1370 = vunpack.c.l.b16 %v626
        %v1371 = vunpack.c.h.b16 %v626
        %v1372 = vunpack.c.l.b16 %v627
        %v1373 = vunpack.c.h.b16 %v627
        %v1374 = vunpack.c.l.b16 %v628
        %v1375 = vunpack.c.h.b16 %v628
        %v1376 = vunpack.c.l.b16 %v629
        %v1377 = vunpack.c.h.b16 %v629
        %v1378 = vunpack.c.l.b16 %v630
        %v1379 = vunpack.c.h.b16 %v630
        %v1380 = vunpack.c.l.b16 %v631
        %v1381 = vunpack.c.h.b16 %v631
        %v1382 = vunpack.c.l.b16 %v632
        %v1383 = vunpack.c.h.b16 %v632
        %v1384 = vunpack.c.l.b16 %v633
        %v1385 = vunpack.c.h.b16 %v633
        %v1386 = vunpack.c.l.b16 %v634
        %v1387 = vunpack.c.h.b16 %v634
        %v1388 = vunpack.c.l.b16 %v635
        %v1389 = vunpack.c.h.b16 %v635
        %v1390 = vunpack.c.l.b16 %v636
        %v1391 = vunpack.c.h.b16 %v636
        %v1392 = vunpack.c.l.b16 %v637
        %v1393 = vunpack.c.h.b16 %v637
        %v1394 = vunpack.c.l.b16 %v638
        %v1395 = vunpack.c.h.b16 %v638
        %v1396 = vunpack.c.l.b16 %v639
        %v1397 = vunpack.c.h.b16 %v639
        %v1398 = vunpack.c.l.b16 %v640
        %v1399 = vunpack.c.h.b16 %v640
        %v1400 = vunpack.c.l.b16 %v641
        %v1401 = vunpack.c.h.b16 %v641
        %v1402 = vunpack.c.l.b16 %v642
        %v1403 = vunpack.c.h.b16 %v642
        %v1404 = vunpack.c.l.b16 %v643
        %v1405 = vunpack.c.h.b16 %v643
        %v1406 = vunpack.c.l.b16 %v644
        %v1407 = vunpack.c.h.b16 %v644
        %v1408 = vunpack.c.l.b16 %v645
        %v1409 = vunpack.c.h.b16 %v645
        %v1410 = vunpack.c.l.b16 %v646
        %v1411 = vunpack.c.h.b16 %v646
        %v1412 = vunpack.c.l.b16 %v647
        %v1413 = vunpack.c.h.b16 %v647
        %v1414 = vunpack.c.l.b16 %v648
        %v1415 = vunpack.c.h.b16 %v648
        %v1416 = vunpack.c.l.b16 %v649
        %v1417 = vunpack.c.h.b16 %v649
        %v1418 = vpack.c.b16 %v1034, %v906
        %v1419 = vpack.c.b16 %v1035, %v907
        %v1420 = vpack.c.b16 %v1036, %v908
        %v1421 = vpack.c.b16 %v1037, %v909
        %v1422 = vpack.c.b16 %v1038, %v910
        %v1423 = vpack.c.b16 %v1039, %v911
        %v1424 = vpack.c.b16 %v1040, %v912
        %v1425 = vpack.c.b16 %v1041, %v913
        %v1426 = vpack.c.b16 %v1042, %v914
        %v1427 = vpack.c.b16 %v1043, %v915
        %v1428 = vpack.c.b16 %v1044, %v916
        %v1429 = vpack.c.b16 %v1045, %v917
        %v1430 = vpack.c.b16 %v1046, %v918
        %v1431 = vpack.c.b16 %v1047, %v919
        %v1432 = vpack.c.b16 %v1048, %v920
        %v1433 = vpack.c.b16 %v1049, %v921
        %v1434 = vpack.c.b16 %v1050, %v922
        %v1435 = vpack.c.b16 %v1051, %v923
        %v1436 = vpack.c.b16 %v1052, %v924
        %v1437 = vpack.c.b16 %v1053, %v925
        %v1438 = vpack.c.b16 %v1054, %v926
        %v1439 = vpack.c.b16 %v1055, %v927
        %v1440 = vpack.c.b16 %v1056, %v928
        %v1441 = vpack.c.b16 %v1057, %v929
        %v1442 = vpack.c.b16 %v1058, %v930
        %v1443 = vpack.c.b16 %v1059, %v931
        %v1444 = vpack.c.b16 %v1060, %v932
        %v1445 = vpack.c.b16 %v1061, %v933
        %v1446 = vpack.c.b16 %v1062, %v934
        %v1447 = vpack.c.b16 %v1063, %v935
        %v1448 = vpack.c.b16 %v1064, %v936
        %v1449 = vpack.c.b16 %v1065, %v937
        %v1450 = vpack.c.b16 %v1066, %v938
        %v1451 = vpack.c.b16 %v1067, %v939
        %v1452 = vpack.c.b16 %v1068, %v940
        %v1453 = vpack.c.b16 %v1069, %v941
        %v1454 = vpack.c.b16 %v1070, %v942
        %v1455 = vpack.c.b16 %v1071, %v943
        %v1456 = vpack.c.b16 %v1072, %v944
        %v1457 = vpack.c.b16 %v1073, %v945
        %v1458 = vpack.c.b16 %v1074, %v946
        %v1459 = vpack.c.b16 %v1075, %v947
        %v1460 = vpack.c.b16 %v1076, %v948
        %v1461 = vpack.c.b16 %v1077, %v949
        %v1462 = vpack.c.b16 %v1078, %v950
        %v1463 = vpack.c.b16 %v1079, %v951
        %v1464 = vpack.c.b16 %v1080, %v952
        %v1465 = vpack.c.b16 %v1081, %v953
        %v1466 = vpack.c.b16 %v1082, %v954
        %v1467 = vpack.c.b16 %v1083, %v955
        %v1468 = vpack.c.b16 %v1084, %v956
        %v1469 = vpack.c.b16 %v1085, %v957
        %v1470 = vpack.c.b16 %v1086, %v958
        %v1471 = vpack.c.b16 %v1087, %v959
        %v1472 = vpack.c.b16 %v1088, %v960
        %v1473 = vpack.c.b16 %v1089, %v961
        %v1474 = vpack.c.b16 %v1090, %v962
        %v1475 = vpack.c.b16 %v1091, %v963
        %v1476 = vpack.c.b16 %v1092, %v964
        %v1477 = vpack.c.b16 %v1093, %v965
        %v1478 = vpack.c.b16 %v1094, %v966
        %v1479 = vpack.c.b16 %v1095, %v967
        %v1480 = vpack.c.b16 %v1096, %v968
        %v1481 = vpack.c.b16 %v1097, %v969
        %v1482 = vpack.c.b16 %v1098, %v970
        %v1483 = vpack.c.b16 %v1099, %v971
        %v1484 = vpack.c.b16 %v1100, %v972
        %v1485 = vpack.c.b16 %v1101, %v973
        %v1486 = vpack.c.b16 %v1102, %v974
        %v1487 = vpack.c.b16 %v1103, %v975
        %v1488 = vpack.c.b16 %v1104, %v976
        %v1489 = vpack.c.b16 %v1105, %v977
        %v1490 = vpack.c.b16 %v1106, %v978
        %v1491 = vpack.c.b16 %v1107, %v979
        %v1492 = vpack.c.b16 %v1108, %v980
        %v1493 = vpack.c.b16 %v1109, %v981
        %v1494 = vpack.c.b16 %v1110, %v982
        %v1495 = vpack.c.b16 %v1111, %v983
        %v1496 = vpack.c.b16 %v1112, %v984
        %v1497 = vpack.c.b16 %v1113, %v985
        %v1498 = vpack.c.b16 %v1114, %v986
        %v1499 = vpack.c.b16 %v1115, %v987
        %v1500 = vpack.c.b16 %v1116, %v988
        %v1501 = vpack.c.b16 %v1117, %v989
        %v1502 = vpack.c.b16 %v1118, %v990
        %v1503 = vpack.c.b16 %v1119, %v991
        %v1504 = vpack.c.b16 %v1120, %v992
        %v1505 = vpack.c.b16 %v1121, %v993
        %v1506 = vpack.c.b16 %v1122, %v994
        %v1507 = vpack.c.b16 %v1123, %v995
        %v1508 = vpack.c.b16 %v1124, %v996
        %v1509 = vpack.c.b16 %v1125, %v997
        %v1510 = vpack.c.b16 %v1126, %v998
        %v1511 = vpack.c.b16 %v1127, %v999
        %v1512 = vpack.c.b16 %v1128, %v1000
        %v1513 = vpack.c.b16 %v1129, %v1001
        %v1514 = vpack.c.b16 %v1130, %v1002
        %v1515 = vpack.c.b16 %v1131, %v1003
        %v1516 = vpack.c.b16 %v1132, %v1004
        %v1517 = vpack.c.b16 %v1133, %v1005
        %v1518 = vpack.c.b16 %v1134, %v1006
        %v1519 = vpack.c.b16 %v1135, %v1007
        %v1520 = vpack.c.b16 %v1136, %v1008
        %v1521 = vpack.c.b16 %v1137, %v1009
        %v1522 = vpack.c.b16 %v1138, %v1010
        %v1523 = vpack.c.b16 %v1139, %v1011
        %v1524 = vpack.c.b16 %v1140, %v1012
        %v1525 = vpack.c.b16 %v1141, %v1013
        %v1526 = vpack.c.b16 %v1142, %v1014
        %v1527 = vpack.c.b16 %v1143, %v1015
        %v1528 = vpack.c.b16 %v1144, %v1016
        %v1529 = vpack.c.b16 %v1145, %v1017
        %v1530 = vpack.c.b16 %v1146, %v1018
        %v1531 = vpack.c.b16 %v1147, %v1019
        %v1532 = vpack.c.b16 %v1148, %v1020
        %v1533 = vpack.c.b16 %v1149, %v1021
        %v1534 = vpack.c.b16 %v1150, %v1022
        %v1535 = vpack.c.b16 %v1151, %v1023
        %v1536 = vpack.c.b16 %v1152, %v1024
        %v1537 = vpack.c.b16 %v1153, %v1025
        %v1538 = vpack.c.b16 %v1154, %v1026
        %v1539 = vpack.c.b16 %v1155, %v1027
        %v1540 = vpack.c.b16 %v1156, %v1028
        %v1541 = vpack.c.b16 %v1157, %v1029
        %v1542 = vpack.c.b16 %v1158, %v1030
        %v1543 = vpack.c.b16 %v1159, %v1031
        %v1544 = vpack.c.b16 %v1160, %v1032
        %v1545 = vpack.c.b16 %v1161, %v1033
        %v1546 = vpack.c.b16 %v1290, %v1162
        %v1547 = vpack.c.b16 %v1291, %v1163
        %v1548 = vpack.c.b16 %v1292, %v1164
        %v1549 = vpack.c.b16 %v1293, %v1165
        %v1550 = vpack.c.b16 %v1294, %v1166
        %v1551 = vpack.c.b16 %v1295, %v1167
        %v1552 = vpack.c.b16 %v1296, %v1168
        %v1553 = vpack.c.b16 %v1297, %v1169
        %v1554 = vpack.c.b16 %v1298, %v1170
        %v1555 = vpack.c.b16 %v1299, %v1171
        %v1556 = vpack.c.b16 %v1300, %v1172
        %v1557 = vpack.c.b16 %v1301, %v1173
        %v1558 = vpack.c.b16 %v1302, %v1174
        %v1559 = vpack.c.b16 %v1303, %v1175
        %v1560 = vpack.c.b16 %v1304, %v1176
        %v1561 = vpack.c.b16 %v1305, %v1177
        %v1562 = vpack.c.b16 %v1306, %v1178
        %v1563 = vpack.c.b16 %v1307, %v1179
        %v1564 = vpack.c.b16 %v1308, %v1180
        %v1565 = vpack.c.b16 %v1309, %v1181
        %v1566 = vpack.c.b16 %v1310, %v1182
        %v1567 = vpack.c.b16 %v1311, %v1183
        %v1568 = vpack.c.b16 %v1312, %v1184
        %v1569 = vpack.c.b16 %v1313, %v1185
        %v1570 = vpack.c.b16 %v1314, %v1186
        %v1571 = vpack.c.b16 %v1315, %v1187
        %v1572 = vpack.c.b16 %v1316, %v1188
        %v1573 = vpack.c.b16 %v1317, %v1189
        %v1574 = vpack.c.b16 %v1318, %v1190
        %v1575 = vpack.c.b16 %v1319, %v1191
        %v1576 = vpack.c.b16 %v1320, %v1192
        %v1577 = vpack.c.b16 %v1321, %v1193
        %v1578 = vpack.c.b16 %v1322, %v1194
        %v1579 = vpack.c.b16 %v1323, %v1195
        %v1580 = vpack.c.b16 %v1324, %v1196
        %v1581 = vpack.c.b16 %v1325, %v1197
        %v1582 = vpack.c.b16 %v1326, %v1198
        %v1583 = vpack.c.b16 %v1327, %v1199
        %v1584 = vpack.c.b16 %v1328, %v1200
        %v1585 = vpack.c.b16 %v1329, %v1201
        %v1586 = vpack.c.b16 %v1330, %v1202
        %v1587 = vpack.c.b16 %v1331, %v1203
        %v1588 = vpack.c.b16 %v1332, %v1204
        %v1589 = vpack.c.b16 %v1333, %v1205
        %v1590 = vpack.c.b16 %v1334, %v1206
        %v1591 = vpack.c.b16 %v1335, %v1207
        %v1592 = vpack.c.b16 %v1336, %v1208
        %v1593 = vpack.c.b16 %v1337, %v1209
        %v1594 = vpack.c.b16 %v1338, %v1210
        %v1595 = vpack.c.b16 %v1339, %v1211
        %v1596 = vpack.c.b16 %v1340, %v1212
        %v1597 = vpack.c.b16 %v1341, %v1213
        %v1598 = vpack.c.b16 %v1342, %v1214
        %v1599 = vpack.c.b16 %v1343, %v1215
        %v1600 = vpack.c.b16 %v1344, %v1216
        %v1601 = vpack.c.b16 %v1345, %v1217
        %v1602 = vpack.c.b16 %v1346, %v1218
        %v1603 = vpack.c.b16 %v1347, %v1219
        %v1604 = vpack.c.b16 %v1348, %v1220
        %v1605 = vpack.c.b16 %v1349, %v1221
        %v1606 = vpack.c.b16 %v1350, %v1222
        %v1607 = vpack.c.b16 %v1351, %v1223
        %v1608 = vpack.c.b16 %v1352, %v1224
        %v1609 = vpack.c.b16 %v1353, %v1225
        %v1610 = vpack.c.b16 %v1354, %v1226
        %v1611 = vpack.c.b16 %v1355, %v1227
        %v1612 = vpack.c.b16 %v1356, %v1228
        %v1613 = vpack.c.b16 %v1357, %v1229
        %v1614 = vpack.c.b16 %v1358, %v1230
        %v1615 = vpack.c.b16 %v1359, %v1231
        %v1616 = vpack.c.b16 %v1360, %v1232
        %v1617 = vpack.c.b16 %v1361, %v1233
        %v1618 = vpack.c.b16 %v1362, %v1234
        %v1619 = vpack.c.b16 %v1363, %v1235
        %v1620 = vpack.c.b16 %v1364, %v1236
        %v1621 = vpack.c.b16 %v1365, %v1237
        %v1622 = vpack.c.b16 %v1366, %v1238
        %v1623 = vpack.c.b16 %v1367, %v1239
        %v1624 = vpack.c.b16 %v1368, %v1240
        %v1625 = vpack.c.b16 %v1369, %v1241
        %v1626 = vpack.c.b16 %v1370, %v1242
        %v1627 = vpack.c.b16 %v1371, %v1243
        %v1628 = vpack.c.b16 %v1372, %v1244
        %v1629 = vpack.c.b16 %v1373, %v1245
        %v1630 = vpack.c.b16 %v1374, %v1246
        %v1631 = vpack.c.b16 %v1375, %v1247
        %v1632 = vpack.c.b16 %v1376, %v1248
        %v1633 = vpack.c.b16 %v1377, %v1249
        %v1634 = vpack.c.b16 %v1378, %v1250
        %v1635 = vpack.c.b16 %v1379, %v1251
        %v1636 = vpack.c.b16 %v1380, %v1252
        %v1637 = vpack.c.b16 %v1381, %v1253
        %v1638 = vpack.c.b16 %v1382, %v1254
        %v1639 = vpack.c.b16 %v1383, %v1255
        %v1640 = vpack.c.b16 %v1384, %v1256
        %v1641 = vpack.c.b16 %v1385, %v1257
        %v1642 = vpack.c.b16 %v1386, %v1258
        %v1643 = vpack.c.b16 %v1387, %v1259
        %v1644 = vpack.c.b16 %v1388, %v1260
        %v1645 = vpack.c.b16 %v1389, %v1261
        %v1646 = vpack.c.b16 %v1390, %v1262
        %v1647 = vpack.c.b16 %v1391, %v1263
        %v1648 = vpack.c.b16 %v1392, %v1264
        %v1649 = vpack.c.b16 %v1393, %v1265
        %v1650 = vpack.c.b16 %v1394, %v1266
        %v1651 = vpack.c.b16 %v1395, %v1267
        %v1652 = vpack.c.b16 %v1396, %v1268
        %v1653 = vpack.c.b16 %v1397, %v1269
        %v1654 = vpack.c.b16 %v1398, %v1270
        %v1655 = vpack.c.b16 %v1399, %v1271
        %v1656 = vpack.c.b16 %v1400, %v1272
        %v1657 = vpack.c.b16 %v1401, %v1273
        %v1658 = vpack.c.b16 %v1402, %v1274
        %v1659 = vpack.c.b16 %v1403, %v1275
        %v1660 = vpack.c.b16 %v1404, %v1276
        %v1661 = vpack.c.b16 %v1405, %v1277
        %v1662 = vpack.c.b16 %v1406, %v1278
        %v1663 = vpack.c.b16 %v1407, %v1279
        %v1664 = vpack.c.b16 %v1408, %v1280
        %v1665 = vpack.c.b16 %v1409, %v1281
        %v1666 = vpack.c.b16 %v1410, %v1282
        %v1667 = vpack.c.b16 %v1411, %v1283
        %v1668 = vpack.c.b16 %v1412, %v1284
        %v1669 = vpack.c.b16 %v1413, %v1285
        %v1670 = vpack.c.b16 %v1414, %v1286
        %v1671 = vpack.c.b16 %v1415, %v1287
        %v1672 = vpack.c.b16 %v1416, %v1288
        %v1673 = vpack.c.b16 %v1417, %v1289
        %vm1930 = vcmask 261120
        %v1932 = vsel %vm1930, %v393, 0
        %1934 = vmatprep.subr.bf16.mxu0 0
        %1935 = vmatpush1.bf16.msra.mxu0 0
        %1936 = vmatprep.subr.bf16.mxu0 0
        %1937 = vmatpush1.bf16.msra.mxu0 0
        %1938 = vmatprep.subr.bf16.mxu0 0
        %1939 = vmatpush1.bf16.msra.mxu0 0
        %1940 = vmatprep.subr.bf16.mxu0 0
        %1941 = vmatpush1.bf16.msra.mxu0 0
        %1942 = vmatprep.subr.bf16.mxu0 0
        %1943 = vmatpush1.bf16.msra.mxu0 0
        %1944 = vmatprep.subr.bf16.mxu0 0
        %1945 = vmatpush1.bf16.msra.mxu0 0
        %1946 = vmatprep.subr.bf16.mxu0 %v1547
        %1947 = vmatpush1.bf16.msra.mxu0 %v1546
        %1948 = vmatprep.subr.bf16.mxu0 %v1419
        %1949 = vmatpush1.bf16.msra.mxu0 %v1418
        %1950 = vmatprep.subr.bf16.mxu0 0
        %1951 = vmatpush2.bf16.msra.mxu0 0
        %1952 = vmatprep.subr.bf16.mxu0 0
        %1953 = vmatpush2.bf16.msra.mxu0 0
        %1954 = vmatprep.subr.bf16.mxu0 0
        %1955 = vmatpush2.bf16.msra.mxu0 0
        %1956 = vmatprep.subr.bf16.mxu0 0
        %1957 = vmatpush2.bf16.msra.mxu0 0
        %1958 = vmatprep.subr.bf16.mxu0 0
        %1959 = vmatpush2.bf16.msra.mxu0 0
        %1960 = vmatprep.subr.bf16.mxu0 0
        %1961 = vmatpush2.bf16.msra.mxu0 0
        %1962 = vmatprep.subr.bf16.mxu0 0
        %1963 = vmatpush2.bf16.msra.mxu0 0
        %1964 = vmatprep.subr.bf16.mxu0 0
        %1965 = vmatpush2.bf16.msra.mxu0 0
        %1966 = vmatprep.mubr.bf16.mxu0 0
        %1967 = vmatmul.mubr.bf16.gmra.mxu0 %v1932
        %v1968 = vpop.f32.mrf.mxu0
        %v1969 = vadd.f32 0.0, %v1968
        %v1970 = vpop.f32.mrf.mxu0
        %v1971 = vadd.f32 0.0, %v1970
        %v1972 = vpop.f32.mrf.mxu0
        %v1973 = vpop.f32.mrf.mxu0
        %1974 = vdwg.mxu0
        %1975 = vmatprep.subr.bf16.mxu0 0
        %1976 = vmatpush1.bf16.msra.mxu0 0
        %1977 = vmatprep.subr.bf16.mxu0 0
        %1978 = vmatpush1.bf16.msra.mxu0 0
        %1979 = vmatprep.subr.bf16.mxu0 0
        %1980 = vmatpush1.bf16.msra.mxu0 0
        %1981 = vmatprep.subr.bf16.mxu0 0
        %1982 = vmatpush1.bf16.msra.mxu0 0
        %1983 = vmatprep.subr.bf16.mxu0 0
        %1984 = vmatpush1.bf16.msra.mxu0 0
        %1985 = vmatprep.subr.bf16.mxu0 0
        %1986 = vmatpush1.bf16.msra.mxu0 0
        %1987 = vmatprep.subr.bf16.mxu0 %v1549
        %1988 = vmatpush1.bf16.msra.mxu0 %v1548
        %1989 = vmatprep.subr.bf16.mxu0 %v1421
        %1990 = vmatpush1.bf16.msra.mxu0 %v1420
        %1991 = vmatprep.subr.bf16.mxu0 0
        %1992 = vmatpush2.bf16.msra.mxu0 0
        %1993 = vmatprep.subr.bf16.mxu0 0
        %1994 = vmatpush2.bf16.msra.mxu0 0
        %1995 = vmatprep.subr.bf16.mxu0 0
        %1996 = vmatpush2.bf16.msra.mxu0 0
        %1997 = vmatprep.subr.bf16.mxu0 0
        %1998 = vmatpush2.bf16.msra.mxu0 0
        %1999 = vmatprep.subr.bf16.mxu0 0
        %2000 = vmatpush2.bf16.msra.mxu0 0
        %2001 = vmatprep.subr.bf16.mxu0 0
        %2002 = vmatpush2.bf16.msra.mxu0 0
        %2003 = vmatprep.subr.bf16.mxu0 0
        %2004 = vmatpush2.bf16.msra.mxu0 0
        %2005 = vmatprep.subr.bf16.mxu0 0
        %2006 = vmatpush2.bf16.msra.mxu0 0
        %2007 = vmatprep.mubr.bf16.mxu0 0
        %2008 = vmatmul.mubr.bf16.gmra.mxu0 %v1932
        %v2009 = vpop.f32.mrf.mxu0
        %v2010 = vadd.f32 0.0, %v2009
        %v2011 = vpop.f32.mrf.mxu0
        %v2012 = vadd.f32 0.0, %v2011
        %v2013 = vpop.f32.mrf.mxu0
        %v2014 = vpop.f32.mrf.mxu0
        %2015 = vdwg.mxu0
        %2016 = vmatprep.subr.bf16.mxu0 0
        %2017 = vmatpush1.bf16.msra.mxu0 0
        %2018 = vmatprep.subr.bf16.mxu0 0
        %2019 = vmatpush1.bf16.msra.mxu0 0
        %2020 = vmatprep.subr.bf16.mxu0 0
        %2021 = vmatpush1.bf16.msra.mxu0 0
        %2022 = vmatprep.subr.bf16.mxu0 0
        %2023 = vmatpush1.bf16.msra.mxu0 0
        %2024 = vmatprep.subr.bf16.mxu0 0
        %2025 = vmatpush1.bf16.msra.mxu0 0
        %2026 = vmatprep.subr.bf16.mxu0 0
        %2027 = vmatpush1.bf16.msra.mxu0 0
        %2028 = vmatprep.subr.bf16.mxu0 %v1551
        %2029 = vmatpush1.bf16.msra.mxu0 %v1550
        %2030 = vmatprep.subr.bf16.mxu0 %v1423
        %2031 = vmatpush1.bf16.msra.mxu0 %v1422
        %2032 = vmatprep.subr.bf16.mxu0 0
        %2033 = vmatpush2.bf16.msra.mxu0 0
        %2034 = vmatprep.subr.bf16.mxu0 0
        %2035 = vmatpush2.bf16.msra.mxu0 0
        %2036 = vmatprep.subr.bf16.mxu0 0
        %2037 = vmatpush2.bf16.msra.mxu0 0
        %2038 = vmatprep.subr.bf16.mxu0 0
        %2039 = vmatpush2.bf16.msra.mxu0 0
        %2040 = vmatprep.subr.bf16.mxu0 0
        %2041 = vmatpush2.bf16.msra.mxu0 0
        %2042 = vmatprep.subr.bf16.mxu0 0
        %2043 = vmatpush2.bf16.msra.mxu0 0
        %2044 = vmatprep.subr.bf16.mxu0 0
        %2045 = vmatpush2.bf16.msra.mxu0 0
        %2046 = vmatprep.subr.bf16.mxu0 0
        %2047 = vmatpush2.bf16.msra.mxu0 0
        %2048 = vmatprep.mubr.bf16.mxu0 0
        %2049 = vmatmul.mubr.bf16.gmra.mxu0 %v1932
        %v2050 = vpop.f32.mrf.mxu0
        %v2051 = vadd.f32 0.0, %v2050
        %v2052 = vpop.f32.mrf.mxu0
        %v2053 = vadd.f32 0.0, %v2052
        %v2054 = vpop.f32.mrf.mxu0
        %v2055 = vpop.f32.mrf.mxu0
        %2056 = vdwg.mxu0
        %2057 = vmatprep.subr.bf16.mxu0 0
        %2058 = vmatpush1.bf16.msra.mxu0 0
        %2059 = vmatprep.subr.bf16.mxu0 0
        %2060 = vmatpush1.bf16.msra.mxu0 0
        %2061 = vmatprep.subr.bf16.mxu0 0
        %2062 = vmatpush1.bf16.msra.mxu0 0
        %2063 = vmatprep.subr.bf16.mxu0 0
        %2064 = vmatpush1.bf16.msra.mxu0 0
        %2065 = vmatprep.subr.bf16.mxu0 0
        %2066 = vmatpush1.bf16.msra.mxu0 0
        %2067 = vmatprep.subr.bf16.mxu0 0
        %2068 = vmatpush1.bf16.msra.mxu0 0
        %2069 = vmatprep.subr.bf16.mxu0 %v1553
        %2070 = vmatpush1.bf16.msra.mxu0 %v1552
        %2071 = vmatprep.subr.bf16.mxu0 %v1425
        %2072 = vmatpush1.bf16.msra.mxu0 %v1424
        %2073 = vmatprep.subr.bf16.mxu0 0
        %2074 = vmatpush2.bf16.msra.mxu0 0
        %2075 = vmatprep.subr.bf16.mxu0 0
        %2076 = vmatpush2.bf16.msra.mxu0 0
        %2077 = vmatprep.subr.bf16.mxu0 0
        %2078 = vmatpush2.bf16.msra.mxu0 0
        %2079 = vmatprep.subr.bf16.mxu0 0
        %2080 = vmatpush2.bf16.msra.mxu0 0
        %2081 = vmatprep.subr.bf16.mxu0 0
        %2082 = vmatpush2.bf16.msra.mxu0 0
        %2083 = vmatprep.subr.bf16.mxu0 0
        %2084 = vmatpush2.bf16.msra.mxu0 0
        %2085 = vmatprep.subr.bf16.mxu0 0
        %2086 = vmatpush2.bf16.msra.mxu0 0
        %2087 = vmatprep.subr.bf16.mxu0 0
        %2088 = vmatpush2.bf16.msra.mxu0 0
        %2089 = vmatprep.mubr.bf16.mxu0 0
        %2090 = vmatmul.mubr.bf16.gmra.mxu0 %v1932
        %v2091 = vpop.f32.mrf.mxu0
        %v2092 = vadd.f32 0.0, %v2091
        %v2093 = vpop.f32.mrf.mxu0
        %v2094 = vadd.f32 0.0, %v2093
        %v2095 = vpop.f32.mrf.mxu0
        %v2096 = vpop.f32.mrf.mxu0
        %2097 = vdwg.mxu0
        %2098 = vmatprep.subr.bf16.mxu0 0
        %2099 = vmatpush1.bf16.msra.mxu0 0
        %2100 = vmatprep.subr.bf16.mxu0 0
        %2101 = vmatpush1.bf16.msra.mxu0 0
        %2102 = vmatprep.subr.bf16.mxu0 0
        %2103 = vmatpush1.bf16.msra.mxu0 0
        %2104 = vmatprep.subr.bf16.mxu0 0
        %2105 = vmatpush1.bf16.msra.mxu0 0
        %2106 = vmatprep.subr.bf16.mxu0 0
        %2107 = vmatpush1.bf16.msra.mxu0 0
        %2108 = vmatprep.subr.bf16.mxu0 0
        %2109 = vmatpush1.bf16.msra.mxu0 0
        %2110 = vmatprep.subr.bf16.mxu0 %v1555
        %2111 = vmatpush1.bf16.msra.mxu0 %v1554
        %2112 = vmatprep.subr.bf16.mxu0 %v1427
        %2113 = vmatpush1.bf16.msra.mxu0 %v1426
        %2114 = vmatprep.subr.bf16.mxu0 0
        %2115 = vmatpush2.bf16.msra.mxu0 0
        %2116 = vmatprep.subr.bf16.mxu0 0
        %2117 = vmatpush2.bf16.msra.mxu0 0
        %2118 = vmatprep.subr.bf16.mxu0 0
        %2119 = vmatpush2.bf16.msra.mxu0 0
        %2120 = vmatprep.subr.bf16.mxu0 0
        %2121 = vmatpush2.bf16.msra.mxu0 0
        %2122 = vmatprep.subr.bf16.mxu0 0
        %2123 = vmatpush2.bf16.msra.mxu0 0
        %2124 = vmatprep.subr.bf16.mxu0 0
        %2125 = vmatpush2.bf16.msra.mxu0 0
        %2126 = vmatprep.subr.bf16.mxu0 0
        %2127 = vmatpush2.bf16.msra.mxu0 0
        %2128 = vmatprep.subr.bf16.mxu0 0
        %2129 = vmatpush2.bf16.msra.mxu0 0
        %2130 = vmatprep.mubr.bf16.mxu0 0
        %2131 = vmatmul.mubr.bf16.gmra.mxu0 %v1932
        %v2132 = vpop.f32.mrf.mxu0
        %v2133 = vadd.f32 0.0, %v2132
        %v2134 = vpop.f32.mrf.mxu0
        %v2135 = vadd.f32 0.0, %v2134
        %v2136 = vpop.f32.mrf.mxu0
        %v2137 = vpop.f32.mrf.mxu0
        %2138 = vdwg.mxu0
        %2139 = vmatprep.subr.bf16.mxu0 0
        %2140 = vmatpush1.bf16.msra.mxu0 0
        %2141 = vmatprep.subr.bf16.mxu0 0
        %2142 = vmatpush1.bf16.msra.mxu0 0
        %2143 = vmatprep.subr.bf16.mxu0 0
        %2144 = vmatpush1.bf16.msra.mxu0 0
        %2145 = vmatprep.subr.bf16.mxu0 0
        %2146 = vmatpush1.bf16.msra.mxu0 0
        %2147 = vmatprep.subr.bf16.mxu0 0
        %2148 = vmatpush1.bf16.msra.mxu0 0
        %2149 = vmatprep.subr.bf16.mxu0 0
        %2150 = vmatpush1.bf16.msra.mxu0 0
        %2151 = vmatprep.subr.bf16.mxu0 %v1557
        %2152 = vmatpush1.bf16.msra.mxu0 %v1556
        %2153 = vmatprep.subr.bf16.mxu0 %v1429
        %2154 = vmatpush1.bf16.msra.mxu0 %v1428
        %2155 = vmatprep.subr.bf16.mxu0 0
        %2156 = vmatpush2.bf16.msra.mxu0 0
        %2157 = vmatprep.subr.bf16.mxu0 0
        %2158 = vmatpush2.bf16.msra.mxu0 0
        %2159 = vmatprep.subr.bf16.mxu0 0
        %2160 = vmatpush2.bf16.msra.mxu0 0
        %2161 = vmatprep.subr.bf16.mxu0 0
        %2162 = vmatpush2.bf16.msra.mxu0 0
        %2163 = vmatprep.subr.bf16.mxu0 0
        %2164 = vmatpush2.bf16.msra.mxu0 0
        %2165 = vmatprep.subr.bf16.mxu0 0
        %2166 = vmatpush2.bf16.msra.mxu0 0
        %2167 = vmatprep.subr.bf16.mxu0 0
        %2168 = vmatpush2.bf16.msra.mxu0 0
        %2169 = vmatprep.subr.bf16.mxu0 0
        %2170 = vmatpush2.bf16.msra.mxu0 0
        %2171 = vmatprep.mubr.bf16.mxu0 0
        %2172 = vmatmul.mubr.bf16.gmra.mxu0 %v1932
        %v2173 = vpop.f32.mrf.mxu0
        %v2174 = vadd.f32 0.0, %v2173
        %v2175 = vpop.f32.mrf.mxu0
        %v2176 = vadd.f32 0.0, %v2175
        %v2177 = vpop.f32.mrf.mxu0
        %v2178 = vpop.f32.mrf.mxu0
        %2179 = vdwg.mxu0
        %2180 = vmatprep.subr.bf16.mxu0 0
        %2181 = vmatpush1.bf16.msra.mxu0 0
        %2182 = vmatprep.subr.bf16.mxu0 0
        %2183 = vmatpush1.bf16.msra.mxu0 0
        %2184 = vmatprep.subr.bf16.mxu0 0
        %2185 = vmatpush1.bf16.msra.mxu0 0
        %2186 = vmatprep.subr.bf16.mxu0 0
        %2187 = vmatpush1.bf16.msra.mxu0 0
        %2188 = vmatprep.subr.bf16.mxu0 0
        %2189 = vmatpush1.bf16.msra.mxu0 0
        %2190 = vmatprep.subr.bf16.mxu0 0
        %2191 = vmatpush1.bf16.msra.mxu0 0
        %2192 = vmatprep.subr.bf16.mxu0 %v1559
        %2193 = vmatpush1.bf16.msra.mxu0 %v1558
        %2194 = vmatprep.subr.bf16.mxu0 %v1431
        %2195 = vmatpush1.bf16.msra.mxu0 %v1430
        %2196 = vmatprep.subr.bf16.mxu0 0
        %2197 = vmatpush2.bf16.msra.mxu0 0
        %2198 = vmatprep.subr.bf16.mxu0 0
        %2199 = vmatpush2.bf16.msra.mxu0 0
        %2200 = vmatprep.subr.bf16.mxu0 0
        %2201 = vmatpush2.bf16.msra.mxu0 0
        %2202 = vmatprep.subr.bf16.mxu0 0
        %2203 = vmatpush2.bf16.msra.mxu0 0
        %2204 = vmatprep.subr.bf16.mxu0 0
        %2205 = vmatpush2.bf16.msra.mxu0 0
        %2206 = vmatprep.subr.bf16.mxu0 0
        %2207 = vmatpush2.bf16.msra.mxu0 0
        %2208 = vmatprep.subr.bf16.mxu0 0
        %2209 = vmatpush2.bf16.msra.mxu0 0
        %2210 = vmatprep.subr.bf16.mxu0 0
        %2211 = vmatpush2.bf16.msra.mxu0 0
        %2212 = vmatprep.mubr.bf16.mxu0 0
        %2213 = vmatmul.mubr.bf16.gmra.mxu0 %v1932
        %v2214 = vpop.f32.mrf.mxu0
        %v2215 = vadd.f32 0.0, %v2214
        %v2216 = vpop.f32.mrf.mxu0
        %v2217 = vadd.f32 0.0, %v2216
        %v2218 = vpop.f32.mrf.mxu0
        %v2219 = vpop.f32.mrf.mxu0
        %2220 = vdwg.mxu0
        %2221 = vmatprep.subr.bf16.mxu0 0
        %2222 = vmatpush1.bf16.msra.mxu0 0
        %2223 = vmatprep.subr.bf16.mxu0 0
        %2224 = vmatpush1.bf16.msra.mxu0 0
        %2225 = vmatprep.subr.bf16.mxu0 0
        %2226 = vmatpush1.bf16.msra.mxu0 0
        %2227 = vmatprep.subr.bf16.mxu0 0
        %2228 = vmatpush1.bf16.msra.mxu0 0
        %2229 = vmatprep.subr.bf16.mxu0 0
        %2230 = vmatpush1.bf16.msra.mxu0 0
        %2231 = vmatprep.subr.bf16.mxu0 0
        %2232 = vmatpush1.bf16.msra.mxu0 0
        %2233 = vmatprep.subr.bf16.mxu0 %v1561
        %2234 = vmatpush1.bf16.msra.mxu0 %v1560
        %2235 = vmatprep.subr.bf16.mxu0 %v1433
        %2236 = vmatpush1.bf16.msra.mxu0 %v1432
        %2237 = vmatprep.subr.bf16.mxu0 0
        %2238 = vmatpush2.bf16.msra.mxu0 0
        %2239 = vmatprep.subr.bf16.mxu0 0
        %2240 = vmatpush2.bf16.msra.mxu0 0
        %2241 = vmatprep.subr.bf16.mxu0 0
        %2242 = vmatpush2.bf16.msra.mxu0 0
        %2243 = vmatprep.subr.bf16.mxu0 0
        %2244 = vmatpush2.bf16.msra.mxu0 0
        %2245 = vmatprep.subr.bf16.mxu0 0
        %2246 = vmatpush2.bf16.msra.mxu0 0
        %2247 = vmatprep.subr.bf16.mxu0 0
        %2248 = vmatpush2.bf16.msra.mxu0 0
        %2249 = vmatprep.subr.bf16.mxu0 0
        %2250 = vmatpush2.bf16.msra.mxu0 0
        %2251 = vmatprep.subr.bf16.mxu0 0
        %2252 = vmatpush2.bf16.msra.mxu0 0
        %2253 = vmatprep.mubr.bf16.mxu0 0
        %2254 = vmatmul.mubr.bf16.gmra.mxu0 %v1932
        %v2255 = vpop.f32.mrf.mxu0
        %v2256 = vadd.f32 0.0, %v2255
        %v2257 = vpop.f32.mrf.mxu0
        %v2258 = vadd.f32 0.0, %v2257
        %v2259 = vpop.f32.mrf.mxu0
        %v2260 = vpop.f32.mrf.mxu0
        %2261 = vdwg.mxu0
        %2262 = vmatprep.subr.bf16.mxu0 0
        %2263 = vmatpush1.bf16.msra.mxu0 0
        %2264 = vmatprep.subr.bf16.mxu0 0
        %2265 = vmatpush1.bf16.msra.mxu0 0
        %2266 = vmatprep.subr.bf16.mxu0 0
        %2267 = vmatpush1.bf16.msra.mxu0 0
        %2268 = vmatprep.subr.bf16.mxu0 0
        %2269 = vmatpush1.bf16.msra.mxu0 0
        %2270 = vmatprep.subr.bf16.mxu0 0
        %2271 = vmatpush1.bf16.msra.mxu0 0
        %2272 = vmatprep.subr.bf16.mxu0 0
        %2273 = vmatpush1.bf16.msra.mxu0 0
        %2274 = vmatprep.subr.bf16.mxu0 %v1563
        %2275 = vmatpush1.bf16.msra.mxu0 %v1562
        %2276 = vmatprep.subr.bf16.mxu0 %v1435
        %2277 = vmatpush1.bf16.msra.mxu0 %v1434
        %2278 = vmatprep.subr.bf16.mxu0 0
        %2279 = vmatpush2.bf16.msra.mxu0 0
        %2280 = vmatprep.subr.bf16.mxu0 0
        %2281 = vmatpush2.bf16.msra.mxu0 0
        %2282 = vmatprep.subr.bf16.mxu0 0
        %2283 = vmatpush2.bf16.msra.mxu0 0
        %2284 = vmatprep.subr.bf16.mxu0 0
        %2285 = vmatpush2.bf16.msra.mxu0 0
        %2286 = vmatprep.subr.bf16.mxu0 0
        %2287 = vmatpush2.bf16.msra.mxu0 0
        %2288 = vmatprep.subr.bf16.mxu0 0
        %2289 = vmatpush2.bf16.msra.mxu0 0
        %2290 = vmatprep.subr.bf16.mxu0 0
        %2291 = vmatpush2.bf16.msra.mxu0 0
        %2292 = vmatprep.subr.bf16.mxu0 0
        %2293 = vmatpush2.bf16.msra.mxu0 0
        %2294 = vmatprep.mubr.bf16.mxu0 0
        %2295 = vmatmul.mubr.bf16.gmra.mxu0 %v1932
        %v2296 = vpop.f32.mrf.mxu0
        %v2297 = vadd.f32 0.0, %v2296
        %v2298 = vpop.f32.mrf.mxu0
        %v2299 = vadd.f32 0.0, %v2298
        %v2300 = vpop.f32.mrf.mxu0
        %v2301 = vpop.f32.mrf.mxu0
        %2302 = vdwg.mxu0
        %2303 = vmatprep.subr.bf16.mxu0 0
        %2304 = vmatpush1.bf16.msra.mxu0 0
        %2305 = vmatprep.subr.bf16.mxu0 0
        %2306 = vmatpush1.bf16.msra.mxu0 0
        %2307 = vmatprep.subr.bf16.mxu0 0
        %2308 = vmatpush1.bf16.msra.mxu0 0
        %2309 = vmatprep.subr.bf16.mxu0 0
        %2310 = vmatpush1.bf16.msra.mxu0 0
        %2311 = vmatprep.subr.bf16.mxu0 0
        %2312 = vmatpush1.bf16.msra.mxu0 0
        %2313 = vmatprep.subr.bf16.mxu0 0
        %2314 = vmatpush1.bf16.msra.mxu0 0
        %2315 = vmatprep.subr.bf16.mxu0 %v1565
        %2316 = vmatpush1.bf16.msra.mxu0 %v1564
        %2317 = vmatprep.subr.bf16.mxu0 %v1437
        %2318 = vmatpush1.bf16.msra.mxu0 %v1436
        %2319 = vmatprep.subr.bf16.mxu0 0
        %2320 = vmatpush2.bf16.msra.mxu0 0
        %2321 = vmatprep.subr.bf16.mxu0 0
        %2322 = vmatpush2.bf16.msra.mxu0 0
        %2323 = vmatprep.subr.bf16.mxu0 0
        %2324 = vmatpush2.bf16.msra.mxu0 0
        %2325 = vmatprep.subr.bf16.mxu0 0
        %2326 = vmatpush2.bf16.msra.mxu0 0
        %2327 = vmatprep.subr.bf16.mxu0 0
        %2328 = vmatpush2.bf16.msra.mxu0 0
        %2329 = vmatprep.subr.bf16.mxu0 0
        %2330 = vmatpush2.bf16.msra.mxu0 0
        %2331 = vmatprep.subr.bf16.mxu0 0
        %2332 = vmatpush2.bf16.msra.mxu0 0
        %2333 = vmatprep.subr.bf16.mxu0 0
        %2334 = vmatpush2.bf16.msra.mxu0 0
        %2335 = vmatprep.mubr.bf16.mxu0 0
        %2336 = vmatmul.mubr.bf16.gmra.mxu0 %v1932
        %v2337 = vpop.f32.mrf.mxu0
        %v2338 = vadd.f32 0.0, %v2337
        %v2339 = vpop.f32.mrf.mxu0
        %v2340 = vadd.f32 0.0, %v2339
        %v2341 = vpop.f32.mrf.mxu0
        %v2342 = vpop.f32.mrf.mxu0
        %2343 = vdwg.mxu0
        %2344 = vmatprep.subr.bf16.mxu0 0
        %2345 = vmatpush1.bf16.msra.mxu0 0
        %2346 = vmatprep.subr.bf16.mxu0 0
        %2347 = vmatpush1.bf16.msra.mxu0 0
        %2348 = vmatprep.subr.bf16.mxu0 0
        %2349 = vmatpush1.bf16.msra.mxu0 0
        %2350 = vmatprep.subr.bf16.mxu0 0
        %2351 = vmatpush1.bf16.msra.mxu0 0
        %2352 = vmatprep.subr.bf16.mxu0 0
        %2353 = vmatpush1.bf16.msra.mxu0 0
        %2354 = vmatprep.subr.bf16.mxu0 0
        %2355 = vmatpush1.bf16.msra.mxu0 0
        %2356 = vmatprep.subr.bf16.mxu0 %v1567
        %2357 = vmatpush1.bf16.msra.mxu0 %v1566
        %2358 = vmatprep.subr.bf16.mxu0 %v1439
        %2359 = vmatpush1.bf16.msra.mxu0 %v1438
        %2360 = vmatprep.subr.bf16.mxu0 0
        %2361 = vmatpush2.bf16.msra.mxu0 0
        %2362 = vmatprep.subr.bf16.mxu0 0
        %2363 = vmatpush2.bf16.msra.mxu0 0
        %2364 = vmatprep.subr.bf16.mxu0 0
        %2365 = vmatpush2.bf16.msra.mxu0 0
        %2366 = vmatprep.subr.bf16.mxu0 0
        %2367 = vmatpush2.bf16.msra.mxu0 0
        %2368 = vmatprep.subr.bf16.mxu0 0
        %2369 = vmatpush2.bf16.msra.mxu0 0
        %2370 = vmatprep.subr.bf16.mxu0 0
        %2371 = vmatpush2.bf16.msra.mxu0 0
        %2372 = vmatprep.subr.bf16.mxu0 0
        %2373 = vmatpush2.bf16.msra.mxu0 0
        %2374 = vmatprep.subr.bf16.mxu0 0
        %2375 = vmatpush2.bf16.msra.mxu0 0
        %2376 = vmatprep.mubr.bf16.mxu0 0
        %2377 = vmatmul.mubr.bf16.gmra.mxu0 %v1932
        %v2378 = vpop.f32.mrf.mxu0
        %v2379 = vadd.f32 0.0, %v2378
        %v2380 = vpop.f32.mrf.mxu0
        %v2381 = vadd.f32 0.0, %v2380
        %v2382 = vpop.f32.mrf.mxu0
        %v2383 = vpop.f32.mrf.mxu0
        %2384 = vdwg.mxu0
        %2385 = vmatprep.subr.bf16.mxu0 0
        %2386 = vmatpush1.bf16.msra.mxu0 0
        %2387 = vmatprep.subr.bf16.mxu0 0
        %2388 = vmatpush1.bf16.msra.mxu0 0
        %2389 = vmatprep.subr.bf16.mxu0 0
        %2390 = vmatpush1.bf16.msra.mxu0 0
        %2391 = vmatprep.subr.bf16.mxu0 0
        %2392 = vmatpush1.bf16.msra.mxu0 0
        %2393 = vmatprep.subr.bf16.mxu0 0
        %2394 = vmatpush1.bf16.msra.mxu0 0
        %2395 = vmatprep.subr.bf16.mxu0 0
        %2396 = vmatpush1.bf16.msra.mxu0 0
        %2397 = vmatprep.subr.bf16.mxu0 %v1569
        %2398 = vmatpush1.bf16.msra.mxu0 %v1568
        %2399 = vmatprep.subr.bf16.mxu0 %v1441
        %2400 = vmatpush1.bf16.msra.mxu0 %v1440
        %2401 = vmatprep.subr.bf16.mxu0 0
        %2402 = vmatpush2.bf16.msra.mxu0 0
        %2403 = vmatprep.subr.bf16.mxu0 0
        %2404 = vmatpush2.bf16.msra.mxu0 0
        %2405 = vmatprep.subr.bf16.mxu0 0
        %2406 = vmatpush2.bf16.msra.mxu0 0
        %2407 = vmatprep.subr.bf16.mxu0 0
        %2408 = vmatpush2.bf16.msra.mxu0 0
        %2409 = vmatprep.subr.bf16.mxu0 0
        %2410 = vmatpush2.bf16.msra.mxu0 0
        %2411 = vmatprep.subr.bf16.mxu0 0
        %2412 = vmatpush2.bf16.msra.mxu0 0
        %2413 = vmatprep.subr.bf16.mxu0 0
        %2414 = vmatpush2.bf16.msra.mxu0 0
        %2415 = vmatprep.subr.bf16.mxu0 0
        %2416 = vmatpush2.bf16.msra.mxu0 0
        %2417 = vmatprep.mubr.bf16.mxu0 0
        %2418 = vmatmul.mubr.bf16.gmra.mxu0 %v1932
        %v2419 = vpop.f32.mrf.mxu0
        %v2420 = vadd.f32 0.0, %v2419
        %v2421 = vpop.f32.mrf.mxu0
        %v2422 = vadd.f32 0.0, %v2421
        %v2423 = vpop.f32.mrf.mxu0
        %v2424 = vpop.f32.mrf.mxu0
        %2425 = vdwg.mxu0
        %2426 = vmatprep.subr.bf16.mxu0 0
        %2427 = vmatpush1.bf16.msra.mxu0 0
        %2428 = vmatprep.subr.bf16.mxu0 0
        %2429 = vmatpush1.bf16.msra.mxu0 0
        %2430 = vmatprep.subr.bf16.mxu0 0
        %2431 = vmatpush1.bf16.msra.mxu0 0
        %2432 = vmatprep.subr.bf16.mxu0 0
        %2433 = vmatpush1.bf16.msra.mxu0 0
        %2434 = vmatprep.subr.bf16.mxu0 0
        %2435 = vmatpush1.bf16.msra.mxu0 0
        %2436 = vmatprep.subr.bf16.mxu0 0
        %2437 = vmatpush1.bf16.msra.mxu0 0
        %2438 = vmatprep.subr.bf16.mxu0 %v1571
        %2439 = vmatpush1.bf16.msra.mxu0 %v1570
        %2440 = vmatprep.subr.bf16.mxu0 %v1443
        %2441 = vmatpush1.bf16.msra.mxu0 %v1442
        %2442 = vmatprep.subr.bf16.mxu0 0
        %2443 = vmatpush2.bf16.msra.mxu0 0
        %2444 = vmatprep.subr.bf16.mxu0 0
        %2445 = vmatpush2.bf16.msra.mxu0 0
        %2446 = vmatprep.subr.bf16.mxu0 0
        %2447 = vmatpush2.bf16.msra.mxu0 0
        %2448 = vmatprep.subr.bf16.mxu0 0
        %2449 = vmatpush2.bf16.msra.mxu0 0
        %2450 = vmatprep.subr.bf16.mxu0 0
        %2451 = vmatpush2.bf16.msra.mxu0 0
        %2452 = vmatprep.subr.bf16.mxu0 0
        %2453 = vmatpush2.bf16.msra.mxu0 0
        %2454 = vmatprep.subr.bf16.mxu0 0
        %2455 = vmatpush2.bf16.msra.mxu0 0
        %2456 = vmatprep.subr.bf16.mxu0 0
        %2457 = vmatpush2.bf16.msra.mxu0 0
        %2458 = vmatprep.mubr.bf16.mxu0 0
        %2459 = vmatmul.mubr.bf16.gmra.mxu0 %v1932
        %v2460 = vpop.f32.mrf.mxu0
        %v2461 = vadd.f32 0.0, %v2460
        %v2462 = vpop.f32.mrf.mxu0
        %v2463 = vadd.f32 0.0, %v2462
        %v2464 = vpop.f32.mrf.mxu0
        %v2465 = vpop.f32.mrf.mxu0
        %2466 = vdwg.mxu0
        %2467 = vmatprep.subr.bf16.mxu0 0
        %2468 = vmatpush1.bf16.msra.mxu0 0
        %2469 = vmatprep.subr.bf16.mxu0 0
        %2470 = vmatpush1.bf16.msra.mxu0 0
        %2471 = vmatprep.subr.bf16.mxu0 0
        %2472 = vmatpush1.bf16.msra.mxu0 0
        %2473 = vmatprep.subr.bf16.mxu0 0
        %2474 = vmatpush1.bf16.msra.mxu0 0
        %2475 = vmatprep.subr.bf16.mxu0 0
        %2476 = vmatpush1.bf16.msra.mxu0 0
        %2477 = vmatprep.subr.bf16.mxu0 0
        %2478 = vmatpush1.bf16.msra.mxu0 0
        %2479 = vmatprep.subr.bf16.mxu0 %v1573
        %2480 = vmatpush1.bf16.msra.mxu0 %v1572
        %2481 = vmatprep.subr.bf16.mxu0 %v1445
        %2482 = vmatpush1.bf16.msra.mxu0 %v1444
        %2483 = vmatprep.subr.bf16.mxu0 0
        %2484 = vmatpush2.bf16.msra.mxu0 0
        %2485 = vmatprep.subr.bf16.mxu0 0
        %2486 = vmatpush2.bf16.msra.mxu0 0
        %2487 = vmatprep.subr.bf16.mxu0 0
        %2488 = vmatpush2.bf16.msra.mxu0 0
        %2489 = vmatprep.subr.bf16.mxu0 0
        %2490 = vmatpush2.bf16.msra.mxu0 0
        %2491 = vmatprep.subr.bf16.mxu0 0
        %2492 = vmatpush2.bf16.msra.mxu0 0
        %2493 = vmatprep.subr.bf16.mxu0 0
        %2494 = vmatpush2.bf16.msra.mxu0 0
        %2495 = vmatprep.subr.bf16.mxu0 0
        %2496 = vmatpush2.bf16.msra.mxu0 0
        %2497 = vmatprep.subr.bf16.mxu0 0
        %2498 = vmatpush2.bf16.msra.mxu0 0
        %2499 = vmatprep.mubr.bf16.mxu0 0
        %2500 = vmatmul.mubr.bf16.gmra.mxu0 %v1932
        %v2501 = vpop.f32.mrf.mxu0
        %v2502 = vadd.f32 0.0, %v2501
        %v2503 = vpop.f32.mrf.mxu0
        %v2504 = vadd.f32 0.0, %v2503
        %v2505 = vpop.f32.mrf.mxu0
        %v2506 = vpop.f32.mrf.mxu0
        %2507 = vdwg.mxu0
        %2508 = vmatprep.subr.bf16.mxu0 0
        %2509 = vmatpush1.bf16.msra.mxu0 0
        %2510 = vmatprep.subr.bf16.mxu0 0
        %2511 = vmatpush1.bf16.msra.mxu0 0
        %2512 = vmatprep.subr.bf16.mxu0 0
        %2513 = vmatpush1.bf16.msra.mxu0 0
        %2514 = vmatprep.subr.bf16.mxu0 0
        %2515 = vmatpush1.bf16.msra.mxu0 0
        %2516 = vmatprep.subr.bf16.mxu0 0
        %2517 = vmatpush1.bf16.msra.mxu0 0
        %2518 = vmatprep.subr.bf16.mxu0 0
        %2519 = vmatpush1.bf16.msra.mxu0 0
        %2520 = vmatprep.subr.bf16.mxu0 %v1575
        %2521 = vmatpush1.bf16.msra.mxu0 %v1574
        %2522 = vmatprep.subr.bf16.mxu0 %v1447
        %2523 = vmatpush1.bf16.msra.mxu0 %v1446
        %2524 = vmatprep.subr.bf16.mxu0 0
        %2525 = vmatpush2.bf16.msra.mxu0 0
        %2526 = vmatprep.subr.bf16.mxu0 0
        %2527 = vmatpush2.bf16.msra.mxu0 0
        %2528 = vmatprep.subr.bf16.mxu0 0
        %2529 = vmatpush2.bf16.msra.mxu0 0
        %2530 = vmatprep.subr.bf16.mxu0 0
        %2531 = vmatpush2.bf16.msra.mxu0 0
        %2532 = vmatprep.subr.bf16.mxu0 0
        %2533 = vmatpush2.bf16.msra.mxu0 0
        %2534 = vmatprep.subr.bf16.mxu0 0
        %2535 = vmatpush2.bf16.msra.mxu0 0
        %2536 = vmatprep.subr.bf16.mxu0 0
        %2537 = vmatpush2.bf16.msra.mxu0 0
        %2538 = vmatprep.subr.bf16.mxu0 0
        %2539 = vmatpush2.bf16.msra.mxu0 0
        %2540 = vmatprep.mubr.bf16.mxu0 0
        %2541 = vmatmul.mubr.bf16.gmra.mxu0 %v1932
        %v2542 = vpop.f32.mrf.mxu0
        %v2543 = vadd.f32 0.0, %v2542
        %v2544 = vpop.f32.mrf.mxu0
        %v2545 = vadd.f32 0.0, %v2544
        %v2546 = vpop.f32.mrf.mxu0
        %v2547 = vpop.f32.mrf.mxu0
        %2548 = vdwg.mxu0
        %2549 = vmatprep.subr.bf16.mxu0 0
        %2550 = vmatpush1.bf16.msra.mxu0 0
        %2551 = vmatprep.subr.bf16.mxu0 0
        %2552 = vmatpush1.bf16.msra.mxu0 0
        %2553 = vmatprep.subr.bf16.mxu0 0
        %2554 = vmatpush1.bf16.msra.mxu0 0
        %2555 = vmatprep.subr.bf16.mxu0 0
        %2556 = vmatpush1.bf16.msra.mxu0 0
        %2557 = vmatprep.subr.bf16.mxu0 0
        %2558 = vmatpush1.bf16.msra.mxu0 0
        %2559 = vmatprep.subr.bf16.mxu0 0
        %2560 = vmatpush1.bf16.msra.mxu0 0
        %2561 = vmatprep.subr.bf16.mxu0 %v1577
        %2562 = vmatpush1.bf16.msra.mxu0 %v1576
        %2563 = vmatprep.subr.bf16.mxu0 %v1449
        %2564 = vmatpush1.bf16.msra.mxu0 %v1448
        %2565 = vmatprep.subr.bf16.mxu0 0
        %2566 = vmatpush2.bf16.msra.mxu0 0
        %2567 = vmatprep.subr.bf16.mxu0 0
        %2568 = vmatpush2.bf16.msra.mxu0 0
        %2569 = vmatprep.subr.bf16.mxu0 0
        %2570 = vmatpush2.bf16.msra.mxu0 0
        %2571 = vmatprep.subr.bf16.mxu0 0
        %2572 = vmatpush2.bf16.msra.mxu0 0
        %2573 = vmatprep.subr.bf16.mxu0 0
        %2574 = vmatpush2.bf16.msra.mxu0 0
        %2575 = vmatprep.subr.bf16.mxu0 0
        %2576 = vmatpush2.bf16.msra.mxu0 0
        %2577 = vmatprep.subr.bf16.mxu0 0
        %2578 = vmatpush2.bf16.msra.mxu0 0
        %2579 = vmatprep.subr.bf16.mxu0 0
        %2580 = vmatpush2.bf16.msra.mxu0 0
        %2581 = vmatprep.mubr.bf16.mxu0 0
        %2582 = vmatmul.mubr.bf16.gmra.mxu0 %v1932
        %v2583 = vpop.f32.mrf.mxu0
        %v2584 = vadd.f32 0.0, %v2583
        %v2585 = vpop.f32.mrf.mxu0
        %v2586 = vadd.f32 0.0, %v2585
        %v2587 = vpop.f32.mrf.mxu0
        %v2588 = vpop.f32.mrf.mxu0
        %2589 = vdwg.mxu0
        %2590 = vmatprep.subr.bf16.mxu0 0
        %2591 = vmatpush1.bf16.msra.mxu0 0
        %2592 = vmatprep.subr.bf16.mxu0 0
        %2593 = vmatpush1.bf16.msra.mxu0 0
        %2594 = vmatprep.subr.bf16.mxu0 0
        %2595 = vmatpush1.bf16.msra.mxu0 0
        %2596 = vmatprep.subr.bf16.mxu0 0
        %2597 = vmatpush1.bf16.msra.mxu0 0
        %2598 = vmatprep.subr.bf16.mxu0 0
        %2599 = vmatpush1.bf16.msra.mxu0 0
        %2600 = vmatprep.subr.bf16.mxu0 0
        %2601 = vmatpush1.bf16.msra.mxu0 0
        %2602 = vmatprep.subr.bf16.mxu0 %v1579
        %2603 = vmatpush1.bf16.msra.mxu0 %v1578
        %2604 = vmatprep.subr.bf16.mxu0 %v1451
        %2605 = vmatpush1.bf16.msra.mxu0 %v1450
        %2606 = vmatprep.subr.bf16.mxu0 0
        %2607 = vmatpush2.bf16.msra.mxu0 0
        %2608 = vmatprep.subr.bf16.mxu0 0
        %2609 = vmatpush2.bf16.msra.mxu0 0
        %2610 = vmatprep.subr.bf16.mxu0 0
        %2611 = vmatpush2.bf16.msra.mxu0 0
        %2612 = vmatprep.subr.bf16.mxu0 0
        %2613 = vmatpush2.bf16.msra.mxu0 0
        %2614 = vmatprep.subr.bf16.mxu0 0
        %2615 = vmatpush2.bf16.msra.mxu0 0
        %2616 = vmatprep.subr.bf16.mxu0 0
        %2617 = vmatpush2.bf16.msra.mxu0 0
        %2618 = vmatprep.subr.bf16.mxu0 0
        %2619 = vmatpush2.bf16.msra.mxu0 0
        %2620 = vmatprep.subr.bf16.mxu0 0
        %2621 = vmatpush2.bf16.msra.mxu0 0
        %2622 = vmatprep.mubr.bf16.mxu0 0
        %2623 = vmatmul.mubr.bf16.gmra.mxu0 %v1932
        %v2624 = vpop.f32.mrf.mxu0
        %v2625 = vadd.f32 0.0, %v2624
        %v2626 = vpop.f32.mrf.mxu0
        %v2627 = vadd.f32 0.0, %v2626
        %v2628 = vpop.f32.mrf.mxu0
        %v2629 = vpop.f32.mrf.mxu0
        %2630 = vdwg.mxu0
        %2631 = vmatprep.subr.bf16.mxu0 0
        %2632 = vmatpush1.bf16.msra.mxu0 0
        %2633 = vmatprep.subr.bf16.mxu0 0
        %2634 = vmatpush1.bf16.msra.mxu0 0
        %2635 = vmatprep.subr.bf16.mxu0 0
        %2636 = vmatpush1.bf16.msra.mxu0 0
        %2637 = vmatprep.subr.bf16.mxu0 0
        %2638 = vmatpush1.bf16.msra.mxu0 0
        %2639 = vmatprep.subr.bf16.mxu0 0
        %2640 = vmatpush1.bf16.msra.mxu0 0
        %2641 = vmatprep.subr.bf16.mxu0 0
        %2642 = vmatpush1.bf16.msra.mxu0 0
        %2643 = vmatprep.subr.bf16.mxu0 %v1581
        %2644 = vmatpush1.bf16.msra.mxu0 %v1580
        %2645 = vmatprep.subr.bf16.mxu0 %v1453
        %2646 = vmatpush1.bf16.msra.mxu0 %v1452
        %2647 = vmatprep.subr.bf16.mxu0 0
        %2648 = vmatpush2.bf16.msra.mxu0 0
        %2649 = vmatprep.subr.bf16.mxu0 0
        %2650 = vmatpush2.bf16.msra.mxu0 0
        %2651 = vmatprep.subr.bf16.mxu0 0
        %2652 = vmatpush2.bf16.msra.mxu0 0
        %2653 = vmatprep.subr.bf16.mxu0 0
        %2654 = vmatpush2.bf16.msra.mxu0 0
        %2655 = vmatprep.subr.bf16.mxu0 0
        %2656 = vmatpush2.bf16.msra.mxu0 0
        %2657 = vmatprep.subr.bf16.mxu0 0
        %2658 = vmatpush2.bf16.msra.mxu0 0
        %2659 = vmatprep.subr.bf16.mxu0 0
        %2660 = vmatpush2.bf16.msra.mxu0 0
        %2661 = vmatprep.subr.bf16.mxu0 0
        %2662 = vmatpush2.bf16.msra.mxu0 0
        %2663 = vmatprep.mubr.bf16.mxu0 0
        %2664 = vmatmul.mubr.bf16.gmra.mxu0 %v1932
        %v2665 = vpop.f32.mrf.mxu0
        %v2666 = vadd.f32 0.0, %v2665
        %v2667 = vpop.f32.mrf.mxu0
        %v2668 = vadd.f32 0.0, %v2667
        %v2669 = vpop.f32.mrf.mxu0
        %v2670 = vpop.f32.mrf.mxu0
        %2671 = vdwg.mxu0
        %2672 = vmatprep.subr.bf16.mxu0 0
        %2673 = vmatpush1.bf16.msra.mxu0 0
        %2674 = vmatprep.subr.bf16.mxu0 0
        %2675 = vmatpush1.bf16.msra.mxu0 0
        %2676 = vmatprep.subr.bf16.mxu0 0
        %2677 = vmatpush1.bf16.msra.mxu0 0
        %2678 = vmatprep.subr.bf16.mxu0 0
        %2679 = vmatpush1.bf16.msra.mxu0 0
        %2680 = vmatprep.subr.bf16.mxu0 0
        %2681 = vmatpush1.bf16.msra.mxu0 0
        %2682 = vmatprep.subr.bf16.mxu0 0
        %2683 = vmatpush1.bf16.msra.mxu0 0
        %2684 = vmatprep.subr.bf16.mxu0 %v1583
        %2685 = vmatpush1.bf16.msra.mxu0 %v1582
        %2686 = vmatprep.subr.bf16.mxu0 %v1455
        %2687 = vmatpush1.bf16.msra.mxu0 %v1454
        %2688 = vmatprep.subr.bf16.mxu0 0
        %2689 = vmatpush2.bf16.msra.mxu0 0
        %2690 = vmatprep.subr.bf16.mxu0 0
        %2691 = vmatpush2.bf16.msra.mxu0 0
        %2692 = vmatprep.subr.bf16.mxu0 0
        %2693 = vmatpush2.bf16.msra.mxu0 0
        %2694 = vmatprep.subr.bf16.mxu0 0
        %2695 = vmatpush2.bf16.msra.mxu0 0
        %2696 = vmatprep.subr.bf16.mxu0 0
        %2697 = vmatpush2.bf16.msra.mxu0 0
        %2698 = vmatprep.subr.bf16.mxu0 0
        %2699 = vmatpush2.bf16.msra.mxu0 0
        %2700 = vmatprep.subr.bf16.mxu0 0
        %2701 = vmatpush2.bf16.msra.mxu0 0
        %2702 = vmatprep.subr.bf16.mxu0 0
        %2703 = vmatpush2.bf16.msra.mxu0 0
        %2704 = vmatprep.mubr.bf16.mxu0 0
        %2705 = vmatmul.mubr.bf16.gmra.mxu0 %v1932
        %v2706 = vpop.f32.mrf.mxu0
        %v2707 = vadd.f32 0.0, %v2706
        %v2708 = vpop.f32.mrf.mxu0
        %v2709 = vadd.f32 0.0, %v2708
        %v2710 = vpop.f32.mrf.mxu0
        %v2711 = vpop.f32.mrf.mxu0
        %2712 = vdwg.mxu0
        %2713 = vmatprep.subr.bf16.mxu0 0
        %2714 = vmatpush1.bf16.msra.mxu0 0
        %2715 = vmatprep.subr.bf16.mxu0 0
        %2716 = vmatpush1.bf16.msra.mxu0 0
        %2717 = vmatprep.subr.bf16.mxu0 0
        %2718 = vmatpush1.bf16.msra.mxu0 0
        %2719 = vmatprep.subr.bf16.mxu0 0
        %2720 = vmatpush1.bf16.msra.mxu0 0
        %2721 = vmatprep.subr.bf16.mxu0 0
        %2722 = vmatpush1.bf16.msra.mxu0 0
        %2723 = vmatprep.subr.bf16.mxu0 0
        %2724 = vmatpush1.bf16.msra.mxu0 0
        %2725 = vmatprep.subr.bf16.mxu0 %v1585
        %2726 = vmatpush1.bf16.msra.mxu0 %v1584
        %2727 = vmatprep.subr.bf16.mxu0 %v1457
        %2728 = vmatpush1.bf16.msra.mxu0 %v1456
        %2729 = vmatprep.subr.bf16.mxu0 0
        %2730 = vmatpush2.bf16.msra.mxu0 0
        %2731 = vmatprep.subr.bf16.mxu0 0
        %2732 = vmatpush2.bf16.msra.mxu0 0
        %2733 = vmatprep.subr.bf16.mxu0 0
        %2734 = vmatpush2.bf16.msra.mxu0 0
        %2735 = vmatprep.subr.bf16.mxu0 0
        %2736 = vmatpush2.bf16.msra.mxu0 0
        %2737 = vmatprep.subr.bf16.mxu0 0
        %2738 = vmatpush2.bf16.msra.mxu0 0
        %2739 = vmatprep.subr.bf16.mxu0 0
        %2740 = vmatpush2.bf16.msra.mxu0 0
        %2741 = vmatprep.subr.bf16.mxu0 0
        %2742 = vmatpush2.bf16.msra.mxu0 0
        %2743 = vmatprep.subr.bf16.mxu0 0
        %2744 = vmatpush2.bf16.msra.mxu0 0
        %2745 = vmatprep.mubr.bf16.mxu0 0
        %2746 = vmatmul.mubr.bf16.gmra.mxu0 %v1932
        %v2747 = vpop.f32.mrf.mxu0
        %v2748 = vadd.f32 0.0, %v2747
        %v2749 = vpop.f32.mrf.mxu0
        %v2750 = vadd.f32 0.0, %v2749
        %v2751 = vpop.f32.mrf.mxu0
        %v2752 = vpop.f32.mrf.mxu0
        %2753 = vdwg.mxu0
        %2754 = vmatprep.subr.bf16.mxu0 0
        %2755 = vmatpush1.bf16.msra.mxu0 0
        %2756 = vmatprep.subr.bf16.mxu0 0
        %2757 = vmatpush1.bf16.msra.mxu0 0
        %2758 = vmatprep.subr.bf16.mxu0 0
        %2759 = vmatpush1.bf16.msra.mxu0 0
        %2760 = vmatprep.subr.bf16.mxu0 0
        %2761 = vmatpush1.bf16.msra.mxu0 0
        %2762 = vmatprep.subr.bf16.mxu0 0
        %2763 = vmatpush1.bf16.msra.mxu0 0
        %2764 = vmatprep.subr.bf16.mxu0 0
        %2765 = vmatpush1.bf16.msra.mxu0 0
        %2766 = vmatprep.subr.bf16.mxu0 %v1587
        %2767 = vmatpush1.bf16.msra.mxu0 %v1586
        %2768 = vmatprep.subr.bf16.mxu0 %v1459
        %2769 = vmatpush1.bf16.msra.mxu0 %v1458
        %2770 = vmatprep.subr.bf16.mxu0 0
        %2771 = vmatpush2.bf16.msra.mxu0 0
        %2772 = vmatprep.subr.bf16.mxu0 0
        %2773 = vmatpush2.bf16.msra.mxu0 0
        %2774 = vmatprep.subr.bf16.mxu0 0
        %2775 = vmatpush2.bf16.msra.mxu0 0
        %2776 = vmatprep.subr.bf16.mxu0 0
        %2777 = vmatpush2.bf16.msra.mxu0 0
        %2778 = vmatprep.subr.bf16.mxu0 0
        %2779 = vmatpush2.bf16.msra.mxu0 0
        %2780 = vmatprep.subr.bf16.mxu0 0
        %2781 = vmatpush2.bf16.msra.mxu0 0
        %2782 = vmatprep.subr.bf16.mxu0 0
        %2783 = vmatpush2.bf16.msra.mxu0 0
        %2784 = vmatprep.subr.bf16.mxu0 0
        %2785 = vmatpush2.bf16.msra.mxu0 0
        %2786 = vmatprep.mubr.bf16.mxu0 0
        %2787 = vmatmul.mubr.bf16.gmra.mxu0 %v1932
        %v2788 = vpop.f32.mrf.mxu0
        %v2789 = vadd.f32 0.0, %v2788
        %v2790 = vpop.f32.mrf.mxu0
        %v2791 = vadd.f32 0.0, %v2790
        %v2792 = vpop.f32.mrf.mxu0
        %v2793 = vpop.f32.mrf.mxu0
        %2794 = vdwg.mxu0
        %2795 = vmatprep.subr.bf16.mxu0 0
        %2796 = vmatpush1.bf16.msra.mxu0 0
        %2797 = vmatprep.subr.bf16.mxu0 0
        %2798 = vmatpush1.bf16.msra.mxu0 0
        %2799 = vmatprep.subr.bf16.mxu0 0
        %2800 = vmatpush1.bf16.msra.mxu0 0
        %2801 = vmatprep.subr.bf16.mxu0 0
        %2802 = vmatpush1.bf16.msra.mxu0 0
        %2803 = vmatprep.subr.bf16.mxu0 0
        %2804 = vmatpush1.bf16.msra.mxu0 0
        %2805 = vmatprep.subr.bf16.mxu0 0
        %2806 = vmatpush1.bf16.msra.mxu0 0
        %2807 = vmatprep.subr.bf16.mxu0 %v1589
        %2808 = vmatpush1.bf16.msra.mxu0 %v1588
        %2809 = vmatprep.subr.bf16.mxu0 %v1461
        %2810 = vmatpush1.bf16.msra.mxu0 %v1460
        %2811 = vmatprep.subr.bf16.mxu0 0
        %2812 = vmatpush2.bf16.msra.mxu0 0
        %2813 = vmatprep.subr.bf16.mxu0 0
        %2814 = vmatpush2.bf16.msra.mxu0 0
        %2815 = vmatprep.subr.bf16.mxu0 0
        %2816 = vmatpush2.bf16.msra.mxu0 0
        %2817 = vmatprep.subr.bf16.mxu0 0
        %2818 = vmatpush2.bf16.msra.mxu0 0
        %2819 = vmatprep.subr.bf16.mxu0 0
        %2820 = vmatpush2.bf16.msra.mxu0 0
        %2821 = vmatprep.subr.bf16.mxu0 0
        %2822 = vmatpush2.bf16.msra.mxu0 0
        %2823 = vmatprep.subr.bf16.mxu0 0
        %2824 = vmatpush2.bf16.msra.mxu0 0
        %2825 = vmatprep.subr.bf16.mxu0 0
        %2826 = vmatpush2.bf16.msra.mxu0 0
        %2827 = vmatprep.mubr.bf16.mxu0 0
        %2828 = vmatmul.mubr.bf16.gmra.mxu0 %v1932
        %v2829 = vpop.f32.mrf.mxu0
        %v2830 = vadd.f32 0.0, %v2829
        %v2831 = vpop.f32.mrf.mxu0
        %v2832 = vadd.f32 0.0, %v2831
        %v2833 = vpop.f32.mrf.mxu0
        %v2834 = vpop.f32.mrf.mxu0
        %2835 = vdwg.mxu0
        %2836 = vmatprep.subr.bf16.mxu0 0
        %2837 = vmatpush1.bf16.msra.mxu0 0
        %2838 = vmatprep.subr.bf16.mxu0 0
        %2839 = vmatpush1.bf16.msra.mxu0 0
        %2840 = vmatprep.subr.bf16.mxu0 0
        %2841 = vmatpush1.bf16.msra.mxu0 0
        %2842 = vmatprep.subr.bf16.mxu0 0
        %2843 = vmatpush1.bf16.msra.mxu0 0
        %2844 = vmatprep.subr.bf16.mxu0 0
        %2845 = vmatpush1.bf16.msra.mxu0 0
        %2846 = vmatprep.subr.bf16.mxu0 0
        %2847 = vmatpush1.bf16.msra.mxu0 0
        %2848 = vmatprep.subr.bf16.mxu0 %v1591
        %2849 = vmatpush1.bf16.msra.mxu0 %v1590
        %2850 = vmatprep.subr.bf16.mxu0 %v1463
        %2851 = vmatpush1.bf16.msra.mxu0 %v1462
        %2852 = vmatprep.subr.bf16.mxu0 0
        %2853 = vmatpush2.bf16.msra.mxu0 0
        %2854 = vmatprep.subr.bf16.mxu0 0
        %2855 = vmatpush2.bf16.msra.mxu0 0
        %2856 = vmatprep.subr.bf16.mxu0 0
        %2857 = vmatpush2.bf16.msra.mxu0 0
        %2858 = vmatprep.subr.bf16.mxu0 0
        %2859 = vmatpush2.bf16.msra.mxu0 0
        %2860 = vmatprep.subr.bf16.mxu0 0
        %2861 = vmatpush2.bf16.msra.mxu0 0
        %2862 = vmatprep.subr.bf16.mxu0 0
        %2863 = vmatpush2.bf16.msra.mxu0 0
        %2864 = vmatprep.subr.bf16.mxu0 0
        %2865 = vmatpush2.bf16.msra.mxu0 0
        %2866 = vmatprep.subr.bf16.mxu0 0
        %2867 = vmatpush2.bf16.msra.mxu0 0
        %2868 = vmatprep.mubr.bf16.mxu0 0
        %2869 = vmatmul.mubr.bf16.gmra.mxu0 %v1932
        %v2870 = vpop.f32.mrf.mxu0
        %v2871 = vadd.f32 0.0, %v2870
        %v2872 = vpop.f32.mrf.mxu0
        %v2873 = vadd.f32 0.0, %v2872
        %v2874 = vpop.f32.mrf.mxu0
        %v2875 = vpop.f32.mrf.mxu0
        %2876 = vdwg.mxu0
        %2877 = vmatprep.subr.bf16.mxu0 0
        %2878 = vmatpush1.bf16.msra.mxu0 0
        %2879 = vmatprep.subr.bf16.mxu0 0
        %2880 = vmatpush1.bf16.msra.mxu0 0
        %2881 = vmatprep.subr.bf16.mxu0 0
        %2882 = vmatpush1.bf16.msra.mxu0 0
        %2883 = vmatprep.subr.bf16.mxu0 0
        %2884 = vmatpush1.bf16.msra.mxu0 0
        %2885 = vmatprep.subr.bf16.mxu0 0
        %2886 = vmatpush1.bf16.msra.mxu0 0
        %2887 = vmatprep.subr.bf16.mxu0 0
        %2888 = vmatpush1.bf16.msra.mxu0 0
        %2889 = vmatprep.subr.bf16.mxu0 %v1593
        %2890 = vmatpush1.bf16.msra.mxu0 %v1592
        %2891 = vmatprep.subr.bf16.mxu0 %v1465
        %2892 = vmatpush1.bf16.msra.mxu0 %v1464
        %2893 = vmatprep.subr.bf16.mxu0 0
        %2894 = vmatpush2.bf16.msra.mxu0 0
        %2895 = vmatprep.subr.bf16.mxu0 0
        %2896 = vmatpush2.bf16.msra.mxu0 0
        %2897 = vmatprep.subr.bf16.mxu0 0
        %2898 = vmatpush2.bf16.msra.mxu0 0
        %2899 = vmatprep.subr.bf16.mxu0 0
        %2900 = vmatpush2.bf16.msra.mxu0 0
        %2901 = vmatprep.subr.bf16.mxu0 0
        %2902 = vmatpush2.bf16.msra.mxu0 0
        %2903 = vmatprep.subr.bf16.mxu0 0
        %2904 = vmatpush2.bf16.msra.mxu0 0
        %2905 = vmatprep.subr.bf16.mxu0 0
        %2906 = vmatpush2.bf16.msra.mxu0 0
        %2907 = vmatprep.subr.bf16.mxu0 0
        %2908 = vmatpush2.bf16.msra.mxu0 0
        %2909 = vmatprep.mubr.bf16.mxu0 0
        %2910 = vmatmul.mubr.bf16.gmra.mxu0 %v1932
        %v2911 = vpop.f32.mrf.mxu0
        %v2912 = vadd.f32 0.0, %v2911
        %v2913 = vpop.f32.mrf.mxu0
        %v2914 = vadd.f32 0.0, %v2913
        %v2915 = vpop.f32.mrf.mxu0
        %v2916 = vpop.f32.mrf.mxu0
        %2917 = vdwg.mxu0
        %2918 = vmatprep.subr.bf16.mxu0 0
        %2919 = vmatpush1.bf16.msra.mxu0 0
        %2920 = vmatprep.subr.bf16.mxu0 0
        %2921 = vmatpush1.bf16.msra.mxu0 0
        %2922 = vmatprep.subr.bf16.mxu0 0
        %2923 = vmatpush1.bf16.msra.mxu0 0
        %2924 = vmatprep.subr.bf16.mxu0 0
        %2925 = vmatpush1.bf16.msra.mxu0 0
        %2926 = vmatprep.subr.bf16.mxu0 0
        %2927 = vmatpush1.bf16.msra.mxu0 0
        %2928 = vmatprep.subr.bf16.mxu0 0
        %2929 = vmatpush1.bf16.msra.mxu0 0
        %2930 = vmatprep.subr.bf16.mxu0 %v1595
        %2931 = vmatpush1.bf16.msra.mxu0 %v1594
        %2932 = vmatprep.subr.bf16.mxu0 %v1467
        %2933 = vmatpush1.bf16.msra.mxu0 %v1466
        %2934 = vmatprep.subr.bf16.mxu0 0
        %2935 = vmatpush2.bf16.msra.mxu0 0
        %2936 = vmatprep.subr.bf16.mxu0 0
        %2937 = vmatpush2.bf16.msra.mxu0 0
        %2938 = vmatprep.subr.bf16.mxu0 0
        %2939 = vmatpush2.bf16.msra.mxu0 0
        %2940 = vmatprep.subr.bf16.mxu0 0
        %2941 = vmatpush2.bf16.msra.mxu0 0
        %2942 = vmatprep.subr.bf16.mxu0 0
        %2943 = vmatpush2.bf16.msra.mxu0 0
        %2944 = vmatprep.subr.bf16.mxu0 0
        %2945 = vmatpush2.bf16.msra.mxu0 0
        %2946 = vmatprep.subr.bf16.mxu0 0
        %2947 = vmatpush2.bf16.msra.mxu0 0
        %2948 = vmatprep.subr.bf16.mxu0 0
        %2949 = vmatpush2.bf16.msra.mxu0 0
        %2950 = vmatprep.mubr.bf16.mxu0 0
        %2951 = vmatmul.mubr.bf16.gmra.mxu0 %v1932
        %v2952 = vpop.f32.mrf.mxu0
        %v2953 = vadd.f32 0.0, %v2952
        %v2954 = vpop.f32.mrf.mxu0
        %v2955 = vadd.f32 0.0, %v2954
        %v2956 = vpop.f32.mrf.mxu0
        %v2957 = vpop.f32.mrf.mxu0
        %2958 = vdwg.mxu0
        %2959 = vmatprep.subr.bf16.mxu0 0
        %2960 = vmatpush1.bf16.msra.mxu0 0
        %2961 = vmatprep.subr.bf16.mxu0 0
        %2962 = vmatpush1.bf16.msra.mxu0 0
        %2963 = vmatprep.subr.bf16.mxu0 0
        %2964 = vmatpush1.bf16.msra.mxu0 0
        %2965 = vmatprep.subr.bf16.mxu0 0
        %2966 = vmatpush1.bf16.msra.mxu0 0
        %2967 = vmatprep.subr.bf16.mxu0 0
        %2968 = vmatpush1.bf16.msra.mxu0 0
        %2969 = vmatprep.subr.bf16.mxu0 0
        %2970 = vmatpush1.bf16.msra.mxu0 0
        %2971 = vmatprep.subr.bf16.mxu0 %v1597
        %2972 = vmatpush1.bf16.msra.mxu0 %v1596
        %2973 = vmatprep.subr.bf16.mxu0 %v1469
        %2974 = vmatpush1.bf16.msra.mxu0 %v1468
        %2975 = vmatprep.subr.bf16.mxu0 0
        %2976 = vmatpush2.bf16.msra.mxu0 0
        %2977 = vmatprep.subr.bf16.mxu0 0
        %2978 = vmatpush2.bf16.msra.mxu0 0
        %2979 = vmatprep.subr.bf16.mxu0 0
        %2980 = vmatpush2.bf16.msra.mxu0 0
        %2981 = vmatprep.subr.bf16.mxu0 0
        %2982 = vmatpush2.bf16.msra.mxu0 0
        %2983 = vmatprep.subr.bf16.mxu0 0
        %2984 = vmatpush2.bf16.msra.mxu0 0
        %2985 = vmatprep.subr.bf16.mxu0 0
        %2986 = vmatpush2.bf16.msra.mxu0 0
        %2987 = vmatprep.subr.bf16.mxu0 0
        %2988 = vmatpush2.bf16.msra.mxu0 0
        %2989 = vmatprep.subr.bf16.mxu0 0
        %2990 = vmatpush2.bf16.msra.mxu0 0
        %2991 = vmatprep.mubr.bf16.mxu0 0
        %2992 = vmatmul.mubr.bf16.gmra.mxu0 %v1932
        %v2993 = vpop.f32.mrf.mxu0
        %v2994 = vadd.f32 0.0, %v2993
        %v2995 = vpop.f32.mrf.mxu0
        %v2996 = vadd.f32 0.0, %v2995
        %v2997 = vpop.f32.mrf.mxu0
        %v2998 = vpop.f32.mrf.mxu0
        %2999 = vdwg.mxu0
        %3000 = vmatprep.subr.bf16.mxu0 0
        %3001 = vmatpush1.bf16.msra.mxu0 0
        %3002 = vmatprep.subr.bf16.mxu0 0
        %3003 = vmatpush1.bf16.msra.mxu0 0
        %3004 = vmatprep.subr.bf16.mxu0 0
        %3005 = vmatpush1.bf16.msra.mxu0 0
        %3006 = vmatprep.subr.bf16.mxu0 0
        %3007 = vmatpush1.bf16.msra.mxu0 0
        %3008 = vmatprep.subr.bf16.mxu0 0
        %3009 = vmatpush1.bf16.msra.mxu0 0
        %3010 = vmatprep.subr.bf16.mxu0 0
        %3011 = vmatpush1.bf16.msra.mxu0 0
        %3012 = vmatprep.subr.bf16.mxu0 %v1599
        %3013 = vmatpush1.bf16.msra.mxu0 %v1598
        %3014 = vmatprep.subr.bf16.mxu0 %v1471
        %3015 = vmatpush1.bf16.msra.mxu0 %v1470
        %3016 = vmatprep.subr.bf16.mxu0 0
        %3017 = vmatpush2.bf16.msra.mxu0 0
        %3018 = vmatprep.subr.bf16.mxu0 0
        %3019 = vmatpush2.bf16.msra.mxu0 0
        %3020 = vmatprep.subr.bf16.mxu0 0
        %3021 = vmatpush2.bf16.msra.mxu0 0
        %3022 = vmatprep.subr.bf16.mxu0 0
        %3023 = vmatpush2.bf16.msra.mxu0 0
        %3024 = vmatprep.subr.bf16.mxu0 0
        %3025 = vmatpush2.bf16.msra.mxu0 0
        %3026 = vmatprep.subr.bf16.mxu0 0
        %3027 = vmatpush2.bf16.msra.mxu0 0
        %3028 = vmatprep.subr.bf16.mxu0 0
        %3029 = vmatpush2.bf16.msra.mxu0 0
        %3030 = vmatprep.subr.bf16.mxu0 0
        %3031 = vmatpush2.bf16.msra.mxu0 0
        %3032 = vmatprep.mubr.bf16.mxu0 0
        %3033 = vmatmul.mubr.bf16.gmra.mxu0 %v1932
        %v3034 = vpop.f32.mrf.mxu0
        %v3035 = vadd.f32 0.0, %v3034
        %v3036 = vpop.f32.mrf.mxu0
        %v3037 = vadd.f32 0.0, %v3036
        %v3038 = vpop.f32.mrf.mxu0
        %v3039 = vpop.f32.mrf.mxu0
        %3040 = vdwg.mxu0
        %3041 = vmatprep.subr.bf16.mxu0 0
        %3042 = vmatpush1.bf16.msra.mxu0 0
        %3043 = vmatprep.subr.bf16.mxu0 0
        %3044 = vmatpush1.bf16.msra.mxu0 0
        %3045 = vmatprep.subr.bf16.mxu0 0
        %3046 = vmatpush1.bf16.msra.mxu0 0
        %3047 = vmatprep.subr.bf16.mxu0 0
        %3048 = vmatpush1.bf16.msra.mxu0 0
        %3049 = vmatprep.subr.bf16.mxu0 0
        %3050 = vmatpush1.bf16.msra.mxu0 0
        %3051 = vmatprep.subr.bf16.mxu0 0
        %3052 = vmatpush1.bf16.msra.mxu0 0
        %3053 = vmatprep.subr.bf16.mxu0 %v1601
        %3054 = vmatpush1.bf16.msra.mxu0 %v1600
        %3055 = vmatprep.subr.bf16.mxu0 %v1473
        %3056 = vmatpush1.bf16.msra.mxu0 %v1472
        %3057 = vmatprep.subr.bf16.mxu0 0
        %3058 = vmatpush2.bf16.msra.mxu0 0
        %3059 = vmatprep.subr.bf16.mxu0 0
        %3060 = vmatpush2.bf16.msra.mxu0 0
        %3061 = vmatprep.subr.bf16.mxu0 0
        %3062 = vmatpush2.bf16.msra.mxu0 0
        %3063 = vmatprep.subr.bf16.mxu0 0
        %3064 = vmatpush2.bf16.msra.mxu0 0
        %3065 = vmatprep.subr.bf16.mxu0 0
        %3066 = vmatpush2.bf16.msra.mxu0 0
        %3067 = vmatprep.subr.bf16.mxu0 0
        %3068 = vmatpush2.bf16.msra.mxu0 0
        %3069 = vmatprep.subr.bf16.mxu0 0
        %3070 = vmatpush2.bf16.msra.mxu0 0
        %3071 = vmatprep.subr.bf16.mxu0 0
        %3072 = vmatpush2.bf16.msra.mxu0 0
        %3073 = vmatprep.mubr.bf16.mxu0 0
        %3074 = vmatmul.mubr.bf16.gmra.mxu0 %v1932
        %v3075 = vpop.f32.mrf.mxu0
        %v3076 = vadd.f32 0.0, %v3075
        %v3077 = vpop.f32.mrf.mxu0
        %v3078 = vadd.f32 0.0, %v3077
        %v3079 = vpop.f32.mrf.mxu0
        %v3080 = vpop.f32.mrf.mxu0
        %3081 = vdwg.mxu0
        %3082 = vmatprep.subr.bf16.mxu0 0
        %3083 = vmatpush1.bf16.msra.mxu0 0
        %3084 = vmatprep.subr.bf16.mxu0 0
        %3085 = vmatpush1.bf16.msra.mxu0 0
        %3086 = vmatprep.subr.bf16.mxu0 0
        %3087 = vmatpush1.bf16.msra.mxu0 0
        %3088 = vmatprep.subr.bf16.mxu0 0
        %3089 = vmatpush1.bf16.msra.mxu0 0
        %3090 = vmatprep.subr.bf16.mxu0 0
        %3091 = vmatpush1.bf16.msra.mxu0 0
        %3092 = vmatprep.subr.bf16.mxu0 0
        %3093 = vmatpush1.bf16.msra.mxu0 0
        %3094 = vmatprep.subr.bf16.mxu0 %v1603
        %3095 = vmatpush1.bf16.msra.mxu0 %v1602
        %3096 = vmatprep.subr.bf16.mxu0 %v1475
        %3097 = vmatpush1.bf16.msra.mxu0 %v1474
        %3098 = vmatprep.subr.bf16.mxu0 0
        %3099 = vmatpush2.bf16.msra.mxu0 0
        %3100 = vmatprep.subr.bf16.mxu0 0
        %3101 = vmatpush2.bf16.msra.mxu0 0
        %3102 = vmatprep.subr.bf16.mxu0 0
        %3103 = vmatpush2.bf16.msra.mxu0 0
        %3104 = vmatprep.subr.bf16.mxu0 0
        %3105 = vmatpush2.bf16.msra.mxu0 0
        %3106 = vmatprep.subr.bf16.mxu0 0
        %3107 = vmatpush2.bf16.msra.mxu0 0
        %3108 = vmatprep.subr.bf16.mxu0 0
        %3109 = vmatpush2.bf16.msra.mxu0 0
        %3110 = vmatprep.subr.bf16.mxu0 0
        %3111 = vmatpush2.bf16.msra.mxu0 0
        %3112 = vmatprep.subr.bf16.mxu0 0
        %3113 = vmatpush2.bf16.msra.mxu0 0
        %3114 = vmatprep.mubr.bf16.mxu0 0
        %3115 = vmatmul.mubr.bf16.gmra.mxu0 %v1932
        %v3116 = vpop.f32.mrf.mxu0
        %v3117 = vadd.f32 0.0, %v3116
        %v3118 = vpop.f32.mrf.mxu0
        %v3119 = vadd.f32 0.0, %v3118
        %v3120 = vpop.f32.mrf.mxu0
        %v3121 = vpop.f32.mrf.mxu0
        %3122 = vdwg.mxu0
        %3123 = vmatprep.subr.bf16.mxu0 0
        %3124 = vmatpush1.bf16.msra.mxu0 0
        %3125 = vmatprep.subr.bf16.mxu0 0
        %3126 = vmatpush1.bf16.msra.mxu0 0
        %3127 = vmatprep.subr.bf16.mxu0 0
        %3128 = vmatpush1.bf16.msra.mxu0 0
        %3129 = vmatprep.subr.bf16.mxu0 0
        %3130 = vmatpush1.bf16.msra.mxu0 0
        %3131 = vmatprep.subr.bf16.mxu0 0
        %3132 = vmatpush1.bf16.msra.mxu0 0
        %3133 = vmatprep.subr.bf16.mxu0 0
        %3134 = vmatpush1.bf16.msra.mxu0 0
        %3135 = vmatprep.subr.bf16.mxu0 %v1605
        %3136 = vmatpush1.bf16.msra.mxu0 %v1604
        %3137 = vmatprep.subr.bf16.mxu0 %v1477
        %3138 = vmatpush1.bf16.msra.mxu0 %v1476
        %3139 = vmatprep.subr.bf16.mxu0 0
        %3140 = vmatpush2.bf16.msra.mxu0 0
        %3141 = vmatprep.subr.bf16.mxu0 0
        %3142 = vmatpush2.bf16.msra.mxu0 0
        %3143 = vmatprep.subr.bf16.mxu0 0
        %3144 = vmatpush2.bf16.msra.mxu0 0
        %3145 = vmatprep.subr.bf16.mxu0 0
        %3146 = vmatpush2.bf16.msra.mxu0 0
        %3147 = vmatprep.subr.bf16.mxu0 0
        %3148 = vmatpush2.bf16.msra.mxu0 0
        %3149 = vmatprep.subr.bf16.mxu0 0
        %3150 = vmatpush2.bf16.msra.mxu0 0
        %3151 = vmatprep.subr.bf16.mxu0 0
        %3152 = vmatpush2.bf16.msra.mxu0 0
        %3153 = vmatprep.subr.bf16.mxu0 0
        %3154 = vmatpush2.bf16.msra.mxu0 0
        %3155 = vmatprep.mubr.bf16.mxu0 0
        %3156 = vmatmul.mubr.bf16.gmra.mxu0 %v1932
        %v3157 = vpop.f32.mrf.mxu0
        %v3158 = vadd.f32 0.0, %v3157
        %v3159 = vpop.f32.mrf.mxu0
        %v3160 = vadd.f32 0.0, %v3159
        %v3161 = vpop.f32.mrf.mxu0
        %v3162 = vpop.f32.mrf.mxu0
        %3163 = vdwg.mxu0
        %3164 = vmatprep.subr.bf16.mxu0 0
        %3165 = vmatpush1.bf16.msra.mxu0 0
        %3166 = vmatprep.subr.bf16.mxu0 0
        %3167 = vmatpush1.bf16.msra.mxu0 0
        %3168 = vmatprep.subr.bf16.mxu0 0
        %3169 = vmatpush1.bf16.msra.mxu0 0
        %3170 = vmatprep.subr.bf16.mxu0 0
        %3171 = vmatpush1.bf16.msra.mxu0 0
        %3172 = vmatprep.subr.bf16.mxu0 0
        %3173 = vmatpush1.bf16.msra.mxu0 0
        %3174 = vmatprep.subr.bf16.mxu0 0
        %3175 = vmatpush1.bf16.msra.mxu0 0
        %3176 = vmatprep.subr.bf16.mxu0 %v1607
        %3177 = vmatpush1.bf16.msra.mxu0 %v1606
        %3178 = vmatprep.subr.bf16.mxu0 %v1479
        %3179 = vmatpush1.bf16.msra.mxu0 %v1478
        %3180 = vmatprep.subr.bf16.mxu0 0
        %3181 = vmatpush2.bf16.msra.mxu0 0
        %3182 = vmatprep.subr.bf16.mxu0 0
        %3183 = vmatpush2.bf16.msra.mxu0 0
        %3184 = vmatprep.subr.bf16.mxu0 0
        %3185 = vmatpush2.bf16.msra.mxu0 0
        %3186 = vmatprep.subr.bf16.mxu0 0
        %3187 = vmatpush2.bf16.msra.mxu0 0
        %3188 = vmatprep.subr.bf16.mxu0 0
        %3189 = vmatpush2.bf16.msra.mxu0 0
        %3190 = vmatprep.subr.bf16.mxu0 0
        %3191 = vmatpush2.bf16.msra.mxu0 0
        %3192 = vmatprep.subr.bf16.mxu0 0
        %3193 = vmatpush2.bf16.msra.mxu0 0
        %3194 = vmatprep.subr.bf16.mxu0 0
        %3195 = vmatpush2.bf16.msra.mxu0 0
        %3196 = vmatprep.mubr.bf16.mxu0 0
        %3197 = vmatmul.mubr.bf16.gmra.mxu0 %v1932
        %v3198 = vpop.f32.mrf.mxu0
        %v3199 = vadd.f32 0.0, %v3198
        %v3200 = vpop.f32.mrf.mxu0
        %v3201 = vadd.f32 0.0, %v3200
        %v3202 = vpop.f32.mrf.mxu0
        %v3203 = vpop.f32.mrf.mxu0
        %3204 = vdwg.mxu0
        %3205 = vmatprep.subr.bf16.mxu0 0
        %3206 = vmatpush1.bf16.msra.mxu0 0
        %3207 = vmatprep.subr.bf16.mxu0 0
        %3208 = vmatpush1.bf16.msra.mxu0 0
        %3209 = vmatprep.subr.bf16.mxu0 0
        %3210 = vmatpush1.bf16.msra.mxu0 0
        %3211 = vmatprep.subr.bf16.mxu0 0
        %3212 = vmatpush1.bf16.msra.mxu0 0
        %3213 = vmatprep.subr.bf16.mxu0 0
        %3214 = vmatpush1.bf16.msra.mxu0 0
        %3215 = vmatprep.subr.bf16.mxu0 0
        %3216 = vmatpush1.bf16.msra.mxu0 0
        %3217 = vmatprep.subr.bf16.mxu0 %v1609
        %3218 = vmatpush1.bf16.msra.mxu0 %v1608
        %3219 = vmatprep.subr.bf16.mxu0 %v1481
        %3220 = vmatpush1.bf16.msra.mxu0 %v1480
        %3221 = vmatprep.subr.bf16.mxu0 0
        %3222 = vmatpush2.bf16.msra.mxu0 0
        %3223 = vmatprep.subr.bf16.mxu0 0
        %3224 = vmatpush2.bf16.msra.mxu0 0
        %3225 = vmatprep.subr.bf16.mxu0 0
        %3226 = vmatpush2.bf16.msra.mxu0 0
        %3227 = vmatprep.subr.bf16.mxu0 0
        %3228 = vmatpush2.bf16.msra.mxu0 0
        %3229 = vmatprep.subr.bf16.mxu0 0
        %3230 = vmatpush2.bf16.msra.mxu0 0
        %3231 = vmatprep.subr.bf16.mxu0 0
        %3232 = vmatpush2.bf16.msra.mxu0 0
        %3233 = vmatprep.subr.bf16.mxu0 0
        %3234 = vmatpush2.bf16.msra.mxu0 0
        %3235 = vmatprep.subr.bf16.mxu0 0
        %3236 = vmatpush2.bf16.msra.mxu0 0
        %3237 = vmatprep.mubr.bf16.mxu0 0
        %3238 = vmatmul.mubr.bf16.gmra.mxu0 %v1932
        %v3239 = vpop.f32.mrf.mxu0
        %v3240 = vadd.f32 0.0, %v3239
        %v3241 = vpop.f32.mrf.mxu0
        %v3242 = vadd.f32 0.0, %v3241
        %v3243 = vpop.f32.mrf.mxu0
        %v3244 = vpop.f32.mrf.mxu0
        %3245 = vdwg.mxu0
        %3246 = vmatprep.subr.bf16.mxu0 0
        %3247 = vmatpush1.bf16.msra.mxu0 0
        %3248 = vmatprep.subr.bf16.mxu0 0
        %3249 = vmatpush1.bf16.msra.mxu0 0
        %3250 = vmatprep.subr.bf16.mxu0 0
        %3251 = vmatpush1.bf16.msra.mxu0 0
        %3252 = vmatprep.subr.bf16.mxu0 0
        %3253 = vmatpush1.bf16.msra.mxu0 0
        %3254 = vmatprep.subr.bf16.mxu0 0
        %3255 = vmatpush1.bf16.msra.mxu0 0
        %3256 = vmatprep.subr.bf16.mxu0 0
        %3257 = vmatpush1.bf16.msra.mxu0 0
        %3258 = vmatprep.subr.bf16.mxu0 %v1611
        %3259 = vmatpush1.bf16.msra.mxu0 %v1610
        %3260 = vmatprep.subr.bf16.mxu0 %v1483
        %3261 = vmatpush1.bf16.msra.mxu0 %v1482
        %3262 = vmatprep.subr.bf16.mxu0 0
        %3263 = vmatpush2.bf16.msra.mxu0 0
        %3264 = vmatprep.subr.bf16.mxu0 0
        %3265 = vmatpush2.bf16.msra.mxu0 0
        %3266 = vmatprep.subr.bf16.mxu0 0
        %3267 = vmatpush2.bf16.msra.mxu0 0
        %3268 = vmatprep.subr.bf16.mxu0 0
        %3269 = vmatpush2.bf16.msra.mxu0 0
        %3270 = vmatprep.subr.bf16.mxu0 0
        %3271 = vmatpush2.bf16.msra.mxu0 0
        %3272 = vmatprep.subr.bf16.mxu0 0
        %3273 = vmatpush2.bf16.msra.mxu0 0
        %3274 = vmatprep.subr.bf16.mxu0 0
        %3275 = vmatpush2.bf16.msra.mxu0 0
        %3276 = vmatprep.subr.bf16.mxu0 0
        %3277 = vmatpush2.bf16.msra.mxu0 0
        %3278 = vmatprep.mubr.bf16.mxu0 0
        %3279 = vmatmul.mubr.bf16.gmra.mxu0 %v1932
        %v3280 = vpop.f32.mrf.mxu0
        %v3281 = vadd.f32 0.0, %v3280
        %v3282 = vpop.f32.mrf.mxu0
        %v3283 = vadd.f32 0.0, %v3282
        %v3284 = vpop.f32.mrf.mxu0
        %v3285 = vpop.f32.mrf.mxu0
        %3286 = vdwg.mxu0
        %3287 = vmatprep.subr.bf16.mxu0 0
        %3288 = vmatpush1.bf16.msra.mxu0 0
        %3289 = vmatprep.subr.bf16.mxu0 0
        %3290 = vmatpush1.bf16.msra.mxu0 0
        %3291 = vmatprep.subr.bf16.mxu0 0
        %3292 = vmatpush1.bf16.msra.mxu0 0
        %3293 = vmatprep.subr.bf16.mxu0 0
        %3294 = vmatpush1.bf16.msra.mxu0 0
        %3295 = vmatprep.subr.bf16.mxu0 0
        %3296 = vmatpush1.bf16.msra.mxu0 0
        %3297 = vmatprep.subr.bf16.mxu0 0
        %3298 = vmatpush1.bf16.msra.mxu0 0
        %3299 = vmatprep.subr.bf16.mxu0 %v1613
        %3300 = vmatpush1.bf16.msra.mxu0 %v1612
        %3301 = vmatprep.subr.bf16.mxu0 %v1485
        %3302 = vmatpush1.bf16.msra.mxu0 %v1484
        %3303 = vmatprep.subr.bf16.mxu0 0
        %3304 = vmatpush2.bf16.msra.mxu0 0
        %3305 = vmatprep.subr.bf16.mxu0 0
        %3306 = vmatpush2.bf16.msra.mxu0 0
        %3307 = vmatprep.subr.bf16.mxu0 0
        %3308 = vmatpush2.bf16.msra.mxu0 0
        %3309 = vmatprep.subr.bf16.mxu0 0
        %3310 = vmatpush2.bf16.msra.mxu0 0
        %3311 = vmatprep.subr.bf16.mxu0 0
        %3312 = vmatpush2.bf16.msra.mxu0 0
        %3313 = vmatprep.subr.bf16.mxu0 0
        %3314 = vmatpush2.bf16.msra.mxu0 0
        %3315 = vmatprep.subr.bf16.mxu0 0
        %3316 = vmatpush2.bf16.msra.mxu0 0
        %3317 = vmatprep.subr.bf16.mxu0 0
        %3318 = vmatpush2.bf16.msra.mxu0 0
        %3319 = vmatprep.mubr.bf16.mxu0 0
        %3320 = vmatmul.mubr.bf16.gmra.mxu0 %v1932
        %v3321 = vpop.f32.mrf.mxu0
        %v3322 = vadd.f32 0.0, %v3321
        %v3323 = vpop.f32.mrf.mxu0
        %v3324 = vadd.f32 0.0, %v3323
        %v3325 = vpop.f32.mrf.mxu0
        %v3326 = vpop.f32.mrf.mxu0
        %3327 = vdwg.mxu0
        %3328 = vmatprep.subr.bf16.mxu0 0
        %3329 = vmatpush1.bf16.msra.mxu0 0
        %3330 = vmatprep.subr.bf16.mxu0 0
        %3331 = vmatpush1.bf16.msra.mxu0 0
        %3332 = vmatprep.subr.bf16.mxu0 0
        %3333 = vmatpush1.bf16.msra.mxu0 0
        %3334 = vmatprep.subr.bf16.mxu0 0
        %3335 = vmatpush1.bf16.msra.mxu0 0
        %3336 = vmatprep.subr.bf16.mxu0 0
        %3337 = vmatpush1.bf16.msra.mxu0 0
        %3338 = vmatprep.subr.bf16.mxu0 0
        %3339 = vmatpush1.bf16.msra.mxu0 0
        %3340 = vmatprep.subr.bf16.mxu0 %v1615
        %3341 = vmatpush1.bf16.msra.mxu0 %v1614
        %3342 = vmatprep.subr.bf16.mxu0 %v1487
        %3343 = vmatpush1.bf16.msra.mxu0 %v1486
        %3344 = vmatprep.subr.bf16.mxu0 0
        %3345 = vmatpush2.bf16.msra.mxu0 0
        %3346 = vmatprep.subr.bf16.mxu0 0
        %3347 = vmatpush2.bf16.msra.mxu0 0
        %3348 = vmatprep.subr.bf16.mxu0 0
        %3349 = vmatpush2.bf16.msra.mxu0 0
        %3350 = vmatprep.subr.bf16.mxu0 0
        %3351 = vmatpush2.bf16.msra.mxu0 0
        %3352 = vmatprep.subr.bf16.mxu0 0
        %3353 = vmatpush2.bf16.msra.mxu0 0
        %3354 = vmatprep.subr.bf16.mxu0 0
        %3355 = vmatpush2.bf16.msra.mxu0 0
        %3356 = vmatprep.subr.bf16.mxu0 0
        %3357 = vmatpush2.bf16.msra.mxu0 0
        %3358 = vmatprep.subr.bf16.mxu0 0
        %3359 = vmatpush2.bf16.msra.mxu0 0
        %3360 = vmatprep.mubr.bf16.mxu0 0
        %3361 = vmatmul.mubr.bf16.gmra.mxu0 %v1932
        %v3362 = vpop.f32.mrf.mxu0
        %v3363 = vadd.f32 0.0, %v3362
        %v3364 = vpop.f32.mrf.mxu0
        %v3365 = vadd.f32 0.0, %v3364
        %v3366 = vpop.f32.mrf.mxu0
        %v3367 = vpop.f32.mrf.mxu0
        %3368 = vdwg.mxu0
        %3369 = vmatprep.subr.bf16.mxu0 0
        %3370 = vmatpush1.bf16.msra.mxu0 0
        %3371 = vmatprep.subr.bf16.mxu0 0
        %3372 = vmatpush1.bf16.msra.mxu0 0
        %3373 = vmatprep.subr.bf16.mxu0 0
        %3374 = vmatpush1.bf16.msra.mxu0 0
        %3375 = vmatprep.subr.bf16.mxu0 0
        %3376 = vmatpush1.bf16.msra.mxu0 0
        %3377 = vmatprep.subr.bf16.mxu0 0
        %3378 = vmatpush1.bf16.msra.mxu0 0
        %3379 = vmatprep.subr.bf16.mxu0 0
        %3380 = vmatpush1.bf16.msra.mxu0 0
        %3381 = vmatprep.subr.bf16.mxu0 %v1617
        %3382 = vmatpush1.bf16.msra.mxu0 %v1616
        %3383 = vmatprep.subr.bf16.mxu0 %v1489
        %3384 = vmatpush1.bf16.msra.mxu0 %v1488
        %3385 = vmatprep.subr.bf16.mxu0 0
        %3386 = vmatpush2.bf16.msra.mxu0 0
        %3387 = vmatprep.subr.bf16.mxu0 0
        %3388 = vmatpush2.bf16.msra.mxu0 0
        %3389 = vmatprep.subr.bf16.mxu0 0
        %3390 = vmatpush2.bf16.msra.mxu0 0
        %3391 = vmatprep.subr.bf16.mxu0 0
        %3392 = vmatpush2.bf16.msra.mxu0 0
        %3393 = vmatprep.subr.bf16.mxu0 0
        %3394 = vmatpush2.bf16.msra.mxu0 0
        %3395 = vmatprep.subr.bf16.mxu0 0
        %3396 = vmatpush2.bf16.msra.mxu0 0
        %3397 = vmatprep.subr.bf16.mxu0 0
        %3398 = vmatpush2.bf16.msra.mxu0 0
        %3399 = vmatprep.subr.bf16.mxu0 0
        %3400 = vmatpush2.bf16.msra.mxu0 0
        %3401 = vmatprep.mubr.bf16.mxu0 0
        %3402 = vmatmul.mubr.bf16.gmra.mxu0 %v1932
        %v3403 = vpop.f32.mrf.mxu0
        %v3404 = vadd.f32 0.0, %v3403
        %v3405 = vpop.f32.mrf.mxu0
        %v3406 = vadd.f32 0.0, %v3405
        %v3407 = vpop.f32.mrf.mxu0
        %v3408 = vpop.f32.mrf.mxu0
        %3409 = vdwg.mxu0
        %3410 = vmatprep.subr.bf16.mxu0 0
        %3411 = vmatpush1.bf16.msra.mxu0 0
        %3412 = vmatprep.subr.bf16.mxu0 0
        %3413 = vmatpush1.bf16.msra.mxu0 0
        %3414 = vmatprep.subr.bf16.mxu0 0
        %3415 = vmatpush1.bf16.msra.mxu0 0
        %3416 = vmatprep.subr.bf16.mxu0 0
        %3417 = vmatpush1.bf16.msra.mxu0 0
        %3418 = vmatprep.subr.bf16.mxu0 0
        %3419 = vmatpush1.bf16.msra.mxu0 0
        %3420 = vmatprep.subr.bf16.mxu0 0
        %3421 = vmatpush1.bf16.msra.mxu0 0
        %3422 = vmatprep.subr.bf16.mxu0 %v1619
        %3423 = vmatpush1.bf16.msra.mxu0 %v1618
        %3424 = vmatprep.subr.bf16.mxu0 %v1491
        %3425 = vmatpush1.bf16.msra.mxu0 %v1490
        %3426 = vmatprep.subr.bf16.mxu0 0
        %3427 = vmatpush2.bf16.msra.mxu0 0
        %3428 = vmatprep.subr.bf16.mxu0 0
        %3429 = vmatpush2.bf16.msra.mxu0 0
        %3430 = vmatprep.subr.bf16.mxu0 0
        %3431 = vmatpush2.bf16.msra.mxu0 0
        %3432 = vmatprep.subr.bf16.mxu0 0
        %3433 = vmatpush2.bf16.msra.mxu0 0
        %3434 = vmatprep.subr.bf16.mxu0 0
        %3435 = vmatpush2.bf16.msra.mxu0 0
        %3436 = vmatprep.subr.bf16.mxu0 0
        %3437 = vmatpush2.bf16.msra.mxu0 0
        %3438 = vmatprep.subr.bf16.mxu0 0
        %3439 = vmatpush2.bf16.msra.mxu0 0
        %3440 = vmatprep.subr.bf16.mxu0 0
        %3441 = vmatpush2.bf16.msra.mxu0 0
        %3442 = vmatprep.mubr.bf16.mxu0 0
        %3443 = vmatmul.mubr.bf16.gmra.mxu0 %v1932
        %v3444 = vpop.f32.mrf.mxu0
        %v3445 = vadd.f32 0.0, %v3444
        %v3446 = vpop.f32.mrf.mxu0
        %v3447 = vadd.f32 0.0, %v3446
        %v3448 = vpop.f32.mrf.mxu0
        %v3449 = vpop.f32.mrf.mxu0
        %3450 = vdwg.mxu0
        %3451 = vmatprep.subr.bf16.mxu0 0
        %3452 = vmatpush1.bf16.msra.mxu0 0
        %3453 = vmatprep.subr.bf16.mxu0 0
        %3454 = vmatpush1.bf16.msra.mxu0 0
        %3455 = vmatprep.subr.bf16.mxu0 0
        %3456 = vmatpush1.bf16.msra.mxu0 0
        %3457 = vmatprep.subr.bf16.mxu0 0
        %3458 = vmatpush1.bf16.msra.mxu0 0
        %3459 = vmatprep.subr.bf16.mxu0 0
        %3460 = vmatpush1.bf16.msra.mxu0 0
        %3461 = vmatprep.subr.bf16.mxu0 0
        %3462 = vmatpush1.bf16.msra.mxu0 0
        %3463 = vmatprep.subr.bf16.mxu0 %v1621
        %3464 = vmatpush1.bf16.msra.mxu0 %v1620
        %3465 = vmatprep.subr.bf16.mxu0 %v1493
        %3466 = vmatpush1.bf16.msra.mxu0 %v1492
        %3467 = vmatprep.subr.bf16.mxu0 0
        %3468 = vmatpush2.bf16.msra.mxu0 0
        %3469 = vmatprep.subr.bf16.mxu0 0
        %3470 = vmatpush2.bf16.msra.mxu0 0
        %3471 = vmatprep.subr.bf16.mxu0 0
        %3472 = vmatpush2.bf16.msra.mxu0 0
        %3473 = vmatprep.subr.bf16.mxu0 0
        %3474 = vmatpush2.bf16.msra.mxu0 0
        %3475 = vmatprep.subr.bf16.mxu0 0
        %3476 = vmatpush2.bf16.msra.mxu0 0
        %3477 = vmatprep.subr.bf16.mxu0 0
        %3478 = vmatpush2.bf16.msra.mxu0 0
        %3479 = vmatprep.subr.bf16.mxu0 0
        %3480 = vmatpush2.bf16.msra.mxu0 0
        %3481 = vmatprep.subr.bf16.mxu0 0
        %3482 = vmatpush2.bf16.msra.mxu0 0
        %3483 = vmatprep.mubr.bf16.mxu0 0
        %3484 = vmatmul.mubr.bf16.gmra.mxu0 %v1932
        %v3485 = vpop.f32.mrf.mxu0
        %v3486 = vadd.f32 0.0, %v3485
        %v3487 = vpop.f32.mrf.mxu0
        %v3488 = vadd.f32 0.0, %v3487
        %v3489 = vpop.f32.mrf.mxu0
        %v3490 = vpop.f32.mrf.mxu0
        %3491 = vdwg.mxu0
        %3492 = vmatprep.subr.bf16.mxu0 0
        %3493 = vmatpush1.bf16.msra.mxu0 0
        %3494 = vmatprep.subr.bf16.mxu0 0
        %3495 = vmatpush1.bf16.msra.mxu0 0
        %3496 = vmatprep.subr.bf16.mxu0 0
        %3497 = vmatpush1.bf16.msra.mxu0 0
        %3498 = vmatprep.subr.bf16.mxu0 0
        %3499 = vmatpush1.bf16.msra.mxu0 0
        %3500 = vmatprep.subr.bf16.mxu0 0
        %3501 = vmatpush1.bf16.msra.mxu0 0
        %3502 = vmatprep.subr.bf16.mxu0 0
        %3503 = vmatpush1.bf16.msra.mxu0 0
        %3504 = vmatprep.subr.bf16.mxu0 %v1623
        %3505 = vmatpush1.bf16.msra.mxu0 %v1622
        %3506 = vmatprep.subr.bf16.mxu0 %v1495
        %3507 = vmatpush1.bf16.msra.mxu0 %v1494
        %3508 = vmatprep.subr.bf16.mxu0 0
        %3509 = vmatpush2.bf16.msra.mxu0 0
        %3510 = vmatprep.subr.bf16.mxu0 0
        %3511 = vmatpush2.bf16.msra.mxu0 0
        %3512 = vmatprep.subr.bf16.mxu0 0
        %3513 = vmatpush2.bf16.msra.mxu0 0
        %3514 = vmatprep.subr.bf16.mxu0 0
        %3515 = vmatpush2.bf16.msra.mxu0 0
        %3516 = vmatprep.subr.bf16.mxu0 0
        %3517 = vmatpush2.bf16.msra.mxu0 0
        %3518 = vmatprep.subr.bf16.mxu0 0
        %3519 = vmatpush2.bf16.msra.mxu0 0
        %3520 = vmatprep.subr.bf16.mxu0 0
        %3521 = vmatpush2.bf16.msra.mxu0 0
        %3522 = vmatprep.subr.bf16.mxu0 0
        %3523 = vmatpush2.bf16.msra.mxu0 0
        %3524 = vmatprep.mubr.bf16.mxu0 0
        %3525 = vmatmul.mubr.bf16.gmra.mxu0 %v1932
        %v3526 = vpop.f32.mrf.mxu0
        %v3527 = vadd.f32 0.0, %v3526
        %v3528 = vpop.f32.mrf.mxu0
        %v3529 = vadd.f32 0.0, %v3528
        %v3530 = vpop.f32.mrf.mxu0
        %v3531 = vpop.f32.mrf.mxu0
        %3532 = vdwg.mxu0
        %3533 = vmatprep.subr.bf16.mxu0 0
        %3534 = vmatpush1.bf16.msra.mxu0 0
        %3535 = vmatprep.subr.bf16.mxu0 0
        %3536 = vmatpush1.bf16.msra.mxu0 0
        %3537 = vmatprep.subr.bf16.mxu0 0
        %3538 = vmatpush1.bf16.msra.mxu0 0
        %3539 = vmatprep.subr.bf16.mxu0 0
        %3540 = vmatpush1.bf16.msra.mxu0 0
        %3541 = vmatprep.subr.bf16.mxu0 0
        %3542 = vmatpush1.bf16.msra.mxu0 0
        %3543 = vmatprep.subr.bf16.mxu0 0
        %3544 = vmatpush1.bf16.msra.mxu0 0
        %3545 = vmatprep.subr.bf16.mxu0 %v1625
        %3546 = vmatpush1.bf16.msra.mxu0 %v1624
        %3547 = vmatprep.subr.bf16.mxu0 %v1497
        %3548 = vmatpush1.bf16.msra.mxu0 %v1496
        %3549 = vmatprep.subr.bf16.mxu0 0
        %3550 = vmatpush2.bf16.msra.mxu0 0
        %3551 = vmatprep.subr.bf16.mxu0 0
        %3552 = vmatpush2.bf16.msra.mxu0 0
        %3553 = vmatprep.subr.bf16.mxu0 0
        %3554 = vmatpush2.bf16.msra.mxu0 0
        %3555 = vmatprep.subr.bf16.mxu0 0
        %3556 = vmatpush2.bf16.msra.mxu0 0
        %3557 = vmatprep.subr.bf16.mxu0 0
        %3558 = vmatpush2.bf16.msra.mxu0 0
        %3559 = vmatprep.subr.bf16.mxu0 0
        %3560 = vmatpush2.bf16.msra.mxu0 0
        %3561 = vmatprep.subr.bf16.mxu0 0
        %3562 = vmatpush2.bf16.msra.mxu0 0
        %3563 = vmatprep.subr.bf16.mxu0 0
        %3564 = vmatpush2.bf16.msra.mxu0 0
        %3565 = vmatprep.mubr.bf16.mxu0 0
        %3566 = vmatmul.mubr.bf16.gmra.mxu0 %v1932
        %v3567 = vpop.f32.mrf.mxu0
        %v3568 = vadd.f32 0.0, %v3567
        %v3569 = vpop.f32.mrf.mxu0
        %v3570 = vadd.f32 0.0, %v3569
        %v3571 = vpop.f32.mrf.mxu0
        %v3572 = vpop.f32.mrf.mxu0
        %3573 = vdwg.mxu0
        %3574 = vmatprep.subr.bf16.mxu0 0
        %3575 = vmatpush1.bf16.msra.mxu0 0
        %3576 = vmatprep.subr.bf16.mxu0 0
        %3577 = vmatpush1.bf16.msra.mxu0 0
        %3578 = vmatprep.subr.bf16.mxu0 0
        %3579 = vmatpush1.bf16.msra.mxu0 0
        %3580 = vmatprep.subr.bf16.mxu0 0
        %3581 = vmatpush1.bf16.msra.mxu0 0
        %3582 = vmatprep.subr.bf16.mxu0 0
        %3583 = vmatpush1.bf16.msra.mxu0 0
        %3584 = vmatprep.subr.bf16.mxu0 0
        %3585 = vmatpush1.bf16.msra.mxu0 0
        %3586 = vmatprep.subr.bf16.mxu0 %v1627
        %3587 = vmatpush1.bf16.msra.mxu0 %v1626
        %3588 = vmatprep.subr.bf16.mxu0 %v1499
        %3589 = vmatpush1.bf16.msra.mxu0 %v1498
        %3590 = vmatprep.subr.bf16.mxu0 0
        %3591 = vmatpush2.bf16.msra.mxu0 0
        %3592 = vmatprep.subr.bf16.mxu0 0
        %3593 = vmatpush2.bf16.msra.mxu0 0
        %3594 = vmatprep.subr.bf16.mxu0 0
        %3595 = vmatpush2.bf16.msra.mxu0 0
        %3596 = vmatprep.subr.bf16.mxu0 0
        %3597 = vmatpush2.bf16.msra.mxu0 0
        %3598 = vmatprep.subr.bf16.mxu0 0
        %3599 = vmatpush2.bf16.msra.mxu0 0
        %3600 = vmatprep.subr.bf16.mxu0 0
        %3601 = vmatpush2.bf16.msra.mxu0 0
        %3602 = vmatprep.subr.bf16.mxu0 0
        %3603 = vmatpush2.bf16.msra.mxu0 0
        %3604 = vmatprep.subr.bf16.mxu0 0
        %3605 = vmatpush2.bf16.msra.mxu0 0
        %3606 = vmatprep.mubr.bf16.mxu0 0
        %3607 = vmatmul.mubr.bf16.gmra.mxu0 %v1932
        %v3608 = vpop.f32.mrf.mxu0
        %v3609 = vadd.f32 0.0, %v3608
        %v3610 = vpop.f32.mrf.mxu0
        %v3611 = vadd.f32 0.0, %v3610
        %v3612 = vpop.f32.mrf.mxu0
        %v3613 = vpop.f32.mrf.mxu0
        %3614 = vdwg.mxu0
        %3615 = vmatprep.subr.bf16.mxu0 0
        %3616 = vmatpush1.bf16.msra.mxu0 0
        %3617 = vmatprep.subr.bf16.mxu0 0
        %3618 = vmatpush1.bf16.msra.mxu0 0
        %3619 = vmatprep.subr.bf16.mxu0 0
        %3620 = vmatpush1.bf16.msra.mxu0 0
        %3621 = vmatprep.subr.bf16.mxu0 0
        %3622 = vmatpush1.bf16.msra.mxu0 0
        %3623 = vmatprep.subr.bf16.mxu0 0
        %3624 = vmatpush1.bf16.msra.mxu0 0
        %3625 = vmatprep.subr.bf16.mxu0 0
        %3626 = vmatpush1.bf16.msra.mxu0 0
        %3627 = vmatprep.subr.bf16.mxu0 %v1629
        %3628 = vmatpush1.bf16.msra.mxu0 %v1628
        %3629 = vmatprep.subr.bf16.mxu0 %v1501
        %3630 = vmatpush1.bf16.msra.mxu0 %v1500
        %3631 = vmatprep.subr.bf16.mxu0 0
        %3632 = vmatpush2.bf16.msra.mxu0 0
        %3633 = vmatprep.subr.bf16.mxu0 0
        %3634 = vmatpush2.bf16.msra.mxu0 0
        %3635 = vmatprep.subr.bf16.mxu0 0
        %3636 = vmatpush2.bf16.msra.mxu0 0
        %3637 = vmatprep.subr.bf16.mxu0 0
        %3638 = vmatpush2.bf16.msra.mxu0 0
        %3639 = vmatprep.subr.bf16.mxu0 0
        %3640 = vmatpush2.bf16.msra.mxu0 0
        %3641 = vmatprep.subr.bf16.mxu0 0
        %3642 = vmatpush2.bf16.msra.mxu0 0
        %3643 = vmatprep.subr.bf16.mxu0 0
        %3644 = vmatpush2.bf16.msra.mxu0 0
        %3645 = vmatprep.subr.bf16.mxu0 0
        %3646 = vmatpush2.bf16.msra.mxu0 0
        %3647 = vmatprep.mubr.bf16.mxu0 0
        %3648 = vmatmul.mubr.bf16.gmra.mxu0 %v1932
        %v3649 = vpop.f32.mrf.mxu0
        %v3650 = vadd.f32 0.0, %v3649
        %v3651 = vpop.f32.mrf.mxu0
        %v3652 = vadd.f32 0.0, %v3651
        %v3653 = vpop.f32.mrf.mxu0
        %v3654 = vpop.f32.mrf.mxu0
        %3655 = vdwg.mxu0
        %3656 = vmatprep.subr.bf16.mxu0 0
        %3657 = vmatpush1.bf16.msra.mxu0 0
        %3658 = vmatprep.subr.bf16.mxu0 0
        %3659 = vmatpush1.bf16.msra.mxu0 0
        %3660 = vmatprep.subr.bf16.mxu0 0
        %3661 = vmatpush1.bf16.msra.mxu0 0
        %3662 = vmatprep.subr.bf16.mxu0 0
        %3663 = vmatpush1.bf16.msra.mxu0 0
        %3664 = vmatprep.subr.bf16.mxu0 0
        %3665 = vmatpush1.bf16.msra.mxu0 0
        %3666 = vmatprep.subr.bf16.mxu0 0
        %3667 = vmatpush1.bf16.msra.mxu0 0
        %3668 = vmatprep.subr.bf16.mxu0 %v1631
        %3669 = vmatpush1.bf16.msra.mxu0 %v1630
        %3670 = vmatprep.subr.bf16.mxu0 %v1503
        %3671 = vmatpush1.bf16.msra.mxu0 %v1502
        %3672 = vmatprep.subr.bf16.mxu0 0
        %3673 = vmatpush2.bf16.msra.mxu0 0
        %3674 = vmatprep.subr.bf16.mxu0 0
        %3675 = vmatpush2.bf16.msra.mxu0 0
        %3676 = vmatprep.subr.bf16.mxu0 0
        %3677 = vmatpush2.bf16.msra.mxu0 0
        %3678 = vmatprep.subr.bf16.mxu0 0
        %3679 = vmatpush2.bf16.msra.mxu0 0
        %3680 = vmatprep.subr.bf16.mxu0 0
        %3681 = vmatpush2.bf16.msra.mxu0 0
        %3682 = vmatprep.subr.bf16.mxu0 0
        %3683 = vmatpush2.bf16.msra.mxu0 0
        %3684 = vmatprep.subr.bf16.mxu0 0
        %3685 = vmatpush2.bf16.msra.mxu0 0
        %3686 = vmatprep.subr.bf16.mxu0 0
        %3687 = vmatpush2.bf16.msra.mxu0 0
        %3688 = vmatprep.mubr.bf16.mxu0 0
        %3689 = vmatmul.mubr.bf16.gmra.mxu0 %v1932
        %v3690 = vpop.f32.mrf.mxu0
        %v3691 = vadd.f32 0.0, %v3690
        %v3692 = vpop.f32.mrf.mxu0
        %v3693 = vadd.f32 0.0, %v3692
        %v3694 = vpop.f32.mrf.mxu0
        %v3695 = vpop.f32.mrf.mxu0
        %3696 = vdwg.mxu0
        %3697 = vmatprep.subr.bf16.mxu0 0
        %3698 = vmatpush1.bf16.msra.mxu0 0
        %3699 = vmatprep.subr.bf16.mxu0 0
        %3700 = vmatpush1.bf16.msra.mxu0 0
        %3701 = vmatprep.subr.bf16.mxu0 0
        %3702 = vmatpush1.bf16.msra.mxu0 0
        %3703 = vmatprep.subr.bf16.mxu0 0
        %3704 = vmatpush1.bf16.msra.mxu0 0
        %3705 = vmatprep.subr.bf16.mxu0 0
        %3706 = vmatpush1.bf16.msra.mxu0 0
        %3707 = vmatprep.subr.bf16.mxu0 0
        %3708 = vmatpush1.bf16.msra.mxu0 0
        %3709 = vmatprep.subr.bf16.mxu0 %v1633
        %3710 = vmatpush1.bf16.msra.mxu0 %v1632
        %3711 = vmatprep.subr.bf16.mxu0 %v1505
        %3712 = vmatpush1.bf16.msra.mxu0 %v1504
        %3713 = vmatprep.subr.bf16.mxu0 0
        %3714 = vmatpush2.bf16.msra.mxu0 0
        %3715 = vmatprep.subr.bf16.mxu0 0
        %3716 = vmatpush2.bf16.msra.mxu0 0
        %3717 = vmatprep.subr.bf16.mxu0 0
        %3718 = vmatpush2.bf16.msra.mxu0 0
        %3719 = vmatprep.subr.bf16.mxu0 0
        %3720 = vmatpush2.bf16.msra.mxu0 0
        %3721 = vmatprep.subr.bf16.mxu0 0
        %3722 = vmatpush2.bf16.msra.mxu0 0
        %3723 = vmatprep.subr.bf16.mxu0 0
        %3724 = vmatpush2.bf16.msra.mxu0 0
        %3725 = vmatprep.subr.bf16.mxu0 0
        %3726 = vmatpush2.bf16.msra.mxu0 0
        %3727 = vmatprep.subr.bf16.mxu0 0
        %3728 = vmatpush2.bf16.msra.mxu0 0
        %3729 = vmatprep.mubr.bf16.mxu0 0
        %3730 = vmatmul.mubr.bf16.gmra.mxu0 %v1932
        %v3731 = vpop.f32.mrf.mxu0
        %v3732 = vadd.f32 0.0, %v3731
        %v3733 = vpop.f32.mrf.mxu0
        %v3734 = vadd.f32 0.0, %v3733
        %v3735 = vpop.f32.mrf.mxu0
        %v3736 = vpop.f32.mrf.mxu0
        %3737 = vdwg.mxu0
        %3738 = vmatprep.subr.bf16.mxu0 0
        %3739 = vmatpush1.bf16.msra.mxu0 0
        %3740 = vmatprep.subr.bf16.mxu0 0
        %3741 = vmatpush1.bf16.msra.mxu0 0
        %3742 = vmatprep.subr.bf16.mxu0 0
        %3743 = vmatpush1.bf16.msra.mxu0 0
        %3744 = vmatprep.subr.bf16.mxu0 0
        %3745 = vmatpush1.bf16.msra.mxu0 0
        %3746 = vmatprep.subr.bf16.mxu0 0
        %3747 = vmatpush1.bf16.msra.mxu0 0
        %3748 = vmatprep.subr.bf16.mxu0 0
        %3749 = vmatpush1.bf16.msra.mxu0 0
        %3750 = vmatprep.subr.bf16.mxu0 %v1635
        %3751 = vmatpush1.bf16.msra.mxu0 %v1634
        %3752 = vmatprep.subr.bf16.mxu0 %v1507
        %3753 = vmatpush1.bf16.msra.mxu0 %v1506
        %3754 = vmatprep.subr.bf16.mxu0 0
        %3755 = vmatpush2.bf16.msra.mxu0 0
        %3756 = vmatprep.subr.bf16.mxu0 0
        %3757 = vmatpush2.bf16.msra.mxu0 0
        %3758 = vmatprep.subr.bf16.mxu0 0
        %3759 = vmatpush2.bf16.msra.mxu0 0
        %3760 = vmatprep.subr.bf16.mxu0 0
        %3761 = vmatpush2.bf16.msra.mxu0 0
        %3762 = vmatprep.subr.bf16.mxu0 0
        %3763 = vmatpush2.bf16.msra.mxu0 0
        %3764 = vmatprep.subr.bf16.mxu0 0
        %3765 = vmatpush2.bf16.msra.mxu0 0
        %3766 = vmatprep.subr.bf16.mxu0 0
        %3767 = vmatpush2.bf16.msra.mxu0 0
        %3768 = vmatprep.subr.bf16.mxu0 0
        %3769 = vmatpush2.bf16.msra.mxu0 0
        %3770 = vmatprep.mubr.bf16.mxu0 0
        %3771 = vmatmul.mubr.bf16.gmra.mxu0 %v1932
        %v3772 = vpop.f32.mrf.mxu0
        %v3773 = vadd.f32 0.0, %v3772
        %v3774 = vpop.f32.mrf.mxu0
        %v3775 = vadd.f32 0.0, %v3774
        %v3776 = vpop.f32.mrf.mxu0
        %v3777 = vpop.f32.mrf.mxu0
        %3778 = vdwg.mxu0
        %3779 = vmatprep.subr.bf16.mxu0 0
        %3780 = vmatpush1.bf16.msra.mxu0 0
        %3781 = vmatprep.subr.bf16.mxu0 0
        %3782 = vmatpush1.bf16.msra.mxu0 0
        %3783 = vmatprep.subr.bf16.mxu0 0
        %3784 = vmatpush1.bf16.msra.mxu0 0
        %3785 = vmatprep.subr.bf16.mxu0 0
        %3786 = vmatpush1.bf16.msra.mxu0 0
        %3787 = vmatprep.subr.bf16.mxu0 0
        %3788 = vmatpush1.bf16.msra.mxu0 0
        %3789 = vmatprep.subr.bf16.mxu0 0
        %3790 = vmatpush1.bf16.msra.mxu0 0
        %3791 = vmatprep.subr.bf16.mxu0 %v1637
        %3792 = vmatpush1.bf16.msra.mxu0 %v1636
        %3793 = vmatprep.subr.bf16.mxu0 %v1509
        %3794 = vmatpush1.bf16.msra.mxu0 %v1508
        %3795 = vmatprep.subr.bf16.mxu0 0
        %3796 = vmatpush2.bf16.msra.mxu0 0
        %3797 = vmatprep.subr.bf16.mxu0 0
        %3798 = vmatpush2.bf16.msra.mxu0 0
        %3799 = vmatprep.subr.bf16.mxu0 0
        %3800 = vmatpush2.bf16.msra.mxu0 0
        %3801 = vmatprep.subr.bf16.mxu0 0
        %3802 = vmatpush2.bf16.msra.mxu0 0
        %3803 = vmatprep.subr.bf16.mxu0 0
        %3804 = vmatpush2.bf16.msra.mxu0 0
        %3805 = vmatprep.subr.bf16.mxu0 0
        %3806 = vmatpush2.bf16.msra.mxu0 0
        %3807 = vmatprep.subr.bf16.mxu0 0
        %3808 = vmatpush2.bf16.msra.mxu0 0
        %3809 = vmatprep.subr.bf16.mxu0 0
        %3810 = vmatpush2.bf16.msra.mxu0 0
        %3811 = vmatprep.mubr.bf16.mxu0 0
        %3812 = vmatmul.mubr.bf16.gmra.mxu0 %v1932
        %v3813 = vpop.f32.mrf.mxu0
        %v3814 = vadd.f32 0.0, %v3813
        %v3815 = vpop.f32.mrf.mxu0
        %v3816 = vadd.f32 0.0, %v3815
        %v3817 = vpop.f32.mrf.mxu0
        %v3818 = vpop.f32.mrf.mxu0
        %3819 = vdwg.mxu0
        %3820 = vmatprep.subr.bf16.mxu0 0
        %3821 = vmatpush1.bf16.msra.mxu0 0
        %3822 = vmatprep.subr.bf16.mxu0 0
        %3823 = vmatpush1.bf16.msra.mxu0 0
        %3824 = vmatprep.subr.bf16.mxu0 0
        %3825 = vmatpush1.bf16.msra.mxu0 0
        %3826 = vmatprep.subr.bf16.mxu0 0
        %3827 = vmatpush1.bf16.msra.mxu0 0
        %3828 = vmatprep.subr.bf16.mxu0 0
        %3829 = vmatpush1.bf16.msra.mxu0 0
        %3830 = vmatprep.subr.bf16.mxu0 0
        %3831 = vmatpush1.bf16.msra.mxu0 0
        %3832 = vmatprep.subr.bf16.mxu0 %v1639
        %3833 = vmatpush1.bf16.msra.mxu0 %v1638
        %3834 = vmatprep.subr.bf16.mxu0 %v1511
        %3835 = vmatpush1.bf16.msra.mxu0 %v1510
        %3836 = vmatprep.subr.bf16.mxu0 0
        %3837 = vmatpush2.bf16.msra.mxu0 0
        %3838 = vmatprep.subr.bf16.mxu0 0
        %3839 = vmatpush2.bf16.msra.mxu0 0
        %3840 = vmatprep.subr.bf16.mxu0 0
        %3841 = vmatpush2.bf16.msra.mxu0 0
        %3842 = vmatprep.subr.bf16.mxu0 0
        %3843 = vmatpush2.bf16.msra.mxu0 0
        %3844 = vmatprep.subr.bf16.mxu0 0
        %3845 = vmatpush2.bf16.msra.mxu0 0
        %3846 = vmatprep.subr.bf16.mxu0 0
        %3847 = vmatpush2.bf16.msra.mxu0 0
        %3848 = vmatprep.subr.bf16.mxu0 0
        %3849 = vmatpush2.bf16.msra.mxu0 0
        %3850 = vmatprep.subr.bf16.mxu0 0
        %3851 = vmatpush2.bf16.msra.mxu0 0
        %3852 = vmatprep.mubr.bf16.mxu0 0
        %3853 = vmatmul.mubr.bf16.gmra.mxu0 %v1932
        %v3854 = vpop.f32.mrf.mxu0
        %v3855 = vadd.f32 0.0, %v3854
        %v3856 = vpop.f32.mrf.mxu0
        %v3857 = vadd.f32 0.0, %v3856
        %v3858 = vpop.f32.mrf.mxu0
        %v3859 = vpop.f32.mrf.mxu0
        %3860 = vdwg.mxu0
        %3861 = vmatprep.subr.bf16.mxu0 0
        %3862 = vmatpush1.bf16.msra.mxu0 0
        %3863 = vmatprep.subr.bf16.mxu0 0
        %3864 = vmatpush1.bf16.msra.mxu0 0
        %3865 = vmatprep.subr.bf16.mxu0 0
        %3866 = vmatpush1.bf16.msra.mxu0 0
        %3867 = vmatprep.subr.bf16.mxu0 0
        %3868 = vmatpush1.bf16.msra.mxu0 0
        %3869 = vmatprep.subr.bf16.mxu0 0
        %3870 = vmatpush1.bf16.msra.mxu0 0
        %3871 = vmatprep.subr.bf16.mxu0 0
        %3872 = vmatpush1.bf16.msra.mxu0 0
        %3873 = vmatprep.subr.bf16.mxu0 %v1641
        %3874 = vmatpush1.bf16.msra.mxu0 %v1640
        %3875 = vmatprep.subr.bf16.mxu0 %v1513
        %3876 = vmatpush1.bf16.msra.mxu0 %v1512
        %3877 = vmatprep.subr.bf16.mxu0 0
        %3878 = vmatpush2.bf16.msra.mxu0 0
        %3879 = vmatprep.subr.bf16.mxu0 0
        %3880 = vmatpush2.bf16.msra.mxu0 0
        %3881 = vmatprep.subr.bf16.mxu0 0
        %3882 = vmatpush2.bf16.msra.mxu0 0
        %3883 = vmatprep.subr.bf16.mxu0 0
        %3884 = vmatpush2.bf16.msra.mxu0 0
        %3885 = vmatprep.subr.bf16.mxu0 0
        %3886 = vmatpush2.bf16.msra.mxu0 0
        %3887 = vmatprep.subr.bf16.mxu0 0
        %3888 = vmatpush2.bf16.msra.mxu0 0
        %3889 = vmatprep.subr.bf16.mxu0 0
        %3890 = vmatpush2.bf16.msra.mxu0 0
        %3891 = vmatprep.subr.bf16.mxu0 0
        %3892 = vmatpush2.bf16.msra.mxu0 0
        %3893 = vmatprep.mubr.bf16.mxu0 0
        %3894 = vmatmul.mubr.bf16.gmra.mxu0 %v1932
        %v3895 = vpop.f32.mrf.mxu0
        %v3896 = vadd.f32 0.0, %v3895
        %v3897 = vpop.f32.mrf.mxu0
        %v3898 = vadd.f32 0.0, %v3897
        %v3899 = vpop.f32.mrf.mxu0
        %v3900 = vpop.f32.mrf.mxu0
        %3901 = vdwg.mxu0
        %3902 = vmatprep.subr.bf16.mxu0 0
        %3903 = vmatpush1.bf16.msra.mxu0 0
        %3904 = vmatprep.subr.bf16.mxu0 0
        %3905 = vmatpush1.bf16.msra.mxu0 0
        %3906 = vmatprep.subr.bf16.mxu0 0
        %3907 = vmatpush1.bf16.msra.mxu0 0
        %3908 = vmatprep.subr.bf16.mxu0 0
        %3909 = vmatpush1.bf16.msra.mxu0 0
        %3910 = vmatprep.subr.bf16.mxu0 0
        %3911 = vmatpush1.bf16.msra.mxu0 0
        %3912 = vmatprep.subr.bf16.mxu0 0
        %3913 = vmatpush1.bf16.msra.mxu0 0
        %3914 = vmatprep.subr.bf16.mxu0 %v1643
        %3915 = vmatpush1.bf16.msra.mxu0 %v1642
        %3916 = vmatprep.subr.bf16.mxu0 %v1515
        %3917 = vmatpush1.bf16.msra.mxu0 %v1514
        %3918 = vmatprep.subr.bf16.mxu0 0
        %3919 = vmatpush2.bf16.msra.mxu0 0
        %3920 = vmatprep.subr.bf16.mxu0 0
        %3921 = vmatpush2.bf16.msra.mxu0 0
        %3922 = vmatprep.subr.bf16.mxu0 0
        %3923 = vmatpush2.bf16.msra.mxu0 0
        %3924 = vmatprep.subr.bf16.mxu0 0
        %3925 = vmatpush2.bf16.msra.mxu0 0
        %3926 = vmatprep.subr.bf16.mxu0 0
        %3927 = vmatpush2.bf16.msra.mxu0 0
        %3928 = vmatprep.subr.bf16.mxu0 0
        %3929 = vmatpush2.bf16.msra.mxu0 0
        %3930 = vmatprep.subr.bf16.mxu0 0
        %3931 = vmatpush2.bf16.msra.mxu0 0
        %3932 = vmatprep.subr.bf16.mxu0 0
        %3933 = vmatpush2.bf16.msra.mxu0 0
        %3934 = vmatprep.mubr.bf16.mxu0 0
        %3935 = vmatmul.mubr.bf16.gmra.mxu0 %v1932
        %v3936 = vpop.f32.mrf.mxu0
        %v3937 = vadd.f32 0.0, %v3936
        %v3938 = vpop.f32.mrf.mxu0
        %v3939 = vadd.f32 0.0, %v3938
        %v3940 = vpop.f32.mrf.mxu0
        %v3941 = vpop.f32.mrf.mxu0
        %3942 = vdwg.mxu0
        %3943 = vmatprep.subr.bf16.mxu0 0
        %3944 = vmatpush1.bf16.msra.mxu0 0
        %3945 = vmatprep.subr.bf16.mxu0 0
        %3946 = vmatpush1.bf16.msra.mxu0 0
        %3947 = vmatprep.subr.bf16.mxu0 0
        %3948 = vmatpush1.bf16.msra.mxu0 0
        %3949 = vmatprep.subr.bf16.mxu0 0
        %3950 = vmatpush1.bf16.msra.mxu0 0
        %3951 = vmatprep.subr.bf16.mxu0 0
        %3952 = vmatpush1.bf16.msra.mxu0 0
        %3953 = vmatprep.subr.bf16.mxu0 0
        %3954 = vmatpush1.bf16.msra.mxu0 0
        %3955 = vmatprep.subr.bf16.mxu0 %v1645
        %3956 = vmatpush1.bf16.msra.mxu0 %v1644
        %3957 = vmatprep.subr.bf16.mxu0 %v1517
        %3958 = vmatpush1.bf16.msra.mxu0 %v1516
        %3959 = vmatprep.subr.bf16.mxu0 0
        %3960 = vmatpush2.bf16.msra.mxu0 0
        %3961 = vmatprep.subr.bf16.mxu0 0
        %3962 = vmatpush2.bf16.msra.mxu0 0
        %3963 = vmatprep.subr.bf16.mxu0 0
        %3964 = vmatpush2.bf16.msra.mxu0 0
        %3965 = vmatprep.subr.bf16.mxu0 0
        %3966 = vmatpush2.bf16.msra.mxu0 0
        %3967 = vmatprep.subr.bf16.mxu0 0
        %3968 = vmatpush2.bf16.msra.mxu0 0
        %3969 = vmatprep.subr.bf16.mxu0 0
        %3970 = vmatpush2.bf16.msra.mxu0 0
        %3971 = vmatprep.subr.bf16.mxu0 0
        %3972 = vmatpush2.bf16.msra.mxu0 0
        %3973 = vmatprep.subr.bf16.mxu0 0
        %3974 = vmatpush2.bf16.msra.mxu0 0
        %3975 = vmatprep.mubr.bf16.mxu0 0
        %3976 = vmatmul.mubr.bf16.gmra.mxu0 %v1932
        %v3977 = vpop.f32.mrf.mxu0
        %v3978 = vadd.f32 0.0, %v3977
        %v3979 = vpop.f32.mrf.mxu0
        %v3980 = vadd.f32 0.0, %v3979
        %v3981 = vpop.f32.mrf.mxu0
        %v3982 = vpop.f32.mrf.mxu0
        %3983 = vdwg.mxu0
        %3984 = vmatprep.subr.bf16.mxu0 0
        %3985 = vmatpush1.bf16.msra.mxu0 0
        %3986 = vmatprep.subr.bf16.mxu0 0
        %3987 = vmatpush1.bf16.msra.mxu0 0
        %3988 = vmatprep.subr.bf16.mxu0 0
        %3989 = vmatpush1.bf16.msra.mxu0 0
        %3990 = vmatprep.subr.bf16.mxu0 0
        %3991 = vmatpush1.bf16.msra.mxu0 0
        %3992 = vmatprep.subr.bf16.mxu0 0
        %3993 = vmatpush1.bf16.msra.mxu0 0
        %3994 = vmatprep.subr.bf16.mxu0 0
        %3995 = vmatpush1.bf16.msra.mxu0 0
        %3996 = vmatprep.subr.bf16.mxu0 %v1647
        %3997 = vmatpush1.bf16.msra.mxu0 %v1646
        %3998 = vmatprep.subr.bf16.mxu0 %v1519
        %3999 = vmatpush1.bf16.msra.mxu0 %v1518
        %4000 = vmatprep.subr.bf16.mxu0 0
        %4001 = vmatpush2.bf16.msra.mxu0 0
        %4002 = vmatprep.subr.bf16.mxu0 0
        %4003 = vmatpush2.bf16.msra.mxu0 0
        %4004 = vmatprep.subr.bf16.mxu0 0
        %4005 = vmatpush2.bf16.msra.mxu0 0
        %4006 = vmatprep.subr.bf16.mxu0 0
        %4007 = vmatpush2.bf16.msra.mxu0 0
        %4008 = vmatprep.subr.bf16.mxu0 0
        %4009 = vmatpush2.bf16.msra.mxu0 0
        %4010 = vmatprep.subr.bf16.mxu0 0
        %4011 = vmatpush2.bf16.msra.mxu0 0
        %4012 = vmatprep.subr.bf16.mxu0 0
        %4013 = vmatpush2.bf16.msra.mxu0 0
        %4014 = vmatprep.subr.bf16.mxu0 0
        %4015 = vmatpush2.bf16.msra.mxu0 0
        %4016 = vmatprep.mubr.bf16.mxu0 0
        %4017 = vmatmul.mubr.bf16.gmra.mxu0 %v1932
        %v4018 = vpop.f32.mrf.mxu0
        %v4019 = vadd.f32 0.0, %v4018
        %v4020 = vpop.f32.mrf.mxu0
        %v4021 = vadd.f32 0.0, %v4020
        %v4022 = vpop.f32.mrf.mxu0
        %v4023 = vpop.f32.mrf.mxu0
        %4024 = vdwg.mxu0
        %4025 = vmatprep.subr.bf16.mxu0 0
        %4026 = vmatpush1.bf16.msra.mxu0 0
        %4027 = vmatprep.subr.bf16.mxu0 0
        %4028 = vmatpush1.bf16.msra.mxu0 0
        %4029 = vmatprep.subr.bf16.mxu0 0
        %4030 = vmatpush1.bf16.msra.mxu0 0
        %4031 = vmatprep.subr.bf16.mxu0 0
        %4032 = vmatpush1.bf16.msra.mxu0 0
        %4033 = vmatprep.subr.bf16.mxu0 0
        %4034 = vmatpush1.bf16.msra.mxu0 0
        %4035 = vmatprep.subr.bf16.mxu0 0
        %4036 = vmatpush1.bf16.msra.mxu0 0
        %4037 = vmatprep.subr.bf16.mxu0 %v1649
        %4038 = vmatpush1.bf16.msra.mxu0 %v1648
        %4039 = vmatprep.subr.bf16.mxu0 %v1521
        %4040 = vmatpush1.bf16.msra.mxu0 %v1520
        %4041 = vmatprep.subr.bf16.mxu0 0
        %4042 = vmatpush2.bf16.msra.mxu0 0
        %4043 = vmatprep.subr.bf16.mxu0 0
        %4044 = vmatpush2.bf16.msra.mxu0 0
        %4045 = vmatprep.subr.bf16.mxu0 0
        %4046 = vmatpush2.bf16.msra.mxu0 0
        %4047 = vmatprep.subr.bf16.mxu0 0
        %4048 = vmatpush2.bf16.msra.mxu0 0
        %4049 = vmatprep.subr.bf16.mxu0 0
        %4050 = vmatpush2.bf16.msra.mxu0 0
        %4051 = vmatprep.subr.bf16.mxu0 0
        %4052 = vmatpush2.bf16.msra.mxu0 0
        %4053 = vmatprep.subr.bf16.mxu0 0
        %4054 = vmatpush2.bf16.msra.mxu0 0
        %4055 = vmatprep.subr.bf16.mxu0 0
        %4056 = vmatpush2.bf16.msra.mxu0 0
        %4057 = vmatprep.mubr.bf16.mxu0 0
        %4058 = vmatmul.mubr.bf16.gmra.mxu0 %v1932
        %v4059 = vpop.f32.mrf.mxu0
        %v4060 = vadd.f32 0.0, %v4059
        %v4061 = vpop.f32.mrf.mxu0
        %v4062 = vadd.f32 0.0, %v4061
        %v4063 = vpop.f32.mrf.mxu0
        %v4064 = vpop.f32.mrf.mxu0
        %4065 = vdwg.mxu0
        %4066 = vmatprep.subr.bf16.mxu0 0
        %4067 = vmatpush1.bf16.msra.mxu0 0
        %4068 = vmatprep.subr.bf16.mxu0 0
        %4069 = vmatpush1.bf16.msra.mxu0 0
        %4070 = vmatprep.subr.bf16.mxu0 0
        %4071 = vmatpush1.bf16.msra.mxu0 0
        %4072 = vmatprep.subr.bf16.mxu0 0
        %4073 = vmatpush1.bf16.msra.mxu0 0
        %4074 = vmatprep.subr.bf16.mxu0 0
        %4075 = vmatpush1.bf16.msra.mxu0 0
        %4076 = vmatprep.subr.bf16.mxu0 0
        %4077 = vmatpush1.bf16.msra.mxu0 0
        %4078 = vmatprep.subr.bf16.mxu0 %v1651
        %4079 = vmatpush1.bf16.msra.mxu0 %v1650
        %4080 = vmatprep.subr.bf16.mxu0 %v1523
        %4081 = vmatpush1.bf16.msra.mxu0 %v1522
        %4082 = vmatprep.subr.bf16.mxu0 0
        %4083 = vmatpush2.bf16.msra.mxu0 0
        %4084 = vmatprep.subr.bf16.mxu0 0
        %4085 = vmatpush2.bf16.msra.mxu0 0
        %4086 = vmatprep.subr.bf16.mxu0 0
        %4087 = vmatpush2.bf16.msra.mxu0 0
        %4088 = vmatprep.subr.bf16.mxu0 0
        %4089 = vmatpush2.bf16.msra.mxu0 0
        %4090 = vmatprep.subr.bf16.mxu0 0
        %4091 = vmatpush2.bf16.msra.mxu0 0
        %4092 = vmatprep.subr.bf16.mxu0 0
        %4093 = vmatpush2.bf16.msra.mxu0 0
        %4094 = vmatprep.subr.bf16.mxu0 0
        %4095 = vmatpush2.bf16.msra.mxu0 0
        %4096 = vmatprep.subr.bf16.mxu0 0
        %4097 = vmatpush2.bf16.msra.mxu0 0
        %4098 = vmatprep.mubr.bf16.mxu0 0
        %4099 = vmatmul.mubr.bf16.gmra.mxu0 %v1932
        %v4100 = vpop.f32.mrf.mxu0
        %v4101 = vadd.f32 0.0, %v4100
        %v4102 = vpop.f32.mrf.mxu0
        %v4103 = vadd.f32 0.0, %v4102
        %v4104 = vpop.f32.mrf.mxu0
        %v4105 = vpop.f32.mrf.mxu0
        %4106 = vdwg.mxu0
        %4107 = vmatprep.subr.bf16.mxu0 0
        %4108 = vmatpush1.bf16.msra.mxu0 0
        %4109 = vmatprep.subr.bf16.mxu0 0
        %4110 = vmatpush1.bf16.msra.mxu0 0
        %4111 = vmatprep.subr.bf16.mxu0 0
        %4112 = vmatpush1.bf16.msra.mxu0 0
        %4113 = vmatprep.subr.bf16.mxu0 0
        %4114 = vmatpush1.bf16.msra.mxu0 0
        %4115 = vmatprep.subr.bf16.mxu0 0
        %4116 = vmatpush1.bf16.msra.mxu0 0
        %4117 = vmatprep.subr.bf16.mxu0 0
        %4118 = vmatpush1.bf16.msra.mxu0 0
        %4119 = vmatprep.subr.bf16.mxu0 %v1653
        %4120 = vmatpush1.bf16.msra.mxu0 %v1652
        %4121 = vmatprep.subr.bf16.mxu0 %v1525
        %4122 = vmatpush1.bf16.msra.mxu0 %v1524
        %4123 = vmatprep.subr.bf16.mxu0 0
        %4124 = vmatpush2.bf16.msra.mxu0 0
        %4125 = vmatprep.subr.bf16.mxu0 0
        %4126 = vmatpush2.bf16.msra.mxu0 0
        %4127 = vmatprep.subr.bf16.mxu0 0
        %4128 = vmatpush2.bf16.msra.mxu0 0
        %4129 = vmatprep.subr.bf16.mxu0 0
        %4130 = vmatpush2.bf16.msra.mxu0 0
        %4131 = vmatprep.subr.bf16.mxu0 0
        %4132 = vmatpush2.bf16.msra.mxu0 0
        %4133 = vmatprep.subr.bf16.mxu0 0
        %4134 = vmatpush2.bf16.msra.mxu0 0
        %4135 = vmatprep.subr.bf16.mxu0 0
        %4136 = vmatpush2.bf16.msra.mxu0 0
        %4137 = vmatprep.subr.bf16.mxu0 0
        %4138 = vmatpush2.bf16.msra.mxu0 0
        %4139 = vmatprep.mubr.bf16.mxu0 0
        %4140 = vmatmul.mubr.bf16.gmra.mxu0 %v1932
        %v4141 = vpop.f32.mrf.mxu0
        %v4142 = vadd.f32 0.0, %v4141
        %v4143 = vpop.f32.mrf.mxu0
        %v4144 = vadd.f32 0.0, %v4143
        %v4145 = vpop.f32.mrf.mxu0
        %v4146 = vpop.f32.mrf.mxu0
        %4147 = vdwg.mxu0
        %4148 = vmatprep.subr.bf16.mxu0 0
        %4149 = vmatpush1.bf16.msra.mxu0 0
        %4150 = vmatprep.subr.bf16.mxu0 0
        %4151 = vmatpush1.bf16.msra.mxu0 0
        %4152 = vmatprep.subr.bf16.mxu0 0
        %4153 = vmatpush1.bf16.msra.mxu0 0
        %4154 = vmatprep.subr.bf16.mxu0 0
        %4155 = vmatpush1.bf16.msra.mxu0 0
        %4156 = vmatprep.subr.bf16.mxu0 0
        %4157 = vmatpush1.bf16.msra.mxu0 0
        %4158 = vmatprep.subr.bf16.mxu0 0
        %4159 = vmatpush1.bf16.msra.mxu0 0
        %4160 = vmatprep.subr.bf16.mxu0 %v1655
        %4161 = vmatpush1.bf16.msra.mxu0 %v1654
        %4162 = vmatprep.subr.bf16.mxu0 %v1527
        %4163 = vmatpush1.bf16.msra.mxu0 %v1526
        %4164 = vmatprep.subr.bf16.mxu0 0
        %4165 = vmatpush2.bf16.msra.mxu0 0
        %4166 = vmatprep.subr.bf16.mxu0 0
        %4167 = vmatpush2.bf16.msra.mxu0 0
        %4168 = vmatprep.subr.bf16.mxu0 0
        %4169 = vmatpush2.bf16.msra.mxu0 0
        %4170 = vmatprep.subr.bf16.mxu0 0
        %4171 = vmatpush2.bf16.msra.mxu0 0
        %4172 = vmatprep.subr.bf16.mxu0 0
        %4173 = vmatpush2.bf16.msra.mxu0 0
        %4174 = vmatprep.subr.bf16.mxu0 0
        %4175 = vmatpush2.bf16.msra.mxu0 0
        %4176 = vmatprep.subr.bf16.mxu0 0
        %4177 = vmatpush2.bf16.msra.mxu0 0
        %4178 = vmatprep.subr.bf16.mxu0 0
        %4179 = vmatpush2.bf16.msra.mxu0 0
        %4180 = vmatprep.mubr.bf16.mxu0 0
        %4181 = vmatmul.mubr.bf16.gmra.mxu0 %v1932
        %v4182 = vpop.f32.mrf.mxu0
        %v4183 = vadd.f32 0.0, %v4182
        %v4184 = vpop.f32.mrf.mxu0
        %v4185 = vadd.f32 0.0, %v4184
        %v4186 = vpop.f32.mrf.mxu0
        %v4187 = vpop.f32.mrf.mxu0
        %4188 = vdwg.mxu0
        %4189 = vmatprep.subr.bf16.mxu0 0
        %4190 = vmatpush1.bf16.msra.mxu0 0
        %4191 = vmatprep.subr.bf16.mxu0 0
        %4192 = vmatpush1.bf16.msra.mxu0 0
        %4193 = vmatprep.subr.bf16.mxu0 0
        %4194 = vmatpush1.bf16.msra.mxu0 0
        %4195 = vmatprep.subr.bf16.mxu0 0
        %4196 = vmatpush1.bf16.msra.mxu0 0
        %4197 = vmatprep.subr.bf16.mxu0 0
        %4198 = vmatpush1.bf16.msra.mxu0 0
        %4199 = vmatprep.subr.bf16.mxu0 0
        %4200 = vmatpush1.bf16.msra.mxu0 0
        %4201 = vmatprep.subr.bf16.mxu0 %v1657
        %4202 = vmatpush1.bf16.msra.mxu0 %v1656
        %4203 = vmatprep.subr.bf16.mxu0 %v1529
        %4204 = vmatpush1.bf16.msra.mxu0 %v1528
        %4205 = vmatprep.subr.bf16.mxu0 0
        %4206 = vmatpush2.bf16.msra.mxu0 0
        %4207 = vmatprep.subr.bf16.mxu0 0
        %4208 = vmatpush2.bf16.msra.mxu0 0
        %4209 = vmatprep.subr.bf16.mxu0 0
        %4210 = vmatpush2.bf16.msra.mxu0 0
        %4211 = vmatprep.subr.bf16.mxu0 0
        %4212 = vmatpush2.bf16.msra.mxu0 0
        %4213 = vmatprep.subr.bf16.mxu0 0
        %4214 = vmatpush2.bf16.msra.mxu0 0
        %4215 = vmatprep.subr.bf16.mxu0 0
        %4216 = vmatpush2.bf16.msra.mxu0 0
        %4217 = vmatprep.subr.bf16.mxu0 0
        %4218 = vmatpush2.bf16.msra.mxu0 0
        %4219 = vmatprep.subr.bf16.mxu0 0
        %4220 = vmatpush2.bf16.msra.mxu0 0
        %4221 = vmatprep.mubr.bf16.mxu0 0
        %4222 = vmatmul.mubr.bf16.gmra.mxu0 %v1932
        %v4223 = vpop.f32.mrf.mxu0
        %v4224 = vadd.f32 0.0, %v4223
        %v4225 = vpop.f32.mrf.mxu0
        %v4226 = vadd.f32 0.0, %v4225
        %v4227 = vpop.f32.mrf.mxu0
        %v4228 = vpop.f32.mrf.mxu0
        %4229 = vdwg.mxu0
        %4230 = vmatprep.subr.bf16.mxu0 0
        %4231 = vmatpush1.bf16.msra.mxu0 0
        %4232 = vmatprep.subr.bf16.mxu0 0
        %4233 = vmatpush1.bf16.msra.mxu0 0
        %4234 = vmatprep.subr.bf16.mxu0 0
        %4235 = vmatpush1.bf16.msra.mxu0 0
        %4236 = vmatprep.subr.bf16.mxu0 0
        %4237 = vmatpush1.bf16.msra.mxu0 0
        %4238 = vmatprep.subr.bf16.mxu0 0
        %4239 = vmatpush1.bf16.msra.mxu0 0
        %4240 = vmatprep.subr.bf16.mxu0 0
        %4241 = vmatpush1.bf16.msra.mxu0 0
        %4242 = vmatprep.subr.bf16.mxu0 %v1659
        %4243 = vmatpush1.bf16.msra.mxu0 %v1658
        %4244 = vmatprep.subr.bf16.mxu0 %v1531
        %4245 = vmatpush1.bf16.msra.mxu0 %v1530
        %4246 = vmatprep.subr.bf16.mxu0 0
        %4247 = vmatpush2.bf16.msra.mxu0 0
        %4248 = vmatprep.subr.bf16.mxu0 0
        %4249 = vmatpush2.bf16.msra.mxu0 0
        %4250 = vmatprep.subr.bf16.mxu0 0
        %4251 = vmatpush2.bf16.msra.mxu0 0
        %4252 = vmatprep.subr.bf16.mxu0 0
        %4253 = vmatpush2.bf16.msra.mxu0 0
        %4254 = vmatprep.subr.bf16.mxu0 0
        %4255 = vmatpush2.bf16.msra.mxu0 0
        %4256 = vmatprep.subr.bf16.mxu0 0
        %4257 = vmatpush2.bf16.msra.mxu0 0
        %4258 = vmatprep.subr.bf16.mxu0 0
        %4259 = vmatpush2.bf16.msra.mxu0 0
        %4260 = vmatprep.subr.bf16.mxu0 0
        %4261 = vmatpush2.bf16.msra.mxu0 0
        %4262 = vmatprep.mubr.bf16.mxu0 0
        %4263 = vmatmul.mubr.bf16.gmra.mxu0 %v1932
        %v4264 = vpop.f32.mrf.mxu0
        %v4265 = vadd.f32 0.0, %v4264
        %v4266 = vpop.f32.mrf.mxu0
        %v4267 = vadd.f32 0.0, %v4266
        %v4268 = vpop.f32.mrf.mxu0
        %v4269 = vpop.f32.mrf.mxu0
        %4270 = vdwg.mxu0
        %4271 = vmatprep.subr.bf16.mxu0 0
        %4272 = vmatpush1.bf16.msra.mxu0 0
        %4273 = vmatprep.subr.bf16.mxu0 0
        %4274 = vmatpush1.bf16.msra.mxu0 0
        %4275 = vmatprep.subr.bf16.mxu0 0
        %4276 = vmatpush1.bf16.msra.mxu0 0
        %4277 = vmatprep.subr.bf16.mxu0 0
        %4278 = vmatpush1.bf16.msra.mxu0 0
        %4279 = vmatprep.subr.bf16.mxu0 0
        %4280 = vmatpush1.bf16.msra.mxu0 0
        %4281 = vmatprep.subr.bf16.mxu0 0
        %4282 = vmatpush1.bf16.msra.mxu0 0
        %4283 = vmatprep.subr.bf16.mxu0 %v1661
        %4284 = vmatpush1.bf16.msra.mxu0 %v1660
        %4285 = vmatprep.subr.bf16.mxu0 %v1533
        %4286 = vmatpush1.bf16.msra.mxu0 %v1532
        %4287 = vmatprep.subr.bf16.mxu0 0
        %4288 = vmatpush2.bf16.msra.mxu0 0
        %4289 = vmatprep.subr.bf16.mxu0 0
        %4290 = vmatpush2.bf16.msra.mxu0 0
        %4291 = vmatprep.subr.bf16.mxu0 0
        %4292 = vmatpush2.bf16.msra.mxu0 0
        %4293 = vmatprep.subr.bf16.mxu0 0
        %4294 = vmatpush2.bf16.msra.mxu0 0
        %4295 = vmatprep.subr.bf16.mxu0 0
        %4296 = vmatpush2.bf16.msra.mxu0 0
        %4297 = vmatprep.subr.bf16.mxu0 0
        %4298 = vmatpush2.bf16.msra.mxu0 0
        %4299 = vmatprep.subr.bf16.mxu0 0
        %4300 = vmatpush2.bf16.msra.mxu0 0
        %4301 = vmatprep.subr.bf16.mxu0 0
        %4302 = vmatpush2.bf16.msra.mxu0 0
        %4303 = vmatprep.mubr.bf16.mxu0 0
        %4304 = vmatmul.mubr.bf16.gmra.mxu0 %v1932
        %v4305 = vpop.f32.mrf.mxu0
        %v4306 = vadd.f32 0.0, %v4305
        %v4307 = vpop.f32.mrf.mxu0
        %v4308 = vadd.f32 0.0, %v4307
        %v4309 = vpop.f32.mrf.mxu0
        %v4310 = vpop.f32.mrf.mxu0
        %4311 = vdwg.mxu0
        %4312 = vmatprep.subr.bf16.mxu0 0
        %4313 = vmatpush1.bf16.msra.mxu0 0
        %4314 = vmatprep.subr.bf16.mxu0 0
        %4315 = vmatpush1.bf16.msra.mxu0 0
        %4316 = vmatprep.subr.bf16.mxu0 0
        %4317 = vmatpush1.bf16.msra.mxu0 0
        %4318 = vmatprep.subr.bf16.mxu0 0
        %4319 = vmatpush1.bf16.msra.mxu0 0
        %4320 = vmatprep.subr.bf16.mxu0 0
        %4321 = vmatpush1.bf16.msra.mxu0 0
        %4322 = vmatprep.subr.bf16.mxu0 0
        %4323 = vmatpush1.bf16.msra.mxu0 0
        %4324 = vmatprep.subr.bf16.mxu0 %v1663
        %4325 = vmatpush1.bf16.msra.mxu0 %v1662
        %4326 = vmatprep.subr.bf16.mxu0 %v1535
        %4327 = vmatpush1.bf16.msra.mxu0 %v1534
        %4328 = vmatprep.subr.bf16.mxu0 0
        %4329 = vmatpush2.bf16.msra.mxu0 0
        %4330 = vmatprep.subr.bf16.mxu0 0
        %4331 = vmatpush2.bf16.msra.mxu0 0
        %4332 = vmatprep.subr.bf16.mxu0 0
        %4333 = vmatpush2.bf16.msra.mxu0 0
        %4334 = vmatprep.subr.bf16.mxu0 0
        %4335 = vmatpush2.bf16.msra.mxu0 0
        %4336 = vmatprep.subr.bf16.mxu0 0
        %4337 = vmatpush2.bf16.msra.mxu0 0
        %4338 = vmatprep.subr.bf16.mxu0 0
        %4339 = vmatpush2.bf16.msra.mxu0 0
        %4340 = vmatprep.subr.bf16.mxu0 0
        %4341 = vmatpush2.bf16.msra.mxu0 0
        %4342 = vmatprep.subr.bf16.mxu0 0
        %4343 = vmatpush2.bf16.msra.mxu0 0
        %4344 = vmatprep.mubr.bf16.mxu0 0
        %4345 = vmatmul.mubr.bf16.gmra.mxu0 %v1932
        %v4346 = vpop.f32.mrf.mxu0
        %v4347 = vadd.f32 0.0, %v4346
        %v4348 = vpop.f32.mrf.mxu0
        %v4349 = vadd.f32 0.0, %v4348
        %v4350 = vpop.f32.mrf.mxu0
        %v4351 = vpop.f32.mrf.mxu0
        %4352 = vdwg.mxu0
        %4353 = vmatprep.subr.bf16.mxu0 0
        %4354 = vmatpush1.bf16.msra.mxu0 0
        %4355 = vmatprep.subr.bf16.mxu0 0
        %4356 = vmatpush1.bf16.msra.mxu0 0
        %4357 = vmatprep.subr.bf16.mxu0 0
        %4358 = vmatpush1.bf16.msra.mxu0 0
        %4359 = vmatprep.subr.bf16.mxu0 0
        %4360 = vmatpush1.bf16.msra.mxu0 0
        %4361 = vmatprep.subr.bf16.mxu0 0
        %4362 = vmatpush1.bf16.msra.mxu0 0
        %4363 = vmatprep.subr.bf16.mxu0 0
        %4364 = vmatpush1.bf16.msra.mxu0 0
        %4365 = vmatprep.subr.bf16.mxu0 %v1665
        %4366 = vmatpush1.bf16.msra.mxu0 %v1664
        %4367 = vmatprep.subr.bf16.mxu0 %v1537
        %4368 = vmatpush1.bf16.msra.mxu0 %v1536
        %4369 = vmatprep.subr.bf16.mxu0 0
        %4370 = vmatpush2.bf16.msra.mxu0 0
        %4371 = vmatprep.subr.bf16.mxu0 0
        %4372 = vmatpush2.bf16.msra.mxu0 0
        %4373 = vmatprep.subr.bf16.mxu0 0
        %4374 = vmatpush2.bf16.msra.mxu0 0
        %4375 = vmatprep.subr.bf16.mxu0 0
        %4376 = vmatpush2.bf16.msra.mxu0 0
        %4377 = vmatprep.subr.bf16.mxu0 0
        %4378 = vmatpush2.bf16.msra.mxu0 0
        %4379 = vmatprep.subr.bf16.mxu0 0
        %4380 = vmatpush2.bf16.msra.mxu0 0
        %4381 = vmatprep.subr.bf16.mxu0 0
        %4382 = vmatpush2.bf16.msra.mxu0 0
        %4383 = vmatprep.subr.bf16.mxu0 0
        %4384 = vmatpush2.bf16.msra.mxu0 0
        %4385 = vmatprep.mubr.bf16.mxu0 0
        %4386 = vmatmul.mubr.bf16.gmra.mxu0 %v1932
        %v4387 = vpop.f32.mrf.mxu0
        %v4388 = vadd.f32 0.0, %v4387
        %v4389 = vpop.f32.mrf.mxu0
        %v4390 = vadd.f32 0.0, %v4389
        %v4391 = vpop.f32.mrf.mxu0
        %v4392 = vpop.f32.mrf.mxu0
        %4393 = vdwg.mxu0
        %4394 = vmatprep.subr.bf16.mxu0 0
        %4395 = vmatpush1.bf16.msra.mxu0 0
        %4396 = vmatprep.subr.bf16.mxu0 0
        %4397 = vmatpush1.bf16.msra.mxu0 0
        %4398 = vmatprep.subr.bf16.mxu0 0
        %4399 = vmatpush1.bf16.msra.mxu0 0
        %4400 = vmatprep.subr.bf16.mxu0 0
        %4401 = vmatpush1.bf16.msra.mxu0 0
        %4402 = vmatprep.subr.bf16.mxu0 0
        %4403 = vmatpush1.bf16.msra.mxu0 0
        %4404 = vmatprep.subr.bf16.mxu0 0
        %4405 = vmatpush1.bf16.msra.mxu0 0
        %4406 = vmatprep.subr.bf16.mxu0 %v1667
        %4407 = vmatpush1.bf16.msra.mxu0 %v1666
        %4408 = vmatprep.subr.bf16.mxu0 %v1539
        %4409 = vmatpush1.bf16.msra.mxu0 %v1538
        %4410 = vmatprep.subr.bf16.mxu0 0
        %4411 = vmatpush2.bf16.msra.mxu0 0
        %4412 = vmatprep.subr.bf16.mxu0 0
        %4413 = vmatpush2.bf16.msra.mxu0 0
        %4414 = vmatprep.subr.bf16.mxu0 0
        %4415 = vmatpush2.bf16.msra.mxu0 0
        %4416 = vmatprep.subr.bf16.mxu0 0
        %4417 = vmatpush2.bf16.msra.mxu0 0
        %4418 = vmatprep.subr.bf16.mxu0 0
        %4419 = vmatpush2.bf16.msra.mxu0 0
        %4420 = vmatprep.subr.bf16.mxu0 0
        %4421 = vmatpush2.bf16.msra.mxu0 0
        %4422 = vmatprep.subr.bf16.mxu0 0
        %4423 = vmatpush2.bf16.msra.mxu0 0
        %4424 = vmatprep.subr.bf16.mxu0 0
        %4425 = vmatpush2.bf16.msra.mxu0 0
        %4426 = vmatprep.mubr.bf16.mxu0 0
        %4427 = vmatmul.mubr.bf16.gmra.mxu0 %v1932
        %v4428 = vpop.f32.mrf.mxu0
        %v4429 = vadd.f32 0.0, %v4428
        %v4430 = vpop.f32.mrf.mxu0
        %v4431 = vadd.f32 0.0, %v4430
        %v4432 = vpop.f32.mrf.mxu0
        %v4433 = vpop.f32.mrf.mxu0
        %4434 = vdwg.mxu0
        %4435 = vmatprep.subr.bf16.mxu0 0
        %4436 = vmatpush1.bf16.msra.mxu0 0
        %4437 = vmatprep.subr.bf16.mxu0 0
        %4438 = vmatpush1.bf16.msra.mxu0 0
        %4439 = vmatprep.subr.bf16.mxu0 0
        %4440 = vmatpush1.bf16.msra.mxu0 0
        %4441 = vmatprep.subr.bf16.mxu0 0
        %4442 = vmatpush1.bf16.msra.mxu0 0
        %4443 = vmatprep.subr.bf16.mxu0 0
        %4444 = vmatpush1.bf16.msra.mxu0 0
        %4445 = vmatprep.subr.bf16.mxu0 0
        %4446 = vmatpush1.bf16.msra.mxu0 0
        %4447 = vmatprep.subr.bf16.mxu0 %v1669
        %4448 = vmatpush1.bf16.msra.mxu0 %v1668
        %4449 = vmatprep.subr.bf16.mxu0 %v1541
        %4450 = vmatpush1.bf16.msra.mxu0 %v1540
        %4451 = vmatprep.subr.bf16.mxu0 0
        %4452 = vmatpush2.bf16.msra.mxu0 0
        %4453 = vmatprep.subr.bf16.mxu0 0
        %4454 = vmatpush2.bf16.msra.mxu0 0
        %4455 = vmatprep.subr.bf16.mxu0 0
        %4456 = vmatpush2.bf16.msra.mxu0 0
        %4457 = vmatprep.subr.bf16.mxu0 0
        %4458 = vmatpush2.bf16.msra.mxu0 0
        %4459 = vmatprep.subr.bf16.mxu0 0
        %4460 = vmatpush2.bf16.msra.mxu0 0
        %4461 = vmatprep.subr.bf16.mxu0 0
        %4462 = vmatpush2.bf16.msra.mxu0 0
        %4463 = vmatprep.subr.bf16.mxu0 0
        %4464 = vmatpush2.bf16.msra.mxu0 0
        %4465 = vmatprep.subr.bf16.mxu0 0
        %4466 = vmatpush2.bf16.msra.mxu0 0
        %4467 = vmatprep.mubr.bf16.mxu0 0
        %4468 = vmatmul.mubr.bf16.gmra.mxu0 %v1932
        %v4469 = vpop.f32.mrf.mxu0
        %v4470 = vadd.f32 0.0, %v4469
        %v4471 = vpop.f32.mrf.mxu0
        %v4472 = vadd.f32 0.0, %v4471
        %v4473 = vpop.f32.mrf.mxu0
        %v4474 = vpop.f32.mrf.mxu0
        %4475 = vdwg.mxu0
        %4476 = vmatprep.subr.bf16.mxu0 0
        %4477 = vmatpush1.bf16.msra.mxu0 0
        %4478 = vmatprep.subr.bf16.mxu0 0
        %4479 = vmatpush1.bf16.msra.mxu0 0
        %4480 = vmatprep.subr.bf16.mxu0 0
        %4481 = vmatpush1.bf16.msra.mxu0 0
        %4482 = vmatprep.subr.bf16.mxu0 0
        %4483 = vmatpush1.bf16.msra.mxu0 0
        %4484 = vmatprep.subr.bf16.mxu0 0
        %4485 = vmatpush1.bf16.msra.mxu0 0
        %4486 = vmatprep.subr.bf16.mxu0 0
        %4487 = vmatpush1.bf16.msra.mxu0 0
        %4488 = vmatprep.subr.bf16.mxu0 %v1671
        %4489 = vmatpush1.bf16.msra.mxu0 %v1670
        %4490 = vmatprep.subr.bf16.mxu0 %v1543
        %4491 = vmatpush1.bf16.msra.mxu0 %v1542
        %4492 = vmatprep.subr.bf16.mxu0 0
        %4493 = vmatpush2.bf16.msra.mxu0 0
        %4494 = vmatprep.subr.bf16.mxu0 0
        %4495 = vmatpush2.bf16.msra.mxu0 0
        %4496 = vmatprep.subr.bf16.mxu0 0
        %4497 = vmatpush2.bf16.msra.mxu0 0
        %4498 = vmatprep.subr.bf16.mxu0 0
        %4499 = vmatpush2.bf16.msra.mxu0 0
        %4500 = vmatprep.subr.bf16.mxu0 0
        %4501 = vmatpush2.bf16.msra.mxu0 0
        %4502 = vmatprep.subr.bf16.mxu0 0
        %4503 = vmatpush2.bf16.msra.mxu0 0
        %4504 = vmatprep.subr.bf16.mxu0 0
        %4505 = vmatpush2.bf16.msra.mxu0 0
        %4506 = vmatprep.subr.bf16.mxu0 0
        %4507 = vmatpush2.bf16.msra.mxu0 0
        %4508 = vmatprep.mubr.bf16.mxu0 0
        %4509 = vmatmul.mubr.bf16.gmra.mxu0 %v1932
        %v4510 = vpop.f32.mrf.mxu0
        %v4511 = vadd.f32 0.0, %v4510
        %v4512 = vpop.f32.mrf.mxu0
        %v4513 = vadd.f32 0.0, %v4512
        %v4514 = vpop.f32.mrf.mxu0
        %v4515 = vpop.f32.mrf.mxu0
        %4516 = vdwg.mxu0
        %4517 = vmatprep.subr.bf16.mxu0 0
        %4518 = vmatpush1.bf16.msra.mxu0 0
        %4519 = vmatprep.subr.bf16.mxu0 0
        %4520 = vmatpush1.bf16.msra.mxu0 0
        %4521 = vmatprep.subr.bf16.mxu0 0
        %4522 = vmatpush1.bf16.msra.mxu0 0
        %4523 = vmatprep.subr.bf16.mxu0 0
        %4524 = vmatpush1.bf16.msra.mxu0 0
        %4525 = vmatprep.subr.bf16.mxu0 0
        %4526 = vmatpush1.bf16.msra.mxu0 0
        %4527 = vmatprep.subr.bf16.mxu0 0
        %4528 = vmatpush1.bf16.msra.mxu0 0
        %4529 = vmatprep.subr.bf16.mxu0 %v1673
        %4530 = vmatpush1.bf16.msra.mxu0 %v1672
        %4531 = vmatprep.subr.bf16.mxu0 %v1545
        %4532 = vmatpush1.bf16.msra.mxu0 %v1544
        %4533 = vmatprep.subr.bf16.mxu0 0
        %4534 = vmatpush2.bf16.msra.mxu0 0
        %4535 = vmatprep.subr.bf16.mxu0 0
        %4536 = vmatpush2.bf16.msra.mxu0 0
        %4537 = vmatprep.subr.bf16.mxu0 0
        %4538 = vmatpush2.bf16.msra.mxu0 0
        %4539 = vmatprep.subr.bf16.mxu0 0
        %4540 = vmatpush2.bf16.msra.mxu0 0
        %4541 = vmatprep.subr.bf16.mxu0 0
        %4542 = vmatpush2.bf16.msra.mxu0 0
        %4543 = vmatprep.subr.bf16.mxu0 0
        %4544 = vmatpush2.bf16.msra.mxu0 0
        %4545 = vmatprep.subr.bf16.mxu0 0
        %4546 = vmatpush2.bf16.msra.mxu0 0
        %4547 = vmatprep.subr.bf16.mxu0 0
        %4548 = vmatpush2.bf16.msra.mxu0 0
        %4549 = vmatprep.mubr.bf16.mxu0 0
        %4550 = vmatmul.mubr.bf16.gmra.mxu0 %v1932
        %v4551 = vpop.f32.mrf.mxu0
        %v4552 = vadd.f32 0.0, %v4551
        %v4553 = vpop.f32.mrf.mxu0
        %v4554 = vadd.f32 0.0, %v4553
        %v4555 = vpop.f32.mrf.mxu0
        %v4556 = vpop.f32.mrf.mxu0
        %4557 = vdwg.mxu0
        %v4574 = vcombine.low %v1969, %v1971
        %v4575 = vcombine.low %v2010, %v2012
        %v4576 = vcombine.low %v2051, %v2053
        %v4577 = vcombine.low %v2092, %v2094
        %v4579 = vunpack.c.l.s4 1966171168
        %v4580 = vunpack.c.0.s8 %v4579
        %v4581 = vlaneseq
        %v4582 = vshrl.u32 %v4581, 7
        %v4583 = vsub.s32 %v4580, %v4582
        %v4584 = vrot.slane %v4574, %v4583
        %v4586 = vunpack.c.l.s4 1966171168
        %v4587 = vunpack.c.0.s8 %v4586
        %v4588 = vlaneseq
        %v4589 = vshrl.u32 %v4588, 7
        %v4590 = vsub.s32 %v4587, %v4589
        %v4591 = vrot.slane %v4575, %v4590
        %v4593 = vunpack.c.l.s4 1966171168
        %v4594 = vunpack.c.0.s8 %v4593
        %v4595 = vlaneseq
        %v4596 = vshrl.u32 %v4595, 7
        %v4597 = vsub.s32 %v4594, %v4596
        %v4598 = vrot.slane %v4576, %v4597
        %v4600 = vunpack.c.l.s4 1966171168
        %v4601 = vunpack.c.0.s8 %v4600
        %v4602 = vlaneseq
        %v4603 = vshrl.u32 %v4602, 7
        %v4604 = vsub.s32 %v4601, %v4603
        %v4605 = vrot.slane %v4577, %v4604
        %v4606 = vcombine.low %v4584, %v4591
        %v4607 = vcombine.low %v4598, %v4605
        %v4609 = vunpack.c.l.s4 1966171168
        %v4610 = vunpack.c.0.s8 %v4609
        %v4611 = vlaneseq
        %v4612 = vshrl.u32 %v4611, 7
        %v4613 = vsub.s32 %v4610, %v4612
        %v4614 = vrot.slane %v4606, %v4613
        %v4616 = vunpack.c.l.s4 1966171168
        %v4617 = vunpack.c.0.s8 %v4616
        %v4618 = vlaneseq
        %v4619 = vshrl.u32 %v4618, 7
        %v4620 = vsub.s32 %v4617, %v4619
        %v4621 = vrot.slane %v4607, %v4620
        %v4622 = vcombine.low %v4614, %v4621
        %v4623 = vcombine.low %v2133, %v2135
        %v4624 = vcombine.low %v2174, %v2176
        %v4625 = vcombine.low %v2215, %v2217
        %v4626 = vcombine.low %v2256, %v2258
        %v4628 = vunpack.c.l.s4 1966171168
        %v4629 = vunpack.c.0.s8 %v4628
        %v4630 = vlaneseq
        %v4631 = vshrl.u32 %v4630, 7
        %v4632 = vsub.s32 %v4629, %v4631
        %v4633 = vrot.slane %v4623, %v4632
        %v4635 = vunpack.c.l.s4 1966171168
        %v4636 = vunpack.c.0.s8 %v4635
        %v4637 = vlaneseq
        %v4638 = vshrl.u32 %v4637, 7
        %v4639 = vsub.s32 %v4636, %v4638
        %v4640 = vrot.slane %v4624, %v4639
        %v4642 = vunpack.c.l.s4 1966171168
        %v4643 = vunpack.c.0.s8 %v4642
        %v4644 = vlaneseq
        %v4645 = vshrl.u32 %v4644, 7
        %v4646 = vsub.s32 %v4643, %v4645
        %v4647 = vrot.slane %v4625, %v4646
        %v4649 = vunpack.c.l.s4 1966171168
        %v4650 = vunpack.c.0.s8 %v4649
        %v4651 = vlaneseq
        %v4652 = vshrl.u32 %v4651, 7
        %v4653 = vsub.s32 %v4650, %v4652
        %v4654 = vrot.slane %v4626, %v4653
        %v4655 = vcombine.low %v4633, %v4640
        %v4656 = vcombine.low %v4647, %v4654
        %v4658 = vunpack.c.l.s4 1966171168
        %v4659 = vunpack.c.0.s8 %v4658
        %v4660 = vlaneseq
        %v4661 = vshrl.u32 %v4660, 7
        %v4662 = vsub.s32 %v4659, %v4661
        %v4663 = vrot.slane %v4655, %v4662
        %v4665 = vunpack.c.l.s4 1966171168
        %v4666 = vunpack.c.0.s8 %v4665
        %v4667 = vlaneseq
        %v4668 = vshrl.u32 %v4667, 7
        %v4669 = vsub.s32 %v4666, %v4668
        %v4670 = vrot.slane %v4656, %v4669
        %v4671 = vcombine.low %v4663, %v4670
        %4674 = vst [vmem:[#allocation2] ss:$8 sm:$0xf] %v4622
        %4675 = vst [vmem:[#allocation2] ss:$8 sm:$0xf0] %v4622
        %s4676 = scalar_lea.vmem [#allocation2], 64
        %4677 = vst [vmem:[%s4676] ss:$8 sm:$0xf] %v4671
        %4678 = vst [vmem:[%s4676] ss:$8 sm:$0xf0] %v4671
        %v4695 = vcombine.low %v2297, %v2299
        %v4696 = vcombine.low %v2338, %v2340
        %v4697 = vcombine.low %v2379, %v2381
        %v4698 = vcombine.low %v2420, %v2422
        %v4700 = vunpack.c.l.s4 1966171168
        %v4701 = vunpack.c.0.s8 %v4700
        %v4702 = vlaneseq
        %v4703 = vshrl.u32 %v4702, 7
        %v4704 = vsub.s32 %v4701, %v4703
        %v4705 = vrot.slane %v4695, %v4704
        %v4707 = vunpack.c.l.s4 1966171168
        %v4708 = vunpack.c.0.s8 %v4707
        %v4709 = vlaneseq
        %v4710 = vshrl.u32 %v4709, 7
        %v4711 = vsub.s32 %v4708, %v4710
        %v4712 = vrot.slane %v4696, %v4711
        %v4714 = vunpack.c.l.s4 1966171168
        %v4715 = vunpack.c.0.s8 %v4714
        %v4716 = vlaneseq
        %v4717 = vshrl.u32 %v4716, 7
        %v4718 = vsub.s32 %v4715, %v4717
        %v4719 = vrot.slane %v4697, %v4718
        %v4721 = vunpack.c.l.s4 1966171168
        %v4722 = vunpack.c.0.s8 %v4721
        %v4723 = vlaneseq
        %v4724 = vshrl.u32 %v4723, 7
        %v4725 = vsub.s32 %v4722, %v4724
        %v4726 = vrot.slane %v4698, %v4725
        %v4727 = vcombine.low %v4705, %v4712
        %v4728 = vcombine.low %v4719, %v4726
        %v4730 = vunpack.c.l.s4 1966171168
        %v4731 = vunpack.c.0.s8 %v4730
        %v4732 = vlaneseq
        %v4733 = vshrl.u32 %v4732, 7
        %v4734 = vsub.s32 %v4731, %v4733
        %v4735 = vrot.slane %v4727, %v4734
        %v4737 = vunpack.c.l.s4 1966171168
        %v4738 = vunpack.c.0.s8 %v4737
        %v4739 = vlaneseq
        %v4740 = vshrl.u32 %v4739, 7
        %v4741 = vsub.s32 %v4738, %v4740
        %v4742 = vrot.slane %v4728, %v4741
        %v4743 = vcombine.low %v4735, %v4742
        %v4744 = vcombine.low %v2461, %v2463
        %v4745 = vcombine.low %v2502, %v2504
        %v4746 = vcombine.low %v2543, %v2545
        %v4747 = vcombine.low %v2584, %v2586
        %v4749 = vunpack.c.l.s4 1966171168
        %v4750 = vunpack.c.0.s8 %v4749
        %v4751 = vlaneseq
        %v4752 = vshrl.u32 %v4751, 7
        %v4753 = vsub.s32 %v4750, %v4752
        %v4754 = vrot.slane %v4744, %v4753
        %v4756 = vunpack.c.l.s4 1966171168
        %v4757 = vunpack.c.0.s8 %v4756
        %v4758 = vlaneseq
        %v4759 = vshrl.u32 %v4758, 7
        %v4760 = vsub.s32 %v4757, %v4759
        %v4761 = vrot.slane %v4745, %v4760
        %v4763 = vunpack.c.l.s4 1966171168
        %v4764 = vunpack.c.0.s8 %v4763
        %v4765 = vlaneseq
        %v4766 = vshrl.u32 %v4765, 7
        %v4767 = vsub.s32 %v4764, %v4766
        %v4768 = vrot.slane %v4746, %v4767
        %v4770 = vunpack.c.l.s4 1966171168
        %v4771 = vunpack.c.0.s8 %v4770
        %v4772 = vlaneseq
        %v4773 = vshrl.u32 %v4772, 7
        %v4774 = vsub.s32 %v4771, %v4773
        %v4775 = vrot.slane %v4747, %v4774
        %v4776 = vcombine.low %v4754, %v4761
        %v4777 = vcombine.low %v4768, %v4775
        %v4779 = vunpack.c.l.s4 1966171168
        %v4780 = vunpack.c.0.s8 %v4779
        %v4781 = vlaneseq
        %v4782 = vshrl.u32 %v4781, 7
        %v4783 = vsub.s32 %v4780, %v4782
        %v4784 = vrot.slane %v4776, %v4783
        %v4786 = vunpack.c.l.s4 1966171168
        %v4787 = vunpack.c.0.s8 %v4786
        %v4788 = vlaneseq
        %v4789 = vshrl.u32 %v4788, 7
        %v4790 = vsub.s32 %v4787, %v4789
        %v4791 = vrot.slane %v4777, %v4790
        %v4792 = vcombine.low %v4784, %v4791
        %s4795 = scalar_lea.vmem [#allocation2], 1
        %4796 = vst [vmem:[%s4795] ss:$8 sm:$0xf] %v4743
        %4797 = vst [vmem:[%s4795] ss:$8 sm:$0xf0] %v4743
        %s4798 = scalar_lea.vmem [#allocation2], 65
        %4799 = vst [vmem:[%s4798] ss:$8 sm:$0xf] %v4792
        %4800 = vst [vmem:[%s4798] ss:$8 sm:$0xf0] %v4792
        %v4817 = vcombine.low %v2625, %v2627
        %v4818 = vcombine.low %v2666, %v2668
        %v4819 = vcombine.low %v2707, %v2709
        %v4820 = vcombine.low %v2748, %v2750
        %v4822 = vunpack.c.l.s4 1966171168
        %v4823 = vunpack.c.0.s8 %v4822
        %v4824 = vlaneseq
        %v4825 = vshrl.u32 %v4824, 7
        %v4826 = vsub.s32 %v4823, %v4825
        %v4827 = vrot.slane %v4817, %v4826
        %v4829 = vunpack.c.l.s4 1966171168
        %v4830 = vunpack.c.0.s8 %v4829
        %v4831 = vlaneseq
        %v4832 = vshrl.u32 %v4831, 7
        %v4833 = vsub.s32 %v4830, %v4832
        %v4834 = vrot.slane %v4818, %v4833
        %v4836 = vunpack.c.l.s4 1966171168
        %v4837 = vunpack.c.0.s8 %v4836
        %v4838 = vlaneseq
        %v4839 = vshrl.u32 %v4838, 7
        %v4840 = vsub.s32 %v4837, %v4839
        %v4841 = vrot.slane %v4819, %v4840
        %v4843 = vunpack.c.l.s4 1966171168
        %v4844 = vunpack.c.0.s8 %v4843
        %v4845 = vlaneseq
        %v4846 = vshrl.u32 %v4845, 7
        %v4847 = vsub.s32 %v4844, %v4846
        %v4848 = vrot.slane %v4820, %v4847
        %v4849 = vcombine.low %v4827, %v4834
        %v4850 = vcombine.low %v4841, %v4848
        %v4852 = vunpack.c.l.s4 1966171168
        %v4853 = vunpack.c.0.s8 %v4852
        %v4854 = vlaneseq
        %v4855 = vshrl.u32 %v4854, 7
        %v4856 = vsub.s32 %v4853, %v4855
        %v4857 = vrot.slane %v4849, %v4856
        %v4859 = vunpack.c.l.s4 1966171168
        %v4860 = vunpack.c.0.s8 %v4859
        %v4861 = vlaneseq
        %v4862 = vshrl.u32 %v4861, 7
        %v4863 = vsub.s32 %v4860, %v4862
        %v4864 = vrot.slane %v4850, %v4863
        %v4865 = vcombine.low %v4857, %v4864
        %v4866 = vcombine.low %v2789, %v2791
        %v4867 = vcombine.low %v2830, %v2832
        %v4868 = vcombine.low %v2871, %v2873
        %v4869 = vcombine.low %v2912, %v2914
        %v4871 = vunpack.c.l.s4 1966171168
        %v4872 = vunpack.c.0.s8 %v4871
        %v4873 = vlaneseq
        %v4874 = vshrl.u32 %v4873, 7
        %v4875 = vsub.s32 %v4872, %v4874
        %v4876 = vrot.slane %v4866, %v4875
        %v4878 = vunpack.c.l.s4 1966171168
        %v4879 = vunpack.c.0.s8 %v4878
        %v4880 = vlaneseq
        %v4881 = vshrl.u32 %v4880, 7
        %v4882 = vsub.s32 %v4879, %v4881
        %v4883 = vrot.slane %v4867, %v4882
        %v4885 = vunpack.c.l.s4 1966171168
        %v4886 = vunpack.c.0.s8 %v4885
        %v4887 = vlaneseq
        %v4888 = vshrl.u32 %v4887, 7
        %v4889 = vsub.s32 %v4886, %v4888
        %v4890 = vrot.slane %v4868, %v4889
        %v4892 = vunpack.c.l.s4 1966171168
        %v4893 = vunpack.c.0.s8 %v4892
        %v4894 = vlaneseq
        %v4895 = vshrl.u32 %v4894, 7
        %v4896 = vsub.s32 %v4893, %v4895
        %v4897 = vrot.slane %v4869, %v4896
        %v4898 = vcombine.low %v4876, %v4883
        %v4899 = vcombine.low %v4890, %v4897
        %v4901 = vunpack.c.l.s4 1966171168
        %v4902 = vunpack.c.0.s8 %v4901
        %v4903 = vlaneseq
        %v4904 = vshrl.u32 %v4903, 7
        %v4905 = vsub.s32 %v4902, %v4904
        %v4906 = vrot.slane %v4898, %v4905
        %v4908 = vunpack.c.l.s4 1966171168
        %v4909 = vunpack.c.0.s8 %v4908
        %v4910 = vlaneseq
        %v4911 = vshrl.u32 %v4910, 7
        %v4912 = vsub.s32 %v4909, %v4911
        %v4913 = vrot.slane %v4899, %v4912
        %v4914 = vcombine.low %v4906, %v4913
        %s4917 = scalar_lea.vmem [#allocation2], 2
        %4918 = vst [vmem:[%s4917] ss:$8 sm:$0xf] %v4865
        %4919 = vst [vmem:[%s4917] ss:$8 sm:$0xf0] %v4865
        %s4920 = scalar_lea.vmem [#allocation2], 66
        %4921 = vst [vmem:[%s4920] ss:$8 sm:$0xf] %v4914
        %4922 = vst [vmem:[%s4920] ss:$8 sm:$0xf0] %v4914
        %v4939 = vcombine.low %v2953, %v2955
        %v4940 = vcombine.low %v2994, %v2996
        %v4941 = vcombine.low %v3035, %v3037
        %v4942 = vcombine.low %v3076, %v3078
        %v4944 = vunpack.c.l.s4 1966171168
        %v4945 = vunpack.c.0.s8 %v4944
        %v4946 = vlaneseq
        %v4947 = vshrl.u32 %v4946, 7
        %v4948 = vsub.s32 %v4945, %v4947
        %v4949 = vrot.slane %v4939, %v4948
        %v4951 = vunpack.c.l.s4 1966171168
        %v4952 = vunpack.c.0.s8 %v4951
        %v4953 = vlaneseq
        %v4954 = vshrl.u32 %v4953, 7
        %v4955 = vsub.s32 %v4952, %v4954
        %v4956 = vrot.slane %v4940, %v4955
        %v4958 = vunpack.c.l.s4 1966171168
        %v4959 = vunpack.c.0.s8 %v4958
        %v4960 = vlaneseq
        %v4961 = vshrl.u32 %v4960, 7
        %v4962 = vsub.s32 %v4959, %v4961
        %v4963 = vrot.slane %v4941, %v4962
        %v4965 = vunpack.c.l.s4 1966171168
        %v4966 = vunpack.c.0.s8 %v4965
        %v4967 = vlaneseq
        %v4968 = vshrl.u32 %v4967, 7
        %v4969 = vsub.s32 %v4966, %v4968
        %v4970 = vrot.slane %v4942, %v4969
        %v4971 = vcombine.low %v4949, %v4956
        %v4972 = vcombine.low %v4963, %v4970
        %v4974 = vunpack.c.l.s4 1966171168
        %v4975 = vunpack.c.0.s8 %v4974
        %v4976 = vlaneseq
        %v4977 = vshrl.u32 %v4976, 7
        %v4978 = vsub.s32 %v4975, %v4977
        %v4979 = vrot.slane %v4971, %v4978
        %v4981 = vunpack.c.l.s4 1966171168
        %v4982 = vunpack.c.0.s8 %v4981
        %v4983 = vlaneseq
        %v4984 = vshrl.u32 %v4983, 7
        %v4985 = vsub.s32 %v4982, %v4984
        %v4986 = vrot.slane %v4972, %v4985
        %v4987 = vcombine.low %v4979, %v4986
        %v4988 = vcombine.low %v3117, %v3119
        %v4989 = vcombine.low %v3158, %v3160
        %v4990 = vcombine.low %v3199, %v3201
        %v4991 = vcombine.low %v3240, %v3242
        %v4993 = vunpack.c.l.s4 1966171168
        %v4994 = vunpack.c.0.s8 %v4993
        %v4995 = vlaneseq
        %v4996 = vshrl.u32 %v4995, 7
        %v4997 = vsub.s32 %v4994, %v4996
        %v4998 = vrot.slane %v4988, %v4997
        %v5000 = vunpack.c.l.s4 1966171168
        %v5001 = vunpack.c.0.s8 %v5000
        %v5002 = vlaneseq
        %v5003 = vshrl.u32 %v5002, 7
        %v5004 = vsub.s32 %v5001, %v5003
        %v5005 = vrot.slane %v4989, %v5004
        %v5007 = vunpack.c.l.s4 1966171168
        %v5008 = vunpack.c.0.s8 %v5007
        %v5009 = vlaneseq
        %v5010 = vshrl.u32 %v5009, 7
        %v5011 = vsub.s32 %v5008, %v5010
        %v5012 = vrot.slane %v4990, %v5011
        %v5014 = vunpack.c.l.s4 1966171168
        %v5015 = vunpack.c.0.s8 %v5014
        %v5016 = vlaneseq
        %v5017 = vshrl.u32 %v5016, 7
        %v5018 = vsub.s32 %v5015, %v5017
        %v5019 = vrot.slane %v4991, %v5018
        %v5020 = vcombine.low %v4998, %v5005
        %v5021 = vcombine.low %v5012, %v5019
        %v5023 = vunpack.c.l.s4 1966171168
        %v5024 = vunpack.c.0.s8 %v5023
        %v5025 = vlaneseq
        %v5026 = vshrl.u32 %v5025, 7
        %v5027 = vsub.s32 %v5024, %v5026
        %v5028 = vrot.slane %v5020, %v5027
        %v5030 = vunpack.c.l.s4 1966171168
        %v5031 = vunpack.c.0.s8 %v5030
        %v5032 = vlaneseq
        %v5033 = vshrl.u32 %v5032, 7
        %v5034 = vsub.s32 %v5031, %v5033
        %v5035 = vrot.slane %v5021, %v5034
        %v5036 = vcombine.low %v5028, %v5035
        %s5039 = scalar_lea.vmem [#allocation2], 3
        %5040 = vst [vmem:[%s5039] ss:$8 sm:$0xf] %v4987
        %5041 = vst [vmem:[%s5039] ss:$8 sm:$0xf0] %v4987
        %s5042 = scalar_lea.vmem [#allocation2], 67
        %5043 = vst [vmem:[%s5042] ss:$8 sm:$0xf] %v5036
        %5044 = vst [vmem:[%s5042] ss:$8 sm:$0xf0] %v5036
        %v5061 = vcombine.low %v3281, %v3283
        %v5062 = vcombine.low %v3322, %v3324
        %v5063 = vcombine.low %v3363, %v3365
        %v5064 = vcombine.low %v3404, %v3406
        %v5066 = vunpack.c.l.s4 1966171168
        %v5067 = vunpack.c.0.s8 %v5066
        %v5068 = vlaneseq
        %v5069 = vshrl.u32 %v5068, 7
        %v5070 = vsub.s32 %v5067, %v5069
        %v5071 = vrot.slane %v5061, %v5070
        %v5073 = vunpack.c.l.s4 1966171168
        %v5074 = vunpack.c.0.s8 %v5073
        %v5075 = vlaneseq
        %v5076 = vshrl.u32 %v5075, 7
        %v5077 = vsub.s32 %v5074, %v5076
        %v5078 = vrot.slane %v5062, %v5077
        %v5080 = vunpack.c.l.s4 1966171168
        %v5081 = vunpack.c.0.s8 %v5080
        %v5082 = vlaneseq
        %v5083 = vshrl.u32 %v5082, 7
        %v5084 = vsub.s32 %v5081, %v5083
        %v5085 = vrot.slane %v5063, %v5084
        %v5087 = vunpack.c.l.s4 1966171168
        %v5088 = vunpack.c.0.s8 %v5087
        %v5089 = vlaneseq
        %v5090 = vshrl.u32 %v5089, 7
        %v5091 = vsub.s32 %v5088, %v5090
        %v5092 = vrot.slane %v5064, %v5091
        %v5093 = vcombine.low %v5071, %v5078
        %v5094 = vcombine.low %v5085, %v5092
        %v5096 = vunpack.c.l.s4 1966171168
        %v5097 = vunpack.c.0.s8 %v5096
        %v5098 = vlaneseq
        %v5099 = vshrl.u32 %v5098, 7
        %v5100 = vsub.s32 %v5097, %v5099
        %v5101 = vrot.slane %v5093, %v5100
        %v5103 = vunpack.c.l.s4 1966171168
        %v5104 = vunpack.c.0.s8 %v5103
        %v5105 = vlaneseq
        %v5106 = vshrl.u32 %v5105, 7
        %v5107 = vsub.s32 %v5104, %v5106
        %v5108 = vrot.slane %v5094, %v5107
        %v5109 = vcombine.low %v5101, %v5108
        %v5110 = vcombine.low %v3445, %v3447
        %v5111 = vcombine.low %v3486, %v3488
        %v5112 = vcombine.low %v3527, %v3529
        %v5113 = vcombine.low %v3568, %v3570
        %v5115 = vunpack.c.l.s4 1966171168
        %v5116 = vunpack.c.0.s8 %v5115
        %v5117 = vlaneseq
        %v5118 = vshrl.u32 %v5117, 7
        %v5119 = vsub.s32 %v5116, %v5118
        %v5120 = vrot.slane %v5110, %v5119
        %v5122 = vunpack.c.l.s4 1966171168
        %v5123 = vunpack.c.0.s8 %v5122
        %v5124 = vlaneseq
        %v5125 = vshrl.u32 %v5124, 7
        %v5126 = vsub.s32 %v5123, %v5125
        %v5127 = vrot.slane %v5111, %v5126
        %v5129 = vunpack.c.l.s4 1966171168
        %v5130 = vunpack.c.0.s8 %v5129
        %v5131 = vlaneseq
        %v5132 = vshrl.u32 %v5131, 7
        %v5133 = vsub.s32 %v5130, %v5132
        %v5134 = vrot.slane %v5112, %v5133
        %v5136 = vunpack.c.l.s4 1966171168
        %v5137 = vunpack.c.0.s8 %v5136
        %v5138 = vlaneseq
        %v5139 = vshrl.u32 %v5138, 7
        %v5140 = vsub.s32 %v5137, %v5139
        %v5141 = vrot.slane %v5113, %v5140
        %v5142 = vcombine.low %v5120, %v5127
        %v5143 = vcombine.low %v5134, %v5141
        %v5145 = vunpack.c.l.s4 1966171168
        %v5146 = vunpack.c.0.s8 %v5145
        %v5147 = vlaneseq
        %v5148 = vshrl.u32 %v5147, 7
        %v5149 = vsub.s32 %v5146, %v5148
        %v5150 = vrot.slane %v5142, %v5149
        %v5152 = vunpack.c.l.s4 1966171168
        %v5153 = vunpack.c.0.s8 %v5152
        %v5154 = vlaneseq
        %v5155 = vshrl.u32 %v5154, 7
        %v5156 = vsub.s32 %v5153, %v5155
        %v5157 = vrot.slane %v5143, %v5156
        %v5158 = vcombine.low %v5150, %v5157
        %s5161 = scalar_lea.vmem [#allocation2], 4
        %5162 = vst [vmem:[%s5161] ss:$8 sm:$0xf] %v5109
        %5163 = vst [vmem:[%s5161] ss:$8 sm:$0xf0] %v5109
        %s5164 = scalar_lea.vmem [#allocation2], 68
        %5165 = vst [vmem:[%s5164] ss:$8 sm:$0xf] %v5158
        %5166 = vst [vmem:[%s5164] ss:$8 sm:$0xf0] %v5158
        %v5183 = vcombine.low %v3609, %v3611
        %v5184 = vcombine.low %v3650, %v3652
        %v5185 = vcombine.low %v3691, %v3693
        %v5186 = vcombine.low %v3732, %v3734
        %v5188 = vunpack.c.l.s4 1966171168
        %v5189 = vunpack.c.0.s8 %v5188
        %v5190 = vlaneseq
        %v5191 = vshrl.u32 %v5190, 7
        %v5192 = vsub.s32 %v5189, %v5191
        %v5193 = vrot.slane %v5183, %v5192
        %v5195 = vunpack.c.l.s4 1966171168
        %v5196 = vunpack.c.0.s8 %v5195
        %v5197 = vlaneseq
        %v5198 = vshrl.u32 %v5197, 7
        %v5199 = vsub.s32 %v5196, %v5198
        %v5200 = vrot.slane %v5184, %v5199
        %v5202 = vunpack.c.l.s4 1966171168
        %v5203 = vunpack.c.0.s8 %v5202
        %v5204 = vlaneseq
        %v5205 = vshrl.u32 %v5204, 7
        %v5206 = vsub.s32 %v5203, %v5205
        %v5207 = vrot.slane %v5185, %v5206
        %v5209 = vunpack.c.l.s4 1966171168
        %v5210 = vunpack.c.0.s8 %v5209
        %v5211 = vlaneseq
        %v5212 = vshrl.u32 %v5211, 7
        %v5213 = vsub.s32 %v5210, %v5212
        %v5214 = vrot.slane %v5186, %v5213
        %v5215 = vcombine.low %v5193, %v5200
        %v5216 = vcombine.low %v5207, %v5214
        %v5218 = vunpack.c.l.s4 1966171168
        %v5219 = vunpack.c.0.s8 %v5218
        %v5220 = vlaneseq
        %v5221 = vshrl.u32 %v5220, 7
        %v5222 = vsub.s32 %v5219, %v5221
        %v5223 = vrot.slane %v5215, %v5222
        %v5225 = vunpack.c.l.s4 1966171168
        %v5226 = vunpack.c.0.s8 %v5225
        %v5227 = vlaneseq
        %v5228 = vshrl.u32 %v5227, 7
        %v5229 = vsub.s32 %v5226, %v5228
        %v5230 = vrot.slane %v5216, %v5229
        %v5231 = vcombine.low %v5223, %v5230
        %v5232 = vcombine.low %v3773, %v3775
        %v5233 = vcombine.low %v3814, %v3816
        %v5234 = vcombine.low %v3855, %v3857
        %v5235 = vcombine.low %v3896, %v3898
        %v5237 = vunpack.c.l.s4 1966171168
        %v5238 = vunpack.c.0.s8 %v5237
        %v5239 = vlaneseq
        %v5240 = vshrl.u32 %v5239, 7
        %v5241 = vsub.s32 %v5238, %v5240
        %v5242 = vrot.slane %v5232, %v5241
        %v5244 = vunpack.c.l.s4 1966171168
        %v5245 = vunpack.c.0.s8 %v5244
        %v5246 = vlaneseq
        %v5247 = vshrl.u32 %v5246, 7
        %v5248 = vsub.s32 %v5245, %v5247
        %v5249 = vrot.slane %v5233, %v5248
        %v5251 = vunpack.c.l.s4 1966171168
        %v5252 = vunpack.c.0.s8 %v5251
        %v5253 = vlaneseq
        %v5254 = vshrl.u32 %v5253, 7
        %v5255 = vsub.s32 %v5252, %v5254
        %v5256 = vrot.slane %v5234, %v5255
        %v5258 = vunpack.c.l.s4 1966171168
        %v5259 = vunpack.c.0.s8 %v5258
        %v5260 = vlaneseq
        %v5261 = vshrl.u32 %v5260, 7
        %v5262 = vsub.s32 %v5259, %v5261
        %v5263 = vrot.slane %v5235, %v5262
        %v5264 = vcombine.low %v5242, %v5249
        %v5265 = vcombine.low %v5256, %v5263
        %v5267 = vunpack.c.l.s4 1966171168
        %v5268 = vunpack.c.0.s8 %v5267
        %v5269 = vlaneseq
        %v5270 = vshrl.u32 %v5269, 7
        %v5271 = vsub.s32 %v5268, %v5270
        %v5272 = vrot.slane %v5264, %v5271
        %v5274 = vunpack.c.l.s4 1966171168
        %v5275 = vunpack.c.0.s8 %v5274
        %v5276 = vlaneseq
        %v5277 = vshrl.u32 %v5276, 7
        %v5278 = vsub.s32 %v5275, %v5277
        %v5279 = vrot.slane %v5265, %v5278
        %v5280 = vcombine.low %v5272, %v5279
        %s5283 = scalar_lea.vmem [#allocation2], 5
        %5284 = vst [vmem:[%s5283] ss:$8 sm:$0xf] %v5231
        %5285 = vst [vmem:[%s5283] ss:$8 sm:$0xf0] %v5231
        %s5286 = scalar_lea.vmem [#allocation2], 69
        %5287 = vst [vmem:[%s5286] ss:$8 sm:$0xf] %v5280
        %5288 = vst [vmem:[%s5286] ss:$8 sm:$0xf0] %v5280
        %v5305 = vcombine.low %v3937, %v3939
        %v5306 = vcombine.low %v3978, %v3980
        %v5307 = vcombine.low %v4019, %v4021
        %v5308 = vcombine.low %v4060, %v4062
        %v5310 = vunpack.c.l.s4 1966171168
        %v5311 = vunpack.c.0.s8 %v5310
        %v5312 = vlaneseq
        %v5313 = vshrl.u32 %v5312, 7
        %v5314 = vsub.s32 %v5311, %v5313
        %v5315 = vrot.slane %v5305, %v5314
        %v5317 = vunpack.c.l.s4 1966171168
        %v5318 = vunpack.c.0.s8 %v5317
        %v5319 = vlaneseq
        %v5320 = vshrl.u32 %v5319, 7
        %v5321 = vsub.s32 %v5318, %v5320
        %v5322 = vrot.slane %v5306, %v5321
        %v5324 = vunpack.c.l.s4 1966171168
        %v5325 = vunpack.c.0.s8 %v5324
        %v5326 = vlaneseq
        %v5327 = vshrl.u32 %v5326, 7
        %v5328 = vsub.s32 %v5325, %v5327
        %v5329 = vrot.slane %v5307, %v5328
        %v5331 = vunpack.c.l.s4 1966171168
        %v5332 = vunpack.c.0.s8 %v5331
        %v5333 = vlaneseq
        %v5334 = vshrl.u32 %v5333, 7
        %v5335 = vsub.s32 %v5332, %v5334
        %v5336 = vrot.slane %v5308, %v5335
        %v5337 = vcombine.low %v5315, %v5322
        %v5338 = vcombine.low %v5329, %v5336
        %v5340 = vunpack.c.l.s4 1966171168
        %v5341 = vunpack.c.0.s8 %v5340
        %v5342 = vlaneseq
        %v5343 = vshrl.u32 %v5342, 7
        %v5344 = vsub.s32 %v5341, %v5343
        %v5345 = vrot.slane %v5337, %v5344
        %v5347 = vunpack.c.l.s4 1966171168
        %v5348 = vunpack.c.0.s8 %v5347
        %v5349 = vlaneseq
        %v5350 = vshrl.u32 %v5349, 7
        %v5351 = vsub.s32 %v5348, %v5350
        %v5352 = vrot.slane %v5338, %v5351
        %v5353 = vcombine.low %v5345, %v5352
        %v5354 = vcombine.low %v4101, %v4103
        %v5355 = vcombine.low %v4142, %v4144
        %v5356 = vcombine.low %v4183, %v4185
        %v5357 = vcombine.low %v4224, %v4226
        %v5359 = vunpack.c.l.s4 1966171168
        %v5360 = vunpack.c.0.s8 %v5359
        %v5361 = vlaneseq
        %v5362 = vshrl.u32 %v5361, 7
        %v5363 = vsub.s32 %v5360, %v5362
        %v5364 = vrot.slane %v5354, %v5363
        %v5366 = vunpack.c.l.s4 1966171168
        %v5367 = vunpack.c.0.s8 %v5366
        %v5368 = vlaneseq
        %v5369 = vshrl.u32 %v5368, 7
        %v5370 = vsub.s32 %v5367, %v5369
        %v5371 = vrot.slane %v5355, %v5370
        %v5373 = vunpack.c.l.s4 1966171168
        %v5374 = vunpack.c.0.s8 %v5373
        %v5375 = vlaneseq
        %v5376 = vshrl.u32 %v5375, 7
        %v5377 = vsub.s32 %v5374, %v5376
        %v5378 = vrot.slane %v5356, %v5377
        %v5380 = vunpack.c.l.s4 1966171168
        %v5381 = vunpack.c.0.s8 %v5380
        %v5382 = vlaneseq
        %v5383 = vshrl.u32 %v5382, 7
        %v5384 = vsub.s32 %v5381, %v5383
        %v5385 = vrot.slane %v5357, %v5384
        %v5386 = vcombine.low %v5364, %v5371
        %v5387 = vcombine.low %v5378, %v5385
        %v5389 = vunpack.c.l.s4 1966171168
        %v5390 = vunpack.c.0.s8 %v5389
        %v5391 = vlaneseq
        %v5392 = vshrl.u32 %v5391, 7
        %v5393 = vsub.s32 %v5390, %v5392
        %v5394 = vrot.slane %v5386, %v5393
        %v5396 = vunpack.c.l.s4 1966171168
        %v5397 = vunpack.c.0.s8 %v5396
        %v5398 = vlaneseq
        %v5399 = vshrl.u32 %v5398, 7
        %v5400 = vsub.s32 %v5397, %v5399
        %v5401 = vrot.slane %v5387, %v5400
        %v5402 = vcombine.low %v5394, %v5401
        %s5405 = scalar_lea.vmem [#allocation2], 6
        %5406 = vst [vmem:[%s5405] ss:$8 sm:$0xf] %v5353
        %5407 = vst [vmem:[%s5405] ss:$8 sm:$0xf0] %v5353
        %s5408 = scalar_lea.vmem [#allocation2], 70
        %5409 = vst [vmem:[%s5408] ss:$8 sm:$0xf] %v5402
        %5410 = vst [vmem:[%s5408] ss:$8 sm:$0xf0] %v5402
        %v5427 = vcombine.low %v4265, %v4267
        %v5428 = vcombine.low %v4306, %v4308
        %v5429 = vcombine.low %v4347, %v4349
        %v5430 = vcombine.low %v4388, %v4390
        %v5432 = vunpack.c.l.s4 1966171168
        %v5433 = vunpack.c.0.s8 %v5432
        %v5434 = vlaneseq
        %v5435 = vshrl.u32 %v5434, 7
        %v5436 = vsub.s32 %v5433, %v5435
        %v5437 = vrot.slane %v5427, %v5436
        %v5439 = vunpack.c.l.s4 1966171168
        %v5440 = vunpack.c.0.s8 %v5439
        %v5441 = vlaneseq
        %v5442 = vshrl.u32 %v5441, 7
        %v5443 = vsub.s32 %v5440, %v5442
        %v5444 = vrot.slane %v5428, %v5443
        %v5446 = vunpack.c.l.s4 1966171168
        %v5447 = vunpack.c.0.s8 %v5446
        %v5448 = vlaneseq
        %v5449 = vshrl.u32 %v5448, 7
        %v5450 = vsub.s32 %v5447, %v5449
        %v5451 = vrot.slane %v5429, %v5450
        %v5453 = vunpack.c.l.s4 1966171168
        %v5454 = vunpack.c.0.s8 %v5453
        %v5455 = vlaneseq
        %v5456 = vshrl.u32 %v5455, 7
        %v5457 = vsub.s32 %v5454, %v5456
        %v5458 = vrot.slane %v5430, %v5457
        %v5459 = vcombine.low %v5437, %v5444
        %v5460 = vcombine.low %v5451, %v5458
        %v5462 = vunpack.c.l.s4 1966171168
        %v5463 = vunpack.c.0.s8 %v5462
        %v5464 = vlaneseq
        %v5465 = vshrl.u32 %v5464, 7
        %v5466 = vsub.s32 %v5463, %v5465
        %v5467 = vrot.slane %v5459, %v5466
        %v5469 = vunpack.c.l.s4 1966171168
        %v5470 = vunpack.c.0.s8 %v5469
        %v5471 = vlaneseq
        %v5472 = vshrl.u32 %v5471, 7
        %v5473 = vsub.s32 %v5470, %v5472
        %v5474 = vrot.slane %v5460, %v5473
        %v5475 = vcombine.low %v5467, %v5474
        %v5476 = vcombine.low %v4429, %v4431
        %v5477 = vcombine.low %v4470, %v4472
        %v5478 = vcombine.low %v4511, %v4513
        %v5479 = vcombine.low %v4552, %v4554
        %v5481 = vunpack.c.l.s4 1966171168
        %v5482 = vunpack.c.0.s8 %v5481
        %v5483 = vlaneseq
        %v5484 = vshrl.u32 %v5483, 7
        %v5485 = vsub.s32 %v5482, %v5484
        %v5486 = vrot.slane %v5476, %v5485
        %v5488 = vunpack.c.l.s4 1966171168
        %v5489 = vunpack.c.0.s8 %v5488
        %v5490 = vlaneseq
        %v5491 = vshrl.u32 %v5490, 7
        %v5492 = vsub.s32 %v5489, %v5491
        %v5493 = vrot.slane %v5477, %v5492
        %v5495 = vunpack.c.l.s4 1966171168
        %v5496 = vunpack.c.0.s8 %v5495
        %v5497 = vlaneseq
        %v5498 = vshrl.u32 %v5497, 7
        %v5499 = vsub.s32 %v5496, %v5498
        %v5500 = vrot.slane %v5478, %v5499
        %v5502 = vunpack.c.l.s4 1966171168
        %v5503 = vunpack.c.0.s8 %v5502
        %v5504 = vlaneseq
        %v5505 = vshrl.u32 %v5504, 7
        %v5506 = vsub.s32 %v5503, %v5505
        %v5507 = vrot.slane %v5479, %v5506
        %v5508 = vcombine.low %v5486, %v5493
        %v5509 = vcombine.low %v5500, %v5507
        %v5511 = vunpack.c.l.s4 1966171168
        %v5512 = vunpack.c.0.s8 %v5511
        %v5513 = vlaneseq
        %v5514 = vshrl.u32 %v5513, 7
        %v5515 = vsub.s32 %v5512, %v5514
        %v5516 = vrot.slane %v5508, %v5515
        %v5518 = vunpack.c.l.s4 1966171168
        %v5519 = vunpack.c.0.s8 %v5518
        %v5520 = vlaneseq
        %v5521 = vshrl.u32 %v5520, 7
        %v5522 = vsub.s32 %v5519, %v5521
        %v5523 = vrot.slane %v5509, %v5522
        %v5524 = vcombine.low %v5516, %v5523
        %s5527 = scalar_lea.vmem [#allocation2], 7
        %5528 = vst [vmem:[%s5527] ss:$8 sm:$0xf] %v5475
        %5529 = vst [vmem:[%s5527] ss:$8 sm:$0xf0] %v5475
        %s5530 = scalar_lea.vmem [#allocation2], 71
        %5531 = vst [vmem:[%s5530] ss:$8 sm:$0xf] %v5524
        %5532 = vst [vmem:[%s5530] ss:$8 sm:$0xf0] %v5524
        %v5533 = vld [vmem:[#allocation2] sm:$0xff]
        %v5534 = vld [vmem:[#allocation2 + $0x8] sm:$0xff]
        %v5535 = vld [vmem:[#allocation2 + $0x10] sm:$0xff]
        %v5536 = vld [vmem:[#allocation2 + $0x18] sm:$0xff]
        %v5537 = vld [vmem:[#allocation2 + $0x20] sm:$0xff]
        %v5538 = vld [vmem:[#allocation2 + $0x28] sm:$0xff]
        %v5539 = vld [vmem:[#allocation2 + $0x30] sm:$0xff]
        %v5540 = vld [vmem:[#allocation2 + $0x38] sm:$0xff]
        %v5541 = vld [vmem:[#allocation2 + $0x40] sm:$0xff]
        %v5542 = vld [vmem:[#allocation2 + $0x48] sm:$0xff]
        %v5543 = vld [vmem:[#allocation2 + $0x50] sm:$0xff]
        %v5544 = vld [vmem:[#allocation2 + $0x58] sm:$0xff]
        %v5545 = vld [vmem:[#allocation2 + $0x60] sm:$0xff]
        %v5546 = vld [vmem:[#allocation2 + $0x68] sm:$0xff]
        %v5547 = vld [vmem:[#allocation2 + $0x70] sm:$0xff]
        %v5548 = vld [vmem:[#allocation2 + $0x78] sm:$0xff]
        %v5549 = vld [vmem:[#allocation9] sm:$0xff]
        %v5550 = vld [vmem:[#allocation9 + $0x8] sm:$0xff]
        %v5551 = vld [vmem:[#allocation9 + $0x10] sm:$0xff]
        %v5552 = vld [vmem:[#allocation9 + $0x18] sm:$0xff]
        %v5553 = vld [vmem:[#allocation9 + $0x20] sm:$0xff]
        %v5554 = vld [vmem:[#allocation9 + $0x28] sm:$0xff]
        %v5555 = vld [vmem:[#allocation9 + $0x30] sm:$0xff]
        %v5556 = vld [vmem:[#allocation9 + $0x38] sm:$0xff]
        %v5557 = vld [vmem:[#allocation9 + $0x40] sm:$0xff]
        %v5558 = vld [vmem:[#allocation9 + $0x48] sm:$0xff]
        %v5559 = vld [vmem:[#allocation9 + $0x50] sm:$0xff]
        %v5560 = vld [vmem:[#allocation9 + $0x58] sm:$0xff]
        %v5561 = vld [vmem:[#allocation9 + $0x60] sm:$0xff]
        %v5562 = vld [vmem:[#allocation9 + $0x68] sm:$0xff]
        %v5563 = vld [vmem:[#allocation9 + $0x70] sm:$0xff]
        %v5564 = vld [vmem:[#allocation9 + $0x78] sm:$0xff]
        %v5565 = vadd.f32 %v5533, %v5549
        %v5566 = vadd.f32 %v5534, %v5550
        %v5567 = vadd.f32 %v5535, %v5551
        %v5568 = vadd.f32 %v5536, %v5552
        %v5569 = vadd.f32 %v5537, %v5553
        %v5570 = vadd.f32 %v5538, %v5554
        %v5571 = vadd.f32 %v5539, %v5555
        %v5572 = vadd.f32 %v5540, %v5556
        %v5573 = vadd.f32 %v5541, %v5557
        %v5574 = vadd.f32 %v5542, %v5558
        %v5575 = vadd.f32 %v5543, %v5559
        %v5576 = vadd.f32 %v5544, %v5560
        %v5577 = vadd.f32 %v5545, %v5561
        %v5578 = vadd.f32 %v5546, %v5562
        %v5579 = vadd.f32 %v5547, %v5563
        %v5580 = vadd.f32 %v5548, %v5564
        %v5581 = vmul.f32 %v5565, 0.5
        %v5582 = vmul.f32 %v5566, 0.5
        %v5583 = vmul.f32 %v5567, 0.5
        %v5584 = vmul.f32 %v5568, 0.5
        %v5585 = vmul.f32 %v5569, 0.5
        %v5586 = vmul.f32 %v5570, 0.5
        %v5587 = vmul.f32 %v5571, 0.5
        %v5588 = vmul.f32 %v5572, 0.5
        %v5589 = vmul.f32 %v5573, 0.5
        %v5590 = vmul.f32 %v5574, 0.5
        %v5591 = vmul.f32 %v5575, 0.5
        %v5592 = vmul.f32 %v5576, 0.5
        %v5593 = vmul.f32 %v5577, 0.5
        %v5594 = vmul.f32 %v5578, 0.5
        %v5595 = vmul.f32 %v5579, 0.5
        %v5596 = vmul.f32 %v5580, 0.5
        %v5597 = vmul.f32 %v5565, 0.044715
        %v5598 = vmul.f32 %v5566, 0.044715
        %v5599 = vmul.f32 %v5567, 0.044715
        %v5600 = vmul.f32 %v5568, 0.044715
        %v5601 = vmul.f32 %v5569, 0.044715
        %v5602 = vmul.f32 %v5570, 0.044715
        %v5603 = vmul.f32 %v5571, 0.044715
        %v5604 = vmul.f32 %v5572, 0.044715
        %v5605 = vmul.f32 %v5573, 0.044715
        %v5606 = vmul.f32 %v5574, 0.044715
        %v5607 = vmul.f32 %v5575, 0.044715
        %v5608 = vmul.f32 %v5576, 0.044715
        %v5609 = vmul.f32 %v5577, 0.044715
        %v5610 = vmul.f32 %v5578, 0.044715
        %v5611 = vmul.f32 %v5579, 0.044715
        %v5612 = vmul.f32 %v5580, 0.044715
        %v5613 = vmul.f32 %v5597, %v5565
        %v5614 = vmul.f32 %v5598, %v5566
        %v5615 = vmul.f32 %v5599, %v5567
        %v5616 = vmul.f32 %v5600, %v5568
        %v5617 = vmul.f32 %v5601, %v5569
        %v5618 = vmul.f32 %v5602, %v5570
        %v5619 = vmul.f32 %v5603, %v5571
        %v5620 = vmul.f32 %v5604, %v5572
        %v5621 = vmul.f32 %v5605, %v5573
        %v5622 = vmul.f32 %v5606, %v5574
        %v5623 = vmul.f32 %v5607, %v5575
        %v5624 = vmul.f32 %v5608, %v5576
        %v5625 = vmul.f32 %v5609, %v5577
        %v5626 = vmul.f32 %v5610, %v5578
        %v5627 = vmul.f32 %v5611, %v5579
        %v5628 = vmul.f32 %v5612, %v5580
        %v5629 = vmul.f32 %v5613, %v5565
        %v5630 = vmul.f32 %v5614, %v5566
        %v5631 = vmul.f32 %v5615, %v5567
        %v5632 = vmul.f32 %v5616, %v5568
        %v5633 = vmul.f32 %v5617, %v5569
        %v5634 = vmul.f32 %v5618, %v5570
        %v5635 = vmul.f32 %v5619, %v5571
        %v5636 = vmul.f32 %v5620, %v5572
        %v5637 = vmul.f32 %v5621, %v5573
        %v5638 = vmul.f32 %v5622, %v5574
        %v5639 = vmul.f32 %v5623, %v5575
        %v5640 = vmul.f32 %v5624, %v5576
        %v5641 = vmul.f32 %v5625, %v5577
        %v5642 = vmul.f32 %v5626, %v5578
        %v5643 = vmul.f32 %v5627, %v5579
        %v5644 = vmul.f32 %v5628, %v5580
        %v5645 = vadd.f32 %v5565, %v5629
        %v5646 = vadd.f32 %v5566, %v5630
        %v5647 = vadd.f32 %v5567, %v5631
        %v5648 = vadd.f32 %v5568, %v5632
        %v5649 = vadd.f32 %v5569, %v5633
        %v5650 = vadd.f32 %v5570, %v5634
        %v5651 = vadd.f32 %v5571, %v5635
        %v5652 = vadd.f32 %v5572, %v5636
        %v5653 = vadd.f32 %v5573, %v5637
        %v5654 = vadd.f32 %v5574, %v5638
        %v5655 = vadd.f32 %v5575, %v5639
        %v5656 = vadd.f32 %v5576, %v5640
        %v5657 = vadd.f32 %v5577, %v5641
        %v5658 = vadd.f32 %v5578, %v5642
        %v5659 = vadd.f32 %v5579, %v5643
        %v5660 = vadd.f32 %v5580, %v5644
        %v5661 = vmul.f32 %v5645, 0.7978846
        %v5662 = vmul.f32 %v5646, 0.7978846
        %v5663 = vmul.f32 %v5647, 0.7978846
        %v5664 = vmul.f32 %v5648, 0.7978846
        %v5665 = vmul.f32 %v5649, 0.7978846
        %v5666 = vmul.f32 %v5650, 0.7978846
        %v5667 = vmul.f32 %v5651, 0.7978846
        %v5668 = vmul.f32 %v5652, 0.7978846
        %v5669 = vmul.f32 %v5653, 0.7978846
        %v5670 = vmul.f32 %v5654, 0.7978846
        %v5671 = vmul.f32 %v5655, 0.7978846
        %v5672 = vmul.f32 %v5656, 0.7978846
        %v5673 = vmul.f32 %v5657, 0.7978846
        %v5674 = vmul.f32 %v5658, 0.7978846
        %v5675 = vmul.f32 %v5659, 0.7978846
        %v5676 = vmul.f32 %v5660, 0.7978846
        %v5677 = vtanh.pop %v5661
        %v5678 = vtanh.pop %v5662
        %v5679 = vtanh.pop %v5663
        %v5680 = vtanh.pop %v5664
        %v5681 = vtanh.pop %v5665
        %v5682 = vtanh.pop %v5666
        %v5683 = vtanh.pop %v5667
        %v5684 = vtanh.pop %v5668
        %v5685 = vtanh.pop %v5669
        %v5686 = vtanh.pop %v5670
        %v5687 = vtanh.pop %v5671
        %v5688 = vtanh.pop %v5672
        %v5689 = vtanh.pop %v5673
        %v5690 = vtanh.pop %v5674
        %v5691 = vtanh.pop %v5675
        %v5692 = vtanh.pop %v5676
        %v5693 = vadd.f32 %v5677, 1.0
        %v5694 = vadd.f32 %v5678, 1.0
        %v5695 = vadd.f32 %v5679, 1.0
        %v5696 = vadd.f32 %v5680, 1.0
        %v5697 = vadd.f32 %v5681, 1.0
        %v5698 = vadd.f32 %v5682, 1.0
        %v5699 = vadd.f32 %v5683, 1.0
        %v5700 = vadd.f32 %v5684, 1.0
        %v5701 = vadd.f32 %v5685, 1.0
        %v5702 = vadd.f32 %v5686, 1.0
        %v5703 = vadd.f32 %v5687, 1.0
        %v5704 = vadd.f32 %v5688, 1.0
        %v5705 = vadd.f32 %v5689, 1.0
        %v5706 = vadd.f32 %v5690, 1.0
        %v5707 = vadd.f32 %v5691, 1.0
        %v5708 = vadd.f32 %v5692, 1.0
        %v5709 = vmul.f32 %v5581, %v5693
        %v5710 = vmul.f32 %v5582, %v5694
        %v5711 = vmul.f32 %v5583, %v5695
        %v5712 = vmul.f32 %v5584, %v5696
        %v5713 = vmul.f32 %v5585, %v5697
        %v5714 = vmul.f32 %v5586, %v5698
        %v5715 = vmul.f32 %v5587, %v5699
        %v5716 = vmul.f32 %v5588, %v5700
        %v5717 = vmul.f32 %v5589, %v5701
        %v5718 = vmul.f32 %v5590, %v5702
        %v5719 = vmul.f32 %v5591, %v5703
        %v5720 = vmul.f32 %v5592, %v5704
        %v5721 = vmul.f32 %v5593, %v5705
        %v5722 = vmul.f32 %v5594, %v5706
        %v5723 = vmul.f32 %v5595, %v5707
        %v5724 = vmul.f32 %v5596, %v5708
        %v5725 = vlaneseq
        %v5726 = vand.u32 %v5725, 127
        %v5727 = vadd.s32 %v5726, 128
        %v5728 = vadd.s32 %v5726, 256
        %v5729 = vadd.s32 %v5726, 384
        %v5730 = vadd.s32 %v5726, 512
        %v5731 = vadd.s32 %v5726, 640
        %v5732 = vadd.s32 %v5726, 768
        %v5733 = vadd.s32 %v5726, 896
        %v5734 = vadd.s32 %v5726, 1024
        %v5735 = vadd.s32 %v5726, 1152
        %v5736 = vadd.s32 %v5726, 1280
        %v5737 = vadd.s32 %v5726, 1408
        %v5738 = vadd.s32 %v5726, 1536
        %v5739 = vadd.s32 %v5726, 1664
        %v5740 = vadd.s32 %v5726, 1792
        %v5741 = vadd.s32 %v5726, 1920
        %v5742 = vld [vmem:[%s3] sm:$0xff]
        %v5743 = vld [vmem:[%s3 + $0x8] sm:$0xff]
        %v5744 = vld [vmem:[%s3 + $0x10] sm:$0xff]
        %vm5745 = vcmask 64512
        %v5747 = vsel %vm5745, %v5742, 0
        %v5750 = vsel %vm5745, %v5743, 0
        %v5753 = vsel %vm5745, %v5744, 0
        %5755 = vmatprep.subr.mxu0 0.0
        %5756 = vmatpush1.msra.mxu0 0.0
        %5757 = vmatprep.subr.mxu0 0.0
        %5758 = vmatpush1.msra.mxu0 0.0
        %5759 = vmatprep.subr.mxu0 0.0
        %5760 = vmatpush1.msra.mxu0 0.0
        %5761 = vmatprep.subr.mxu0 0.0
        %5762 = vmatpush1.msra.mxu0 0.0
        %5763 = vmatprep.subr.mxu0 0.0
        %5764 = vmatpush1.msra.mxu0 0.0
        %5765 = vmatprep.subr.mxu0 0.0
        %5766 = vmatpush1.msra.mxu0 0.0
        %5767 = vmatprep.subr.mxu0 0.0
        %5768 = vmatpush1.msra.mxu0 0.0
        %5769 = vmatprep.subr.mxu0 0.0
        %5770 = vmatpush1.msra.mxu0 0.0
        %5771 = vmatprep.subr.mxu0 0.0
        %5772 = vmatpush1.msra.mxu0 0.0
        %5773 = vmatprep.subr.mxu0 0.0
        %5774 = vmatpush1.msra.mxu0 0.0
        %5775 = vmatprep.subr.mxu0 0.0
        %5776 = vmatpush1.msra.mxu0 0.0
        %5777 = vmatprep.subr.mxu0 0.0
        %5778 = vmatpush1.msra.mxu0 0.0
        %5779 = vmatprep.subr.mxu0 0.0
        %5780 = vmatpush1.msra.mxu0 0.0
        %5781 = vmatprep.subr.mxu0 0.0
        %5782 = vmatpush1.msra.mxu0 0.0
        %5783 = vmatprep.subr.mxu0 0.0
        %5784 = vmatpush1.msra.mxu0 0.0
        %5785 = vmatprep.subr.mxu0 %v5710
        %5786 = vmatpush1.msra.mxu0 %v5709
        %5787 = vmatprep.subr.mxu0 0.0
        %5788 = vmatpush2.msra.mxu0 0.0
        %5789 = vmatprep.subr.mxu0 0.0
        %5790 = vmatpush2.msra.mxu0 0.0
        %5791 = vmatprep.subr.mxu0 0.0
        %5792 = vmatpush2.msra.mxu0 0.0
        %5793 = vmatprep.subr.mxu0 0.0
        %5794 = vmatpush2.msra.mxu0 0.0
        %5795 = vmatprep.subr.mxu0 0.0
        %5796 = vmatpush2.msra.mxu0 0.0
        %5797 = vmatprep.subr.mxu0 0.0
        %5798 = vmatpush2.msra.mxu0 0.0
        %5799 = vmatprep.subr.mxu0 0.0
        %5800 = vmatpush2.msra.mxu0 0.0
        %5801 = vmatprep.subr.mxu0 0.0
        %5802 = vmatpush2.msra.mxu0 0.0
        %5803 = vmatprep.subr.mxu0 0.0
        %5804 = vmatpush2.msra.mxu0 0.0
        %5805 = vmatprep.subr.mxu0 0.0
        %5806 = vmatpush2.msra.mxu0 0.0
        %5807 = vmatprep.subr.mxu0 0.0
        %5808 = vmatpush2.msra.mxu0 0.0
        %5809 = vmatprep.subr.mxu0 0.0
        %5810 = vmatpush2.msra.mxu0 0.0
        %5811 = vmatprep.subr.mxu0 0.0
        %5812 = vmatpush2.msra.mxu0 0.0
        %5813 = vmatprep.subr.mxu0 0.0
        %5814 = vmatpush2.msra.mxu0 0.0
        %5815 = vmatprep.subr.mxu0 0.0
        %5816 = vmatpush2.msra.mxu0 0.0
        %5817 = vmatprep.subr.mxu0 0.0
        %5818 = vmatpush2.msra.mxu0 0.0
        %5819 = vmatprep.mubr.f32.mxu0 0.0
        %5820 = vmatmul.mubr.f32.gmra.mxu0 %v5747
        %v5821 = vpop.f32.mrf.mxu0
        %v5822 = vadd.f32 0.0, %v5821
        %v5823 = vpop.f32.mrf.mxu0
        %v5824 = vadd.f32 0.0, %v5823
        %5825 = vmatprep.mubr.f32.mxu0 0.0
        %5826 = vmatmul.mubr.f32.gmra.mxu0 %v5750
        %v5827 = vpop.f32.mrf.mxu0
        %v5828 = vadd.f32 0.0, %v5827
        %v5829 = vpop.f32.mrf.mxu0
        %v5830 = vadd.f32 0.0, %v5829
        %5831 = vmatprep.mubr.f32.mxu0 0.0
        %5832 = vmatmul.mubr.f32.gmra.mxu0 %v5753
        %v5833 = vpop.f32.mrf.mxu0
        %v5834 = vadd.f32 0.0, %v5833
        %v5835 = vpop.f32.mrf.mxu0
        %v5836 = vadd.f32 0.0, %v5835
        %5837 = vdwg.mxu0
        %5838 = vmatprep.subr.mxu0 0.0
        %5839 = vmatpush1.msra.mxu0 0.0
        %5840 = vmatprep.subr.mxu0 0.0
        %5841 = vmatpush1.msra.mxu0 0.0
        %5842 = vmatprep.subr.mxu0 0.0
        %5843 = vmatpush1.msra.mxu0 0.0
        %5844 = vmatprep.subr.mxu0 0.0
        %5845 = vmatpush1.msra.mxu0 0.0
        %5846 = vmatprep.subr.mxu0 0.0
        %5847 = vmatpush1.msra.mxu0 0.0
        %5848 = vmatprep.subr.mxu0 0.0
        %5849 = vmatpush1.msra.mxu0 0.0
        %5850 = vmatprep.subr.mxu0 0.0
        %5851 = vmatpush1.msra.mxu0 0.0
        %5852 = vmatprep.subr.mxu0 0.0
        %5853 = vmatpush1.msra.mxu0 0.0
        %5854 = vmatprep.subr.mxu0 0.0
        %5855 = vmatpush1.msra.mxu0 0.0
        %5856 = vmatprep.subr.mxu0 0.0
        %5857 = vmatpush1.msra.mxu0 0.0
        %5858 = vmatprep.subr.mxu0 0.0
        %5859 = vmatpush1.msra.mxu0 0.0
        %5860 = vmatprep.subr.mxu0 0.0
        %5861 = vmatpush1.msra.mxu0 0.0
        %5862 = vmatprep.subr.mxu0 0.0
        %5863 = vmatpush1.msra.mxu0 0.0
        %5864 = vmatprep.subr.mxu0 0.0
        %5865 = vmatpush1.msra.mxu0 0.0
        %5866 = vmatprep.subr.mxu0 0.0
        %5867 = vmatpush1.msra.mxu0 0.0
        %5868 = vmatprep.subr.mxu0 %v5712
        %5869 = vmatpush1.msra.mxu0 %v5711
        %5870 = vmatprep.subr.mxu0 0.0
        %5871 = vmatpush2.msra.mxu0 0.0
        %5872 = vmatprep.subr.mxu0 0.0
        %5873 = vmatpush2.msra.mxu0 0.0
        %5874 = vmatprep.subr.mxu0 0.0
        %5875 = vmatpush2.msra.mxu0 0.0
        %5876 = vmatprep.subr.mxu0 0.0
        %5877 = vmatpush2.msra.mxu0 0.0
        %5878 = vmatprep.subr.mxu0 0.0
        %5879 = vmatpush2.msra.mxu0 0.0
        %5880 = vmatprep.subr.mxu0 0.0
        %5881 = vmatpush2.msra.mxu0 0.0
        %5882 = vmatprep.subr.mxu0 0.0
        %5883 = vmatpush2.msra.mxu0 0.0
        %5884 = vmatprep.subr.mxu0 0.0
        %5885 = vmatpush2.msra.mxu0 0.0
        %5886 = vmatprep.subr.mxu0 0.0
        %5887 = vmatpush2.msra.mxu0 0.0
        %5888 = vmatprep.subr.mxu0 0.0
        %5889 = vmatpush2.msra.mxu0 0.0
        %5890 = vmatprep.subr.mxu0 0.0
        %5891 = vmatpush2.msra.mxu0 0.0
        %5892 = vmatprep.subr.mxu0 0.0
        %5893 = vmatpush2.msra.mxu0 0.0
        %5894 = vmatprep.subr.mxu0 0.0
        %5895 = vmatpush2.msra.mxu0 0.0
        %5896 = vmatprep.subr.mxu0 0.0
        %5897 = vmatpush2.msra.mxu0 0.0
        %5898 = vmatprep.subr.mxu0 0.0
        %5899 = vmatpush2.msra.mxu0 0.0
        %5900 = vmatprep.subr.mxu0 0.0
        %5901 = vmatpush2.msra.mxu0 0.0
        %5902 = vmatprep.mubr.f32.mxu0 0.0
        %5903 = vmatmul.mubr.f32.gmra.mxu0 %v5747
        %v5904 = vpop.f32.mrf.mxu0
        %v5905 = vadd.f32 0.0, %v5904
        %v5906 = vpop.f32.mrf.mxu0
        %v5907 = vadd.f32 0.0, %v5906
        %5908 = vmatprep.mubr.f32.mxu0 0.0
        %5909 = vmatmul.mubr.f32.gmra.mxu0 %v5750
        %v5910 = vpop.f32.mrf.mxu0
        %v5911 = vadd.f32 0.0, %v5910
        %v5912 = vpop.f32.mrf.mxu0
        %v5913 = vadd.f32 0.0, %v5912
        %5914 = vmatprep.mubr.f32.mxu0 0.0
        %5915 = vmatmul.mubr.f32.gmra.mxu0 %v5753
        %v5916 = vpop.f32.mrf.mxu0
        %v5917 = vadd.f32 0.0, %v5916
        %v5918 = vpop.f32.mrf.mxu0
        %v5919 = vadd.f32 0.0, %v5918
        %5920 = vdwg.mxu0
        %5921 = vmatprep.subr.mxu0 0.0
        %5922 = vmatpush1.msra.mxu0 0.0
        %5923 = vmatprep.subr.mxu0 0.0
        %5924 = vmatpush1.msra.mxu0 0.0
        %5925 = vmatprep.subr.mxu0 0.0
        %5926 = vmatpush1.msra.mxu0 0.0
        %5927 = vmatprep.subr.mxu0 0.0
        %5928 = vmatpush1.msra.mxu0 0.0
        %5929 = vmatprep.subr.mxu0 0.0
        %5930 = vmatpush1.msra.mxu0 0.0
        %5931 = vmatprep.subr.mxu0 0.0
        %5932 = vmatpush1.msra.mxu0 0.0
        %5933 = vmatprep.subr.mxu0 0.0
        %5934 = vmatpush1.msra.mxu0 0.0
        %5935 = vmatprep.subr.mxu0 0.0
        %5936 = vmatpush1.msra.mxu0 0.0
        %5937 = vmatprep.subr.mxu0 0.0
        %5938 = vmatpush1.msra.mxu0 0.0
        %5939 = vmatprep.subr.mxu0 0.0
        %5940 = vmatpush1.msra.mxu0 0.0
        %5941 = vmatprep.subr.mxu0 0.0
        %5942 = vmatpush1.msra.mxu0 0.0
        %5943 = vmatprep.subr.mxu0 0.0
        %5944 = vmatpush1.msra.mxu0 0.0
        %5945 = vmatprep.subr.mxu0 0.0
        %5946 = vmatpush1.msra.mxu0 0.0
        %5947 = vmatprep.subr.mxu0 0.0
        %5948 = vmatpush1.msra.mxu0 0.0
        %5949 = vmatprep.subr.mxu0 0.0
        %5950 = vmatpush1.msra.mxu0 0.0
        %5951 = vmatprep.subr.mxu0 %v5714
        %5952 = vmatpush1.msra.mxu0 %v5713
        %5953 = vmatprep.subr.mxu0 0.0
        %5954 = vmatpush2.msra.mxu0 0.0
        %5955 = vmatprep.subr.mxu0 0.0
        %5956 = vmatpush2.msra.mxu0 0.0
        %5957 = vmatprep.subr.mxu0 0.0
        %5958 = vmatpush2.msra.mxu0 0.0
        %5959 = vmatprep.subr.mxu0 0.0
        %5960 = vmatpush2.msra.mxu0 0.0
        %5961 = vmatprep.subr.mxu0 0.0
        %5962 = vmatpush2.msra.mxu0 0.0
        %5963 = vmatprep.subr.mxu0 0.0
        %5964 = vmatpush2.msra.mxu0 0.0
        %5965 = vmatprep.subr.mxu0 0.0
        %5966 = vmatpush2.msra.mxu0 0.0
        %5967 = vmatprep.subr.mxu0 0.0
        %5968 = vmatpush2.msra.mxu0 0.0
        %5969 = vmatprep.subr.mxu0 0.0
        %5970 = vmatpush2.msra.mxu0 0.0
        %5971 = vmatprep.subr.mxu0 0.0
        %5972 = vmatpush2.msra.mxu0 0.0
        %5973 = vmatprep.subr.mxu0 0.0
        %5974 = vmatpush2.msra.mxu0 0.0
        %5975 = vmatprep.subr.mxu0 0.0
        %5976 = vmatpush2.msra.mxu0 0.0
        %5977 = vmatprep.subr.mxu0 0.0
        %5978 = vmatpush2.msra.mxu0 0.0
        %5979 = vmatprep.subr.mxu0 0.0
        %5980 = vmatpush2.msra.mxu0 0.0
        %5981 = vmatprep.subr.mxu0 0.0
        %5982 = vmatpush2.msra.mxu0 0.0
        %5983 = vmatprep.subr.mxu0 0.0
        %5984 = vmatpush2.msra.mxu0 0.0
        %5985 = vmatprep.mubr.f32.mxu0 0.0
        %5986 = vmatmul.mubr.f32.gmra.mxu0 %v5747
        %v5987 = vpop.f32.mrf.mxu0
        %v5988 = vadd.f32 0.0, %v5987
        %v5989 = vpop.f32.mrf.mxu0
        %v5990 = vadd.f32 0.0, %v5989
        %5991 = vmatprep.mubr.f32.mxu0 0.0
        %5992 = vmatmul.mubr.f32.gmra.mxu0 %v5750
        %v5993 = vpop.f32.mrf.mxu0
        %v5994 = vadd.f32 0.0, %v5993
        %v5995 = vpop.f32.mrf.mxu0
        %v5996 = vadd.f32 0.0, %v5995
        %5997 = vmatprep.mubr.f32.mxu0 0.0
        %5998 = vmatmul.mubr.f32.gmra.mxu0 %v5753
        %v5999 = vpop.f32.mrf.mxu0
        %v6000 = vadd.f32 0.0, %v5999
        %v6001 = vpop.f32.mrf.mxu0
        %v6002 = vadd.f32 0.0, %v6001
        %6003 = vdwg.mxu0
        %6004 = vmatprep.subr.mxu0 0.0
        %6005 = vmatpush1.msra.mxu0 0.0
        %6006 = vmatprep.subr.mxu0 0.0
        %6007 = vmatpush1.msra.mxu0 0.0
        %6008 = vmatprep.subr.mxu0 0.0
        %6009 = vmatpush1.msra.mxu0 0.0
        %6010 = vmatprep.subr.mxu0 0.0
        %6011 = vmatpush1.msra.mxu0 0.0
        %6012 = vmatprep.subr.mxu0 0.0
        %6013 = vmatpush1.msra.mxu0 0.0
        %6014 = vmatprep.subr.mxu0 0.0
        %6015 = vmatpush1.msra.mxu0 0.0
        %6016 = vmatprep.subr.mxu0 0.0
        %6017 = vmatpush1.msra.mxu0 0.0
        %6018 = vmatprep.subr.mxu0 0.0
        %6019 = vmatpush1.msra.mxu0 0.0
        %6020 = vmatprep.subr.mxu0 0.0
        %6021 = vmatpush1.msra.mxu0 0.0
        %6022 = vmatprep.subr.mxu0 0.0
        %6023 = vmatpush1.msra.mxu0 0.0
        %6024 = vmatprep.subr.mxu0 0.0
        %6025 = vmatpush1.msra.mxu0 0.0
        %6026 = vmatprep.subr.mxu0 0.0
        %6027 = vmatpush1.msra.mxu0 0.0
        %6028 = vmatprep.subr.mxu0 0.0
        %6029 = vmatpush1.msra.mxu0 0.0
        %6030 = vmatprep.subr.mxu0 0.0
        %6031 = vmatpush1.msra.mxu0 0.0
        %6032 = vmatprep.subr.mxu0 0.0
        %6033 = vmatpush1.msra.mxu0 0.0
        %6034 = vmatprep.subr.mxu0 %v5716
        %6035 = vmatpush1.msra.mxu0 %v5715
        %6036 = vmatprep.subr.mxu0 0.0
        %6037 = vmatpush2.msra.mxu0 0.0
        %6038 = vmatprep.subr.mxu0 0.0
        %6039 = vmatpush2.msra.mxu0 0.0
        %6040 = vmatprep.subr.mxu0 0.0
        %6041 = vmatpush2.msra.mxu0 0.0
        %6042 = vmatprep.subr.mxu0 0.0
        %6043 = vmatpush2.msra.mxu0 0.0
        %6044 = vmatprep.subr.mxu0 0.0
        %6045 = vmatpush2.msra.mxu0 0.0
        %6046 = vmatprep.subr.mxu0 0.0
        %6047 = vmatpush2.msra.mxu0 0.0
        %6048 = vmatprep.subr.mxu0 0.0
        %6049 = vmatpush2.msra.mxu0 0.0
        %6050 = vmatprep.subr.mxu0 0.0
        %6051 = vmatpush2.msra.mxu0 0.0
        %6052 = vmatprep.subr.mxu0 0.0
        %6053 = vmatpush2.msra.mxu0 0.0
        %6054 = vmatprep.subr.mxu0 0.0
        %6055 = vmatpush2.msra.mxu0 0.0
        %6056 = vmatprep.subr.mxu0 0.0
        %6057 = vmatpush2.msra.mxu0 0.0
        %6058 = vmatprep.subr.mxu0 0.0
        %6059 = vmatpush2.msra.mxu0 0.0
        %6060 = vmatprep.subr.mxu0 0.0
        %6061 = vmatpush2.msra.mxu0 0.0
        %6062 = vmatprep.subr.mxu0 0.0
        %6063 = vmatpush2.msra.mxu0 0.0
        %6064 = vmatprep.subr.mxu0 0.0
        %6065 = vmatpush2.msra.mxu0 0.0
        %6066 = vmatprep.subr.mxu0 0.0
        %6067 = vmatpush2.msra.mxu0 0.0
        %6068 = vmatprep.mubr.f32.mxu0 0.0
        %6069 = vmatmul.mubr.f32.gmra.mxu0 %v5747
        %v6070 = vpop.f32.mrf.mxu0
        %v6071 = vadd.f32 0.0, %v6070
        %v6072 = vpop.f32.mrf.mxu0
        %v6073 = vadd.f32 0.0, %v6072
        %6074 = vmatprep.mubr.f32.mxu0 0.0
        %6075 = vmatmul.mubr.f32.gmra.mxu0 %v5750
        %v6076 = vpop.f32.mrf.mxu0
        %v6077 = vadd.f32 0.0, %v6076
        %v6078 = vpop.f32.mrf.mxu0
        %v6079 = vadd.f32 0.0, %v6078
        %6080 = vmatprep.mubr.f32.mxu0 0.0
        %6081 = vmatmul.mubr.f32.gmra.mxu0 %v5753
        %v6082 = vpop.f32.mrf.mxu0
        %v6083 = vadd.f32 0.0, %v6082
        %v6084 = vpop.f32.mrf.mxu0
        %v6085 = vadd.f32 0.0, %v6084
        %6086 = vdwg.mxu0
        %6087 = vmatprep.subr.mxu0 0.0
        %6088 = vmatpush1.msra.mxu0 0.0
        %6089 = vmatprep.subr.mxu0 0.0
        %6090 = vmatpush1.msra.mxu0 0.0
        %6091 = vmatprep.subr.mxu0 0.0
        %6092 = vmatpush1.msra.mxu0 0.0
        %6093 = vmatprep.subr.mxu0 0.0
        %6094 = vmatpush1.msra.mxu0 0.0
        %6095 = vmatprep.subr.mxu0 0.0
        %6096 = vmatpush1.msra.mxu0 0.0
        %6097 = vmatprep.subr.mxu0 0.0
        %6098 = vmatpush1.msra.mxu0 0.0
        %6099 = vmatprep.subr.mxu0 0.0
        %6100 = vmatpush1.msra.mxu0 0.0
        %6101 = vmatprep.subr.mxu0 0.0
        %6102 = vmatpush1.msra.mxu0 0.0
        %6103 = vmatprep.subr.mxu0 0.0
        %6104 = vmatpush1.msra.mxu0 0.0
        %6105 = vmatprep.subr.mxu0 0.0
        %6106 = vmatpush1.msra.mxu0 0.0
        %6107 = vmatprep.subr.mxu0 0.0
        %6108 = vmatpush1.msra.mxu0 0.0
        %6109 = vmatprep.subr.mxu0 0.0
        %6110 = vmatpush1.msra.mxu0 0.0
        %6111 = vmatprep.subr.mxu0 0.0
        %6112 = vmatpush1.msra.mxu0 0.0
        %6113 = vmatprep.subr.mxu0 0.0
        %6114 = vmatpush1.msra.mxu0 0.0
        %6115 = vmatprep.subr.mxu0 0.0
        %6116 = vmatpush1.msra.mxu0 0.0
        %6117 = vmatprep.subr.mxu0 %v5718
        %6118 = vmatpush1.msra.mxu0 %v5717
        %6119 = vmatprep.subr.mxu0 0.0
        %6120 = vmatpush2.msra.mxu0 0.0
        %6121 = vmatprep.subr.mxu0 0.0
        %6122 = vmatpush2.msra.mxu0 0.0
        %6123 = vmatprep.subr.mxu0 0.0
        %6124 = vmatpush2.msra.mxu0 0.0
        %6125 = vmatprep.subr.mxu0 0.0
        %6126 = vmatpush2.msra.mxu0 0.0
        %6127 = vmatprep.subr.mxu0 0.0
        %6128 = vmatpush2.msra.mxu0 0.0
        %6129 = vmatprep.subr.mxu0 0.0
        %6130 = vmatpush2.msra.mxu0 0.0
        %6131 = vmatprep.subr.mxu0 0.0
        %6132 = vmatpush2.msra.mxu0 0.0
        %6133 = vmatprep.subr.mxu0 0.0
        %6134 = vmatpush2.msra.mxu0 0.0
        %6135 = vmatprep.subr.mxu0 0.0
        %6136 = vmatpush2.msra.mxu0 0.0
        %6137 = vmatprep.subr.mxu0 0.0
        %6138 = vmatpush2.msra.mxu0 0.0
        %6139 = vmatprep.subr.mxu0 0.0
        %6140 = vmatpush2.msra.mxu0 0.0
        %6141 = vmatprep.subr.mxu0 0.0
        %6142 = vmatpush2.msra.mxu0 0.0
        %6143 = vmatprep.subr.mxu0 0.0
        %6144 = vmatpush2.msra.mxu0 0.0
        %6145 = vmatprep.subr.mxu0 0.0
        %6146 = vmatpush2.msra.mxu0 0.0
        %6147 = vmatprep.subr.mxu0 0.0
        %6148 = vmatpush2.msra.mxu0 0.0
        %6149 = vmatprep.subr.mxu0 0.0
        %6150 = vmatpush2.msra.mxu0 0.0
        %6151 = vmatprep.mubr.f32.mxu0 0.0
        %6152 = vmatmul.mubr.f32.gmra.mxu0 %v5747
        %v6153 = vpop.f32.mrf.mxu0
        %v6154 = vadd.f32 0.0, %v6153
        %v6155 = vpop.f32.mrf.mxu0
        %v6156 = vadd.f32 0.0, %v6155
        %6157 = vmatprep.mubr.f32.mxu0 0.0
        %6158 = vmatmul.mubr.f32.gmra.mxu0 %v5750
        %v6159 = vpop.f32.mrf.mxu0
        %v6160 = vadd.f32 0.0, %v6159
        %v6161 = vpop.f32.mrf.mxu0
        %v6162 = vadd.f32 0.0, %v6161
        %6163 = vmatprep.mubr.f32.mxu0 0.0
        %6164 = vmatmul.mubr.f32.gmra.mxu0 %v5753
        %v6165 = vpop.f32.mrf.mxu0
        %v6166 = vadd.f32 0.0, %v6165
        %v6167 = vpop.f32.mrf.mxu0
        %v6168 = vadd.f32 0.0, %v6167
        %6169 = vdwg.mxu0
        %6170 = vmatprep.subr.mxu0 0.0
        %6171 = vmatpush1.msra.mxu0 0.0
        %6172 = vmatprep.subr.mxu0 0.0
        %6173 = vmatpush1.msra.mxu0 0.0
        %6174 = vmatprep.subr.mxu0 0.0
        %6175 = vmatpush1.msra.mxu0 0.0
        %6176 = vmatprep.subr.mxu0 0.0
        %6177 = vmatpush1.msra.mxu0 0.0
        %6178 = vmatprep.subr.mxu0 0.0
        %6179 = vmatpush1.msra.mxu0 0.0
        %6180 = vmatprep.subr.mxu0 0.0
        %6181 = vmatpush1.msra.mxu0 0.0
        %6182 = vmatprep.subr.mxu0 0.0
        %6183 = vmatpush1.msra.mxu0 0.0
        %6184 = vmatprep.subr.mxu0 0.0
        %6185 = vmatpush1.msra.mxu0 0.0
        %6186 = vmatprep.subr.mxu0 0.0
        %6187 = vmatpush1.msra.mxu0 0.0
        %6188 = vmatprep.subr.mxu0 0.0
        %6189 = vmatpush1.msra.mxu0 0.0
        %6190 = vmatprep.subr.mxu0 0.0
        %6191 = vmatpush1.msra.mxu0 0.0
        %6192 = vmatprep.subr.mxu0 0.0
        %6193 = vmatpush1.msra.mxu0 0.0
        %6194 = vmatprep.subr.mxu0 0.0
        %6195 = vmatpush1.msra.mxu0 0.0
        %6196 = vmatprep.subr.mxu0 0.0
        %6197 = vmatpush1.msra.mxu0 0.0
        %6198 = vmatprep.subr.mxu0 0.0
        %6199 = vmatpush1.msra.mxu0 0.0
        %6200 = vmatprep.subr.mxu0 %v5720
        %6201 = vmatpush1.msra.mxu0 %v5719
        %6202 = vmatprep.subr.mxu0 0.0
        %6203 = vmatpush2.msra.mxu0 0.0
        %6204 = vmatprep.subr.mxu0 0.0
        %6205 = vmatpush2.msra.mxu0 0.0
        %6206 = vmatprep.subr.mxu0 0.0
        %6207 = vmatpush2.msra.mxu0 0.0
        %6208 = vmatprep.subr.mxu0 0.0
        %6209 = vmatpush2.msra.mxu0 0.0
        %6210 = vmatprep.subr.mxu0 0.0
        %6211 = vmatpush2.msra.mxu0 0.0
        %6212 = vmatprep.subr.mxu0 0.0
        %6213 = vmatpush2.msra.mxu0 0.0
        %6214 = vmatprep.subr.mxu0 0.0
        %6215 = vmatpush2.msra.mxu0 0.0
        %6216 = vmatprep.subr.mxu0 0.0
        %6217 = vmatpush2.msra.mxu0 0.0
        %6218 = vmatprep.subr.mxu0 0.0
        %6219 = vmatpush2.msra.mxu0 0.0
        %6220 = vmatprep.subr.mxu0 0.0
        %6221 = vmatpush2.msra.mxu0 0.0
        %6222 = vmatprep.subr.mxu0 0.0
        %6223 = vmatpush2.msra.mxu0 0.0
        %6224 = vmatprep.subr.mxu0 0.0
        %6225 = vmatpush2.msra.mxu0 0.0
        %6226 = vmatprep.subr.mxu0 0.0
        %6227 = vmatpush2.msra.mxu0 0.0
        %6228 = vmatprep.subr.mxu0 0.0
        %6229 = vmatpush2.msra.mxu0 0.0
        %6230 = vmatprep.subr.mxu0 0.0
        %6231 = vmatpush2.msra.mxu0 0.0
        %6232 = vmatprep.subr.mxu0 0.0
        %6233 = vmatpush2.msra.mxu0 0.0
        %6234 = vmatprep.mubr.f32.mxu0 0.0
        %6235 = vmatmul.mubr.f32.gmra.mxu0 %v5747
        %v6236 = vpop.f32.mrf.mxu0
        %v6237 = vadd.f32 0.0, %v6236
        %v6238 = vpop.f32.mrf.mxu0
        %v6239 = vadd.f32 0.0, %v6238
        %6240 = vmatprep.mubr.f32.mxu0 0.0
        %6241 = vmatmul.mubr.f32.gmra.mxu0 %v5750
        %v6242 = vpop.f32.mrf.mxu0
        %v6243 = vadd.f32 0.0, %v6242
        %v6244 = vpop.f32.mrf.mxu0
        %v6245 = vadd.f32 0.0, %v6244
        %6246 = vmatprep.mubr.f32.mxu0 0.0
        %6247 = vmatmul.mubr.f32.gmra.mxu0 %v5753
        %v6248 = vpop.f32.mrf.mxu0
        %v6249 = vadd.f32 0.0, %v6248
        %v6250 = vpop.f32.mrf.mxu0
        %v6251 = vadd.f32 0.0, %v6250
        %6252 = vdwg.mxu0
        %6253 = vmatprep.subr.mxu0 0.0
        %6254 = vmatpush1.msra.mxu0 0.0
        %6255 = vmatprep.subr.mxu0 0.0
        %6256 = vmatpush1.msra.mxu0 0.0
        %6257 = vmatprep.subr.mxu0 0.0
        %6258 = vmatpush1.msra.mxu0 0.0
        %6259 = vmatprep.subr.mxu0 0.0
        %6260 = vmatpush1.msra.mxu0 0.0
        %6261 = vmatprep.subr.mxu0 0.0
        %6262 = vmatpush1.msra.mxu0 0.0
        %6263 = vmatprep.subr.mxu0 0.0
        %6264 = vmatpush1.msra.mxu0 0.0
        %6265 = vmatprep.subr.mxu0 0.0
        %6266 = vmatpush1.msra.mxu0 0.0
        %6267 = vmatprep.subr.mxu0 0.0
        %6268 = vmatpush1.msra.mxu0 0.0
        %6269 = vmatprep.subr.mxu0 0.0
        %6270 = vmatpush1.msra.mxu0 0.0
        %6271 = vmatprep.subr.mxu0 0.0
        %6272 = vmatpush1.msra.mxu0 0.0
        %6273 = vmatprep.subr.mxu0 0.0
        %6274 = vmatpush1.msra.mxu0 0.0
        %6275 = vmatprep.subr.mxu0 0.0
        %6276 = vmatpush1.msra.mxu0 0.0
        %6277 = vmatprep.subr.mxu0 0.0
        %6278 = vmatpush1.msra.mxu0 0.0
        %6279 = vmatprep.subr.mxu0 0.0
        %6280 = vmatpush1.msra.mxu0 0.0
        %6281 = vmatprep.subr.mxu0 0.0
        %6282 = vmatpush1.msra.mxu0 0.0
        %6283 = vmatprep.subr.mxu0 %v5722
        %6284 = vmatpush1.msra.mxu0 %v5721
        %6285 = vmatprep.subr.mxu0 0.0
        %6286 = vmatpush2.msra.mxu0 0.0
        %6287 = vmatprep.subr.mxu0 0.0
        %6288 = vmatpush2.msra.mxu0 0.0
        %6289 = vmatprep.subr.mxu0 0.0
        %6290 = vmatpush2.msra.mxu0 0.0
        %6291 = vmatprep.subr.mxu0 0.0
        %6292 = vmatpush2.msra.mxu0 0.0
        %6293 = vmatprep.subr.mxu0 0.0
        %6294 = vmatpush2.msra.mxu0 0.0
        %6295 = vmatprep.subr.mxu0 0.0
        %6296 = vmatpush2.msra.mxu0 0.0
        %6297 = vmatprep.subr.mxu0 0.0
        %6298 = vmatpush2.msra.mxu0 0.0
        %6299 = vmatprep.subr.mxu0 0.0
        %6300 = vmatpush2.msra.mxu0 0.0
        %6301 = vmatprep.subr.mxu0 0.0
        %6302 = vmatpush2.msra.mxu0 0.0
        %6303 = vmatprep.subr.mxu0 0.0
        %6304 = vmatpush2.msra.mxu0 0.0
        %6305 = vmatprep.subr.mxu0 0.0
        %6306 = vmatpush2.msra.mxu0 0.0
        %6307 = vmatprep.subr.mxu0 0.0
        %6308 = vmatpush2.msra.mxu0 0.0
        %6309 = vmatprep.subr.mxu0 0.0
        %6310 = vmatpush2.msra.mxu0 0.0
        %6311 = vmatprep.subr.mxu0 0.0
        %6312 = vmatpush2.msra.mxu0 0.0
        %6313 = vmatprep.subr.mxu0 0.0
        %6314 = vmatpush2.msra.mxu0 0.0
        %6315 = vmatprep.subr.mxu0 0.0
        %6316 = vmatpush2.msra.mxu0 0.0
        %6317 = vmatprep.mubr.f32.mxu0 0.0
        %6318 = vmatmul.mubr.f32.gmra.mxu0 %v5747
        %v6319 = vpop.f32.mrf.mxu0
        %v6320 = vadd.f32 0.0, %v6319
        %v6321 = vpop.f32.mrf.mxu0
        %v6322 = vadd.f32 0.0, %v6321
        %6323 = vmatprep.mubr.f32.mxu0 0.0
        %6324 = vmatmul.mubr.f32.gmra.mxu0 %v5750
        %v6325 = vpop.f32.mrf.mxu0
        %v6326 = vadd.f32 0.0, %v6325
        %v6327 = vpop.f32.mrf.mxu0
        %v6328 = vadd.f32 0.0, %v6327
        %6329 = vmatprep.mubr.f32.mxu0 0.0
        %6330 = vmatmul.mubr.f32.gmra.mxu0 %v5753
        %v6331 = vpop.f32.mrf.mxu0
        %v6332 = vadd.f32 0.0, %v6331
        %v6333 = vpop.f32.mrf.mxu0
        %v6334 = vadd.f32 0.0, %v6333
        %6335 = vdwg.mxu0
        %6336 = vmatprep.subr.mxu0 0.0
        %6337 = vmatpush1.msra.mxu0 0.0
        %6338 = vmatprep.subr.mxu0 0.0
        %6339 = vmatpush1.msra.mxu0 0.0
        %6340 = vmatprep.subr.mxu0 0.0
        %6341 = vmatpush1.msra.mxu0 0.0
        %6342 = vmatprep.subr.mxu0 0.0
        %6343 = vmatpush1.msra.mxu0 0.0
        %6344 = vmatprep.subr.mxu0 0.0
        %6345 = vmatpush1.msra.mxu0 0.0
        %6346 = vmatprep.subr.mxu0 0.0
        %6347 = vmatpush1.msra.mxu0 0.0
        %6348 = vmatprep.subr.mxu0 0.0
        %6349 = vmatpush1.msra.mxu0 0.0
        %6350 = vmatprep.subr.mxu0 0.0
        %6351 = vmatpush1.msra.mxu0 0.0
        %6352 = vmatprep.subr.mxu0 0.0
        %6353 = vmatpush1.msra.mxu0 0.0
        %6354 = vmatprep.subr.mxu0 0.0
        %6355 = vmatpush1.msra.mxu0 0.0
        %6356 = vmatprep.subr.mxu0 0.0
        %6357 = vmatpush1.msra.mxu0 0.0
        %6358 = vmatprep.subr.mxu0 0.0
        %6359 = vmatpush1.msra.mxu0 0.0
        %6360 = vmatprep.subr.mxu0 0.0
        %6361 = vmatpush1.msra.mxu0 0.0
        %6362 = vmatprep.subr.mxu0 0.0
        %6363 = vmatpush1.msra.mxu0 0.0
        %6364 = vmatprep.subr.mxu0 0.0
        %6365 = vmatpush1.msra.mxu0 0.0
        %6366 = vmatprep.subr.mxu0 %v5724
        %6367 = vmatpush1.msra.mxu0 %v5723
        %6368 = vmatprep.subr.mxu0 0.0
        %6369 = vmatpush2.msra.mxu0 0.0
        %6370 = vmatprep.subr.mxu0 0.0
        %6371 = vmatpush2.msra.mxu0 0.0
        %6372 = vmatprep.subr.mxu0 0.0
        %6373 = vmatpush2.msra.mxu0 0.0
        %6374 = vmatprep.subr.mxu0 0.0
        %6375 = vmatpush2.msra.mxu0 0.0
        %6376 = vmatprep.subr.mxu0 0.0
        %6377 = vmatpush2.msra.mxu0 0.0
        %6378 = vmatprep.subr.mxu0 0.0
        %6379 = vmatpush2.msra.mxu0 0.0
        %6380 = vmatprep.subr.mxu0 0.0
        %6381 = vmatpush2.msra.mxu0 0.0
        %6382 = vmatprep.subr.mxu0 0.0
        %6383 = vmatpush2.msra.mxu0 0.0
        %6384 = vmatprep.subr.mxu0 0.0
        %6385 = vmatpush2.msra.mxu0 0.0
        %6386 = vmatprep.subr.mxu0 0.0
        %6387 = vmatpush2.msra.mxu0 0.0
        %6388 = vmatprep.subr.mxu0 0.0
        %6389 = vmatpush2.msra.mxu0 0.0
        %6390 = vmatprep.subr.mxu0 0.0
        %6391 = vmatpush2.msra.mxu0 0.0
        %6392 = vmatprep.subr.mxu0 0.0
        %6393 = vmatpush2.msra.mxu0 0.0
        %6394 = vmatprep.subr.mxu0 0.0
        %6395 = vmatpush2.msra.mxu0 0.0
        %6396 = vmatprep.subr.mxu0 0.0
        %6397 = vmatpush2.msra.mxu0 0.0
        %6398 = vmatprep.subr.mxu0 0.0
        %6399 = vmatpush2.msra.mxu0 0.0
        %6400 = vmatprep.mubr.f32.mxu0 0.0
        %6401 = vmatmul.mubr.f32.gmra.mxu0 %v5747
        %v6402 = vpop.f32.mrf.mxu0
        %v6403 = vadd.f32 0.0, %v6402
        %v6404 = vpop.f32.mrf.mxu0
        %v6405 = vadd.f32 0.0, %v6404
        %6406 = vmatprep.mubr.f32.mxu0 0.0
        %6407 = vmatmul.mubr.f32.gmra.mxu0 %v5750
        %v6408 = vpop.f32.mrf.mxu0
        %v6409 = vadd.f32 0.0, %v6408
        %v6410 = vpop.f32.mrf.mxu0
        %v6411 = vadd.f32 0.0, %v6410
        %6412 = vmatprep.mubr.f32.mxu0 0.0
        %6413 = vmatmul.mubr.f32.gmra.mxu0 %v5753
        %v6414 = vpop.f32.mrf.mxu0
        %v6415 = vadd.f32 0.0, %v6414
        %v6416 = vpop.f32.mrf.mxu0
        %v6417 = vadd.f32 0.0, %v6416
        %6418 = vdwg.mxu0
        %vm6419 = vcmp.eq.s32.totalorder %v5726, 0
        %vm6420 = vcmp.eq.s32.totalorder %v5727, 0
        %vm6421 = vcmp.eq.s32.totalorder %v5728, 0
        %vm6422 = vcmp.eq.s32.totalorder %v5729, 0
        %vm6423 = vcmp.eq.s32.totalorder %v5730, 0
        %vm6424 = vcmp.eq.s32.totalorder %v5731, 0
        %vm6425 = vcmp.eq.s32.totalorder %v5732, 0
        %vm6426 = vcmp.eq.s32.totalorder %v5733, 0
        %vm6427 = vcmp.eq.s32.totalorder %v5734, 0
        %vm6428 = vcmp.eq.s32.totalorder %v5735, 0
        %vm6429 = vcmp.eq.s32.totalorder %v5736, 0
        %vm6430 = vcmp.eq.s32.totalorder %v5737, 0
        %vm6431 = vcmp.eq.s32.totalorder %v5738, 0
        %vm6432 = vcmp.eq.s32.totalorder %v5739, 0
        %vm6433 = vcmp.eq.s32.totalorder %v5740, 0
        %vm6434 = vcmp.eq.s32.totalorder %v5741, 0
        %6435 = vrot.lane.b32.xlu0 %v5822, 1
        %v6436 = vpop.permute.xlu0 %6435
        %6437 = vrot.lane.b32.xlu0 %v5824, 1
        %v6438 = vpop.permute.xlu0 %6437
        %6439 = vrot.lane.b32.xlu0 %v5905, 1
        %v6440 = vpop.permute.xlu0 %6439
        %6441 = vrot.lane.b32.xlu0 %v5907, 1
        %v6442 = vpop.permute.xlu0 %6441
        %6443 = vrot.lane.b32.xlu0 %v5988, 1
        %v6444 = vpop.permute.xlu0 %6443
        %6445 = vrot.lane.b32.xlu0 %v5990, 1
        %v6446 = vpop.permute.xlu0 %6445
        %6447 = vrot.lane.b32.xlu0 %v6071, 1
        %v6448 = vpop.permute.xlu0 %6447
        %6449 = vrot.lane.b32.xlu0 %v6073, 1
        %v6450 = vpop.permute.xlu0 %6449
        %6451 = vrot.lane.b32.xlu0 %v6154, 1
        %v6452 = vpop.permute.xlu0 %6451
        %6453 = vrot.lane.b32.xlu0 %v6156, 1
        %v6454 = vpop.permute.xlu0 %6453
        %6455 = vrot.lane.b32.xlu0 %v6237, 1
        %v6456 = vpop.permute.xlu0 %6455
        %6457 = vrot.lane.b32.xlu0 %v6239, 1
        %v6458 = vpop.permute.xlu0 %6457
        %6459 = vrot.lane.b32.xlu0 %v6320, 1
        %v6460 = vpop.permute.xlu0 %6459
        %6461 = vrot.lane.b32.xlu0 %v6322, 1
        %v6462 = vpop.permute.xlu0 %6461
        %6463 = vrot.lane.b32.xlu0 %v6403, 1
        %v6464 = vpop.permute.xlu0 %6463
        %6465 = vrot.lane.b32.xlu0 %v6405, 1
        %v6466 = vpop.permute.xlu0 %6465
        %vm6467 = vcmp.lt.s32.totalorder %v5726, 1
        %v6468 = vsel %vm6467, %v6464, %v6466
        %v6469 = vsel %vm6467, %v6462, %v6464
        %v6470 = vsel %vm6467, %v6460, %v6462
        %v6471 = vsel %vm6467, %v6458, %v6460
        %v6472 = vsel %vm6467, %v6456, %v6458
        %v6473 = vsel %vm6467, %v6454, %v6456
        %v6474 = vsel %vm6467, %v6452, %v6454
        %v6475 = vsel %vm6467, %v6450, %v6452
        %v6476 = vsel %vm6467, %v6448, %v6450
        %v6477 = vsel %vm6467, %v6446, %v6448
        %v6478 = vsel %vm6467, %v6444, %v6446
        %v6479 = vsel %vm6467, %v6442, %v6444
        %v6480 = vsel %vm6467, %v6440, %v6442
        %v6481 = vsel %vm6467, %v6438, %v6440
        %v6482 = vsel %vm6467, %v6436, %v6438
        %v6483 = vsel %vm6467, %v6466, %v6436
        %v6484 = vsel %vm6419, 0.0, %v6483
        %v6485 = vsel %vm6420, 0.0, %v6482
        %v6486 = vsel %vm6421, 0.0, %v6481
        %v6487 = vsel %vm6422, 0.0, %v6480
        %v6488 = vsel %vm6423, 0.0, %v6479
        %v6489 = vsel %vm6424, 0.0, %v6478
        %v6490 = vsel %vm6425, 0.0, %v6477
        %v6491 = vsel %vm6426, 0.0, %v6476
        %v6492 = vsel %vm6427, 0.0, %v6475
        %v6493 = vsel %vm6428, 0.0, %v6474
        %v6494 = vsel %vm6429, 0.0, %v6473
        %v6495 = vsel %vm6430, 0.0, %v6472
        %v6496 = vsel %vm6431, 0.0, %v6471
        %v6497 = vsel %vm6432, 0.0, %v6470
        %v6498 = vsel %vm6433, 0.0, %v6469
        %v6499 = vsel %vm6434, 0.0, %v6468
        %vm6500 = vcmp.eq.s32.totalorder %v5726, 2047
        %vm6501 = vcmp.eq.s32.totalorder %v5727, 2047
        %vm6502 = vcmp.eq.s32.totalorder %v5728, 2047
        %vm6503 = vcmp.eq.s32.totalorder %v5729, 2047
        %vm6504 = vcmp.eq.s32.totalorder %v5730, 2047
        %vm6505 = vcmp.eq.s32.totalorder %v5731, 2047
        %vm6506 = vcmp.eq.s32.totalorder %v5732, 2047
        %vm6507 = vcmp.eq.s32.totalorder %v5733, 2047
        %vm6508 = vcmp.eq.s32.totalorder %v5734, 2047
        %vm6509 = vcmp.eq.s32.totalorder %v5735, 2047
        %vm6510 = vcmp.eq.s32.totalorder %v5736, 2047
        %vm6511 = vcmp.eq.s32.totalorder %v5737, 2047
        %vm6512 = vcmp.eq.s32.totalorder %v5738, 2047
        %vm6513 = vcmp.eq.s32.totalorder %v5739, 2047
        %vm6514 = vcmp.eq.s32.totalorder %v5740, 2047
        %vm6515 = vcmp.eq.s32.totalorder %v5741, 2047
        %6516 = vrot.lane.b32.xlu0 %v5834, 127
        %v6517 = vpop.permute.xlu0 %6516
        %6518 = vrot.lane.b32.xlu0 %v5836, 127
        %v6519 = vpop.permute.xlu0 %6518
        %6520 = vrot.lane.b32.xlu0 %v5917, 127
        %v6521 = vpop.permute.xlu0 %6520
        %6522 = vrot.lane.b32.xlu0 %v5919, 127
        %v6523 = vpop.permute.xlu0 %6522
        %6524 = vrot.lane.b32.xlu0 %v6000, 127
        %v6525 = vpop.permute.xlu0 %6524
        %6526 = vrot.lane.b32.xlu0 %v6002, 127
        %v6527 = vpop.permute.xlu0 %6526
        %6528 = vrot.lane.b32.xlu0 %v6083, 127
        %v6529 = vpop.permute.xlu0 %6528
        %6530 = vrot.lane.b32.xlu0 %v6085, 127
        %v6531 = vpop.permute.xlu0 %6530
        %6532 = vrot.lane.b32.xlu0 %v6166, 127
        %v6533 = vpop.permute.xlu0 %6532
        %6534 = vrot.lane.b32.xlu0 %v6168, 127
        %v6535 = vpop.permute.xlu0 %6534
        %6536 = vrot.lane.b32.xlu0 %v6249, 127
        %v6537 = vpop.permute.xlu0 %6536
        %6538 = vrot.lane.b32.xlu0 %v6251, 127
        %v6539 = vpop.permute.xlu0 %6538
        %6540 = vrot.lane.b32.xlu0 %v6332, 127
        %v6541 = vpop.permute.xlu0 %6540
        %6542 = vrot.lane.b32.xlu0 %v6334, 127
        %v6543 = vpop.permute.xlu0 %6542
        %6544 = vrot.lane.b32.xlu0 %v6415, 127
        %v6545 = vpop.permute.xlu0 %6544
        %6546 = vrot.lane.b32.xlu0 %v6417, 127
        %v6547 = vpop.permute.xlu0 %6546
        %vm6548 = vcmp.lt.s32.totalorder %v5726, 127
        %v6549 = vsel %vm6548, %v6545, %v6547
        %v6550 = vsel %vm6548, %v6543, %v6545
        %v6551 = vsel %vm6548, %v6541, %v6543
        %v6552 = vsel %vm6548, %v6539, %v6541
        %v6553 = vsel %vm6548, %v6537, %v6539
        %v6554 = vsel %vm6548, %v6535, %v6537
        %v6555 = vsel %vm6548, %v6533, %v6535
        %v6556 = vsel %vm6548, %v6531, %v6533
        %v6557 = vsel %vm6548, %v6529, %v6531
        %v6558 = vsel %vm6548, %v6527, %v6529
        %v6559 = vsel %vm6548, %v6525, %v6527
        %v6560 = vsel %vm6548, %v6523, %v6525
        %v6561 = vsel %vm6548, %v6521, %v6523
        %v6562 = vsel %vm6548, %v6519, %v6521
        %v6563 = vsel %vm6548, %v6517, %v6519
        %v6564 = vsel %vm6548, %v6547, %v6517
        %v6565 = vsel %vm6500, 0.0, %v6563
        %v6566 = vsel %vm6501, 0.0, %v6562
        %v6567 = vsel %vm6502, 0.0, %v6561
        %v6568 = vsel %vm6503, 0.0, %v6560
        %v6569 = vsel %vm6504, 0.0, %v6559
        %v6570 = vsel %vm6505, 0.0, %v6558
        %v6571 = vsel %vm6506, 0.0, %v6557
        %v6572 = vsel %vm6507, 0.0, %v6556
        %v6573 = vsel %vm6508, 0.0, %v6555
        %v6574 = vsel %vm6509, 0.0, %v6554
        %v6575 = vsel %vm6510, 0.0, %v6553
        %v6576 = vsel %vm6511, 0.0, %v6552
        %v6577 = vsel %vm6512, 0.0, %v6551
        %v6578 = vsel %vm6513, 0.0, %v6550
        %v6579 = vsel %vm6514, 0.0, %v6549
        %v6580 = vsel %vm6515, 0.0, %v6564
        %v6581 = vadd.f32 %v6484, %v5828
        %v6582 = vadd.f32 %v6485, %v5830
        %v6583 = vadd.f32 %v6486, %v5911
        %v6584 = vadd.f32 %v6487, %v5913
        %v6585 = vadd.f32 %v6488, %v5994
        %v6586 = vadd.f32 %v6489, %v5996
        %v6587 = vadd.f32 %v6490, %v6077
        %v6588 = vadd.f32 %v6491, %v6079
        %v6589 = vadd.f32 %v6492, %v6160
        %v6590 = vadd.f32 %v6493, %v6162
        %v6591 = vadd.f32 %v6494, %v6243
        %v6592 = vadd.f32 %v6495, %v6245
        %v6593 = vadd.f32 %v6496, %v6326
        %v6594 = vadd.f32 %v6497, %v6328
        %v6595 = vadd.f32 %v6498, %v6409
        %v6596 = vadd.f32 %v6499, %v6411
        %v6597 = vadd.f32 %v6581, %v6565
        %v6598 = vadd.f32 %v6582, %v6566
        %v6599 = vadd.f32 %v6583, %v6567
        %v6600 = vadd.f32 %v6584, %v6568
        %v6601 = vadd.f32 %v6585, %v6569
        %v6602 = vadd.f32 %v6586, %v6570
        %v6603 = vadd.f32 %v6587, %v6571
        %v6604 = vadd.f32 %v6588, %v6572
        %v6605 = vadd.f32 %v6589, %v6573
        %v6606 = vadd.f32 %v6590, %v6574
        %v6607 = vadd.f32 %v6591, %v6575
        %v6608 = vadd.f32 %v6592, %v6576
        %v6609 = vadd.f32 %v6593, %v6577
        %v6610 = vadd.f32 %v6594, %v6578
        %v6611 = vadd.f32 %v6595, %v6579
        %v6612 = vadd.f32 %v6596, %v6580
        %v6613 = vld [vmem:[%s4] sm:$0xff]
        %6615 = vset.pattern.permute.xlu0 0
        %6616 = vperm.xlu0 %6615, %v6613
        %v6617 = vpop.permute.xlu0 %6616
        %v6619 = vadd.f32 %v6597, %v6617
        %v6620 = vadd.f32 %v6598, %v6617
        %v6621 = vadd.f32 %v6599, %v6617
        %v6622 = vadd.f32 %v6600, %v6617
        %v6623 = vadd.f32 %v6601, %v6617
        %v6624 = vadd.f32 %v6602, %v6617
        %v6625 = vadd.f32 %v6603, %v6617
        %v6626 = vadd.f32 %v6604, %v6617
        %v6627 = vadd.f32 %v6605, %v6617
        %v6628 = vadd.f32 %v6606, %v6617
        %v6629 = vadd.f32 %v6607, %v6617
        %v6630 = vadd.f32 %v6608, %v6617
        %v6631 = vadd.f32 %v6609, %v6617
        %v6632 = vadd.f32 %v6610, %v6617
        %v6633 = vadd.f32 %v6611, %v6617
        %v6634 = vadd.f32 %v6612, %v6617
        %v6635 = vld [vmem:[%s5] sm:$0xff]
        %v6636 = vld [vmem:[%s5 + $0x8] sm:$0xf]
        %v6638 = vsel %vm5745, %v6635, 0
        %v6641 = vsel %vm5745, %v6636, 0
        %6643 = vmatprep.subr.mxu0 0.0
        %6644 = vmatpush1.msra.mxu0 0.0
        %6645 = vmatprep.subr.mxu0 0.0
        %6646 = vmatpush1.msra.mxu0 0.0
        %6647 = vmatprep.subr.mxu0 0.0
        %6648 = vmatpush1.msra.mxu0 0.0
        %6649 = vmatprep.subr.mxu0 0.0
        %6650 = vmatpush1.msra.mxu0 0.0
        %6651 = vmatprep.subr.mxu0 0.0
        %6652 = vmatpush1.msra.mxu0 0.0
        %6653 = vmatprep.subr.mxu0 0.0
        %6654 = vmatpush1.msra.mxu0 0.0
        %6655 = vmatprep.subr.mxu0 0.0
        %6656 = vmatpush1.msra.mxu0 0.0
        %6657 = vmatprep.subr.mxu0 0.0
        %6658 = vmatpush1.msra.mxu0 0.0
        %6659 = vmatprep.subr.mxu0 0.0
        %6660 = vmatpush1.msra.mxu0 0.0
        %6661 = vmatprep.subr.mxu0 0.0
        %6662 = vmatpush1.msra.mxu0 0.0
        %6663 = vmatprep.subr.mxu0 0.0
        %6664 = vmatpush1.msra.mxu0 0.0
        %6665 = vmatprep.subr.mxu0 0.0
        %6666 = vmatpush1.msra.mxu0 0.0
        %6667 = vmatprep.subr.mxu0 0.0
        %6668 = vmatpush1.msra.mxu0 0.0
        %6669 = vmatprep.subr.mxu0 0.0
        %6670 = vmatpush1.msra.mxu0 0.0
        %6671 = vmatprep.subr.mxu0 0.0
        %6672 = vmatpush1.msra.mxu0 0.0
        %6673 = vmatprep.subr.mxu0 %v6620
        %6674 = vmatpush1.msra.mxu0 %v6619
        %6675 = vmatprep.subr.mxu0 0.0
        %6676 = vmatpush2.msra.mxu0 0.0
        %6677 = vmatprep.subr.mxu0 0.0
        %6678 = vmatpush2.msra.mxu0 0.0
        %6679 = vmatprep.subr.mxu0 0.0
        %6680 = vmatpush2.msra.mxu0 0.0
        %6681 = vmatprep.subr.mxu0 0.0
        %6682 = vmatpush2.msra.mxu0 0.0
        %6683 = vmatprep.subr.mxu0 0.0
        %6684 = vmatpush2.msra.mxu0 0.0
        %6685 = vmatprep.subr.mxu0 0.0
        %6686 = vmatpush2.msra.mxu0 0.0
        %6687 = vmatprep.subr.mxu0 0.0
        %6688 = vmatpush2.msra.mxu0 0.0
        %6689 = vmatprep.subr.mxu0 0.0
        %6690 = vmatpush2.msra.mxu0 0.0
        %6691 = vmatprep.subr.mxu0 0.0
        %6692 = vmatpush2.msra.mxu0 0.0
        %6693 = vmatprep.subr.mxu0 0.0
        %6694 = vmatpush2.msra.mxu0 0.0
        %6695 = vmatprep.subr.mxu0 0.0
        %6696 = vmatpush2.msra.mxu0 0.0
        %6697 = vmatprep.subr.mxu0 0.0
        %6698 = vmatpush2.msra.mxu0 0.0
        %6699 = vmatprep.subr.mxu0 0.0
        %6700 = vmatpush2.msra.mxu0 0.0
        %6701 = vmatprep.subr.mxu0 0.0
        %6702 = vmatpush2.msra.mxu0 0.0
        %6703 = vmatprep.subr.mxu0 0.0
        %6704 = vmatpush2.msra.mxu0 0.0
        %6705 = vmatprep.subr.mxu0 0.0
        %6706 = vmatpush2.msra.mxu0 0.0
        %6707 = vmatprep.mubr.f32.mxu0 0.0
        %6708 = vmatmul.mubr.f32.gmra.mxu0 %v6638
        %v6709 = vpop.f32.mrf.mxu0
        %v6710 = vadd.f32 0.0, %v6709
        %v6711 = vpop.f32.mrf.mxu0
        %v6712 = vadd.f32 0.0, %v6711
        %6713 = vmatprep.mubr.f32.mxu0 0.0
        %6714 = vmatmul.mubr.f32.gmra.mxu0 %v6641
        %v6715 = vpop.f32.mrf.mxu0
        %v6716 = vadd.f32 0.0, %v6715
        %v6717 = vpop.f32.mrf.mxu0
        %v6718 = vadd.f32 0.0, %v6717
        %6719 = vdwg.mxu0
        %6720 = vmatprep.subr.mxu0 0.0
        %6721 = vmatpush1.msra.mxu0 0.0
        %6722 = vmatprep.subr.mxu0 0.0
        %6723 = vmatpush1.msra.mxu0 0.0
        %6724 = vmatprep.subr.mxu0 0.0
        %6725 = vmatpush1.msra.mxu0 0.0
        %6726 = vmatprep.subr.mxu0 0.0
        %6727 = vmatpush1.msra.mxu0 0.0
        %6728 = vmatprep.subr.mxu0 0.0
        %6729 = vmatpush1.msra.mxu0 0.0
        %6730 = vmatprep.subr.mxu0 0.0
        %6731 = vmatpush1.msra.mxu0 0.0
        %6732 = vmatprep.subr.mxu0 0.0
        %6733 = vmatpush1.msra.mxu0 0.0
        %6734 = vmatprep.subr.mxu0 0.0
        %6735 = vmatpush1.msra.mxu0 0.0
        %6736 = vmatprep.subr.mxu0 0.0
        %6737 = vmatpush1.msra.mxu0 0.0
        %6738 = vmatprep.subr.mxu0 0.0
        %6739 = vmatpush1.msra.mxu0 0.0
        %6740 = vmatprep.subr.mxu0 0.0
        %6741 = vmatpush1.msra.mxu0 0.0
        %6742 = vmatprep.subr.mxu0 0.0
        %6743 = vmatpush1.msra.mxu0 0.0
        %6744 = vmatprep.subr.mxu0 0.0
        %6745 = vmatpush1.msra.mxu0 0.0
        %6746 = vmatprep.subr.mxu0 0.0
        %6747 = vmatpush1.msra.mxu0 0.0
        %6748 = vmatprep.subr.mxu0 0.0
        %6749 = vmatpush1.msra.mxu0 0.0
        %6750 = vmatprep.subr.mxu0 %v6622
        %6751 = vmatpush1.msra.mxu0 %v6621
        %6752 = vmatprep.subr.mxu0 0.0
        %6753 = vmatpush2.msra.mxu0 0.0
        %6754 = vmatprep.subr.mxu0 0.0
        %6755 = vmatpush2.msra.mxu0 0.0
        %6756 = vmatprep.subr.mxu0 0.0
        %6757 = vmatpush2.msra.mxu0 0.0
        %6758 = vmatprep.subr.mxu0 0.0
        %6759 = vmatpush2.msra.mxu0 0.0
        %6760 = vmatprep.subr.mxu0 0.0
        %6761 = vmatpush2.msra.mxu0 0.0
        %6762 = vmatprep.subr.mxu0 0.0
        %6763 = vmatpush2.msra.mxu0 0.0
        %6764 = vmatprep.subr.mxu0 0.0
        %6765 = vmatpush2.msra.mxu0 0.0
        %6766 = vmatprep.subr.mxu0 0.0
        %6767 = vmatpush2.msra.mxu0 0.0
        %6768 = vmatprep.subr.mxu0 0.0
        %6769 = vmatpush2.msra.mxu0 0.0
        %6770 = vmatprep.subr.mxu0 0.0
        %6771 = vmatpush2.msra.mxu0 0.0
        %6772 = vmatprep.subr.mxu0 0.0
        %6773 = vmatpush2.msra.mxu0 0.0
        %6774 = vmatprep.subr.mxu0 0.0
        %6775 = vmatpush2.msra.mxu0 0.0
        %6776 = vmatprep.subr.mxu0 0.0
        %6777 = vmatpush2.msra.mxu0 0.0
        %6778 = vmatprep.subr.mxu0 0.0
        %6779 = vmatpush2.msra.mxu0 0.0
        %6780 = vmatprep.subr.mxu0 0.0
        %6781 = vmatpush2.msra.mxu0 0.0
        %6782 = vmatprep.subr.mxu0 0.0
        %6783 = vmatpush2.msra.mxu0 0.0
        %6784 = vmatprep.mubr.f32.mxu0 0.0
        %6785 = vmatmul.mubr.f32.gmra.mxu0 %v6638
        %v6786 = vpop.f32.mrf.mxu0
        %v6787 = vadd.f32 0.0, %v6786
        %v6788 = vpop.f32.mrf.mxu0
        %v6789 = vadd.f32 0.0, %v6788
        %6790 = vmatprep.mubr.f32.mxu0 0.0
        %6791 = vmatmul.mubr.f32.gmra.mxu0 %v6641
        %v6792 = vpop.f32.mrf.mxu0
        %v6793 = vadd.f32 0.0, %v6792
        %v6794 = vpop.f32.mrf.mxu0
        %v6795 = vadd.f32 0.0, %v6794
        %6796 = vdwg.mxu0
        %6797 = vmatprep.subr.mxu0 0.0
        %6798 = vmatpush1.msra.mxu0 0.0
        %6799 = vmatprep.subr.mxu0 0.0
        %6800 = vmatpush1.msra.mxu0 0.0
        %6801 = vmatprep.subr.mxu0 0.0
        %6802 = vmatpush1.msra.mxu0 0.0
        %6803 = vmatprep.subr.mxu0 0.0
        %6804 = vmatpush1.msra.mxu0 0.0
        %6805 = vmatprep.subr.mxu0 0.0
        %6806 = vmatpush1.msra.mxu0 0.0
        %6807 = vmatprep.subr.mxu0 0.0
        %6808 = vmatpush1.msra.mxu0 0.0
        %6809 = vmatprep.subr.mxu0 0.0
        %6810 = vmatpush1.msra.mxu0 0.0
        %6811 = vmatprep.subr.mxu0 0.0
        %6812 = vmatpush1.msra.mxu0 0.0
        %6813 = vmatprep.subr.mxu0 0.0
        %6814 = vmatpush1.msra.mxu0 0.0
        %6815 = vmatprep.subr.mxu0 0.0
        %6816 = vmatpush1.msra.mxu0 0.0
        %6817 = vmatprep.subr.mxu0 0.0
        %6818 = vmatpush1.msra.mxu0 0.0
        %6819 = vmatprep.subr.mxu0 0.0
        %6820 = vmatpush1.msra.mxu0 0.0
        %6821 = vmatprep.subr.mxu0 0.0
        %6822 = vmatpush1.msra.mxu0 0.0
        %6823 = vmatprep.subr.mxu0 0.0
        %6824 = vmatpush1.msra.mxu0 0.0
        %6825 = vmatprep.subr.mxu0 0.0
        %6826 = vmatpush1.msra.mxu0 0.0
        %6827 = vmatprep.subr.mxu0 %v6624
        %6828 = vmatpush1.msra.mxu0 %v6623
        %6829 = vmatprep.subr.mxu0 0.0
        %6830 = vmatpush2.msra.mxu0 0.0
        %6831 = vmatprep.subr.mxu0 0.0
        %6832 = vmatpush2.msra.mxu0 0.0
        %6833 = vmatprep.subr.mxu0 0.0
        %6834 = vmatpush2.msra.mxu0 0.0
        %6835 = vmatprep.subr.mxu0 0.0
        %6836 = vmatpush2.msra.mxu0 0.0
        %6837 = vmatprep.subr.mxu0 0.0
        %6838 = vmatpush2.msra.mxu0 0.0
        %6839 = vmatprep.subr.mxu0 0.0
        %6840 = vmatpush2.msra.mxu0 0.0
        %6841 = vmatprep.subr.mxu0 0.0
        %6842 = vmatpush2.msra.mxu0 0.0
        %6843 = vmatprep.subr.mxu0 0.0
        %6844 = vmatpush2.msra.mxu0 0.0
        %6845 = vmatprep.subr.mxu0 0.0
        %6846 = vmatpush2.msra.mxu0 0.0
        %6847 = vmatprep.subr.mxu0 0.0
        %6848 = vmatpush2.msra.mxu0 0.0
        %6849 = vmatprep.subr.mxu0 0.0
        %6850 = vmatpush2.msra.mxu0 0.0
        %6851 = vmatprep.subr.mxu0 0.0
        %6852 = vmatpush2.msra.mxu0 0.0
        %6853 = vmatprep.subr.mxu0 0.0
        %6854 = vmatpush2.msra.mxu0 0.0
        %6855 = vmatprep.subr.mxu0 0.0
        %6856 = vmatpush2.msra.mxu0 0.0
        %6857 = vmatprep.subr.mxu0 0.0
        %6858 = vmatpush2.msra.mxu0 0.0
        %6859 = vmatprep.subr.mxu0 0.0
        %6860 = vmatpush2.msra.mxu0 0.0
        %6861 = vmatprep.mubr.f32.mxu0 0.0
        %6862 = vmatmul.mubr.f32.gmra.mxu0 %v6638
        %v6863 = vpop.f32.mrf.mxu0
        %v6864 = vadd.f32 0.0, %v6863
        %v6865 = vpop.f32.mrf.mxu0
        %v6866 = vadd.f32 0.0, %v6865
        %6867 = vmatprep.mubr.f32.mxu0 0.0
        %6868 = vmatmul.mubr.f32.gmra.mxu0 %v6641
        %v6869 = vpop.f32.mrf.mxu0
        %v6870 = vadd.f32 0.0, %v6869
        %v6871 = vpop.f32.mrf.mxu0
        %v6872 = vadd.f32 0.0, %v6871
        %6873 = vdwg.mxu0
        %6874 = vmatprep.subr.mxu0 0.0
        %6875 = vmatpush1.msra.mxu0 0.0
        %6876 = vmatprep.subr.mxu0 0.0
        %6877 = vmatpush1.msra.mxu0 0.0
        %6878 = vmatprep.subr.mxu0 0.0
        %6879 = vmatpush1.msra.mxu0 0.0
        %6880 = vmatprep.subr.mxu0 0.0
        %6881 = vmatpush1.msra.mxu0 0.0
        %6882 = vmatprep.subr.mxu0 0.0
        %6883 = vmatpush1.msra.mxu0 0.0
        %6884 = vmatprep.subr.mxu0 0.0
        %6885 = vmatpush1.msra.mxu0 0.0
        %6886 = vmatprep.subr.mxu0 0.0
        %6887 = vmatpush1.msra.mxu0 0.0
        %6888 = vmatprep.subr.mxu0 0.0
        %6889 = vmatpush1.msra.mxu0 0.0
        %6890 = vmatprep.subr.mxu0 0.0
        %6891 = vmatpush1.msra.mxu0 0.0
        %6892 = vmatprep.subr.mxu0 0.0
        %6893 = vmatpush1.msra.mxu0 0.0
        %6894 = vmatprep.subr.mxu0 0.0
        %6895 = vmatpush1.msra.mxu0 0.0
        %6896 = vmatprep.subr.mxu0 0.0
        %6897 = vmatpush1.msra.mxu0 0.0
        %6898 = vmatprep.subr.mxu0 0.0
        %6899 = vmatpush1.msra.mxu0 0.0
        %6900 = vmatprep.subr.mxu0 0.0
        %6901 = vmatpush1.msra.mxu0 0.0
        %6902 = vmatprep.subr.mxu0 0.0
        %6903 = vmatpush1.msra.mxu0 0.0
        %6904 = vmatprep.subr.mxu0 %v6626
        %6905 = vmatpush1.msra.mxu0 %v6625
        %6906 = vmatprep.subr.mxu0 0.0
        %6907 = vmatpush2.msra.mxu0 0.0
        %6908 = vmatprep.subr.mxu0 0.0
        %6909 = vmatpush2.msra.mxu0 0.0
        %6910 = vmatprep.subr.mxu0 0.0
        %6911 = vmatpush2.msra.mxu0 0.0
        %6912 = vmatprep.subr.mxu0 0.0
        %6913 = vmatpush2.msra.mxu0 0.0
        %6914 = vmatprep.subr.mxu0 0.0
        %6915 = vmatpush2.msra.mxu0 0.0
        %6916 = vmatprep.subr.mxu0 0.0
        %6917 = vmatpush2.msra.mxu0 0.0
        %6918 = vmatprep.subr.mxu0 0.0
        %6919 = vmatpush2.msra.mxu0 0.0
        %6920 = vmatprep.subr.mxu0 0.0
        %6921 = vmatpush2.msra.mxu0 0.0
        %6922 = vmatprep.subr.mxu0 0.0
        %6923 = vmatpush2.msra.mxu0 0.0
        %6924 = vmatprep.subr.mxu0 0.0
        %6925 = vmatpush2.msra.mxu0 0.0
        %6926 = vmatprep.subr.mxu0 0.0
        %6927 = vmatpush2.msra.mxu0 0.0
        %6928 = vmatprep.subr.mxu0 0.0
        %6929 = vmatpush2.msra.mxu0 0.0
        %6930 = vmatprep.subr.mxu0 0.0
        %6931 = vmatpush2.msra.mxu0 0.0
        %6932 = vmatprep.subr.mxu0 0.0
        %6933 = vmatpush2.msra.mxu0 0.0
        %6934 = vmatprep.subr.mxu0 0.0
        %6935 = vmatpush2.msra.mxu0 0.0
        %6936 = vmatprep.subr.mxu0 0.0
        %6937 = vmatpush2.msra.mxu0 0.0
        %6938 = vmatprep.mubr.f32.mxu0 0.0
        %6939 = vmatmul.mubr.f32.gmra.mxu0 %v6638
        %v6940 = vpop.f32.mrf.mxu0
        %v6941 = vadd.f32 0.0, %v6940
        %v6942 = vpop.f32.mrf.mxu0
        %v6943 = vadd.f32 0.0, %v6942
        %6944 = vmatprep.mubr.f32.mxu0 0.0
        %6945 = vmatmul.mubr.f32.gmra.mxu0 %v6641
        %v6946 = vpop.f32.mrf.mxu0
        %v6947 = vadd.f32 0.0, %v6946
        %v6948 = vpop.f32.mrf.mxu0
        %v6949 = vadd.f32 0.0, %v6948
        %6950 = vdwg.mxu0
        %6951 = vmatprep.subr.mxu0 0.0
        %6952 = vmatpush1.msra.mxu0 0.0
        %6953 = vmatprep.subr.mxu0 0.0
        %6954 = vmatpush1.msra.mxu0 0.0
        %6955 = vmatprep.subr.mxu0 0.0
        %6956 = vmatpush1.msra.mxu0 0.0
        %6957 = vmatprep.subr.mxu0 0.0
        %6958 = vmatpush1.msra.mxu0 0.0
        %6959 = vmatprep.subr.mxu0 0.0
        %6960 = vmatpush1.msra.mxu0 0.0
        %6961 = vmatprep.subr.mxu0 0.0
        %6962 = vmatpush1.msra.mxu0 0.0
        %6963 = vmatprep.subr.mxu0 0.0
        %6964 = vmatpush1.msra.mxu0 0.0
        %6965 = vmatprep.subr.mxu0 0.0
        %6966 = vmatpush1.msra.mxu0 0.0
        %6967 = vmatprep.subr.mxu0 0.0
        %6968 = vmatpush1.msra.mxu0 0.0
        %6969 = vmatprep.subr.mxu0 0.0
        %6970 = vmatpush1.msra.mxu0 0.0
        %6971 = vmatprep.subr.mxu0 0.0
        %6972 = vmatpush1.msra.mxu0 0.0
        %6973 = vmatprep.subr.mxu0 0.0
        %6974 = vmatpush1.msra.mxu0 0.0
        %6975 = vmatprep.subr.mxu0 0.0
        %6976 = vmatpush1.msra.mxu0 0.0
        %6977 = vmatprep.subr.mxu0 0.0
        %6978 = vmatpush1.msra.mxu0 0.0
        %6979 = vmatprep.subr.mxu0 0.0
        %6980 = vmatpush1.msra.mxu0 0.0
        %6981 = vmatprep.subr.mxu0 %v6628
        %6982 = vmatpush1.msra.mxu0 %v6627
        %6983 = vmatprep.subr.mxu0 0.0
        %6984 = vmatpush2.msra.mxu0 0.0
        %6985 = vmatprep.subr.mxu0 0.0
        %6986 = vmatpush2.msra.mxu0 0.0
        %6987 = vmatprep.subr.mxu0 0.0
        %6988 = vmatpush2.msra.mxu0 0.0
        %6989 = vmatprep.subr.mxu0 0.0
        %6990 = vmatpush2.msra.mxu0 0.0
        %6991 = vmatprep.subr.mxu0 0.0
        %6992 = vmatpush2.msra.mxu0 0.0
        %6993 = vmatprep.subr.mxu0 0.0
        %6994 = vmatpush2.msra.mxu0 0.0
        %6995 = vmatprep.subr.mxu0 0.0
        %6996 = vmatpush2.msra.mxu0 0.0
        %6997 = vmatprep.subr.mxu0 0.0
        %6998 = vmatpush2.msra.mxu0 0.0
        %6999 = vmatprep.subr.mxu0 0.0
        %7000 = vmatpush2.msra.mxu0 0.0
        %7001 = vmatprep.subr.mxu0 0.0
        %7002 = vmatpush2.msra.mxu0 0.0
        %7003 = vmatprep.subr.mxu0 0.0
        %7004 = vmatpush2.msra.mxu0 0.0
        %7005 = vmatprep.subr.mxu0 0.0
        %7006 = vmatpush2.msra.mxu0 0.0
        %7007 = vmatprep.subr.mxu0 0.0
        %7008 = vmatpush2.msra.mxu0 0.0
        %7009 = vmatprep.subr.mxu0 0.0
        %7010 = vmatpush2.msra.mxu0 0.0
        %7011 = vmatprep.subr.mxu0 0.0
        %7012 = vmatpush2.msra.mxu0 0.0
        %7013 = vmatprep.subr.mxu0 0.0
        %7014 = vmatpush2.msra.mxu0 0.0
        %7015 = vmatprep.mubr.f32.mxu0 0.0
        %7016 = vmatmul.mubr.f32.gmra.mxu0 %v6638
        %v7017 = vpop.f32.mrf.mxu0
        %v7018 = vadd.f32 0.0, %v7017
        %v7019 = vpop.f32.mrf.mxu0
        %v7020 = vadd.f32 0.0, %v7019
        %7021 = vmatprep.mubr.f32.mxu0 0.0
        %7022 = vmatmul.mubr.f32.gmra.mxu0 %v6641
        %v7023 = vpop.f32.mrf.mxu0
        %v7024 = vadd.f32 0.0, %v7023
        %v7025 = vpop.f32.mrf.mxu0
        %v7026 = vadd.f32 0.0, %v7025
        %7027 = vdwg.mxu0
        %7028 = vmatprep.subr.mxu0 0.0
        %7029 = vmatpush1.msra.mxu0 0.0
        %7030 = vmatprep.subr.mxu0 0.0
        %7031 = vmatpush1.msra.mxu0 0.0
        %7032 = vmatprep.subr.mxu0 0.0
        %7033 = vmatpush1.msra.mxu0 0.0
        %7034 = vmatprep.subr.mxu0 0.0
        %7035 = vmatpush1.msra.mxu0 0.0
        %7036 = vmatprep.subr.mxu0 0.0
        %7037 = vmatpush1.msra.mxu0 0.0
        %7038 = vmatprep.subr.mxu0 0.0
        %7039 = vmatpush1.msra.mxu0 0.0
        %7040 = vmatprep.subr.mxu0 0.0
        %7041 = vmatpush1.msra.mxu0 0.0
        %7042 = vmatprep.subr.mxu0 0.0
        %7043 = vmatpush1.msra.mxu0 0.0
        %7044 = vmatprep.subr.mxu0 0.0
        %7045 = vmatpush1.msra.mxu0 0.0
        %7046 = vmatprep.subr.mxu0 0.0
        %7047 = vmatpush1.msra.mxu0 0.0
        %7048 = vmatprep.subr.mxu0 0.0
        %7049 = vmatpush1.msra.mxu0 0.0
        %7050 = vmatprep.subr.mxu0 0.0
        %7051 = vmatpush1.msra.mxu0 0.0
        %7052 = vmatprep.subr.mxu0 0.0
        %7053 = vmatpush1.msra.mxu0 0.0
        %7054 = vmatprep.subr.mxu0 0.0
        %7055 = vmatpush1.msra.mxu0 0.0
        %7056 = vmatprep.subr.mxu0 0.0
        %7057 = vmatpush1.msra.mxu0 0.0
        %7058 = vmatprep.subr.mxu0 %v6630
        %7059 = vmatpush1.msra.mxu0 %v6629
        %7060 = vmatprep.subr.mxu0 0.0
        %7061 = vmatpush2.msra.mxu0 0.0
        %7062 = vmatprep.subr.mxu0 0.0
        %7063 = vmatpush2.msra.mxu0 0.0
        %7064 = vmatprep.subr.mxu0 0.0
        %7065 = vmatpush2.msra.mxu0 0.0
        %7066 = vmatprep.subr.mxu0 0.0
        %7067 = vmatpush2.msra.mxu0 0.0
        %7068 = vmatprep.subr.mxu0 0.0
        %7069 = vmatpush2.msra.mxu0 0.0
        %7070 = vmatprep.subr.mxu0 0.0
        %7071 = vmatpush2.msra.mxu0 0.0
        %7072 = vmatprep.subr.mxu0 0.0
        %7073 = vmatpush2.msra.mxu0 0.0
        %7074 = vmatprep.subr.mxu0 0.0
        %7075 = vmatpush2.msra.mxu0 0.0
        %7076 = vmatprep.subr.mxu0 0.0
        %7077 = vmatpush2.msra.mxu0 0.0
        %7078 = vmatprep.subr.mxu0 0.0
        %7079 = vmatpush2.msra.mxu0 0.0
        %7080 = vmatprep.subr.mxu0 0.0
        %7081 = vmatpush2.msra.mxu0 0.0
        %7082 = vmatprep.subr.mxu0 0.0
        %7083 = vmatpush2.msra.mxu0 0.0
        %7084 = vmatprep.subr.mxu0 0.0
        %7085 = vmatpush2.msra.mxu0 0.0
        %7086 = vmatprep.subr.mxu0 0.0
        %7087 = vmatpush2.msra.mxu0 0.0
        %7088 = vmatprep.subr.mxu0 0.0
        %7089 = vmatpush2.msra.mxu0 0.0
        %7090 = vmatprep.subr.mxu0 0.0
        %7091 = vmatpush2.msra.mxu0 0.0
        %7092 = vmatprep.mubr.f32.mxu0 0.0
        %7093 = vmatmul.mubr.f32.gmra.mxu0 %v6638
        %v7094 = vpop.f32.mrf.mxu0
        %v7095 = vadd.f32 0.0, %v7094
        %v7096 = vpop.f32.mrf.mxu0
        %v7097 = vadd.f32 0.0, %v7096
        %7098 = vmatprep.mubr.f32.mxu0 0.0
        %7099 = vmatmul.mubr.f32.gmra.mxu0 %v6641
        %v7100 = vpop.f32.mrf.mxu0
        %v7101 = vadd.f32 0.0, %v7100
        %v7102 = vpop.f32.mrf.mxu0
        %v7103 = vadd.f32 0.0, %v7102
        %7104 = vdwg.mxu0
        %7105 = vmatprep.subr.mxu0 0.0
        %7106 = vmatpush1.msra.mxu0 0.0
        %7107 = vmatprep.subr.mxu0 0.0
        %7108 = vmatpush1.msra.mxu0 0.0
        %7109 = vmatprep.subr.mxu0 0.0
        %7110 = vmatpush1.msra.mxu0 0.0
        %7111 = vmatprep.subr.mxu0 0.0
        %7112 = vmatpush1.msra.mxu0 0.0
        %7113 = vmatprep.subr.mxu0 0.0
        %7114 = vmatpush1.msra.mxu0 0.0
        %7115 = vmatprep.subr.mxu0 0.0
        %7116 = vmatpush1.msra.mxu0 0.0
        %7117 = vmatprep.subr.mxu0 0.0
        %7118 = vmatpush1.msra.mxu0 0.0
        %7119 = vmatprep.subr.mxu0 0.0
        %7120 = vmatpush1.msra.mxu0 0.0
        %7121 = vmatprep.subr.mxu0 0.0
        %7122 = vmatpush1.msra.mxu0 0.0
        %7123 = vmatprep.subr.mxu0 0.0
        %7124 = vmatpush1.msra.mxu0 0.0
        %7125 = vmatprep.subr.mxu0 0.0
        %7126 = vmatpush1.msra.mxu0 0.0
        %7127 = vmatprep.subr.mxu0 0.0
        %7128 = vmatpush1.msra.mxu0 0.0
        %7129 = vmatprep.subr.mxu0 0.0
        %7130 = vmatpush1.msra.mxu0 0.0
        %7131 = vmatprep.subr.mxu0 0.0
        %7132 = vmatpush1.msra.mxu0 0.0
        %7133 = vmatprep.subr.mxu0 0.0
        %7134 = vmatpush1.msra.mxu0 0.0
        %7135 = vmatprep.subr.mxu0 %v6632
        %7136 = vmatpush1.msra.mxu0 %v6631
        %7137 = vmatprep.subr.mxu0 0.0
        %7138 = vmatpush2.msra.mxu0 0.0
        %7139 = vmatprep.subr.mxu0 0.0
        %7140 = vmatpush2.msra.mxu0 0.0
        %7141 = vmatprep.subr.mxu0 0.0
        %7142 = vmatpush2.msra.mxu0 0.0
        %7143 = vmatprep.subr.mxu0 0.0
        %7144 = vmatpush2.msra.mxu0 0.0
        %7145 = vmatprep.subr.mxu0 0.0
        %7146 = vmatpush2.msra.mxu0 0.0
        %7147 = vmatprep.subr.mxu0 0.0
        %7148 = vmatpush2.msra.mxu0 0.0
        %7149 = vmatprep.subr.mxu0 0.0
        %7150 = vmatpush2.msra.mxu0 0.0
        %7151 = vmatprep.subr.mxu0 0.0
        %7152 = vmatpush2.msra.mxu0 0.0
        %7153 = vmatprep.subr.mxu0 0.0
        %7154 = vmatpush2.msra.mxu0 0.0
        %7155 = vmatprep.subr.mxu0 0.0
        %7156 = vmatpush2.msra.mxu0 0.0
        %7157 = vmatprep.subr.mxu0 0.0
        %7158 = vmatpush2.msra.mxu0 0.0
        %7159 = vmatprep.subr.mxu0 0.0
        %7160 = vmatpush2.msra.mxu0 0.0
        %7161 = vmatprep.subr.mxu0 0.0
        %7162 = vmatpush2.msra.mxu0 0.0
        %7163 = vmatprep.subr.mxu0 0.0
        %7164 = vmatpush2.msra.mxu0 0.0
        %7165 = vmatprep.subr.mxu0 0.0
        %7166 = vmatpush2.msra.mxu0 0.0
        %7167 = vmatprep.subr.mxu0 0.0
        %7168 = vmatpush2.msra.mxu0 0.0
        %7169 = vmatprep.mubr.f32.mxu0 0.0
        %7170 = vmatmul.mubr.f32.gmra.mxu0 %v6638
        %v7171 = vpop.f32.mrf.mxu0
        %v7172 = vadd.f32 0.0, %v7171
        %v7173 = vpop.f32.mrf.mxu0
        %v7174 = vadd.f32 0.0, %v7173
        %7175 = vmatprep.mubr.f32.mxu0 0.0
        %7176 = vmatmul.mubr.f32.gmra.mxu0 %v6641
        %v7177 = vpop.f32.mrf.mxu0
        %v7178 = vadd.f32 0.0, %v7177
        %v7179 = vpop.f32.mrf.mxu0
        %v7180 = vadd.f32 0.0, %v7179
        %7181 = vdwg.mxu0
        %7182 = vmatprep.subr.mxu0 0.0
        %7183 = vmatpush1.msra.mxu0 0.0
        %7184 = vmatprep.subr.mxu0 0.0
        %7185 = vmatpush1.msra.mxu0 0.0
        %7186 = vmatprep.subr.mxu0 0.0
        %7187 = vmatpush1.msra.mxu0 0.0
        %7188 = vmatprep.subr.mxu0 0.0
        %7189 = vmatpush1.msra.mxu0 0.0
        %7190 = vmatprep.subr.mxu0 0.0
        %7191 = vmatpush1.msra.mxu0 0.0
        %7192 = vmatprep.subr.mxu0 0.0
        %7193 = vmatpush1.msra.mxu0 0.0
        %7194 = vmatprep.subr.mxu0 0.0
        %7195 = vmatpush1.msra.mxu0 0.0
        %7196 = vmatprep.subr.mxu0 0.0
        %7197 = vmatpush1.msra.mxu0 0.0
        %7198 = vmatprep.subr.mxu0 0.0
        %7199 = vmatpush1.msra.mxu0 0.0
        %7200 = vmatprep.subr.mxu0 0.0
        %7201 = vmatpush1.msra.mxu0 0.0
        %7202 = vmatprep.subr.mxu0 0.0
        %7203 = vmatpush1.msra.mxu0 0.0
        %7204 = vmatprep.subr.mxu0 0.0
        %7205 = vmatpush1.msra.mxu0 0.0
        %7206 = vmatprep.subr.mxu0 0.0
        %7207 = vmatpush1.msra.mxu0 0.0
        %7208 = vmatprep.subr.mxu0 0.0
        %7209 = vmatpush1.msra.mxu0 0.0
        %7210 = vmatprep.subr.mxu0 0.0
        %7211 = vmatpush1.msra.mxu0 0.0
        %7212 = vmatprep.subr.mxu0 %v6634
        %7213 = vmatpush1.msra.mxu0 %v6633
        %7214 = vmatprep.subr.mxu0 0.0
        %7215 = vmatpush2.msra.mxu0 0.0
        %7216 = vmatprep.subr.mxu0 0.0
        %7217 = vmatpush2.msra.mxu0 0.0
        %7218 = vmatprep.subr.mxu0 0.0
        %7219 = vmatpush2.msra.mxu0 0.0
        %7220 = vmatprep.subr.mxu0 0.0
        %7221 = vmatpush2.msra.mxu0 0.0
        %7222 = vmatprep.subr.mxu0 0.0
        %7223 = vmatpush2.msra.mxu0 0.0
        %7224 = vmatprep.subr.mxu0 0.0
        %7225 = vmatpush2.msra.mxu0 0.0
        %7226 = vmatprep.subr.mxu0 0.0
        %7227 = vmatpush2.msra.mxu0 0.0
        %7228 = vmatprep.subr.mxu0 0.0
        %7229 = vmatpush2.msra.mxu0 0.0
        %7230 = vmatprep.subr.mxu0 0.0
        %7231 = vmatpush2.msra.mxu0 0.0
        %7232 = vmatprep.subr.mxu0 0.0
        %7233 = vmatpush2.msra.mxu0 0.0
        %7234 = vmatprep.subr.mxu0 0.0
        %7235 = vmatpush2.msra.mxu0 0.0
        %7236 = vmatprep.subr.mxu0 0.0
        %7237 = vmatpush2.msra.mxu0 0.0
        %7238 = vmatprep.subr.mxu0 0.0
        %7239 = vmatpush2.msra.mxu0 0.0
        %7240 = vmatprep.subr.mxu0 0.0
        %7241 = vmatpush2.msra.mxu0 0.0
        %7242 = vmatprep.subr.mxu0 0.0
        %7243 = vmatpush2.msra.mxu0 0.0
        %7244 = vmatprep.subr.mxu0 0.0
        %7245 = vmatpush2.msra.mxu0 0.0
        %7246 = vmatprep.mubr.f32.mxu0 0.0
        %7247 = vmatmul.mubr.f32.gmra.mxu0 %v6638
        %v7248 = vpop.f32.mrf.mxu0
        %v7249 = vadd.f32 0.0, %v7248
        %v7250 = vpop.f32.mrf.mxu0
        %v7251 = vadd.f32 0.0, %v7250
        %7252 = vmatprep.mubr.f32.mxu0 0.0
        %7253 = vmatmul.mubr.f32.gmra.mxu0 %v6641
        %v7254 = vpop.f32.mrf.mxu0
        %v7255 = vadd.f32 0.0, %v7254
        %v7256 = vpop.f32.mrf.mxu0
        %v7257 = vadd.f32 0.0, %v7256
        %7258 = vdwg.mxu0
        %v7259 = vld [vmem:[%s6] sm:$0xf]
        %7260 = vrot.lane.b32.xlu0 %v6710, 127
        %v7261 = vpop.permute.xlu0 %7260
        %7262 = vrot.lane.b32.xlu0 %v6712, 127
        %v7263 = vpop.permute.xlu0 %7262
        %7264 = vrot.lane.b32.xlu0 %v6787, 127
        %v7265 = vpop.permute.xlu0 %7264
        %7266 = vrot.lane.b32.xlu0 %v6789, 127
        %v7267 = vpop.permute.xlu0 %7266
        %7268 = vrot.lane.b32.xlu0 %v6864, 127
        %v7269 = vpop.permute.xlu0 %7268
        %7270 = vrot.lane.b32.xlu0 %v6866, 127
        %v7271 = vpop.permute.xlu0 %7270
        %7272 = vrot.lane.b32.xlu0 %v6941, 127
        %v7273 = vpop.permute.xlu0 %7272
        %7274 = vrot.lane.b32.xlu0 %v6943, 127
        %v7275 = vpop.permute.xlu0 %7274
        %7276 = vrot.lane.b32.xlu0 %v7018, 127
        %v7277 = vpop.permute.xlu0 %7276
        %7278 = vrot.lane.b32.xlu0 %v7020, 127
        %v7279 = vpop.permute.xlu0 %7278
        %7280 = vrot.lane.b32.xlu0 %v7095, 127
        %v7281 = vpop.permute.xlu0 %7280
        %7282 = vrot.lane.b32.xlu0 %v7097, 127
        %v7283 = vpop.permute.xlu0 %7282
        %7284 = vrot.lane.b32.xlu0 %v7172, 127
        %v7285 = vpop.permute.xlu0 %7284
        %7286 = vrot.lane.b32.xlu0 %v7174, 127
        %v7287 = vpop.permute.xlu0 %7286
        %7288 = vrot.lane.b32.xlu0 %v7249, 127
        %v7289 = vpop.permute.xlu0 %7288
        %7290 = vrot.lane.b32.xlu0 %v7251, 127
        %v7291 = vpop.permute.xlu0 %7290
        %v7292 = vsel %vm6548, %v7289, %v7291
        %v7293 = vsel %vm6548, %v7287, %v7289
        %v7294 = vsel %vm6548, %v7285, %v7287
        %v7295 = vsel %vm6548, %v7283, %v7285
        %v7296 = vsel %vm6548, %v7281, %v7283
        %v7297 = vsel %vm6548, %v7279, %v7281
        %v7298 = vsel %vm6548, %v7277, %v7279
        %v7299 = vsel %vm6548, %v7275, %v7277
        %v7300 = vsel %vm6548, %v7273, %v7275
        %v7301 = vsel %vm6548, %v7271, %v7273
        %v7302 = vsel %vm6548, %v7269, %v7271
        %v7303 = vsel %vm6548, %v7267, %v7269
        %v7304 = vsel %vm6548, %v7265, %v7267
        %v7305 = vsel %vm6548, %v7263, %v7265
        %v7306 = vsel %vm6548, %v7261, %v7263
        %v7307 = vsel %vm6548, %v7291, %v7261
        %v7308 = vsel %vm6500, 0.0, %v7306
        %v7309 = vsel %vm6501, 0.0, %v7305
        %v7310 = vsel %vm6502, 0.0, %v7304
        %v7311 = vsel %vm6503, 0.0, %v7303
        %v7312 = vsel %vm6504, 0.0, %v7302
        %v7313 = vsel %vm6505, 0.0, %v7301
        %v7314 = vsel %vm6506, 0.0, %v7300
        %v7315 = vsel %vm6507, 0.0, %v7299
        %v7316 = vsel %vm6508, 0.0, %v7298
        %v7317 = vsel %vm6509, 0.0, %v7297
        %v7318 = vsel %vm6510, 0.0, %v7296
        %v7319 = vsel %vm6511, 0.0, %v7295
        %v7320 = vsel %vm6512, 0.0, %v7294
        %v7321 = vsel %vm6513, 0.0, %v7293
        %v7322 = vsel %vm6514, 0.0, %v7292
        %v7323 = vsel %vm6515, 0.0, %v7307
        %7325 = vset.pattern.permute.xlu0 0
        %7326 = vperm.xlu0 %7325, %v7259
        %v7327 = vpop.permute.xlu0 %7326
        %v7329 = vrot.slane %v7327, 4
        %v7331 = vadd.f32 %v6710, %v7329
        %v7332 = vadd.f32 %v6712, %v7329
        %v7333 = vadd.f32 %v6787, %v7329
        %v7334 = vadd.f32 %v6789, %v7329
        %v7335 = vadd.f32 %v6864, %v7329
        %v7336 = vadd.f32 %v6866, %v7329
        %v7337 = vadd.f32 %v6941, %v7329
        %v7338 = vadd.f32 %v6943, %v7329
        %v7339 = vadd.f32 %v7018, %v7329
        %v7340 = vadd.f32 %v7020, %v7329
        %v7341 = vadd.f32 %v7095, %v7329
        %v7342 = vadd.f32 %v7097, %v7329
        %v7343 = vadd.f32 %v7172, %v7329
        %v7344 = vadd.f32 %v7174, %v7329
        %v7345 = vadd.f32 %v7249, %v7329
        %v7346 = vadd.f32 %v7251, %v7329
        %v7347 = vmul.f32 %v7331, 0.5
        %v7348 = vmul.f32 %v7332, 0.5
        %v7349 = vmul.f32 %v7333, 0.5
        %v7350 = vmul.f32 %v7334, 0.5
        %v7351 = vmul.f32 %v7335, 0.5
        %v7352 = vmul.f32 %v7336, 0.5
        %v7353 = vmul.f32 %v7337, 0.5
        %v7354 = vmul.f32 %v7338, 0.5
        %v7355 = vmul.f32 %v7339, 0.5
        %v7356 = vmul.f32 %v7340, 0.5
        %v7357 = vmul.f32 %v7341, 0.5
        %v7358 = vmul.f32 %v7342, 0.5
        %v7359 = vmul.f32 %v7343, 0.5
        %v7360 = vmul.f32 %v7344, 0.5
        %v7361 = vmul.f32 %v7345, 0.5
        %v7362 = vmul.f32 %v7346, 0.5
        %v7363 = vmul.f32 %v7331, 0.044715
        %v7364 = vmul.f32 %v7332, 0.044715
        %v7365 = vmul.f32 %v7333, 0.044715
        %v7366 = vmul.f32 %v7334, 0.044715
        %v7367 = vmul.f32 %v7335, 0.044715
        %v7368 = vmul.f32 %v7336, 0.044715
        %v7369 = vmul.f32 %v7337, 0.044715
        %v7370 = vmul.f32 %v7338, 0.044715
        %v7371 = vmul.f32 %v7339, 0.044715
        %v7372 = vmul.f32 %v7340, 0.044715
        %v7373 = vmul.f32 %v7341, 0.044715
        %v7374 = vmul.f32 %v7342, 0.044715
        %v7375 = vmul.f32 %v7343, 0.044715
        %v7376 = vmul.f32 %v7344, 0.044715
        %v7377 = vmul.f32 %v7345, 0.044715
        %v7378 = vmul.f32 %v7346, 0.044715
        %v7379 = vmul.f32 %v7363, %v7331
        %v7380 = vmul.f32 %v7364, %v7332
        %v7381 = vmul.f32 %v7365, %v7333
        %v7382 = vmul.f32 %v7366, %v7334
        %v7383 = vmul.f32 %v7367, %v7335
        %v7384 = vmul.f32 %v7368, %v7336
        %v7385 = vmul.f32 %v7369, %v7337
        %v7386 = vmul.f32 %v7370, %v7338
        %v7387 = vmul.f32 %v7371, %v7339
        %v7388 = vmul.f32 %v7372, %v7340
        %v7389 = vmul.f32 %v7373, %v7341
        %v7390 = vmul.f32 %v7374, %v7342
        %v7391 = vmul.f32 %v7375, %v7343
        %v7392 = vmul.f32 %v7376, %v7344
        %v7393 = vmul.f32 %v7377, %v7345
        %v7394 = vmul.f32 %v7378, %v7346
        %v7395 = vmul.f32 %v7379, %v7331
        %v7396 = vmul.f32 %v7380, %v7332
        %v7397 = vmul.f32 %v7381, %v7333
        %v7398 = vmul.f32 %v7382, %v7334
        %v7399 = vmul.f32 %v7383, %v7335
        %v7400 = vmul.f32 %v7384, %v7336
        %v7401 = vmul.f32 %v7385, %v7337
        %v7402 = vmul.f32 %v7386, %v7338
        %v7403 = vmul.f32 %v7387, %v7339
        %v7404 = vmul.f32 %v7388, %v7340
        %v7405 = vmul.f32 %v7389, %v7341
        %v7406 = vmul.f32 %v7390, %v7342
        %v7407 = vmul.f32 %v7391, %v7343
        %v7408 = vmul.f32 %v7392, %v7344
        %v7409 = vmul.f32 %v7393, %v7345
        %v7410 = vmul.f32 %v7394, %v7346
        %v7411 = vadd.f32 %v7331, %v7395
        %v7412 = vadd.f32 %v7332, %v7396
        %v7413 = vadd.f32 %v7333, %v7397
        %v7414 = vadd.f32 %v7334, %v7398
        %v7415 = vadd.f32 %v7335, %v7399
        %v7416 = vadd.f32 %v7336, %v7400
        %v7417 = vadd.f32 %v7337, %v7401
        %v7418 = vadd.f32 %v7338, %v7402
        %v7419 = vadd.f32 %v7339, %v7403
        %v7420 = vadd.f32 %v7340, %v7404
        %v7421 = vadd.f32 %v7341, %v7405
        %v7422 = vadd.f32 %v7342, %v7406
        %v7423 = vadd.f32 %v7343, %v7407
        %v7424 = vadd.f32 %v7344, %v7408
        %v7425 = vadd.f32 %v7345, %v7409
        %v7426 = vadd.f32 %v7346, %v7410
        %v7427 = vmul.f32 %v7411, 0.7978846
        %v7428 = vmul.f32 %v7412, 0.7978846
        %v7429 = vmul.f32 %v7413, 0.7978846
        %v7430 = vmul.f32 %v7414, 0.7978846
        %v7431 = vmul.f32 %v7415, 0.7978846
        %v7432 = vmul.f32 %v7416, 0.7978846
        %v7433 = vmul.f32 %v7417, 0.7978846
        %v7434 = vmul.f32 %v7418, 0.7978846
        %v7435 = vmul.f32 %v7419, 0.7978846
        %v7436 = vmul.f32 %v7420, 0.7978846
        %v7437 = vmul.f32 %v7421, 0.7978846
        %v7438 = vmul.f32 %v7422, 0.7978846
        %v7439 = vmul.f32 %v7423, 0.7978846
        %v7440 = vmul.f32 %v7424, 0.7978846
        %v7441 = vmul.f32 %v7425, 0.7978846
        %v7442 = vmul.f32 %v7426, 0.7978846
        %v7443 = vtanh.pop %v7427
        %v7444 = vtanh.pop %v7428
        %v7445 = vtanh.pop %v7429
        %v7446 = vtanh.pop %v7430
        %v7447 = vtanh.pop %v7431
        %v7448 = vtanh.pop %v7432
        %v7449 = vtanh.pop %v7433
        %v7450 = vtanh.pop %v7434
        %v7451 = vtanh.pop %v7435
        %v7452 = vtanh.pop %v7436
        %v7453 = vtanh.pop %v7437
        %v7454 = vtanh.pop %v7438
        %v7455 = vtanh.pop %v7439
        %v7456 = vtanh.pop %v7440
        %v7457 = vtanh.pop %v7441
        %v7458 = vtanh.pop %v7442
        %v7459 = vadd.f32 %v7443, 1.0
        %v7460 = vadd.f32 %v7444, 1.0
        %v7461 = vadd.f32 %v7445, 1.0
        %v7462 = vadd.f32 %v7446, 1.0
        %v7463 = vadd.f32 %v7447, 1.0
        %v7464 = vadd.f32 %v7448, 1.0
        %v7465 = vadd.f32 %v7449, 1.0
        %v7466 = vadd.f32 %v7450, 1.0
        %v7467 = vadd.f32 %v7451, 1.0
        %v7468 = vadd.f32 %v7452, 1.0
        %v7469 = vadd.f32 %v7453, 1.0
        %v7470 = vadd.f32 %v7454, 1.0
        %v7471 = vadd.f32 %v7455, 1.0
        %v7472 = vadd.f32 %v7456, 1.0
        %v7473 = vadd.f32 %v7457, 1.0
        %v7474 = vadd.f32 %v7458, 1.0
        %v7475 = vmul.f32 %v7347, %v7459
        %v7476 = vmul.f32 %v7348, %v7460
        %v7477 = vmul.f32 %v7349, %v7461
        %v7478 = vmul.f32 %v7350, %v7462
        %v7479 = vmul.f32 %v7351, %v7463
        %v7480 = vmul.f32 %v7352, %v7464
        %v7481 = vmul.f32 %v7353, %v7465
        %v7482 = vmul.f32 %v7354, %v7466
        %v7483 = vmul.f32 %v7355, %v7467
        %v7484 = vmul.f32 %v7356, %v7468
        %v7485 = vmul.f32 %v7357, %v7469
        %v7486 = vmul.f32 %v7358, %v7470
        %v7487 = vmul.f32 %v7359, %v7471
        %v7488 = vmul.f32 %v7360, %v7472
        %v7489 = vmul.f32 %v7361, %v7473
        %v7490 = vmul.f32 %v7362, %v7474
        %v7491 = vadd.f32 %v6710, %v6716
        %v7492 = vadd.f32 %v6712, %v6718
        %v7493 = vadd.f32 %v6787, %v6793
        %v7494 = vadd.f32 %v6789, %v6795
        %v7495 = vadd.f32 %v6864, %v6870
        %v7496 = vadd.f32 %v6866, %v6872
        %v7497 = vadd.f32 %v6941, %v6947
        %v7498 = vadd.f32 %v6943, %v6949
        %v7499 = vadd.f32 %v7018, %v7024
        %v7500 = vadd.f32 %v7020, %v7026
        %v7501 = vadd.f32 %v7095, %v7101
        %v7502 = vadd.f32 %v7097, %v7103
        %v7503 = vadd.f32 %v7172, %v7178
        %v7504 = vadd.f32 %v7174, %v7180
        %v7505 = vadd.f32 %v7249, %v7255
        %v7506 = vadd.f32 %v7251, %v7257
        %v7507 = vadd.f32 %v7491, %v7327
        %v7508 = vadd.f32 %v7492, %v7327
        %v7509 = vadd.f32 %v7493, %v7327
        %v7510 = vadd.f32 %v7494, %v7327
        %v7511 = vadd.f32 %v7495, %v7327
        %v7512 = vadd.f32 %v7496, %v7327
        %v7513 = vadd.f32 %v7497, %v7327
        %v7514 = vadd.f32 %v7498, %v7327
        %v7515 = vadd.f32 %v7499, %v7327
        %v7516 = vadd.f32 %v7500, %v7327
        %v7517 = vadd.f32 %v7501, %v7327
        %v7518 = vadd.f32 %v7502, %v7327
        %v7519 = vadd.f32 %v7503, %v7327
        %v7520 = vadd.f32 %v7504, %v7327
        %v7521 = vadd.f32 %v7505, %v7327
        %v7522 = vadd.f32 %v7506, %v7327
        %v7523 = vmul.f32 %v7507, 0.5
        %v7524 = vmul.f32 %v7508, 0.5
        %v7525 = vmul.f32 %v7509, 0.5
        %v7526 = vmul.f32 %v7510, 0.5
        %v7527 = vmul.f32 %v7511, 0.5
        %v7528 = vmul.f32 %v7512, 0.5
        %v7529 = vmul.f32 %v7513, 0.5
        %v7530 = vmul.f32 %v7514, 0.5
        %v7531 = vmul.f32 %v7515, 0.5
        %v7532 = vmul.f32 %v7516, 0.5
        %v7533 = vmul.f32 %v7517, 0.5
        %v7534 = vmul.f32 %v7518, 0.5
        %v7535 = vmul.f32 %v7519, 0.5
        %v7536 = vmul.f32 %v7520, 0.5
        %v7537 = vmul.f32 %v7521, 0.5
        %v7538 = vmul.f32 %v7522, 0.5
        %v7539 = vmul.f32 %v7507, 0.044715
        %v7540 = vmul.f32 %v7508, 0.044715
        %v7541 = vmul.f32 %v7509, 0.044715
        %v7542 = vmul.f32 %v7510, 0.044715
        %v7543 = vmul.f32 %v7511, 0.044715
        %v7544 = vmul.f32 %v7512, 0.044715
        %v7545 = vmul.f32 %v7513, 0.044715
        %v7546 = vmul.f32 %v7514, 0.044715
        %v7547 = vmul.f32 %v7515, 0.044715
        %v7548 = vmul.f32 %v7516, 0.044715
        %v7549 = vmul.f32 %v7517, 0.044715
        %v7550 = vmul.f32 %v7518, 0.044715
        %v7551 = vmul.f32 %v7519, 0.044715
        %v7552 = vmul.f32 %v7520, 0.044715
        %v7553 = vmul.f32 %v7521, 0.044715
        %v7554 = vmul.f32 %v7522, 0.044715
        %v7555 = vmul.f32 %v7539, %v7507
        %v7556 = vmul.f32 %v7540, %v7508
        %v7557 = vmul.f32 %v7541, %v7509
        %v7558 = vmul.f32 %v7542, %v7510
        %v7559 = vmul.f32 %v7543, %v7511
        %v7560 = vmul.f32 %v7544, %v7512
        %v7561 = vmul.f32 %v7545, %v7513
        %v7562 = vmul.f32 %v7546, %v7514
        %v7563 = vmul.f32 %v7547, %v7515
        %v7564 = vmul.f32 %v7548, %v7516
        %v7565 = vmul.f32 %v7549, %v7517
        %v7566 = vmul.f32 %v7550, %v7518
        %v7567 = vmul.f32 %v7551, %v7519
        %v7568 = vmul.f32 %v7552, %v7520
        %v7569 = vmul.f32 %v7553, %v7521
        %v7570 = vmul.f32 %v7554, %v7522
        %v7571 = vmul.f32 %v7555, %v7507
        %v7572 = vmul.f32 %v7556, %v7508
        %v7573 = vmul.f32 %v7557, %v7509
        %v7574 = vmul.f32 %v7558, %v7510
        %v7575 = vmul.f32 %v7559, %v7511
        %v7576 = vmul.f32 %v7560, %v7512
        %v7577 = vmul.f32 %v7561, %v7513
        %v7578 = vmul.f32 %v7562, %v7514
        %v7579 = vmul.f32 %v7563, %v7515
        %v7580 = vmul.f32 %v7564, %v7516
        %v7581 = vmul.f32 %v7565, %v7517
        %v7582 = vmul.f32 %v7566, %v7518
        %v7583 = vmul.f32 %v7567, %v7519
        %v7584 = vmul.f32 %v7568, %v7520
        %v7585 = vmul.f32 %v7569, %v7521
        %v7586 = vmul.f32 %v7570, %v7522
        %v7587 = vadd.f32 %v7507, %v7571
        %v7588 = vadd.f32 %v7508, %v7572
        %v7589 = vadd.f32 %v7509, %v7573
        %v7590 = vadd.f32 %v7510, %v7574
        %v7591 = vadd.f32 %v7511, %v7575
        %v7592 = vadd.f32 %v7512, %v7576
        %v7593 = vadd.f32 %v7513, %v7577
        %v7594 = vadd.f32 %v7514, %v7578
        %v7595 = vadd.f32 %v7515, %v7579
        %v7596 = vadd.f32 %v7516, %v7580
        %v7597 = vadd.f32 %v7517, %v7581
        %v7598 = vadd.f32 %v7518, %v7582
        %v7599 = vadd.f32 %v7519, %v7583
        %v7600 = vadd.f32 %v7520, %v7584
        %v7601 = vadd.f32 %v7521, %v7585
        %v7602 = vadd.f32 %v7522, %v7586
        %v7603 = vmul.f32 %v7587, 0.7978846
        %v7604 = vmul.f32 %v7588, 0.7978846
        %v7605 = vmul.f32 %v7589, 0.7978846
        %v7606 = vmul.f32 %v7590, 0.7978846
        %v7607 = vmul.f32 %v7591, 0.7978846
        %v7608 = vmul.f32 %v7592, 0.7978846
        %v7609 = vmul.f32 %v7593, 0.7978846
        %v7610 = vmul.f32 %v7594, 0.7978846
        %v7611 = vmul.f32 %v7595, 0.7978846
        %v7612 = vmul.f32 %v7596, 0.7978846
        %v7613 = vmul.f32 %v7597, 0.7978846
        %v7614 = vmul.f32 %v7598, 0.7978846
        %v7615 = vmul.f32 %v7599, 0.7978846
        %v7616 = vmul.f32 %v7600, 0.7978846
        %v7617 = vmul.f32 %v7601, 0.7978846
        %v7618 = vmul.f32 %v7602, 0.7978846
        %v7619 = vtanh.pop %v7603
        %v7620 = vtanh.pop %v7604
        %v7621 = vtanh.pop %v7605
        %v7622 = vtanh.pop %v7606
        %v7623 = vtanh.pop %v7607
        %v7624 = vtanh.pop %v7608
        %v7625 = vtanh.pop %v7609
        %v7626 = vtanh.pop %v7610
        %v7627 = vtanh.pop %v7611
        %v7628 = vtanh.pop %v7612
        %v7629 = vtanh.pop %v7613
        %v7630 = vtanh.pop %v7614
        %v7631 = vtanh.pop %v7615
        %v7632 = vtanh.pop %v7616
        %v7633 = vtanh.pop %v7617
        %v7634 = vtanh.pop %v7618
        %v7635 = vadd.f32 %v7619, 1.0
        %v7636 = vadd.f32 %v7620, 1.0
        %v7637 = vadd.f32 %v7621, 1.0
        %v7638 = vadd.f32 %v7622, 1.0
        %v7639 = vadd.f32 %v7623, 1.0
        %v7640 = vadd.f32 %v7624, 1.0
        %v7641 = vadd.f32 %v7625, 1.0
        %v7642 = vadd.f32 %v7626, 1.0
        %v7643 = vadd.f32 %v7627, 1.0
        %v7644 = vadd.f32 %v7628, 1.0
        %v7645 = vadd.f32 %v7629, 1.0
        %v7646 = vadd.f32 %v7630, 1.0
        %v7647 = vadd.f32 %v7631, 1.0
        %v7648 = vadd.f32 %v7632, 1.0
        %v7649 = vadd.f32 %v7633, 1.0
        %v7650 = vadd.f32 %v7634, 1.0
        %v7651 = vmul.f32 %v7523, %v7635
        %v7652 = vmul.f32 %v7524, %v7636
        %v7653 = vmul.f32 %v7525, %v7637
        %v7654 = vmul.f32 %v7526, %v7638
        %v7655 = vmul.f32 %v7527, %v7639
        %v7656 = vmul.f32 %v7528, %v7640
        %v7657 = vmul.f32 %v7529, %v7641
        %v7658 = vmul.f32 %v7530, %v7642
        %v7659 = vmul.f32 %v7531, %v7643
        %v7660 = vmul.f32 %v7532, %v7644
        %v7661 = vmul.f32 %v7533, %v7645
        %v7662 = vmul.f32 %v7534, %v7646
        %v7663 = vmul.f32 %v7535, %v7647
        %v7664 = vmul.f32 %v7536, %v7648
        %v7665 = vmul.f32 %v7537, %v7649
        %v7666 = vmul.f32 %v7538, %v7650
        %v7667 = vadd.f32 %v7308, %v6716
        %v7668 = vadd.f32 %v7309, %v6718
        %v7669 = vadd.f32 %v7310, %v6793
        %v7670 = vadd.f32 %v7311, %v6795
        %v7671 = vadd.f32 %v7312, %v6870
        %v7672 = vadd.f32 %v7313, %v6872
        %v7673 = vadd.f32 %v7314, %v6947
        %v7674 = vadd.f32 %v7315, %v6949
        %v7675 = vadd.f32 %v7316, %v7024
        %v7676 = vadd.f32 %v7317, %v7026
        %v7677 = vadd.f32 %v7318, %v7101
        %v7678 = vadd.f32 %v7319, %v7103
        %v7679 = vadd.f32 %v7320, %v7178
        %v7680 = vadd.f32 %v7321, %v7180
        %v7681 = vadd.f32 %v7322, %v7255
        %v7682 = vadd.f32 %v7323, %v7257
        %v7683 = vadd.f32 %v7667, %v7327
        %v7684 = vadd.f32 %v7668, %v7327
        %v7685 = vadd.f32 %v7669, %v7327
        %v7686 = vadd.f32 %v7670, %v7327
        %v7687 = vadd.f32 %v7671, %v7327
        %v7688 = vadd.f32 %v7672, %v7327
        %v7689 = vadd.f32 %v7673, %v7327
        %v7690 = vadd.f32 %v7674, %v7327
        %v7691 = vadd.f32 %v7675, %v7327
        %v7692 = vadd.f32 %v7676, %v7327
        %v7693 = vadd.f32 %v7677, %v7327
        %v7694 = vadd.f32 %v7678, %v7327
        %v7695 = vadd.f32 %v7679, %v7327
        %v7696 = vadd.f32 %v7680, %v7327
        %v7697 = vadd.f32 %v7681, %v7327
        %v7698 = vadd.f32 %v7682, %v7327
        %v7699 = vmul.f32 %v7683, 0.5
        %v7700 = vmul.f32 %v7684, 0.5
        %v7701 = vmul.f32 %v7685, 0.5
        %v7702 = vmul.f32 %v7686, 0.5
        %v7703 = vmul.f32 %v7687, 0.5
        %v7704 = vmul.f32 %v7688, 0.5
        %v7705 = vmul.f32 %v7689, 0.5
        %v7706 = vmul.f32 %v7690, 0.5
        %v7707 = vmul.f32 %v7691, 0.5
        %v7708 = vmul.f32 %v7692, 0.5
        %v7709 = vmul.f32 %v7693, 0.5
        %v7710 = vmul.f32 %v7694, 0.5
        %v7711 = vmul.f32 %v7695, 0.5
        %v7712 = vmul.f32 %v7696, 0.5
        %v7713 = vmul.f32 %v7697, 0.5
        %v7714 = vmul.f32 %v7698, 0.5
        %v7715 = vmul.f32 %v7683, 0.044715
        %v7716 = vmul.f32 %v7684, 0.044715
        %v7717 = vmul.f32 %v7685, 0.044715
        %v7718 = vmul.f32 %v7686, 0.044715
        %v7719 = vmul.f32 %v7687, 0.044715
        %v7720 = vmul.f32 %v7688, 0.044715
        %v7721 = vmul.f32 %v7689, 0.044715
        %v7722 = vmul.f32 %v7690, 0.044715
        %v7723 = vmul.f32 %v7691, 0.044715
        %v7724 = vmul.f32 %v7692, 0.044715
        %v7725 = vmul.f32 %v7693, 0.044715
        %v7726 = vmul.f32 %v7694, 0.044715
        %v7727 = vmul.f32 %v7695, 0.044715
        %v7728 = vmul.f32 %v7696, 0.044715
        %v7729 = vmul.f32 %v7697, 0.044715
        %v7730 = vmul.f32 %v7698, 0.044715
        %v7731 = vmul.f32 %v7715, %v7683
        %v7732 = vmul.f32 %v7716, %v7684
        %v7733 = vmul.f32 %v7717, %v7685
        %v7734 = vmul.f32 %v7718, %v7686
        %v7735 = vmul.f32 %v7719, %v7687
        %v7736 = vmul.f32 %v7720, %v7688
        %v7737 = vmul.f32 %v7721, %v7689
        %v7738 = vmul.f32 %v7722, %v7690
        %v7739 = vmul.f32 %v7723, %v7691
        %v7740 = vmul.f32 %v7724, %v7692
        %v7741 = vmul.f32 %v7725, %v7693
        %v7742 = vmul.f32 %v7726, %v7694
        %v7743 = vmul.f32 %v7727, %v7695
        %v7744 = vmul.f32 %v7728, %v7696
        %v7745 = vmul.f32 %v7729, %v7697
        %v7746 = vmul.f32 %v7730, %v7698
        %v7747 = vmul.f32 %v7731, %v7683
        %v7748 = vmul.f32 %v7732, %v7684
        %v7749 = vmul.f32 %v7733, %v7685
        %v7750 = vmul.f32 %v7734, %v7686
        %v7751 = vmul.f32 %v7735, %v7687
        %v7752 = vmul.f32 %v7736, %v7688
        %v7753 = vmul.f32 %v7737, %v7689
        %v7754 = vmul.f32 %v7738, %v7690
        %v7755 = vmul.f32 %v7739, %v7691
        %v7756 = vmul.f32 %v7740, %v7692
        %v7757 = vmul.f32 %v7741, %v7693
        %v7758 = vmul.f32 %v7742, %v7694
        %v7759 = vmul.f32 %v7743, %v7695
        %v7760 = vmul.f32 %v7744, %v7696
        %v7761 = vmul.f32 %v7745, %v7697
        %v7762 = vmul.f32 %v7746, %v7698
        %v7763 = vadd.f32 %v7683, %v7747
        %v7764 = vadd.f32 %v7684, %v7748
        %v7765 = vadd.f32 %v7685, %v7749
        %v7766 = vadd.f32 %v7686, %v7750
        %v7767 = vadd.f32 %v7687, %v7751
        %v7768 = vadd.f32 %v7688, %v7752
        %v7769 = vadd.f32 %v7689, %v7753
        %v7770 = vadd.f32 %v7690, %v7754
        %v7771 = vadd.f32 %v7691, %v7755
        %v7772 = vadd.f32 %v7692, %v7756
        %v7773 = vadd.f32 %v7693, %v7757
        %v7774 = vadd.f32 %v7694, %v7758
        %v7775 = vadd.f32 %v7695, %v7759
        %v7776 = vadd.f32 %v7696, %v7760
        %v7777 = vadd.f32 %v7697, %v7761
        %v7778 = vadd.f32 %v7698, %v7762
        %v7779 = vmul.f32 %v7763, 0.7978846
        %v7780 = vmul.f32 %v7764, 0.7978846
        %v7781 = vmul.f32 %v7765, 0.7978846
        %v7782 = vmul.f32 %v7766, 0.7978846
        %v7783 = vmul.f32 %v7767, 0.7978846
        %v7784 = vmul.f32 %v7768, 0.7978846
        %v7785 = vmul.f32 %v7769, 0.7978846
        %v7786 = vmul.f32 %v7770, 0.7978846
        %v7787 = vmul.f32 %v7771, 0.7978846
        %v7788 = vmul.f32 %v7772, 0.7978846
        %v7789 = vmul.f32 %v7773, 0.7978846
        %v7790 = vmul.f32 %v7774, 0.7978846
        %v7791 = vmul.f32 %v7775, 0.7978846
        %v7792 = vmul.f32 %v7776, 0.7978846
        %v7793 = vmul.f32 %v7777, 0.7978846
        %v7794 = vmul.f32 %v7778, 0.7978846
        %v7795 = vtanh.pop %v7779
        %v7796 = vtanh.pop %v7780
        %v7797 = vtanh.pop %v7781
        %v7798 = vtanh.pop %v7782
        %v7799 = vtanh.pop %v7783
        %v7800 = vtanh.pop %v7784
        %v7801 = vtanh.pop %v7785
        %v7802 = vtanh.pop %v7786
        %v7803 = vtanh.pop %v7787
        %v7804 = vtanh.pop %v7788
        %v7805 = vtanh.pop %v7789
        %v7806 = vtanh.pop %v7790
        %v7807 = vtanh.pop %v7791
        %v7808 = vtanh.pop %v7792
        %v7809 = vtanh.pop %v7793
        %v7810 = vtanh.pop %v7794
        %v7811 = vadd.f32 %v7795, 1.0
        %v7812 = vadd.f32 %v7796, 1.0
        %v7813 = vadd.f32 %v7797, 1.0
        %v7814 = vadd.f32 %v7798, 1.0
        %v7815 = vadd.f32 %v7799, 1.0
        %v7816 = vadd.f32 %v7800, 1.0
        %v7817 = vadd.f32 %v7801, 1.0
        %v7818 = vadd.f32 %v7802, 1.0
        %v7819 = vadd.f32 %v7803, 1.0
        %v7820 = vadd.f32 %v7804, 1.0
        %v7821 = vadd.f32 %v7805, 1.0
        %v7822 = vadd.f32 %v7806, 1.0
        %v7823 = vadd.f32 %v7807, 1.0
        %v7824 = vadd.f32 %v7808, 1.0
        %v7825 = vadd.f32 %v7809, 1.0
        %v7826 = vadd.f32 %v7810, 1.0
        %v7827 = vmul.f32 %v7699, %v7811
        %v7828 = vmul.f32 %v7700, %v7812
        %v7829 = vmul.f32 %v7701, %v7813
        %v7830 = vmul.f32 %v7702, %v7814
        %v7831 = vmul.f32 %v7703, %v7815
        %v7832 = vmul.f32 %v7704, %v7816
        %v7833 = vmul.f32 %v7705, %v7817
        %v7834 = vmul.f32 %v7706, %v7818
        %v7835 = vmul.f32 %v7707, %v7819
        %v7836 = vmul.f32 %v7708, %v7820
        %v7837 = vmul.f32 %v7709, %v7821
        %v7838 = vmul.f32 %v7710, %v7822
        %v7839 = vmul.f32 %v7711, %v7823
        %v7840 = vmul.f32 %v7712, %v7824
        %v7841 = vmul.f32 %v7713, %v7825
        %v7842 = vmul.f32 %v7714, %v7826
        %v7859 = vrot.slane %v7475, 4
        %v7860 = vrot.slane %v7476, 4
        %v7861 = vrot.slane %v7477, 4
        %v7862 = vrot.slane %v7478, 4
        %v7863 = vrot.slane %v7479, 4
        %v7864 = vrot.slane %v7480, 4
        %v7865 = vrot.slane %v7481, 4
        %v7866 = vrot.slane %v7482, 4
        %v7867 = vrot.slane %v7483, 4
        %v7868 = vrot.slane %v7484, 4
        %v7869 = vrot.slane %v7485, 4
        %v7870 = vrot.slane %v7486, 4
        %v7871 = vrot.slane %v7487, 4
        %v7872 = vrot.slane %v7488, 4
        %v7873 = vrot.slane %v7489, 4
        %v7874 = vrot.slane %v7490, 4
        %7891 = vrot.lane.b32.xlu0 %v7859, 127
        %v7892 = vpop.permute.xlu0 %7891
        %7893 = vrot.lane.b32.xlu0 %v7860, 127
        %v7894 = vpop.permute.xlu0 %7893
        %7895 = vrot.lane.b32.xlu0 %v7861, 127
        %v7896 = vpop.permute.xlu0 %7895
        %7897 = vrot.lane.b32.xlu0 %v7862, 127
        %v7898 = vpop.permute.xlu0 %7897
        %7899 = vrot.lane.b32.xlu0 %v7863, 127
        %v7900 = vpop.permute.xlu0 %7899
        %7901 = vrot.lane.b32.xlu0 %v7864, 127
        %v7902 = vpop.permute.xlu0 %7901
        %7903 = vrot.lane.b32.xlu0 %v7865, 127
        %v7904 = vpop.permute.xlu0 %7903
        %7905 = vrot.lane.b32.xlu0 %v7866, 127
        %v7906 = vpop.permute.xlu0 %7905
        %7907 = vrot.lane.b32.xlu0 %v7867, 127
        %v7908 = vpop.permute.xlu0 %7907
        %7909 = vrot.lane.b32.xlu0 %v7868, 127
        %v7910 = vpop.permute.xlu0 %7909
        %7911 = vrot.lane.b32.xlu0 %v7869, 127
        %v7912 = vpop.permute.xlu0 %7911
        %7913 = vrot.lane.b32.xlu0 %v7870, 127
        %v7914 = vpop.permute.xlu0 %7913
        %7915 = vrot.lane.b32.xlu0 %v7871, 127
        %v7916 = vpop.permute.xlu0 %7915
        %7917 = vrot.lane.b32.xlu0 %v7872, 127
        %v7918 = vpop.permute.xlu0 %7917
        %7919 = vrot.lane.b32.xlu0 %v7873, 127
        %v7920 = vpop.permute.xlu0 %7919
        %7921 = vrot.lane.b32.xlu0 %v7874, 127
        %v7922 = vpop.permute.xlu0 %7921
        %v7923 = vsel %vm6548, %v7920, %v7922
        %v7924 = vsel %vm6548, %v7918, %v7920
        %v7925 = vsel %vm6548, %v7916, %v7918
        %v7926 = vsel %vm6548, %v7914, %v7916
        %v7927 = vsel %vm6548, %v7912, %v7914
        %v7928 = vsel %vm6548, %v7910, %v7912
        %v7929 = vsel %vm6548, %v7908, %v7910
        %v7930 = vsel %vm6548, %v7906, %v7908
        %v7931 = vsel %vm6548, %v7904, %v7906
        %v7932 = vsel %vm6548, %v7902, %v7904
        %v7933 = vsel %vm6548, %v7900, %v7902
        %v7934 = vsel %vm6548, %v7898, %v7900
        %v7935 = vsel %vm6548, %v7896, %v7898
        %v7936 = vsel %vm6548, %v7894, %v7896
        %v7937 = vsel %vm6548, %v7892, %v7894
        %v7938 = vsel %vm6548, %v7922, %v7892
        %v7939 = vsel %vm6500, 0.0, %v7937
        %v7940 = vsel %vm6501, 0.0, %v7936
        %v7941 = vsel %vm6502, 0.0, %v7935
        %v7942 = vsel %vm6503, 0.0, %v7934
        %v7943 = vsel %vm6504, 0.0, %v7933
        %v7944 = vsel %vm6505, 0.0, %v7932
        %v7945 = vsel %vm6506, 0.0, %v7931
        %v7946 = vsel %vm6507, 0.0, %v7930
        %v7947 = vsel %vm6508, 0.0, %v7929
        %v7948 = vsel %vm6509, 0.0, %v7928
        %v7949 = vsel %vm6510, 0.0, %v7927
        %v7950 = vsel %vm6511, 0.0, %v7926
        %v7951 = vsel %vm6512, 0.0, %v7925
        %v7952 = vsel %vm6513, 0.0, %v7924
        %v7953 = vsel %vm6514, 0.0, %v7923
        %v7954 = vsel %vm6515, 0.0, %v7938
        %7955 = vst [vmem:[#allocation3] sm:$0xf] %v7859
        %7956 = vst [vmem:[#allocation3 + $0x8] sm:$0xf] %v7860
        %7957 = vst [vmem:[#allocation3 + $0x10] sm:$0xf] %v7861
        %7958 = vst [vmem:[#allocation3 + $0x18] sm:$0xf] %v7862
        %7959 = vst [vmem:[#allocation3 + $0x20] sm:$0xf] %v7863
        %7960 = vst [vmem:[#allocation3 + $0x28] sm:$0xf] %v7864
        %7961 = vst [vmem:[#allocation3 + $0x30] sm:$0xf] %v7865
        %7962 = vst [vmem:[#allocation3 + $0x38] sm:$0xf] %v7866
        %7963 = vst [vmem:[#allocation3 + $0x40] sm:$0xf] %v7867
        %7964 = vst [vmem:[#allocation3 + $0x48] sm:$0xf] %v7868
        %7965 = vst [vmem:[#allocation3 + $0x50] sm:$0xf] %v7869
        %7966 = vst [vmem:[#allocation3 + $0x58] sm:$0xf] %v7870
        %7967 = vst [vmem:[#allocation3 + $0x60] sm:$0xf] %v7871
        %7968 = vst [vmem:[#allocation3 + $0x68] sm:$0xf] %v7872
        %7969 = vst [vmem:[#allocation3 + $0x70] sm:$0xf] %v7873
        %7970 = vst [vmem:[#allocation3 + $0x78] sm:$0xf] %v7874
        %v7987 = vrot.slane %v7651, 4
        %v7988 = vrot.slane %v7652, 4
        %v7989 = vrot.slane %v7653, 4
        %v7990 = vrot.slane %v7654, 4
        %v7991 = vrot.slane %v7655, 4
        %v7992 = vrot.slane %v7656, 4
        %v7993 = vrot.slane %v7657, 4
        %v7994 = vrot.slane %v7658, 4
        %v7995 = vrot.slane %v7659, 4
        %v7996 = vrot.slane %v7660, 4
        %v7997 = vrot.slane %v7661, 4
        %v7998 = vrot.slane %v7662, 4
        %v7999 = vrot.slane %v7663, 4
        %v8000 = vrot.slane %v7664, 4
        %v8001 = vrot.slane %v7665, 4
        %v8002 = vrot.slane %v7666, 4
        %8019 = vst [vmem:[#allocation3] sm:$0xf0] %v7987
        %8020 = vst [vmem:[#allocation3 + $0x8] sm:$0xf0] %v7988
        %8021 = vst [vmem:[#allocation3 + $0x10] sm:$0xf0] %v7989
        %8022 = vst [vmem:[#allocation3 + $0x18] sm:$0xf0] %v7990
        %8023 = vst [vmem:[#allocation3 + $0x20] sm:$0xf0] %v7991
        %8024 = vst [vmem:[#allocation3 + $0x28] sm:$0xf0] %v7992
        %8025 = vst [vmem:[#allocation3 + $0x30] sm:$0xf0] %v7993
        %8026 = vst [vmem:[#allocation3 + $0x38] sm:$0xf0] %v7994
        %8027 = vst [vmem:[#allocation3 + $0x40] sm:$0xf0] %v7995
        %8028 = vst [vmem:[#allocation3 + $0x48] sm:$0xf0] %v7996
        %8029 = vst [vmem:[#allocation3 + $0x50] sm:$0xf0] %v7997
        %8030 = vst [vmem:[#allocation3 + $0x58] sm:$0xf0] %v7998
        %8031 = vst [vmem:[#allocation3 + $0x60] sm:$0xf0] %v7999
        %8032 = vst [vmem:[#allocation3 + $0x68] sm:$0xf0] %v8000
        %8033 = vst [vmem:[#allocation3 + $0x70] sm:$0xf0] %v8001
        %8034 = vst [vmem:[#allocation3 + $0x78] sm:$0xf0] %v8002
        %8035 = vst [vmem:[#allocation3 + $0x80] sm:$0xf] %v7827
        %8036 = vst [vmem:[#allocation3 + $0x88] sm:$0xf] %v7828
        %8037 = vst [vmem:[#allocation3 + $0x90] sm:$0xf] %v7829
        %8038 = vst [vmem:[#allocation3 + $0x98] sm:$0xf] %v7830
        %8039 = vst [vmem:[#allocation3 + $0xa0] sm:$0xf] %v7831
        %8040 = vst [vmem:[#allocation3 + $0xa8] sm:$0xf] %v7832
        %8041 = vst [vmem:[#allocation3 + $0xb0] sm:$0xf] %v7833
        %8042 = vst [vmem:[#allocation3 + $0xb8] sm:$0xf] %v7834
        %8043 = vst [vmem:[#allocation3 + $0xc0] sm:$0xf] %v7835
        %8044 = vst [vmem:[#allocation3 + $0xc8] sm:$0xf] %v7836
        %8045 = vst [vmem:[#allocation3 + $0xd0] sm:$0xf] %v7837
        %8046 = vst [vmem:[#allocation3 + $0xd8] sm:$0xf] %v7838
        %8047 = vst [vmem:[#allocation3 + $0xe0] sm:$0xf] %v7839
        %8048 = vst [vmem:[#allocation3 + $0xe8] sm:$0xf] %v7840
        %8049 = vst [vmem:[#allocation3 + $0xf0] sm:$0xf] %v7841
        %8050 = vst [vmem:[#allocation3 + $0xf8] sm:$0xf] %v7842
        %v8067 = vrot.slane %v7939, 4
        %v8068 = vrot.slane %v7940, 4
        %v8069 = vrot.slane %v7941, 4
        %v8070 = vrot.slane %v7942, 4
        %v8071 = vrot.slane %v7943, 4
        %v8072 = vrot.slane %v7944, 4
        %v8073 = vrot.slane %v7945, 4
        %v8074 = vrot.slane %v7946, 4
        %v8075 = vrot.slane %v7947, 4
        %v8076 = vrot.slane %v7948, 4
        %v8077 = vrot.slane %v7949, 4
        %v8078 = vrot.slane %v7950, 4
        %v8079 = vrot.slane %v7951, 4
        %v8080 = vrot.slane %v7952, 4
        %v8081 = vrot.slane %v7953, 4
        %v8082 = vrot.slane %v7954, 4
        %8099 = vst [vmem:[#allocation3 + $0x80] sm:$0xf0] %v8067
        %8100 = vst [vmem:[#allocation3 + $0x88] sm:$0xf0] %v8068
        %8101 = vst [vmem:[#allocation3 + $0x90] sm:$0xf0] %v8069
        %8102 = vst [vmem:[#allocation3 + $0x98] sm:$0xf0] %v8070
        %8103 = vst [vmem:[#allocation3 + $0xa0] sm:$0xf0] %v8071
        %8104 = vst [vmem:[#allocation3 + $0xa8] sm:$0xf0] %v8072
        %8105 = vst [vmem:[#allocation3 + $0xb0] sm:$0xf0] %v8073
        %8106 = vst [vmem:[#allocation3 + $0xb8] sm:$0xf0] %v8074
        %8107 = vst [vmem:[#allocation3 + $0xc0] sm:$0xf0] %v8075
        %8108 = vst [vmem:[#allocation3 + $0xc8] sm:$0xf0] %v8076
        %8109 = vst [vmem:[#allocation3 + $0xd0] sm:$0xf0] %v8077
        %8110 = vst [vmem:[#allocation3 + $0xd8] sm:$0xf0] %v8078
        %8111 = vst [vmem:[#allocation3 + $0xe0] sm:$0xf0] %v8079
        %8112 = vst [vmem:[#allocation3 + $0xe8] sm:$0xf0] %v8080
        %8113 = vst [vmem:[#allocation3 + $0xf0] sm:$0xf0] %v8081
        %8114 = vst [vmem:[#allocation3 + $0xf8] sm:$0xf0] %v8082
        %v8115 = vld [vmem:[#allocation10] sm:$0xff]
        %v8116 = vld [vmem:[#allocation10 + $0x8] sm:$0xff]
        %v8117 = vld [vmem:[#allocation3] sm:$0xff]
        %v8118 = vld [vmem:[#allocation3 + $0x8] sm:$0xff]
        %v8119 = vld [vmem:[#allocation3 + $0x10] sm:$0xff]
        %v8120 = vld [vmem:[#allocation3 + $0x18] sm:$0xff]
        %v8121 = vld [vmem:[#allocation3 + $0x20] sm:$0xff]
        %v8122 = vld [vmem:[#allocation3 + $0x28] sm:$0xff]
        %v8123 = vld [vmem:[#allocation3 + $0x30] sm:$0xff]
        %v8124 = vld [vmem:[#allocation3 + $0x38] sm:$0xff]
        %v8125 = vld [vmem:[#allocation3 + $0x40] sm:$0xff]
        %v8126 = vld [vmem:[#allocation3 + $0x48] sm:$0xff]
        %v8127 = vld [vmem:[#allocation3 + $0x50] sm:$0xff]
        %v8128 = vld [vmem:[#allocation3 + $0x58] sm:$0xff]
        %v8129 = vld [vmem:[#allocation3 + $0x60] sm:$0xff]
        %v8130 = vld [vmem:[#allocation3 + $0x68] sm:$0xff]
        %v8131 = vld [vmem:[#allocation3 + $0x70] sm:$0xff]
        %v8132 = vld [vmem:[#allocation3 + $0x78] sm:$0xff]
        %v8133 = vld [vmem:[#allocation3 + $0x80] sm:$0xff]
        %v8134 = vld [vmem:[#allocation3 + $0x88] sm:$0xff]
        %v8135 = vld [vmem:[#allocation3 + $0x90] sm:$0xff]
        %v8136 = vld [vmem:[#allocation3 + $0x98] sm:$0xff]
        %v8137 = vld [vmem:[#allocation3 + $0xa0] sm:$0xff]
        %v8138 = vld [vmem:[#allocation3 + $0xa8] sm:$0xff]
        %v8139 = vld [vmem:[#allocation3 + $0xb0] sm:$0xff]
        %v8140 = vld [vmem:[#allocation3 + $0xb8] sm:$0xff]
        %v8141 = vld [vmem:[#allocation3 + $0xc0] sm:$0xff]
        %v8142 = vld [vmem:[#allocation3 + $0xc8] sm:$0xff]
        %v8143 = vld [vmem:[#allocation3 + $0xd0] sm:$0xff]
        %v8144 = vld [vmem:[#allocation3 + $0xd8] sm:$0xff]
        %v8145 = vld [vmem:[#allocation3 + $0xe0] sm:$0xff]
        %v8146 = vld [vmem:[#allocation3 + $0xe8] sm:$0xff]
        %v8147 = vld [vmem:[#allocation3 + $0xf0] sm:$0xff]
        %v8148 = vld [vmem:[#allocation3 + $0xf8] sm:$0xff]
        %v8149 = vld [vmem:[#allocation4] sm:$0x1]
        %v8151 = vlaneseq
        %v8152 = vshrl.u32 %v8151, 7
        %v8153 = vsub.s32 0, %v8152
        %v8154 = vrot.slane %v8149, %v8153
        %8155 = vset.pattern.permute.xlu0 0
        %8156 = vperm.xlu0 %8155, %v8154
        %v8157 = vpop.permute.xlu0 %8156
        %vm8159 = vcmask 130048
        %v8161 = vsel %vm8159, %v8115, 0
        %v8164 = vsel %vm8159, %v8116, 0
        %8166 = vmatprep.subr.mxu0 0.0
        %8167 = vmatpush1.msra.mxu0 0.0
        %8168 = vmatprep.subr.mxu0 0.0
        %8169 = vmatpush1.msra.mxu0 0.0
        %8170 = vmatprep.subr.mxu0 0.0
        %8171 = vmatpush1.msra.mxu0 0.0
        %8172 = vmatprep.subr.mxu0 0.0
        %8173 = vmatpush1.msra.mxu0 0.0
        %8174 = vmatprep.subr.mxu0 0.0
        %8175 = vmatpush1.msra.mxu0 0.0
        %8176 = vmatprep.subr.mxu0 0.0
        %8177 = vmatpush1.msra.mxu0 0.0
        %8178 = vmatprep.subr.mxu0 0.0
        %8179 = vmatpush1.msra.mxu0 0.0
        %8180 = vmatprep.subr.mxu0 0.0
        %8181 = vmatpush1.msra.mxu0 0.0
        %8182 = vmatprep.subr.mxu0 0.0
        %8183 = vmatpush1.msra.mxu0 0.0
        %8184 = vmatprep.subr.mxu0 0.0
        %8185 = vmatpush1.msra.mxu0 0.0
        %8186 = vmatprep.subr.mxu0 0.0
        %8187 = vmatpush1.msra.mxu0 0.0
        %8188 = vmatprep.subr.mxu0 0.0
        %8189 = vmatpush1.msra.mxu0 0.0
        %8190 = vmatprep.subr.mxu0 0.0
        %8191 = vmatpush1.msra.mxu0 0.0
        %8192 = vmatprep.subr.mxu0 0.0
        %8193 = vmatpush1.msra.mxu0 0.0
        %8194 = vmatprep.subr.mxu0 %v8134
        %8195 = vmatpush1.msra.mxu0 %v8133
        %8196 = vmatprep.subr.mxu0 %v8118
        %8197 = vmatpush1.msra.mxu0 %v8117
        %8198 = vmatprep.subr.mxu0 0.0
        %8199 = vmatpush2.msra.mxu0 0.0
        %8200 = vmatprep.subr.mxu0 0.0
        %8201 = vmatpush2.msra.mxu0 0.0
        %8202 = vmatprep.subr.mxu0 0.0
        %8203 = vmatpush2.msra.mxu0 0.0
        %8204 = vmatprep.subr.mxu0 0.0
        %8205 = vmatpush2.msra.mxu0 0.0
        %8206 = vmatprep.subr.mxu0 0.0
        %8207 = vmatpush2.msra.mxu0 0.0
        %8208 = vmatprep.subr.mxu0 0.0
        %8209 = vmatpush2.msra.mxu0 0.0
        %8210 = vmatprep.subr.mxu0 0.0
        %8211 = vmatpush2.msra.mxu0 0.0
        %8212 = vmatprep.subr.mxu0 0.0
        %8213 = vmatpush2.msra.mxu0 0.0
        %8214 = vmatprep.subr.mxu0 0.0
        %8215 = vmatpush2.msra.mxu0 0.0
        %8216 = vmatprep.subr.mxu0 0.0
        %8217 = vmatpush2.msra.mxu0 0.0
        %8218 = vmatprep.subr.mxu0 0.0
        %8219 = vmatpush2.msra.mxu0 0.0
        %8220 = vmatprep.subr.mxu0 0.0
        %8221 = vmatpush2.msra.mxu0 0.0
        %8222 = vmatprep.subr.mxu0 0.0
        %8223 = vmatpush2.msra.mxu0 0.0
        %8224 = vmatprep.subr.mxu0 0.0
        %8225 = vmatpush2.msra.mxu0 0.0
        %8226 = vmatprep.subr.mxu0 0.0
        %8227 = vmatpush2.msra.mxu0 0.0
        %8228 = vmatprep.subr.mxu0 0.0
        %8229 = vmatpush2.msra.mxu0 0.0
        %8230 = vmatprep.mubr.f32.mxu0 0.0
        %8231 = vmatmul.mubr.f32.gmra.mxu0 %v8161
        %v8232 = vpop.f32.mrf.mxu0
        %v8233 = vadd.f32 %v8157, %v8232
        %v8234 = vpop.f32.mrf.mxu0
        %v8235 = vadd.f32 %v8157, %v8234
        %8236 = vmatprep.mubr.f32.mxu0 0.0
        %8237 = vmatmul.mubr.f32.gmra.mxu0 %v8164
        %v8238 = vpop.f32.mrf.mxu0
        %v8239 = vadd.f32 %v8157, %v8238
        %v8240 = vpop.f32.mrf.mxu0
        %v8241 = vadd.f32 %v8157, %v8240
        %8242 = vdwg.mxu0
        %8243 = vmatprep.subr.mxu0 0.0
        %8244 = vmatpush1.msra.mxu0 0.0
        %8245 = vmatprep.subr.mxu0 0.0
        %8246 = vmatpush1.msra.mxu0 0.0
        %8247 = vmatprep.subr.mxu0 0.0
        %8248 = vmatpush1.msra.mxu0 0.0
        %8249 = vmatprep.subr.mxu0 0.0
        %8250 = vmatpush1.msra.mxu0 0.0
        %8251 = vmatprep.subr.mxu0 0.0
        %8252 = vmatpush1.msra.mxu0 0.0
        %8253 = vmatprep.subr.mxu0 0.0
        %8254 = vmatpush1.msra.mxu0 0.0
        %8255 = vmatprep.subr.mxu0 0.0
        %8256 = vmatpush1.msra.mxu0 0.0
        %8257 = vmatprep.subr.mxu0 0.0
        %8258 = vmatpush1.msra.mxu0 0.0
        %8259 = vmatprep.subr.mxu0 0.0
        %8260 = vmatpush1.msra.mxu0 0.0
        %8261 = vmatprep.subr.mxu0 0.0
        %8262 = vmatpush1.msra.mxu0 0.0
        %8263 = vmatprep.subr.mxu0 0.0
        %8264 = vmatpush1.msra.mxu0 0.0
        %8265 = vmatprep.subr.mxu0 0.0
        %8266 = vmatpush1.msra.mxu0 0.0
        %8267 = vmatprep.subr.mxu0 0.0
        %8268 = vmatpush1.msra.mxu0 0.0
        %8269 = vmatprep.subr.mxu0 0.0
        %8270 = vmatpush1.msra.mxu0 0.0
        %8271 = vmatprep.subr.mxu0 %v8136
        %8272 = vmatpush1.msra.mxu0 %v8135
        %8273 = vmatprep.subr.mxu0 %v8120
        %8274 = vmatpush1.msra.mxu0 %v8119
        %8275 = vmatprep.subr.mxu0 0.0
        %8276 = vmatpush2.msra.mxu0 0.0
        %8277 = vmatprep.subr.mxu0 0.0
        %8278 = vmatpush2.msra.mxu0 0.0
        %8279 = vmatprep.subr.mxu0 0.0
        %8280 = vmatpush2.msra.mxu0 0.0
        %8281 = vmatprep.subr.mxu0 0.0
        %8282 = vmatpush2.msra.mxu0 0.0
        %8283 = vmatprep.subr.mxu0 0.0
        %8284 = vmatpush2.msra.mxu0 0.0
        %8285 = vmatprep.subr.mxu0 0.0
        %8286 = vmatpush2.msra.mxu0 0.0
        %8287 = vmatprep.subr.mxu0 0.0
        %8288 = vmatpush2.msra.mxu0 0.0
        %8289 = vmatprep.subr.mxu0 0.0
        %8290 = vmatpush2.msra.mxu0 0.0
        %8291 = vmatprep.subr.mxu0 0.0
        %8292 = vmatpush2.msra.mxu0 0.0
        %8293 = vmatprep.subr.mxu0 0.0
        %8294 = vmatpush2.msra.mxu0 0.0
        %8295 = vmatprep.subr.mxu0 0.0
        %8296 = vmatpush2.msra.mxu0 0.0
        %8297 = vmatprep.subr.mxu0 0.0
        %8298 = vmatpush2.msra.mxu0 0.0
        %8299 = vmatprep.subr.mxu0 0.0
        %8300 = vmatpush2.msra.mxu0 0.0
        %8301 = vmatprep.subr.mxu0 0.0
        %8302 = vmatpush2.msra.mxu0 0.0
        %8303 = vmatprep.subr.mxu0 0.0
        %8304 = vmatpush2.msra.mxu0 0.0
        %8305 = vmatprep.subr.mxu0 0.0
        %8306 = vmatpush2.msra.mxu0 0.0
        %8307 = vmatprep.mubr.f32.mxu0 0.0
        %8308 = vmatmul.mubr.f32.gmra.mxu0 %v8161
        %v8309 = vpop.f32.mrf.mxu0
        %v8310 = vadd.f32 %v8157, %v8309
        %v8311 = vpop.f32.mrf.mxu0
        %v8312 = vadd.f32 %v8157, %v8311
        %8313 = vmatprep.mubr.f32.mxu0 0.0
        %8314 = vmatmul.mubr.f32.gmra.mxu0 %v8164
        %v8315 = vpop.f32.mrf.mxu0
        %v8316 = vadd.f32 %v8157, %v8315
        %v8317 = vpop.f32.mrf.mxu0
        %v8318 = vadd.f32 %v8157, %v8317
        %8319 = vdwg.mxu0
        %8320 = vmatprep.subr.mxu0 0.0
        %8321 = vmatpush1.msra.mxu0 0.0
        %8322 = vmatprep.subr.mxu0 0.0
        %8323 = vmatpush1.msra.mxu0 0.0
        %8324 = vmatprep.subr.mxu0 0.0
        %8325 = vmatpush1.msra.mxu0 0.0
        %8326 = vmatprep.subr.mxu0 0.0
        %8327 = vmatpush1.msra.mxu0 0.0
        %8328 = vmatprep.subr.mxu0 0.0
        %8329 = vmatpush1.msra.mxu0 0.0
        %8330 = vmatprep.subr.mxu0 0.0
        %8331 = vmatpush1.msra.mxu0 0.0
        %8332 = vmatprep.subr.mxu0 0.0
        %8333 = vmatpush1.msra.mxu0 0.0
        %8334 = vmatprep.subr.mxu0 0.0
        %8335 = vmatpush1.msra.mxu0 0.0
        %8336 = vmatprep.subr.mxu0 0.0
        %8337 = vmatpush1.msra.mxu0 0.0
        %8338 = vmatprep.subr.mxu0 0.0
        %8339 = vmatpush1.msra.mxu0 0.0
        %8340 = vmatprep.subr.mxu0 0.0
        %8341 = vmatpush1.msra.mxu0 0.0
        %8342 = vmatprep.subr.mxu0 0.0
        %8343 = vmatpush1.msra.mxu0 0.0
        %8344 = vmatprep.subr.mxu0 0.0
        %8345 = vmatpush1.msra.mxu0 0.0
        %8346 = vmatprep.subr.mxu0 0.0
        %8347 = vmatpush1.msra.mxu0 0.0
        %8348 = vmatprep.subr.mxu0 %v8138
        %8349 = vmatpush1.msra.mxu0 %v8137
        %8350 = vmatprep.subr.mxu0 %v8122
        %8351 = vmatpush1.msra.mxu0 %v8121
        %8352 = vmatprep.subr.mxu0 0.0
        %8353 = vmatpush2.msra.mxu0 0.0
        %8354 = vmatprep.subr.mxu0 0.0
        %8355 = vmatpush2.msra.mxu0 0.0
        %8356 = vmatprep.subr.mxu0 0.0
        %8357 = vmatpush2.msra.mxu0 0.0
        %8358 = vmatprep.subr.mxu0 0.0
        %8359 = vmatpush2.msra.mxu0 0.0
        %8360 = vmatprep.subr.mxu0 0.0
        %8361 = vmatpush2.msra.mxu0 0.0
        %8362 = vmatprep.subr.mxu0 0.0
        %8363 = vmatpush2.msra.mxu0 0.0
        %8364 = vmatprep.subr.mxu0 0.0
        %8365 = vmatpush2.msra.mxu0 0.0
        %8366 = vmatprep.subr.mxu0 0.0
        %8367 = vmatpush2.msra.mxu0 0.0
        %8368 = vmatprep.subr.mxu0 0.0
        %8369 = vmatpush2.msra.mxu0 0.0
        %8370 = vmatprep.subr.mxu0 0.0
        %8371 = vmatpush2.msra.mxu0 0.0
        %8372 = vmatprep.subr.mxu0 0.0
        %8373 = vmatpush2.msra.mxu0 0.0
        %8374 = vmatprep.subr.mxu0 0.0
        %8375 = vmatpush2.msra.mxu0 0.0
        %8376 = vmatprep.subr.mxu0 0.0
        %8377 = vmatpush2.msra.mxu0 0.0
        %8378 = vmatprep.subr.mxu0 0.0
        %8379 = vmatpush2.msra.mxu0 0.0
        %8380 = vmatprep.subr.mxu0 0.0
        %8381 = vmatpush2.msra.mxu0 0.0
        %8382 = vmatprep.subr.mxu0 0.0
        %8383 = vmatpush2.msra.mxu0 0.0
        %8384 = vmatprep.mubr.f32.mxu0 0.0
        %8385 = vmatmul.mubr.f32.gmra.mxu0 %v8161
        %v8386 = vpop.f32.mrf.mxu0
        %v8387 = vadd.f32 %v8157, %v8386
        %v8388 = vpop.f32.mrf.mxu0
        %v8389 = vadd.f32 %v8157, %v8388
        %8390 = vmatprep.mubr.f32.mxu0 0.0
        %8391 = vmatmul.mubr.f32.gmra.mxu0 %v8164
        %v8392 = vpop.f32.mrf.mxu0
        %v8393 = vadd.f32 %v8157, %v8392
        %v8394 = vpop.f32.mrf.mxu0
        %v8395 = vadd.f32 %v8157, %v8394
        %8396 = vdwg.mxu0
        %8397 = vmatprep.subr.mxu0 0.0
        %8398 = vmatpush1.msra.mxu0 0.0
        %8399 = vmatprep.subr.mxu0 0.0
        %8400 = vmatpush1.msra.mxu0 0.0
        %8401 = vmatprep.subr.mxu0 0.0
        %8402 = vmatpush1.msra.mxu0 0.0
        %8403 = vmatprep.subr.mxu0 0.0
        %8404 = vmatpush1.msra.mxu0 0.0
        %8405 = vmatprep.subr.mxu0 0.0
        %8406 = vmatpush1.msra.mxu0 0.0
        %8407 = vmatprep.subr.mxu0 0.0
        %8408 = vmatpush1.msra.mxu0 0.0
        %8409 = vmatprep.subr.mxu0 0.0
        %8410 = vmatpush1.msra.mxu0 0.0
        %8411 = vmatprep.subr.mxu0 0.0
        %8412 = vmatpush1.msra.mxu0 0.0
        %8413 = vmatprep.subr.mxu0 0.0
        %8414 = vmatpush1.msra.mxu0 0.0
        %8415 = vmatprep.subr.mxu0 0.0
        %8416 = vmatpush1.msra.mxu0 0.0
        %8417 = vmatprep.subr.mxu0 0.0
        %8418 = vmatpush1.msra.mxu0 0.0
        %8419 = vmatprep.subr.mxu0 0.0
        %8420 = vmatpush1.msra.mxu0 0.0
        %8421 = vmatprep.subr.mxu0 0.0
        %8422 = vmatpush1.msra.mxu0 0.0
        %8423 = vmatprep.subr.mxu0 0.0
        %8424 = vmatpush1.msra.mxu0 0.0
        %8425 = vmatprep.subr.mxu0 %v8140
        %8426 = vmatpush1.msra.mxu0 %v8139
        %8427 = vmatprep.subr.mxu0 %v8124
        %8428 = vmatpush1.msra.mxu0 %v8123
        %8429 = vmatprep.subr.mxu0 0.0
        %8430 = vmatpush2.msra.mxu0 0.0
        %8431 = vmatprep.subr.mxu0 0.0
        %8432 = vmatpush2.msra.mxu0 0.0
        %8433 = vmatprep.subr.mxu0 0.0
        %8434 = vmatpush2.msra.mxu0 0.0
        %8435 = vmatprep.subr.mxu0 0.0
        %8436 = vmatpush2.msra.mxu0 0.0
        %8437 = vmatprep.subr.mxu0 0.0
        %8438 = vmatpush2.msra.mxu0 0.0
        %8439 = vmatprep.subr.mxu0 0.0
        %8440 = vmatpush2.msra.mxu0 0.0
        %8441 = vmatprep.subr.mxu0 0.0
        %8442 = vmatpush2.msra.mxu0 0.0
        %8443 = vmatprep.subr.mxu0 0.0
        %8444 = vmatpush2.msra.mxu0 0.0
        %8445 = vmatprep.subr.mxu0 0.0
        %8446 = vmatpush2.msra.mxu0 0.0
        %8447 = vmatprep.subr.mxu0 0.0
        %8448 = vmatpush2.msra.mxu0 0.0
        %8449 = vmatprep.subr.mxu0 0.0
        %8450 = vmatpush2.msra.mxu0 0.0
        %8451 = vmatprep.subr.mxu0 0.0
        %8452 = vmatpush2.msra.mxu0 0.0
        %8453 = vmatprep.subr.mxu0 0.0
        %8454 = vmatpush2.msra.mxu0 0.0
        %8455 = vmatprep.subr.mxu0 0.0
        %8456 = vmatpush2.msra.mxu0 0.0
        %8457 = vmatprep.subr.mxu0 0.0
        %8458 = vmatpush2.msra.mxu0 0.0
        %8459 = vmatprep.subr.mxu0 0.0
        %8460 = vmatpush2.msra.mxu0 0.0
        %8461 = vmatprep.mubr.f32.mxu0 0.0
        %8462 = vmatmul.mubr.f32.gmra.mxu0 %v8161
        %v8463 = vpop.f32.mrf.mxu0
        %v8464 = vadd.f32 %v8157, %v8463
        %v8465 = vpop.f32.mrf.mxu0
        %v8466 = vadd.f32 %v8157, %v8465
        %8467 = vmatprep.mubr.f32.mxu0 0.0
        %8468 = vmatmul.mubr.f32.gmra.mxu0 %v8164
        %v8469 = vpop.f32.mrf.mxu0
        %v8470 = vadd.f32 %v8157, %v8469
        %v8471 = vpop.f32.mrf.mxu0
        %v8472 = vadd.f32 %v8157, %v8471
        %8473 = vdwg.mxu0
        %8474 = vmatprep.subr.mxu0 0.0
        %8475 = vmatpush1.msra.mxu0 0.0
        %8476 = vmatprep.subr.mxu0 0.0
        %8477 = vmatpush1.msra.mxu0 0.0
        %8478 = vmatprep.subr.mxu0 0.0
        %8479 = vmatpush1.msra.mxu0 0.0
        %8480 = vmatprep.subr.mxu0 0.0
        %8481 = vmatpush1.msra.mxu0 0.0
        %8482 = vmatprep.subr.mxu0 0.0
        %8483 = vmatpush1.msra.mxu0 0.0
        %8484 = vmatprep.subr.mxu0 0.0
        %8485 = vmatpush1.msra.mxu0 0.0
        %8486 = vmatprep.subr.mxu0 0.0
        %8487 = vmatpush1.msra.mxu0 0.0
        %8488 = vmatprep.subr.mxu0 0.0
        %8489 = vmatpush1.msra.mxu0 0.0
        %8490 = vmatprep.subr.mxu0 0.0
        %8491 = vmatpush1.msra.mxu0 0.0
        %8492 = vmatprep.subr.mxu0 0.0
        %8493 = vmatpush1.msra.mxu0 0.0
        %8494 = vmatprep.subr.mxu0 0.0
        %8495 = vmatpush1.msra.mxu0 0.0
        %8496 = vmatprep.subr.mxu0 0.0
        %8497 = vmatpush1.msra.mxu0 0.0
        %8498 = vmatprep.subr.mxu0 0.0
        %8499 = vmatpush1.msra.mxu0 0.0
        %8500 = vmatprep.subr.mxu0 0.0
        %8501 = vmatpush1.msra.mxu0 0.0
        %8502 = vmatprep.subr.mxu0 %v8142
        %8503 = vmatpush1.msra.mxu0 %v8141
        %8504 = vmatprep.subr.mxu0 %v8126
        %8505 = vmatpush1.msra.mxu0 %v8125
        %8506 = vmatprep.subr.mxu0 0.0
        %8507 = vmatpush2.msra.mxu0 0.0
        %8508 = vmatprep.subr.mxu0 0.0
        %8509 = vmatpush2.msra.mxu0 0.0
        %8510 = vmatprep.subr.mxu0 0.0
        %8511 = vmatpush2.msra.mxu0 0.0
        %8512 = vmatprep.subr.mxu0 0.0
        %8513 = vmatpush2.msra.mxu0 0.0
        %8514 = vmatprep.subr.mxu0 0.0
        %8515 = vmatpush2.msra.mxu0 0.0
        %8516 = vmatprep.subr.mxu0 0.0
        %8517 = vmatpush2.msra.mxu0 0.0
        %8518 = vmatprep.subr.mxu0 0.0
        %8519 = vmatpush2.msra.mxu0 0.0
        %8520 = vmatprep.subr.mxu0 0.0
        %8521 = vmatpush2.msra.mxu0 0.0
        %8522 = vmatprep.subr.mxu0 0.0
        %8523 = vmatpush2.msra.mxu0 0.0
        %8524 = vmatprep.subr.mxu0 0.0
        %8525 = vmatpush2.msra.mxu0 0.0
        %8526 = vmatprep.subr.mxu0 0.0
        %8527 = vmatpush2.msra.mxu0 0.0
        %8528 = vmatprep.subr.mxu0 0.0
        %8529 = vmatpush2.msra.mxu0 0.0
        %8530 = vmatprep.subr.mxu0 0.0
        %8531 = vmatpush2.msra.mxu0 0.0
        %8532 = vmatprep.subr.mxu0 0.0
        %8533 = vmatpush2.msra.mxu0 0.0
        %8534 = vmatprep.subr.mxu0 0.0
        %8535 = vmatpush2.msra.mxu0 0.0
        %8536 = vmatprep.subr.mxu0 0.0
        %8537 = vmatpush2.msra.mxu0 0.0
        %8538 = vmatprep.mubr.f32.mxu0 0.0
        %8539 = vmatmul.mubr.f32.gmra.mxu0 %v8161
        %v8540 = vpop.f32.mrf.mxu0
        %v8541 = vadd.f32 %v8157, %v8540
        %v8542 = vpop.f32.mrf.mxu0
        %v8543 = vadd.f32 %v8157, %v8542
        %8544 = vmatprep.mubr.f32.mxu0 0.0
        %8545 = vmatmul.mubr.f32.gmra.mxu0 %v8164
        %v8546 = vpop.f32.mrf.mxu0
        %v8547 = vadd.f32 %v8157, %v8546
        %v8548 = vpop.f32.mrf.mxu0
        %v8549 = vadd.f32 %v8157, %v8548
        %8550 = vdwg.mxu0
        %8551 = vmatprep.subr.mxu0 0.0
        %8552 = vmatpush1.msra.mxu0 0.0
        %8553 = vmatprep.subr.mxu0 0.0
        %8554 = vmatpush1.msra.mxu0 0.0
        %8555 = vmatprep.subr.mxu0 0.0
        %8556 = vmatpush1.msra.mxu0 0.0
        %8557 = vmatprep.subr.mxu0 0.0
        %8558 = vmatpush1.msra.mxu0 0.0
        %8559 = vmatprep.subr.mxu0 0.0
        %8560 = vmatpush1.msra.mxu0 0.0
        %8561 = vmatprep.subr.mxu0 0.0
        %8562 = vmatpush1.msra.mxu0 0.0
        %8563 = vmatprep.subr.mxu0 0.0
        %8564 = vmatpush1.msra.mxu0 0.0
        %8565 = vmatprep.subr.mxu0 0.0
        %8566 = vmatpush1.msra.mxu0 0.0
        %8567 = vmatprep.subr.mxu0 0.0
        %8568 = vmatpush1.msra.mxu0 0.0
        %8569 = vmatprep.subr.mxu0 0.0
        %8570 = vmatpush1.msra.mxu0 0.0
        %8571 = vmatprep.subr.mxu0 0.0
        %8572 = vmatpush1.msra.mxu0 0.0
        %8573 = vmatprep.subr.mxu0 0.0
        %8574 = vmatpush1.msra.mxu0 0.0
        %8575 = vmatprep.subr.mxu0 0.0
        %8576 = vmatpush1.msra.mxu0 0.0
        %8577 = vmatprep.subr.mxu0 0.0
        %8578 = vmatpush1.msra.mxu0 0.0
        %8579 = vmatprep.subr.mxu0 %v8144
        %8580 = vmatpush1.msra.mxu0 %v8143
        %8581 = vmatprep.subr.mxu0 %v8128
        %8582 = vmatpush1.msra.mxu0 %v8127
        %8583 = vmatprep.subr.mxu0 0.0
        %8584 = vmatpush2.msra.mxu0 0.0
        %8585 = vmatprep.subr.mxu0 0.0
        %8586 = vmatpush2.msra.mxu0 0.0
        %8587 = vmatprep.subr.mxu0 0.0
        %8588 = vmatpush2.msra.mxu0 0.0
        %8589 = vmatprep.subr.mxu0 0.0
        %8590 = vmatpush2.msra.mxu0 0.0
        %8591 = vmatprep.subr.mxu0 0.0
        %8592 = vmatpush2.msra.mxu0 0.0
        %8593 = vmatprep.subr.mxu0 0.0
        %8594 = vmatpush2.msra.mxu0 0.0
        %8595 = vmatprep.subr.mxu0 0.0
        %8596 = vmatpush2.msra.mxu0 0.0
        %8597 = vmatprep.subr.mxu0 0.0
        %8598 = vmatpush2.msra.mxu0 0.0
        %8599 = vmatprep.subr.mxu0 0.0
        %8600 = vmatpush2.msra.mxu0 0.0
        %8601 = vmatprep.subr.mxu0 0.0
        %8602 = vmatpush2.msra.mxu0 0.0
        %8603 = vmatprep.subr.mxu0 0.0
        %8604 = vmatpush2.msra.mxu0 0.0
        %8605 = vmatprep.subr.mxu0 0.0
        %8606 = vmatpush2.msra.mxu0 0.0
        %8607 = vmatprep.subr.mxu0 0.0
        %8608 = vmatpush2.msra.mxu0 0.0
        %8609 = vmatprep.subr.mxu0 0.0
        %8610 = vmatpush2.msra.mxu0 0.0
        %8611 = vmatprep.subr.mxu0 0.0
        %8612 = vmatpush2.msra.mxu0 0.0
        %8613 = vmatprep.subr.mxu0 0.0
        %8614 = vmatpush2.msra.mxu0 0.0
        %8615 = vmatprep.mubr.f32.mxu0 0.0
        %8616 = vmatmul.mubr.f32.gmra.mxu0 %v8161
        %v8617 = vpop.f32.mrf.mxu0
        %v8618 = vadd.f32 %v8157, %v8617
        %v8619 = vpop.f32.mrf.mxu0
        %v8620 = vadd.f32 %v8157, %v8619
        %8621 = vmatprep.mubr.f32.mxu0 0.0
        %8622 = vmatmul.mubr.f32.gmra.mxu0 %v8164
        %v8623 = vpop.f32.mrf.mxu0
        %v8624 = vadd.f32 %v8157, %v8623
        %v8625 = vpop.f32.mrf.mxu0
        %v8626 = vadd.f32 %v8157, %v8625
        %8627 = vdwg.mxu0
        %8628 = vmatprep.subr.mxu0 0.0
        %8629 = vmatpush1.msra.mxu0 0.0
        %8630 = vmatprep.subr.mxu0 0.0
        %8631 = vmatpush1.msra.mxu0 0.0
        %8632 = vmatprep.subr.mxu0 0.0
        %8633 = vmatpush1.msra.mxu0 0.0
        %8634 = vmatprep.subr.mxu0 0.0
        %8635 = vmatpush1.msra.mxu0 0.0
        %8636 = vmatprep.subr.mxu0 0.0
        %8637 = vmatpush1.msra.mxu0 0.0
        %8638 = vmatprep.subr.mxu0 0.0
        %8639 = vmatpush1.msra.mxu0 0.0
        %8640 = vmatprep.subr.mxu0 0.0
        %8641 = vmatpush1.msra.mxu0 0.0
        %8642 = vmatprep.subr.mxu0 0.0
        %8643 = vmatpush1.msra.mxu0 0.0
        %8644 = vmatprep.subr.mxu0 0.0
        %8645 = vmatpush1.msra.mxu0 0.0
        %8646 = vmatprep.subr.mxu0 0.0
        %8647 = vmatpush1.msra.mxu0 0.0
        %8648 = vmatprep.subr.mxu0 0.0
        %8649 = vmatpush1.msra.mxu0 0.0
        %8650 = vmatprep.subr.mxu0 0.0
        %8651 = vmatpush1.msra.mxu0 0.0
        %8652 = vmatprep.subr.mxu0 0.0
        %8653 = vmatpush1.msra.mxu0 0.0
        %8654 = vmatprep.subr.mxu0 0.0
        %8655 = vmatpush1.msra.mxu0 0.0
        %8656 = vmatprep.subr.mxu0 %v8146
        %8657 = vmatpush1.msra.mxu0 %v8145
        %8658 = vmatprep.subr.mxu0 %v8130
        %8659 = vmatpush1.msra.mxu0 %v8129
        %8660 = vmatprep.subr.mxu0 0.0
        %8661 = vmatpush2.msra.mxu0 0.0
        %8662 = vmatprep.subr.mxu0 0.0
        %8663 = vmatpush2.msra.mxu0 0.0
        %8664 = vmatprep.subr.mxu0 0.0
        %8665 = vmatpush2.msra.mxu0 0.0
        %8666 = vmatprep.subr.mxu0 0.0
        %8667 = vmatpush2.msra.mxu0 0.0
        %8668 = vmatprep.subr.mxu0 0.0
        %8669 = vmatpush2.msra.mxu0 0.0
        %8670 = vmatprep.subr.mxu0 0.0
        %8671 = vmatpush2.msra.mxu0 0.0
        %8672 = vmatprep.subr.mxu0 0.0
        %8673 = vmatpush2.msra.mxu0 0.0
        %8674 = vmatprep.subr.mxu0 0.0
        %8675 = vmatpush2.msra.mxu0 0.0
        %8676 = vmatprep.subr.mxu0 0.0
        %8677 = vmatpush2.msra.mxu0 0.0
        %8678 = vmatprep.subr.mxu0 0.0
        %8679 = vmatpush2.msra.mxu0 0.0
        %8680 = vmatprep.subr.mxu0 0.0
        %8681 = vmatpush2.msra.mxu0 0.0
        %8682 = vmatprep.subr.mxu0 0.0
        %8683 = vmatpush2.msra.mxu0 0.0
        %8684 = vmatprep.subr.mxu0 0.0
        %8685 = vmatpush2.msra.mxu0 0.0
        %8686 = vmatprep.subr.mxu0 0.0
        %8687 = vmatpush2.msra.mxu0 0.0
        %8688 = vmatprep.subr.mxu0 0.0
        %8689 = vmatpush2.msra.mxu0 0.0
        %8690 = vmatprep.subr.mxu0 0.0
        %8691 = vmatpush2.msra.mxu0 0.0
        %8692 = vmatprep.mubr.f32.mxu0 0.0
        %8693 = vmatmul.mubr.f32.gmra.mxu0 %v8161
        %v8694 = vpop.f32.mrf.mxu0
        %v8695 = vadd.f32 %v8157, %v8694
        %v8696 = vpop.f32.mrf.mxu0
        %v8697 = vadd.f32 %v8157, %v8696
        %8698 = vmatprep.mubr.f32.mxu0 0.0
        %8699 = vmatmul.mubr.f32.gmra.mxu0 %v8164
        %v8700 = vpop.f32.mrf.mxu0
        %v8701 = vadd.f32 %v8157, %v8700
        %v8702 = vpop.f32.mrf.mxu0
        %v8703 = vadd.f32 %v8157, %v8702
        %8704 = vdwg.mxu0
        %8705 = vmatprep.subr.mxu0 0.0
        %8706 = vmatpush1.msra.mxu0 0.0
        %8707 = vmatprep.subr.mxu0 0.0
        %8708 = vmatpush1.msra.mxu0 0.0
        %8709 = vmatprep.subr.mxu0 0.0
        %8710 = vmatpush1.msra.mxu0 0.0
        %8711 = vmatprep.subr.mxu0 0.0
        %8712 = vmatpush1.msra.mxu0 0.0
        %8713 = vmatprep.subr.mxu0 0.0
        %8714 = vmatpush1.msra.mxu0 0.0
        %8715 = vmatprep.subr.mxu0 0.0
        %8716 = vmatpush1.msra.mxu0 0.0
        %8717 = vmatprep.subr.mxu0 0.0
        %8718 = vmatpush1.msra.mxu0 0.0
        %8719 = vmatprep.subr.mxu0 0.0
        %8720 = vmatpush1.msra.mxu0 0.0
        %8721 = vmatprep.subr.mxu0 0.0
        %8722 = vmatpush1.msra.mxu0 0.0
        %8723 = vmatprep.subr.mxu0 0.0
        %8724 = vmatpush1.msra.mxu0 0.0
        %8725 = vmatprep.subr.mxu0 0.0
        %8726 = vmatpush1.msra.mxu0 0.0
        %8727 = vmatprep.subr.mxu0 0.0
        %8728 = vmatpush1.msra.mxu0 0.0
        %8729 = vmatprep.subr.mxu0 0.0
        %8730 = vmatpush1.msra.mxu0 0.0
        %8731 = vmatprep.subr.mxu0 0.0
        %8732 = vmatpush1.msra.mxu0 0.0
        %8733 = vmatprep.subr.mxu0 %v8148
        %8734 = vmatpush1.msra.mxu0 %v8147
        %8735 = vmatprep.subr.mxu0 %v8132
        %8736 = vmatpush1.msra.mxu0 %v8131
        %8737 = vmatprep.subr.mxu0 0.0
        %8738 = vmatpush2.msra.mxu0 0.0
        %8739 = vmatprep.subr.mxu0 0.0
        %8740 = vmatpush2.msra.mxu0 0.0
        %8741 = vmatprep.subr.mxu0 0.0
        %8742 = vmatpush2.msra.mxu0 0.0
        %8743 = vmatprep.subr.mxu0 0.0
        %8744 = vmatpush2.msra.mxu0 0.0
        %8745 = vmatprep.subr.mxu0 0.0
        %8746 = vmatpush2.msra.mxu0 0.0
        %8747 = vmatprep.subr.mxu0 0.0
        %8748 = vmatpush2.msra.mxu0 0.0
        %8749 = vmatprep.subr.mxu0 0.0
        %8750 = vmatpush2.msra.mxu0 0.0
        %8751 = vmatprep.subr.mxu0 0.0
        %8752 = vmatpush2.msra.mxu0 0.0
        %8753 = vmatprep.subr.mxu0 0.0
        %8754 = vmatpush2.msra.mxu0 0.0
        %8755 = vmatprep.subr.mxu0 0.0
        %8756 = vmatpush2.msra.mxu0 0.0
        %8757 = vmatprep.subr.mxu0 0.0
        %8758 = vmatpush2.msra.mxu0 0.0
        %8759 = vmatprep.subr.mxu0 0.0
        %8760 = vmatpush2.msra.mxu0 0.0
        %8761 = vmatprep.subr.mxu0 0.0
        %8762 = vmatpush2.msra.mxu0 0.0
        %8763 = vmatprep.subr.mxu0 0.0
        %8764 = vmatpush2.msra.mxu0 0.0
        %8765 = vmatprep.subr.mxu0 0.0
        %8766 = vmatpush2.msra.mxu0 0.0
        %8767 = vmatprep.subr.mxu0 0.0
        %8768 = vmatpush2.msra.mxu0 0.0
        %8769 = vmatprep.mubr.f32.mxu0 0.0
        %8770 = vmatmul.mubr.f32.gmra.mxu0 %v8161
        %v8771 = vpop.f32.mrf.mxu0
        %v8772 = vadd.f32 %v8157, %v8771
        %v8773 = vpop.f32.mrf.mxu0
        %v8774 = vadd.f32 %v8157, %v8773
        %8775 = vmatprep.mubr.f32.mxu0 0.0
        %8776 = vmatmul.mubr.f32.gmra.mxu0 %v8164
        %v8777 = vpop.f32.mrf.mxu0
        %v8778 = vadd.f32 %v8157, %v8777
        %v8779 = vpop.f32.mrf.mxu0
        %v8780 = vadd.f32 %v8157, %v8779
        %8781 = vdwg.mxu0
        %v8782 = vtanh.pop %v8233
        %v8783 = vtanh.pop %v8235
        %v8784 = vtanh.pop %v8310
        %v8785 = vtanh.pop %v8312
        %v8786 = vtanh.pop %v8387
        %v8787 = vtanh.pop %v8389
        %v8788 = vtanh.pop %v8464
        %v8789 = vtanh.pop %v8466
        %v8790 = vtanh.pop %v8541
        %v8791 = vtanh.pop %v8543
        %v8792 = vtanh.pop %v8618
        %v8793 = vtanh.pop %v8620
        %v8794 = vtanh.pop %v8695
        %v8795 = vtanh.pop %v8697
        %v8796 = vtanh.pop %v8772
        %v8797 = vtanh.pop %v8774
        %v8798 = vtanh.pop %v8239
        %v8799 = vtanh.pop %v8241
        %v8800 = vtanh.pop %v8316
        %v8801 = vtanh.pop %v8318
        %v8802 = vtanh.pop %v8393
        %v8803 = vtanh.pop %v8395
        %v8804 = vtanh.pop %v8470
        %v8805 = vtanh.pop %v8472
        %v8806 = vtanh.pop %v8547
        %v8807 = vtanh.pop %v8549
        %v8808 = vtanh.pop %v8624
        %v8809 = vtanh.pop %v8626
        %v8810 = vtanh.pop %v8701
        %v8811 = vtanh.pop %v8703
        %v8812 = vtanh.pop %v8778
        %v8813 = vtanh.pop %v8780
        %8814 = vst [vmem:[%s390] sm:$0xff] %v8782
        %8815 = vst [vmem:[%s390 + $0x8] sm:$0xff] %v8783
        %8816 = vst [vmem:[%s390 + $0x10] sm:$0xff] %v8784
        %8817 = vst [vmem:[%s390 + $0x18] sm:$0xff] %v8785
        %8818 = vst [vmem:[%s390 + $0x20] sm:$0xff] %v8786
        %8819 = vst [vmem:[%s390 + $0x28] sm:$0xff] %v8787
        %8820 = vst [vmem:[%s390 + $0x30] sm:$0xff] %v8788
        %8821 = vst [vmem:[%s390 + $0x38] sm:$0xff] %v8789
        %8822 = vst [vmem:[%s390 + $0x40] sm:$0xff] %v8790
        %8823 = vst [vmem:[%s390 + $0x48] sm:$0xff] %v8791
        %8824 = vst [vmem:[%s390 + $0x50] sm:$0xff] %v8792
        %8825 = vst [vmem:[%s390 + $0x58] sm:$0xff] %v8793
        %8826 = vst [vmem:[%s390 + $0x60] sm:$0xff] %v8794
        %8827 = vst [vmem:[%s390 + $0x68] sm:$0xff] %v8795
        %8828 = vst [vmem:[%s390 + $0x70] sm:$0xff] %v8796
        %8829 = vst [vmem:[%s390 + $0x78] sm:$0xff] %v8797
        %8830 = vst [vmem:[%s390 + $0x80] sm:$0xff] %v8798
        %8831 = vst [vmem:[%s390 + $0x88] sm:$0xff] %v8799
        %8832 = vst [vmem:[%s390 + $0x90] sm:$0xff] %v8800
        %8833 = vst [vmem:[%s390 + $0x98] sm:$0xff] %v8801
        %8834 = vst [vmem:[%s390 + $0xa0] sm:$0xff] %v8802
        %8835 = vst [vmem:[%s390 + $0xa8] sm:$0xff] %v8803
        %8836 = vst [vmem:[%s390 + $0xb0] sm:$0xff] %v8804
        %8837 = vst [vmem:[%s390 + $0xb8] sm:$0xff] %v8805
        %8838 = vst [vmem:[%s390 + $0xc0] sm:$0xff] %v8806
        %8839 = vst [vmem:[%s390 + $0xc8] sm:$0xff] %v8807
        %8840 = vst [vmem:[%s390 + $0xd0] sm:$0xff] %v8808
        %8841 = vst [vmem:[%s390 + $0xd8] sm:$0xff] %v8809
        %8842 = vst [vmem:[%s390 + $0xe0] sm:$0xff] %v8810
        %8843 = vst [vmem:[%s390 + $0xe8] sm:$0xff] %v8811
        %8844 = vst [vmem:[%s390 + $0xf0] sm:$0xff] %v8812
        %8845 = vst [vmem:[%s390 + $0xf8] sm:$0xff] %v8813
        %p8846 = scmp.lt.s32.totalorder %s27, 1
        %s8847 = scalar_select %p8846, %s27, 1
        %s8848 = smul.addr %s8847, 32
        %s8849 = smul.addr %s8848, 8
        %s8850 = scalar_lea.vmem %s9, %s8849
        // Predicated region
        $region73: #{decoder_forward.1} parent=55 // pred_check
          %p8851 = pneg %p239
        $region74: #{decoder_forward.1} parent=55 // pred_check_branch
          %8853 = sbr.rel (%p8851) target = $region76
        $region75: #{decoder_forward.1} parent=55 // pred_region
          _
        $region76: #{decoder_forward.1} parent=55 // pred_fallthru
          _
      $region56: #{decoder_forward.1} parent=5 // pred_fallthru
        _
      %p8854 = scmp.le.s32.totalorder 2, %s22
      // Predicated region
      $region77: #{decoder_forward.1} parent=5 // pred_check
        %p8855 = pneg %p8854
      $region78: #{decoder_forward.1} parent=5 // pred_check_branch
        %8857 = sbr.rel (%p8855) target = $region80
      $region79: #{decoder_forward.1} parent=5 // pred_region
        %s8858 = ssub.s32 %s22, 2
        // Predicated region
        $region81: #{decoder_forward.1} parent=79 // pred_check
          %p8859 = pneg %p245
        $region82: #{decoder_forward.1} parent=79 // pred_check_branch
          %8861 = sbr.rel (%p8859) target = $region84
        $region83: #{decoder_forward.1} parent=79 // pred_region
          %p8862 = scmp.lt.s32.totalorder %s28, 1
          %s8863 = scalar_select %p8862, %s28, 1
          %s8864 = smul.addr %s8863, 32
          %s8865 = smul.addr %s8864, 8
          %s8866 = scalar_lea.vmem %s9, %s8865
        $region84: #{decoder_forward.1} parent=79 // pred_fallthru
          _
      $region80: #{decoder_forward.1} parent=5 // pred_fallthru
        _
    $region6: #{decoder_forward.1} parent=1 // loop_footer
      %s26 = sadd.s32 1, %s22
    $region7: #{decoder_forward.1} parent=1 // loop_footer_branch
      %21 = sbr.rel target = $region3
    $region8: #{decoder_forward.1} parent=1 // loop_exit
      _
    %8867 = vsyncpa [#allocation6], 1
    %s8868 = scalar_lea.sflag [#allocation6], 1
    %8869 = vsyncpa %s8868, 1
    %8870 = vsyncpa [#allocation8], 1
    %8871 = vsyncpa [#allocation11], 1

</llo_original>
